<compile_context>
chip_gen: v7x
topology: tpu7x:2x2x1
jax: 0.10.0
libtpu: 0.0.40
codegen_flags: <defaults>
</compile_context>

<pallas_src>
import jax
import jax.numpy as jnp
from jax import lax
from jax.experimental import pallas as pl
from jax.experimental.pallas import tpu as pltpu

# Small, TPU-friendly synthetic sizes.
B = 4            # graphs per batch
N = 64           # nodes per graph
C = 16           # input node-feature dim
DS = 4           # learned spatial dims
DF = 32          # learned feature dims
DOUT = 32        # output feature dim
GPB = 2          # graphs per grid step (2 steps total)
assert B % GPB == 0


def gravnet_kernel(x_ref, w_sf_ref, w_out_ref, bo_ref, o_ref):
    w_sf = w_sf_ref[...]                                              # (C, DF+DS)
    w_out = w_out_ref[...]                                            # (C+2*DF, DOUT)
    bo = bo_ref[...]                                                  # (1, DOUT)

    outs = []
    for g in range(GPB):  # static unroll; scheduler interleaves both graphs
        x = x_ref[g].astype(jnp.float32)                              # (N, C)

        # --- fused [features | spatial] projection: one MXU push ---
        h = jnp.dot(x, w_sf, preferred_element_type=jnp.float32)      # (N, DF+DS)
        f = h[:, :DF]                                                 # (N, DF)
        s = h[:, DF:DF + DS]                                          # (N, DS)

        # --- pairwise squared distances folded into one augmented matmul:
        #     d2[i,j] = -2*s_i.s_j + ||s_i||^2 + ||s_j||^2, clamped at 0.
        #     Squared norms come directly from the tiny (N,DS) tensor; the
        #     broadcast-adds and *2 ride on the (idle) MXU, not the VPU. ---
        ssq = jnp.sum(s * s, axis=-1, keepdims=True)                  # (N, 1)
        ones = jnp.ones_like(ssq)                                     # (N, 1)
        a_aug = jnp.concatenate([s, ssq, ones], axis=1)               # (N, DS+2)
        b_aug = jnp.concatenate([-2.0 * s, ones, ssq], axis=1)        # (N, DS+2)
        d2 = jnp.maximum(
            jnp.dot(a_aug, b_aug.T, preferred_element_type=jnp.float32), 0.0)

        # --- GravNet potential weights (EUP); w is symmetric by construction ---
        w = jnp.exp(-10.0 * d2)                                       # (N, N)

        # --- mean aggregation: one MXU push (1/N folded into fused W_out) ---
        mean_agg = jnp.dot(w, f, preferred_element_type=jnp.float32)  # (N, DF)

        # --- max aggregation: leading-axis reduce -> pure elementwise vmax
        #     over whole (N, DF) tiles.  w is symmetric, so its first axis can
        #     serve as the source-node axis. ---
        prod = w[:, :, None] * f[:, None, :]                          # (Nsrc, Ndst, DF)
        max_agg = jnp.max(prod, axis=0)                               # (N, DF)

        # --- fused output layer: concat([x, mean, max]) @ W_out + b ---
        cat = jnp.concatenate([x, mean_agg, max_agg], axis=1)         # (N, C+2*DF)
        outs.append(jnp.dot(cat, w_out, preferred_element_type=jnp.float32) + bo)

    # Lane-pack the GPB graphs' outputs: (N, GPB*DOUT), no zero padding.
    o_ref[0] = jnp.concatenate(outs, axis=1).astype(o_ref.dtype)


def _fuse_params(params):
    """Fused weight layout consumed by the kernel (1/N folded into mean branch)."""
    ws, wf, wo_x, wo_mean, wo_max, bo = params
    w_sf = jnp.concatenate([wf, ws], axis=1)                          # (C, DF+DS)
    w_out = jnp.concatenate([wo_x, wo_mean / N, wo_max], axis=0)      # (C+2*DF, DOUT)
    return w_sf, w_out, bo


@jax.jit
def gravnet_forward(x, w_sf, w_out, bo):
    packed = pl.pallas_call(
        gravnet_kernel,
        out_shape=jax.ShapeDtypeStruct((B // GPB, N, GPB * DOUT), jnp.float32),
        grid=(B // GPB,),
        in_specs=[
            pl.BlockSpec((GPB, N, C), lambda b: (b, 0, 0)),            # 2 graphs' x
            pl.BlockSpec((C, DF + DS), lambda b: (0, 0)),              # fused W_sf
            pl.BlockSpec((C + 2 * DF, DOUT), lambda b: (0, 0)),        # fused W_out
            pl.BlockSpec((1, DOUT), lambda b: (0, 0)),                 # bias
        ],
        out_specs=pl.BlockSpec((1, N, GPB * DOUT), lambda b: (b, 0, 0)),
        compiler_params=pltpu.CompilerParams(
            dimension_semantics=("parallel",)),
    )(x, w_sf, w_out, bo)
    # Un-pack the lane-packed per-step graphs back to (B, N, DOUT).
    return (packed.reshape(B // GPB, N, GPB, DOUT)
                  .transpose(0, 2, 1, 3)
                  .reshape(B, N, DOUT))


class GATWrapperJAX:
    """Mirrors GATWrapper: forwards (g, step_count) to the GravNet model."""

    def __init__(self, params):
        self.params = params
        self.fused = _fuse_params(params)

    def __call__(self, g_node_feats, step_count):
        del step_count  # only used for scheduling/logging in the original model
        return gravnet_forward(g_node_feats, *self.fused)


def gravnet_reference_single(x, params):
    """Pure-JAX per-graph reference (unfused weights) for correctness."""
    ws, wf, wo_x, wo_mean, wo_max, bo = params
    s = x @ ws
    f = x @ wf
    ssq = jnp.sum(s * s, axis=-1, keepdims=True)
    d2 = jnp.maximum(ssq + ssq.T - 2.0 * (s @ s.T), 0.0)
    w = jnp.exp(-10.0 * d2)
    mean_agg = (w @ f) / N
    max_agg = jnp.max(w[:, :, None] * f[None, :, :], axis=1)
    return x @ wo_x + mean_agg @ wo_mean + max_agg @ wo_max + bo


def gravnet_reference(xb, params):
    return jax.vmap(lambda xi: gravnet_reference_single(xi, params))(xb)


def init_params(key):
    ks = jax.random.split(key, 6)
    scale = 0.1
    ws = scale * jax.random.normal(ks[0], (C, DS), jnp.float32)
    wf = scale * jax.random.normal(ks[1], (C, DF), jnp.float32)
    wo_x = scale * jax.random.normal(ks[2], (C, DOUT), jnp.float32)
    wo_mean = scale * jax.random.normal(ks[3], (DF, DOUT), jnp.float32)
    wo_max = scale * jax.random.normal(ks[4], (DF, DOUT), jnp.float32)
    bo = scale * jax.random.normal(ks[5], (1, DOUT), jnp.float32)
    return ws, wf, wo_x, wo_mean, wo_max, bo


if __name__ == "__main__":
    key = jax.random.PRNGKey(0)
    k_x, k_p = jax.random.split(key)
    x = jax.random.normal(k_x, (B, N, C), jnp.float32)   # batch of graphs (node feats)
    params = init_params(k_p)

    model = GATWrapperJAX(params)
    out = model(x, step_count=0)
    out = jax.block_until_ready(out)

    ref = gravnet_reference(x, params)
    assert out.shape == (B, N, DOUT)
    assert jnp.allclose(out, ref, atol=1e-4, rtol=1e-4)
    print("KERNEL_OK")
</pallas_src>

<mosaic_0001>
module attributes {stable_mosaic.version = 11 : i64} {
  func.func @gravnet_kernel(%arg0: i32, %arg1: memref<2x64x16xf32, #tpu.memory_space<vmem>>, %arg2: memref<16x36xf32, #tpu.memory_space<vmem>>, %arg3: memref<80x32xf32, #tpu.memory_space<vmem>>, %arg4: memref<1x32xf32, #tpu.memory_space<vmem>>, %arg5: memref<1x64x64xf32, #tpu.memory_space<vmem>>) attributes {dimension_semantics = [#tpu.dimension_semantics<parallel>], iteration_bounds = array<i64: 2>, scalar_prefetch = 0 : i64, scratch_operands = 0 : i64, tpu.core_type = #tpu.core_type<tc>, window_params = [{transform_indices = @transform_0, window_bounds = array<i64: 2, 64, 16>}, {pipeline_mode = #tpu.pipeline_mode<synchronous>, transform_indices = @transform_1, window_bounds = array<i64: 16, 36>}, {pipeline_mode = #tpu.pipeline_mode<synchronous>, transform_indices = @transform_2, window_bounds = array<i64: 80, 32>}, {pipeline_mode = #tpu.pipeline_mode<synchronous>, transform_indices = @transform_3, window_bounds = array<i64: 1, 32>}, {transform_indices = @transform_4, window_bounds = array<i64: 1, 64, 64>}]} {
    %c0 = arith.constant 0 : index
    %c0_0 = arith.constant 0 : index
    %0 = vector.load %arg2[%c0, %c0_0] : memref<16x36xf32, #tpu.memory_space<vmem>>, vector<16x36xf32>
    %c0_1 = arith.constant 0 : index
    %c0_2 = arith.constant 0 : index
    %1 = vector.load %arg3[%c0_1, %c0_2] : memref<80x32xf32, #tpu.memory_space<vmem>>, vector<80x32xf32>
    %c0_3 = arith.constant 0 : index
    %c0_4 = arith.constant 0 : index
    %2 = vector.load %arg4[%c0_3, %c0_4] : memref<1x32xf32, #tpu.memory_space<vmem>>, vector<1x32xf32>
    %c0_5 = arith.constant 0 : index
    %c0_6 = arith.constant 0 : index
    %c0_7 = arith.constant 0 : index
    %3 = vector.load %arg1[%c0_5, %c0_6, %c0_7] : memref<2x64x16xf32, #tpu.memory_space<vmem>>, vector<1x64x16xf32>
    %4 = vector.shape_cast %3 : vector<1x64x16xf32> to vector<64x16xf32>
    %cst = arith.constant dense<0.000000e+00> : vector<64x36xf32>
    %5 = tpu.matmul %4, %0, %cst {dimension_numbers = #tpu.dot_dimension_numbers<[1], [0], [0], [1], [0, 0, 1, 1], [], []>} : vector<64x16xf32>, vector<16x36xf32>, vector<64x36xf32> -> vector<64x36xf32>
    %6 = vector.extract_strided_slice %5 {offsets = [0, 0], sizes = [64, 32], strides = [1, 1]} : vector<64x36xf32> to vector<64x32xf32>
    %7 = vector.extract_strided_slice %5 {offsets = [0, 32], sizes = [64, 4], strides = [1, 1]} : vector<64x36xf32> to vector<64x4xf32>
    %8 = arith.mulf %7, %7 : vector<64x4xf32>
    %cst_8 = arith.constant dense<0.000000e+00> : vector<64xf32>
    %9 = vector.multi_reduction <add>, %8, %cst_8 [1] : vector<64x4xf32> to vector<64xf32>
    %10 = vector.shape_cast %9 : vector<64xf32> to vector<64x1xf32>
    %cst_9 = arith.constant 1.000000e+00 : f32
    %11 = vector.broadcast %cst_9 : f32 to vector<64x1xf32>
    %12 = tpu.concatenate %7, %10, %11 in 1 : vector<64x4xf32>, vector<64x1xf32>, vector<64x1xf32> -> vector<64x6xf32>
    %cst_10 = arith.constant -2.000000e+00 : f32
    %13 = vector.broadcast %cst_10 : f32 to vector<64x4xf32>
    %14 = arith.mulf %13, %7 : vector<64x4xf32>
    %15 = tpu.concatenate %14, %11, %10 in 1 : vector<64x4xf32>, vector<64x1xf32>, vector<64x1xf32> -> vector<64x6xf32>
    %16 = tpu.transpose %15, [1, 0] : vector<64x6xf32> -> vector<6x64xf32>
    %cst_11 = arith.constant dense<0.000000e+00> : vector<64x64xf32>
    %17 = tpu.matmul %12, %16, %cst_11 {dimension_numbers = #tpu.dot_dimension_numbers<[1], [0], [0], [1], [0, 0, 1, 1], [], []>} : vector<64x6xf32>, vector<6x64xf32>, vector<64x64xf32> -> vector<64x64xf32>
    %cst_12 = arith.constant 0.000000e+00 : f32
    %18 = vector.broadcast %cst_12 : f32 to vector<64x64xf32>
    %19 = arith.maximumf %17, %18 : vector<64x64xf32>
    %cst_13 = arith.constant -1.000000e+01 : f32
    %20 = vector.broadcast %cst_13 : f32 to vector<64x64xf32>
    %21 = arith.mulf %20, %19 : vector<64x64xf32>
    %22 = math.exp %21 : vector<64x64xf32>
    %cst_14 = arith.constant dense<0.000000e+00> : vector<64x32xf32>
    %23 = tpu.matmul %22, %6, %cst_14 {dimension_numbers = #tpu.dot_dimension_numbers<[1], [0], [0], [1], [0, 0, 1, 1], [], []>} : vector<64x64xf32>, vector<64x32xf32>, vector<64x32xf32> -> vector<64x32xf32>
    %24 = vector.shape_cast %22 : vector<64x64xf32> to vector<64x64x1xf32>
    %25 = vector.shape_cast %6 : vector<64x32xf32> to vector<64x1x32xf32>
    %26 = vector.broadcast %24 : vector<64x64x1xf32> to vector<64x64x32xf32>
    %27 = vector.broadcast %25 : vector<64x1x32xf32> to vector<64x64x32xf32>
    %28 = arith.mulf %26, %27 : vector<64x64x32xf32>
    %cst_15 = arith.constant dense<0xFF800000> : vector<64x32xf32>
    %29 = vector.multi_reduction <maximumf>, %28, %cst_15 [0] : vector<64x64x32xf32> to vector<64x32xf32>
    %30 = tpu.concatenate %4, %23, %29 in 1 : vector<64x16xf32>, vector<64x32xf32>, vector<64x32xf32> -> vector<64x80xf32>
    %cst_16 = arith.constant dense<0.000000e+00> : vector<64x32xf32>
    %31 = tpu.matmul %30, %1, %cst_16 {dimension_numbers = #tpu.dot_dimension_numbers<[1], [0], [0], [1], [0, 0, 1, 1], [], []>} : vector<64x80xf32>, vector<80x32xf32>, vector<64x32xf32> -> vector<64x32xf32>
    %32 = vector.broadcast %2 : vector<1x32xf32> to vector<64x32xf32>
    %33 = arith.addf %31, %32 : vector<64x32xf32>
    %c1 = arith.constant 1 : index
    %c0_17 = arith.constant 0 : index
    %c0_18 = arith.constant 0 : index
    %34 = vector.load %arg1[%c1, %c0_17, %c0_18] : memref<2x64x16xf32, #tpu.memory_space<vmem>>, vector<1x64x16xf32>
    %35 = vector.shape_cast %34 : vector<1x64x16xf32> to vector<64x16xf32>
    %cst_19 = arith.constant dense<0.000000e+00> : vector<64x36xf32>
    %36 = tpu.matmul %35, %0, %cst_19 {dimension_numbers = #tpu.dot_dimension_numbers<[1], [0], [0], [1], [0, 0, 1, 1], [], []>} : vector<64x16xf32>, vector<16x36xf32>, vector<64x36xf32> -> vector<64x36xf32>
    %37 = vector.extract_strided_slice %36 {offsets = [0, 0], sizes = [64, 32], strides = [1, 1]} : vector<64x36xf32> to vector<64x32xf32>
    %38 = vector.extract_strided_slice %36 {offsets = [0, 32], sizes = [64, 4], strides = [1, 1]} : vector<64x36xf32> to vector<64x4xf32>
    %39 = arith.mulf %38, %38 : vector<64x4xf32>
    %cst_20 = arith.constant dense<0.000000e+00> : vector<64xf32>
    %40 = vector.multi_reduction <add>, %39, %cst_20 [1] : vector<64x4xf32> to vector<64xf32>
    %41 = vector.shape_cast %40 : vector<64xf32> to vector<64x1xf32>
    %cst_21 = arith.constant 1.000000e+00 : f32
    %42 = vector.broadcast %cst_21 : f32 to vector<64x1xf32>
    %43 = tpu.concatenate %38, %41, %42 in 1 : vector<64x4xf32>, vector<64x1xf32>, vector<64x1xf32> -> vector<64x6xf32>
    %cst_22 = arith.constant -2.000000e+00 : f32
    %44 = vector.broadcast %cst_22 : f32 to vector<64x4xf32>
    %45 = arith.mulf %44, %38 : vector<64x4xf32>
    %46 = tpu.concatenate %45, %42, %41 in 1 : vector<64x4xf32>, vector<64x1xf32>, vector<64x1xf32> -> vector<64x6xf32>
    %47 = tpu.transpose %46, [1, 0] : vector<64x6xf32> -> vector<6x64xf32>
    %cst_23 = arith.constant dense<0.000000e+00> : vector<64x64xf32>
    %48 = tpu.matmul %43, %47, %cst_23 {dimension_numbers = #tpu.dot_dimension_numbers<[1], [0], [0], [1], [0, 0, 1, 1], [], []>} : vector<64x6xf32>, vector<6x64xf32>, vector<64x64xf32> -> vector<64x64xf32>
    %cst_24 = arith.constant 0.000000e+00 : f32
    %49 = vector.broadcast %cst_24 : f32 to vector<64x64xf32>
    %50 = arith.maximumf %48, %49 : vector<64x64xf32>
    %cst_25 = arith.constant -1.000000e+01 : f32
    %51 = vector.broadcast %cst_25 : f32 to vector<64x64xf32>
    %52 = arith.mulf %51, %50 : vector<64x64xf32>
    %53 = math.exp %52 : vector<64x64xf32>
    %cst_26 = arith.constant dense<0.000000e+00> : vector<64x32xf32>
    %54 = tpu.matmul %53, %37, %cst_26 {dimension_numbers = #tpu.dot_dimension_numbers<[1], [0], [0], [1], [0, 0, 1, 1], [], []>} : vector<64x64xf32>, vector<64x32xf32>, vector<64x32xf32> -> vector<64x32xf32>
    %55 = vector.shape_cast %53 : vector<64x64xf32> to vector<64x64x1xf32>
    %56 = vector.shape_cast %37 : vector<64x32xf32> to vector<64x1x32xf32>
    %57 = vector.broadcast %55 : vector<64x64x1xf32> to vector<64x64x32xf32>
    %58 = vector.broadcast %56 : vector<64x1x32xf32> to vector<64x64x32xf32>
    %59 = arith.mulf %57, %58 : vector<64x64x32xf32>
    %cst_27 = arith.constant dense<0xFF800000> : vector<64x32xf32>
    %60 = vector.multi_reduction <maximumf>, %59, %cst_27 [0] : vector<64x64x32xf32> to vector<64x32xf32>
    %61 = tpu.concatenate %35, %54, %60 in 1 : vector<64x16xf32>, vector<64x32xf32>, vector<64x32xf32> -> vector<64x80xf32>
    %cst_28 = arith.constant dense<0.000000e+00> : vector<64x32xf32>
    %62 = tpu.matmul %61, %1, %cst_28 {dimension_numbers = #tpu.dot_dimension_numbers<[1], [0], [0], [1], [0, 0, 1, 1], [], []>} : vector<64x80xf32>, vector<80x32xf32>, vector<64x32xf32> -> vector<64x32xf32>
    %63 = vector.broadcast %2 : vector<1x32xf32> to vector<64x32xf32>
    %64 = arith.addf %62, %63 : vector<64x32xf32>
    %65 = tpu.concatenate %33, %64 in 1 : vector<64x32xf32>, vector<64x32xf32> -> vector<64x64xf32>
    %c0_29 = arith.constant 0 : index
    %c0_30 = arith.constant 0 : index
    %c0_31 = arith.constant 0 : index
    %66 = vector.load %arg5[%c0_29, %c0_30, %c0_31] : memref<1x64x64xf32, #tpu.memory_space<vmem>>, vector<1x64x64xf32>
    %67 = vector.shape_cast %66 : vector<1x64x64xf32> to vector<64x64xf32>
    %68 = vector.shape_cast %65 : vector<64x64xf32> to vector<1x64x64xf32>
    tpu.vector_store %arg5[%c0_29, %c0_30, %c0_31], %68 {strides = array<i32>} : memref<1x64x64xf32, #tpu.memory_space<vmem>>, vector<1x64x64xf32>,
    return
  }
  func.func @transform_0(%arg0: i32) -> (i32, i32, i32) {
    %c0_i32 = arith.constant 0 : i32
    %c0_i32_0 = arith.constant 0 : i32
    %c0_i32_1 = arith.constant 0 : i32
    return %arg0, %c0_i32, %c0_i32_0 : i32, i32, i32
  }
  func.func @transform_1(%arg0: i32) -> (i32, i32) {
    %c0_i32 = arith.constant 0 : i32
    %c0_i32_0 = arith.constant 0 : i32
    %c0_i32_1 = arith.constant 0 : i32
    return %c0_i32, %c0_i32_0 : i32, i32
  }
  func.func @transform_2(%arg0: i32) -> (i32, i32) {
    %c0_i32 = arith.constant 0 : i32
    %c0_i32_0 = arith.constant 0 : i32
    %c0_i32_1 = arith.constant 0 : i32
    return %c0_i32, %c0_i32_0 : i32, i32
  }
  func.func @transform_3(%arg0: i32) -> (i32, i32) {
    %c0_i32 = arith.constant 0 : i32
    %c0_i32_0 = arith.constant 0 : i32
    %c0_i32_1 = arith.constant 0 : i32
    return %c0_i32, %c0_i32_0 : i32, i32
  }
  func.func @transform_4(%arg0: i32) -> (i32, i32, i32) {
    %c0_i32 = arith.constant 0 : i32
    %c0_i32_0 = arith.constant 0 : i32
    %c0_i32_1 = arith.constant 0 : i32
    return %arg0, %c0_i32, %c0_i32_0 : i32, i32, i32
  }
}

</mosaic_0001>

<llo_original>
// kernel: gravnet_forward.1
$region0: #{gravnet_forward.1}
  #allocation0 [shape = 'u32[]', space=smem, size = 0x4, offset = 0x4, fixed_abs, tag = 'smem constant byte address 0x4 - core index']
  #allocation1 [shape = 'u32[144,128]{1,0:T(1,128)}', space=vmem, size = 0x12000, scoped, tag = 'internal scratch']
  %s0 = inlined_call_operand.vmem [shape: f32[4,64,16], index: 0, kind: input, shape index: {}]
  %s1 = inlined_call_operand.vmem [shape: f32[16,36], index: 1, kind: input, shape index: {}]
  %s2 = inlined_call_operand.vmem [shape: f32[80,32], index: 2, kind: input, shape index: {}]
  %s3 = inlined_call_operand.vmem [shape: f32[1,32], index: 3, kind: input, shape index: {}]
  %s4 = inlined_call_operand.vmem [shape: f32[2,64,64], index: 4, kind: output, shape index: {}]
  %s5 = sld [smem:[#allocation0]]
  $region49: #{gravnet_forward.1} parent=0
    _
  %s7 = ssub.s32 1, %s5
  %s8 = scalar_select 0, %s7, %s5
  loop: start=0, step=1, limit=4
  $region2: #{gravnet_forward.1} parent=0 // loop_pre_header
    _
  $region3: #{gravnet_forward.1} parent=0 // loop_header
    %s10 = sphi 0, %s14
    %p11 = scmp.ge.s32.totalorder %s10, 4
    %s20 = sphi 0, %s22
    %s23 = sphi 0, %s20
    %s24 = sphi 0, %s23
    %s40 = sphi 0, %s24
    %s44 = sphi 0, %s44
    %s46 = sphi 0, %s44
    %s47 = sphi 0, %s46
    %s61 = sphi 0, %s47
    %s65 = sphi 0, %s65
    %s67 = sphi 0, %s65
    %s68 = sphi 0, %s67
    %s82 = sphi 0, %s68
    %s86 = sphi 0, %s86
    %s88 = sphi 0, %s86
    %s89 = sphi 0, %s88
    %s103 = sphi 0, %s89
    %s109 = sphi 0, %s111
    %s112 = sphi 0, %s109
    %s113 = sphi 0, %s112
    %s129 = sphi 0, %s113
  $region4: #{gravnet_forward.1} parent=0 // loop_header_branch
    %13 = sbr.rel (%p11) target = $region8
  $region5: #{gravnet_forward.1} parent=0 // loop_body
    %s15 = ssub.s32 %s10, 1
    %s16 = ssub.s32 %s10, 2
    %s17 = sadd.s32 %s10, 1
    %s18 = ssub.s32 %s10, %s17
    %p19 = scmp.eq.s32.totalorder %s18, 0
    %s21 = sadd.s32 %s20, 1
    %s22 = scalar_select %p19, %s20, %s21
    %p25 = pneg %p19
    %p26 = scmp.eq.s32.totalorder %s10, 1
    %p27 = por %p25, %p26
    %p28 = scmp.ne.s32.totalorder %s20, %s23
    %p29 = scmp.eq.s32.totalorder %s10, 0
    %p30 = por %p28, %p29
    %p31 = scmp.ne.s32.totalorder %s20, %s23
    %p32 = scmp.eq.s32.totalorder %s15, 1
    %p33 = por %p31, %p32
    %p34 = scmp.ne.s32.totalorder %s23, %s24
    %p35 = scmp.eq.s32.totalorder %s15, 0
    %p36 = por %p34, %p35
    %p37 = scmp.ne.s32.totalorder %s23, %s24
    %p38 = scmp.eq.s32.totalorder %s16, 1
    %p39 = por %p37, %p38
    %p41 = scmp.ne.s32.totalorder %s24, %s40
    %p42 = scmp.eq.s32.totalorder %s16, 0
    %p43 = por %p41, %p42
    %s45 = sadd.s32 %s44, 1
    %p48 = scmp.eq.s32.totalorder %s10, 1
    %p49 = scmp.ne.s32.totalorder %s44, %s46
    %p50 = scmp.eq.s32.totalorder %s10, 0
    %p51 = por %p49, %p50
    %p52 = scmp.ne.s32.totalorder %s44, %s46
    %p53 = scmp.eq.s32.totalorder %s15, 1
    %p54 = por %p52, %p53
    %p55 = scmp.ne.s32.totalorder %s46, %s47
    %p56 = scmp.eq.s32.totalorder %s15, 0
    %p57 = por %p55, %p56
    %p58 = scmp.ne.s32.totalorder %s46, %s47
    %p59 = scmp.eq.s32.totalorder %s16, 1
    %p60 = por %p58, %p59
    %p62 = scmp.ne.s32.totalorder %s47, %s61
    %p63 = scmp.eq.s32.totalorder %s16, 0
    %p64 = por %p62, %p63
    %s66 = sadd.s32 %s65, 1
    %p69 = scmp.eq.s32.totalorder %s10, 1
    %p70 = scmp.ne.s32.totalorder %s65, %s67
    %p71 = scmp.eq.s32.totalorder %s10, 0
    %p72 = por %p70, %p71
    %p73 = scmp.ne.s32.totalorder %s65, %s67
    %p74 = scmp.eq.s32.totalorder %s15, 1
    %p75 = por %p73, %p74
    %p76 = scmp.ne.s32.totalorder %s67, %s68
    %p77 = scmp.eq.s32.totalorder %s15, 0
    %p78 = por %p76, %p77
    %p79 = scmp.ne.s32.totalorder %s67, %s68
    %p80 = scmp.eq.s32.totalorder %s16, 1
    %p81 = por %p79, %p80
    %p83 = scmp.ne.s32.totalorder %s68, %s82
    %p84 = scmp.eq.s32.totalorder %s16, 0
    %p85 = por %p83, %p84
    %s87 = sadd.s32 %s86, 1
    %p90 = scmp.eq.s32.totalorder %s10, 1
    %p91 = scmp.ne.s32.totalorder %s86, %s88
    %p92 = scmp.eq.s32.totalorder %s10, 0
    %p93 = por %p91, %p92
    %p94 = scmp.ne.s32.totalorder %s86, %s88
    %p95 = scmp.eq.s32.totalorder %s15, 1
    %p96 = por %p94, %p95
    %p97 = scmp.ne.s32.totalorder %s88, %s89
    %p98 = scmp.eq.s32.totalorder %s15, 0
    %p99 = por %p97, %p98
    %p100 = scmp.ne.s32.totalorder %s88, %s89
    %p101 = scmp.eq.s32.totalorder %s16, 1
    %p102 = por %p100, %p101
    %p104 = scmp.ne.s32.totalorder %s89, %s103
    %p105 = scmp.eq.s32.totalorder %s16, 0
    %p106 = por %p104, %p105
    %s107 = ssub.s32 %s10, %s17
    %p108 = scmp.eq.s32.totalorder %s107, 0
    %s110 = sadd.s32 %s109, 1
    %s111 = scalar_select %p108, %s109, %s110
    %p114 = pneg %p108
    %p115 = scmp.eq.s32.totalorder %s10, 1
    %p116 = por %p114, %p115
    %p117 = scmp.ne.s32.totalorder %s109, %s112
    %p118 = scmp.eq.s32.totalorder %s10, 0
    %p119 = por %p117, %p118
    %p120 = scmp.ne.s32.totalorder %s109, %s112
    %p121 = scmp.eq.s32.totalorder %s15, 1
    %p122 = por %p120, %p121
    %p123 = scmp.ne.s32.totalorder %s112, %s113
    %p124 = scmp.eq.s32.totalorder %s15, 0
    %p125 = por %p123, %p124
    %p126 = scmp.ne.s32.totalorder %s112, %s113
    %p127 = scmp.eq.s32.totalorder %s16, 1
    %p128 = por %p126, %p127
    %p130 = scmp.ne.s32.totalorder %s113, %s129
    %p131 = scmp.eq.s32.totalorder %s16, 0
    %p132 = por %p130, %p131
    %p133 = scmp.le.s32.totalorder 1, %s10
    %p134 = scmp.lt.s32.totalorder %s10, 3
    %p135 = pnand %p133, %p134
    %p136 = pneg %p135
    // Predicated region
    $region9: #{gravnet_forward.1} parent=5 // pred_check
      _
    $region10: #{gravnet_forward.1} parent=5 // pred_check_branch
      %138 = sbr.rel (%p135) target = $region12
    $region11: #{gravnet_forward.1} parent=5 // pred_region
      %s139 = ssub.s32 %s10, 1
      // Predicated region
      $region13: #{gravnet_forward.1} parent=11 // pred_check
        %p140 = pneg %p57
      $region14: #{gravnet_forward.1} parent=11 // pred_check_branch
        %142 = sbr.rel (%p140) target = $region16
      $region15: #{gravnet_forward.1} parent=11 // pred_region
        _
      $region16: #{gravnet_forward.1} parent=11 // pred_fallthru
        _
      // Predicated region
      $region17: #{gravnet_forward.1} parent=11 // pred_check
        %p143 = pneg %p78
      $region18: #{gravnet_forward.1} parent=11 // pred_check_branch
        %145 = sbr.rel (%p143) target = $region20
      $region19: #{gravnet_forward.1} parent=11 // pred_region
        _
      $region20: #{gravnet_forward.1} parent=11 // pred_fallthru
        _
      // Predicated region
      $region21: #{gravnet_forward.1} parent=11 // pred_check
        %p146 = pneg %p99
      $region22: #{gravnet_forward.1} parent=11 // pred_check_branch
        %148 = sbr.rel (%p146) target = $region24
      $region23: #{gravnet_forward.1} parent=11 // pred_region
        _
      $region24: #{gravnet_forward.1} parent=11 // pred_fallthru
        _
    $region12: #{gravnet_forward.1} parent=5 // pred_fallthru
      _
    %p149 = scmp.lt.s32.totalorder %s10, 2
    // Predicated region
    $region25: #{gravnet_forward.1} parent=5 // pred_check
      %p150 = pneg %p149
    $region26: #{gravnet_forward.1} parent=5 // pred_check_branch
      %152 = sbr.rel (%p150) target = $region28
    $region27: #{gravnet_forward.1} parent=5 // pred_region
      // Predicated region
      $region29: #{gravnet_forward.1} parent=27 // pred_check
        %p153 = pneg %p30
      $region30: #{gravnet_forward.1} parent=27 // pred_check_branch
        %155 = sbr.rel (%p153) target = $region32
      $region31: #{gravnet_forward.1} parent=27 // pred_region
        %s156 = smul.u32 2, %s10
        %p157 = scmp.lt.s32.totalorder %s156, 3
        %s158 = scalar_select %p157, %s156, 3
        %s159 = smul.addr %s158, 8
        %s160 = smul.addr %s159, 8
        %s161 = scalar_lea.vmem %s0, %s160
        %s162 = smul.u32 2, %s10
      $region32: #{gravnet_forward.1} parent=27 // pred_fallthru
        _
    $region28: #{gravnet_forward.1} parent=5 // pred_fallthru
      _
    %p163 = scmp.le.s32.totalorder 1, %s10
    %p164 = scmp.lt.s32.totalorder %s10, 3
    %p165 = pnand %p163, %p164
    %p166 = pneg %p165
    // Predicated region
    $region33: #{gravnet_forward.1} parent=5 // pred_check
      _
    $region34: #{gravnet_forward.1} parent=5 // pred_check_branch
      %168 = sbr.rel (%p165) target = $region36
    $region35: #{gravnet_forward.1} parent=5 // pred_region
      %s169 = ssub.s32 %s10, 1
      %s170 = smul.u32 2, %s15
      %p171 = scmp.lt.s32.totalorder %s170, 3
      %s172 = scalar_select %p171, %s170, 3
      %s173 = smul.addr %s172, 8
      %s174 = smul.addr %s173, 8
      %s175 = scalar_lea.vmem %s0, %s174
      %p176 = pneg %p36
      %p177 = pneg %p33
      %p178 = pneg %p57
      %p179 = pneg %p54
      %p180 = pneg %p78
      %p181 = pneg %p75
      %p182 = pneg %p99
      %p183 = pneg %p96
      %p184 = pneg %p125
      %p185 = pneg %p122
      %p186 = scmp.lt.s32.totalorder %s15, 1
      %s187 = scalar_select %p186, %s15, 1
      %s188 = smul.addr %s187, 8
      %s189 = smul.addr %s188, 8
      %s190 = scalar_lea.vmem %s4, %s189
      %s191 = smul.u32 2, %s15
      %p192 = scmp.lt.s32.totalorder %s191, 3
      %s193 = scalar_select %p192, %s191, 3
      %s194 = smul.addr %s193, 8
      %s195 = smul.addr %s194, 8
      %s196 = scalar_lea.vmem %s0, %s195
      %s197 = smul.u32 2, %s15
      %p198 = scmp.lt.s32.totalorder %s15, 1
      %s199 = scalar_select %p198, %s15, 1
      %s200 = smul.addr %s199, 8
      %s201 = smul.addr %s200, 8
      %s202 = scalar_lea.vmem %s4, %s201
      %v203 = vld [vmem:[%s1] sm:$0xff]
      %v204 = vld [vmem:[%s1 + $0x8] sm:$0xff]
      %v205 = vld [vmem:[%s2] sm:$0xff]
      %v206 = vld [vmem:[%s2 + $0x8] sm:$0xff]
      %v207 = vld [vmem:[%s2 + $0x10] sm:$0xff]
      %v208 = vld [vmem:[%s2 + $0x18] sm:$0xff]
      %v209 = vld [vmem:[%s2 + $0x20] sm:$0xff]
      %v210 = vld [vmem:[%s2 + $0x28] sm:$0xff]
      %v211 = vld [vmem:[%s2 + $0x30] sm:$0xff]
      %v212 = vld [vmem:[%s2 + $0x38] sm:$0xff]
      %v213 = vld [vmem:[%s2 + $0x40] sm:$0xff]
      %v214 = vld [vmem:[%s2 + $0x48] sm:$0xff]
      %v215 = vld [vmem:[%s3] sm:$0x1]
      %v216 = vld [vmem:[%s196] sm:$0xff]
      %v217 = vld [vmem:[%s196 + $0x8] sm:$0xff]
      %v218 = vld [vmem:[%s196 + $0x10] sm:$0xff]
      %v219 = vld [vmem:[%s196 + $0x18] sm:$0xff]
      %v220 = vld [vmem:[%s196 + $0x20] sm:$0xff]
      %v221 = vld [vmem:[%s196 + $0x28] sm:$0xff]
      %v222 = vld [vmem:[%s196 + $0x30] sm:$0xff]
      %v223 = vld [vmem:[%s196 + $0x38] sm:$0xff]
      %vm224 = vcmask 130048
      %v226 = vsel %vm224, %v216, 0
      %v229 = vsel %vm224, %v217, 0
      %v232 = vsel %vm224, %v218, 0
      %v235 = vsel %vm224, %v219, 0
      %v238 = vsel %vm224, %v220, 0
      %v241 = vsel %vm224, %v221, 0
      %v244 = vsel %vm224, %v222, 0
      %v247 = vsel %vm224, %v223, 0
      %249 = vmatprep.subr.mxu0 0.0
      %250 = vmatpush1.msra.mxu0 %v203
      %251 = vmatprep.subr.mxu0 0.0
      %252 = vmatpush1.msra.mxu0 %v204
      %253 = vmatprep.subr.mxu0 0.0
      %254 = vmatpush1.msra.mxu0 0.0
      %255 = vmatprep.subr.mxu0 0.0
      %256 = vmatpush1.msra.mxu0 0.0
      %257 = vmatprep.subr.mxu0 0.0
      %258 = vmatpush1.msra.mxu0 0.0
      %259 = vmatprep.subr.mxu0 0.0
      %260 = vmatpush1.msra.mxu0 0.0
      %261 = vmatprep.subr.mxu0 0.0
      %262 = vmatpush1.msra.mxu0 0.0
      %263 = vmatprep.subr.mxu0 0.0
      %264 = vmatpush1.msra.mxu0 0.0
      %265 = vmatprep.subr.mxu0 0.0
      %266 = vmatpush1.msra.mxu0 0.0
      %267 = vmatprep.subr.mxu0 0.0
      %268 = vmatpush1.msra.mxu0 0.0
      %269 = vmatprep.subr.mxu0 0.0
      %270 = vmatpush1.msra.mxu0 0.0
      %271 = vmatprep.subr.mxu0 0.0
      %272 = vmatpush1.msra.mxu0 0.0
      %273 = vmatprep.subr.mxu0 0.0
      %274 = vmatpush1.msra.mxu0 0.0
      %275 = vmatprep.subr.mxu0 0.0
      %276 = vmatpush1.msra.mxu0 0.0
      %277 = vmatprep.subr.mxu0 0.0
      %278 = vmatpush1.msra.mxu0 0.0
      %279 = vmatprep.subr.mxu0 0.0
      %280 = vmatpush1.msra.mxu0 0.0
      %281 = vmatprep.subr.mxu0 0.0
      %282 = vmatpush1.msra.mxu0 0.0
      %283 = vmatprep.subr.mxu0 0.0
      %284 = vmatpush1.msra.mxu0 0.0
      %285 = vmatprep.subr.mxu0 0.0
      %286 = vmatpush1.msra.mxu0 0.0
      %287 = vmatprep.subr.mxu0 0.0
      %288 = vmatpush1.msra.mxu0 0.0
      %289 = vmatprep.subr.mxu0 0.0
      %290 = vmatpush1.msra.mxu0 0.0
      %291 = vmatprep.subr.mxu0 0.0
      %292 = vmatpush1.msra.mxu0 0.0
      %293 = vmatprep.subr.mxu0 0.0
      %294 = vmatpush1.msra.mxu0 0.0
      %295 = vmatprep.subr.mxu0 0.0
      %296 = vmatpush1.msra.mxu0 0.0
      %297 = vmatprep.subr.mxu0 0.0
      %298 = vmatpush1.msra.mxu0 0.0
      %299 = vmatprep.subr.mxu0 0.0
      %300 = vmatpush1.msra.mxu0 0.0
      %301 = vmatprep.subr.mxu0 0.0
      %302 = vmatpush1.msra.mxu0 0.0
      %303 = vmatprep.subr.mxu0 0.0
      %304 = vmatpush1.msra.mxu0 0.0
      %305 = vmatprep.subr.mxu0 0.0
      %306 = vmatpush1.msra.mxu0 0.0
      %307 = vmatprep.subr.mxu0 0.0
      %308 = vmatpush1.msra.mxu0 0.0
      %309 = vmatprep.subr.mxu0 0.0
      %310 = vmatpush1.msra.mxu0 0.0
      %311 = vmatprep.subr.mxu0 0.0
      %312 = vmatpush1.msra.mxu0 0.0
      %313 = vmatprep.mubr.f32.mxu0 0.0
      %314 = vmatmul.mubr.f32.gmra.mrb[0].mxu0 %v226
      %v315 = vpop.f32.mrb[0].mxu0
      %v316 = vadd.f32 0.0, %v315
      %v317 = vpop.f32.mrb[0].mxu0
      %318 = vmatprep.mubr.f32.mxu0 0.0
      %319 = vmatmul.mubr.f32.gmra.mrb[0].mxu0 %v229
      %v320 = vpop.f32.mrb[0].mxu0
      %v321 = vadd.f32 0.0, %v320
      %v322 = vpop.f32.mrb[0].mxu0
      %323 = vmatprep.mubr.f32.mxu0 0.0
      %324 = vmatmul.mubr.f32.gmra.mrb[0].mxu0 %v232
      %v325 = vpop.f32.mrb[0].mxu0
      %v326 = vadd.f32 0.0, %v325
      %v327 = vpop.f32.mrb[0].mxu0
      %328 = vmatprep.mubr.f32.mxu0 0.0
      %329 = vmatmul.mubr.f32.gmra.mrb[0].mxu0 %v235
      %v330 = vpop.f32.mrb[0].mxu0
      %v331 = vadd.f32 0.0, %v330
      %v332 = vpop.f32.mrb[0].mxu0
      %333 = vmatprep.mubr.f32.mxu0 0.0
      %334 = vmatmul.mubr.f32.gmra.mrb[0].mxu0 %v238
      %v335 = vpop.f32.mrb[0].mxu0
      %v336 = vadd.f32 0.0, %v335
      %v337 = vpop.f32.mrb[0].mxu0
      %338 = vmatprep.mubr.f32.mxu0 0.0
      %339 = vmatmul.mubr.f32.gmra.mrb[0].mxu0 %v241
      %v340 = vpop.f32.mrb[0].mxu0
      %v341 = vadd.f32 0.0, %v340
      %v342 = vpop.f32.mrb[0].mxu0
      %343 = vmatprep.mubr.f32.mxu0 0.0
      %344 = vmatmul.mubr.f32.gmra.mrb[0].mxu0 %v244
      %v345 = vpop.f32.mrb[0].mxu0
      %v346 = vadd.f32 0.0, %v345
      %v347 = vpop.f32.mrb[0].mxu0
      %348 = vmatprep.mubr.f32.mxu0 0.0
      %349 = vmatmul.mubr.f32.gmra.mrb[0].mxu0 %v247
      %v350 = vpop.f32.mrb[0].mxu0
      %v351 = vadd.f32 0.0, %v350
      %v352 = vpop.f32.mrb[0].mxu0
      %353 = vdwg.mxu0
      %v354 = vmul.f32 %v316, %v316
      %v355 = vmul.f32 %v321, %v321
      %v356 = vmul.f32 %v326, %v326
      %v357 = vmul.f32 %v331, %v331
      %v358 = vmul.f32 %v336, %v336
      %v359 = vmul.f32 %v341, %v341
      %v360 = vmul.f32 %v346, %v346
      %v361 = vmul.f32 %v351, %v351
      %370 = vrot.lane.b32.xlu0 %v354, 96
      %v371 = vpop.permute.xlu0 %370
      %372 = vrot.lane.b32.xlu0 %v355, 96
      %v373 = vpop.permute.xlu0 %372
      %374 = vrot.lane.b32.xlu0 %v356, 96
      %v375 = vpop.permute.xlu0 %374
      %376 = vrot.lane.b32.xlu0 %v357, 96
      %v377 = vpop.permute.xlu0 %376
      %378 = vrot.lane.b32.xlu0 %v358, 96
      %v379 = vpop.permute.xlu0 %378
      %380 = vrot.lane.b32.xlu0 %v359, 96
      %v381 = vpop.permute.xlu0 %380
      %382 = vrot.lane.b32.xlu0 %v360, 96
      %v383 = vpop.permute.xlu0 %382
      %384 = vrot.lane.b32.xlu0 %v361, 96
      %v385 = vpop.permute.xlu0 %384
      %vm394 = vcmask 31744
      %v395 = vsel %vm394, %v371, 0.0
      %396 = vadd.xlane.f32.xlu0 %v395
      %v397 = vpop.xlane.xlu0 %396
      %v398 = vsel %vm394, %v373, 0.0
      %399 = vadd.xlane.f32.xlu0 %v398
      %v400 = vpop.xlane.xlu0 %399
      %v401 = vsel %vm394, %v375, 0.0
      %402 = vadd.xlane.f32.xlu0 %v401
      %v403 = vpop.xlane.xlu0 %402
      %v404 = vsel %vm394, %v377, 0.0
      %405 = vadd.xlane.f32.xlu0 %v404
      %v406 = vpop.xlane.xlu0 %405
      %v407 = vsel %vm394, %v379, 0.0
      %408 = vadd.xlane.f32.xlu0 %v407
      %v409 = vpop.xlane.xlu0 %408
      %v410 = vsel %vm394, %v381, 0.0
      %411 = vadd.xlane.f32.xlu0 %v410
      %v412 = vpop.xlane.xlu0 %411
      %v413 = vsel %vm394, %v383, 0.0
      %414 = vadd.xlane.f32.xlu0 %v413
      %v415 = vpop.xlane.xlu0 %414
      %v416 = vsel %vm394, %v385, 0.0
      %417 = vadd.xlane.f32.xlu0 %v416
      %v418 = vpop.xlane.xlu0 %417
      %427 = vrot.lane.b32.xlu0 %v316, 96
      %v428 = vpop.permute.xlu0 %427
      %429 = vrot.lane.b32.xlu0 %v321, 96
      %v430 = vpop.permute.xlu0 %429
      %431 = vrot.lane.b32.xlu0 %v326, 96
      %v432 = vpop.permute.xlu0 %431
      %433 = vrot.lane.b32.xlu0 %v331, 96
      %v434 = vpop.permute.xlu0 %433
      %435 = vrot.lane.b32.xlu0 %v336, 96
      %v436 = vpop.permute.xlu0 %435
      %437 = vrot.lane.b32.xlu0 %v341, 96
      %v438 = vpop.permute.xlu0 %437
      %439 = vrot.lane.b32.xlu0 %v346, 96
      %v440 = vpop.permute.xlu0 %439
      %441 = vrot.lane.b32.xlu0 %v351, 96
      %v442 = vpop.permute.xlu0 %441
      %v451 = vsel %vm394, %v428, %v397
      %v452 = vsel %vm394, %v430, %v400
      %v453 = vsel %vm394, %v432, %v403
      %v454 = vsel %vm394, %v434, %v406
      %v455 = vsel %vm394, %v436, %v409
      %v456 = vsel %vm394, %v438, %v412
      %v457 = vsel %vm394, %v440, %v415
      %v458 = vsel %vm394, %v442, %v418
      %vm459 = vcmask 39936
      %v460 = vsel %vm459, %v451, 1.0
      %v461 = vsel %vm459, %v452, 1.0
      %v462 = vsel %vm459, %v453, 1.0
      %v463 = vsel %vm459, %v454, 1.0
      %v464 = vsel %vm459, %v455, 1.0
      %v465 = vsel %vm459, %v456, 1.0
      %v466 = vsel %vm459, %v457, 1.0
      %v467 = vsel %vm459, %v458, 1.0
      %v468 = vmul.f32 %v316, -2.0
      %v469 = vmul.f32 %v321, -2.0
      %v470 = vmul.f32 %v326, -2.0
      %v471 = vmul.f32 %v331, -2.0
      %v472 = vmul.f32 %v336, -2.0
      %v473 = vmul.f32 %v341, -2.0
      %v474 = vmul.f32 %v346, -2.0
      %v475 = vmul.f32 %v351, -2.0
      %484 = vrot.lane.b32.xlu0 %v468, 96
      %v485 = vpop.permute.xlu0 %484
      %486 = vrot.lane.b32.xlu0 %v469, 96
      %v487 = vpop.permute.xlu0 %486
      %488 = vrot.lane.b32.xlu0 %v470, 96
      %v489 = vpop.permute.xlu0 %488
      %490 = vrot.lane.b32.xlu0 %v471, 96
      %v491 = vpop.permute.xlu0 %490
      %492 = vrot.lane.b32.xlu0 %v472, 96
      %v493 = vpop.permute.xlu0 %492
      %494 = vrot.lane.b32.xlu0 %v473, 96
      %v495 = vpop.permute.xlu0 %494
      %496 = vrot.lane.b32.xlu0 %v474, 96
      %v497 = vpop.permute.xlu0 %496
      %498 = vrot.lane.b32.xlu0 %v475, 96
      %v499 = vpop.permute.xlu0 %498
      %v508 = vsel %vm394, %v485, 1.0
      %v509 = vsel %vm394, %v487, 1.0
      %v510 = vsel %vm394, %v489, 1.0
      %v511 = vsel %vm394, %v491, 1.0
      %v512 = vsel %vm394, %v493, 1.0
      %v513 = vsel %vm394, %v495, 1.0
      %v514 = vsel %vm394, %v497, 1.0
      %v515 = vsel %vm394, %v499, 1.0
      %v516 = vsel %vm459, %v508, %v397
      %v517 = vsel %vm459, %v509, %v400
      %v518 = vsel %vm459, %v510, %v403
      %v519 = vsel %vm459, %v511, %v406
      %v520 = vsel %vm459, %v512, %v409
      %v521 = vsel %vm459, %v513, %v412
      %v522 = vsel %vm459, %v514, %v415
      %v523 = vsel %vm459, %v515, %v418
      %vm524 = vcmask 48128
      %v526 = vsel %vm524, %v460, 0
      %v529 = vsel %vm524, %v461, 0
      %v532 = vsel %vm524, %v462, 0
      %v535 = vsel %vm524, %v463, 0
      %v538 = vsel %vm524, %v464, 0
      %v541 = vsel %vm524, %v465, 0
      %v544 = vsel %vm524, %v466, 0
      %v547 = vsel %vm524, %v467, 0
      %v550 = vsel %vm524, %v516, 0
      %v553 = vsel %vm524, %v517, 0
      %v556 = vsel %vm524, %v518, 0
      %v559 = vsel %vm524, %v519, 0
      %v562 = vsel %vm524, %v520, 0
      %v565 = vsel %vm524, %v521, 0
      %v568 = vsel %vm524, %v522, 0
      %v571 = vsel %vm524, %v523, 0
      %573 = vmatprep.subr.mxu0 0.0
      %574 = vmatpush1.xpose.msra.mxu0 %v550
      %575 = vmatprep.subr.mxu0 0.0
      %576 = vmatpush1.xpose.msra.mxu0 %v553
      %577 = vmatprep.subr.mxu0 0.0
      %578 = vmatpush1.xpose.msra.mxu0 %v556
      %579 = vmatprep.subr.mxu0 0.0
      %580 = vmatpush1.xpose.msra.mxu0 %v559
      %581 = vmatprep.subr.mxu0 0.0
      %582 = vmatpush1.xpose.msra.mxu0 %v562
      %583 = vmatprep.subr.mxu0 0.0
      %584 = vmatpush1.xpose.msra.mxu0 %v565
      %585 = vmatprep.subr.mxu0 0.0
      %586 = vmatpush1.xpose.msra.mxu0 %v568
      %587 = vmatprep.subr.mxu0 0.0
      %588 = vmatpush1.xpose.msra.mxu0 %v571
      %589 = vmatprep.subr.mxu0 0.0
      %590 = vmatpush1.xpose.msra.mxu0 0.0
      %591 = vmatprep.subr.mxu0 0.0
      %592 = vmatpush1.xpose.msra.mxu0 0.0
      %593 = vmatprep.subr.mxu0 0.0
      %594 = vmatpush1.xpose.msra.mxu0 0.0
      %595 = vmatprep.subr.mxu0 0.0
      %596 = vmatpush1.xpose.msra.mxu0 0.0
      %597 = vmatprep.subr.mxu0 0.0
      %598 = vmatpush1.xpose.msra.mxu0 0.0
      %599 = vmatprep.subr.mxu0 0.0
      %600 = vmatpush1.xpose.msra.mxu0 0.0
      %601 = vmatprep.subr.mxu0 0.0
      %602 = vmatpush1.xpose.msra.mxu0 0.0
      %603 = vmatprep.subr.mxu0 0.0
      %604 = vmatpush1.xpose.msra.mxu0 0.0
      %605 = vmatprep.subr.mxu0 0.0
      %606 = vmatpush1.xpose.msra.mxu0 0.0
      %607 = vmatprep.subr.mxu0 0.0
      %608 = vmatpush1.xpose.msra.mxu0 0.0
      %609 = vmatprep.subr.mxu0 0.0
      %610 = vmatpush1.xpose.msra.mxu0 0.0
      %611 = vmatprep.subr.mxu0 0.0
      %612 = vmatpush1.xpose.msra.mxu0 0.0
      %613 = vmatprep.subr.mxu0 0.0
      %614 = vmatpush1.xpose.msra.mxu0 0.0
      %615 = vmatprep.subr.mxu0 0.0
      %616 = vmatpush1.xpose.msra.mxu0 0.0
      %617 = vmatprep.subr.mxu0 0.0
      %618 = vmatpush1.xpose.msra.mxu0 0.0
      %619 = vmatprep.subr.mxu0 0.0
      %620 = vmatpush1.xpose.msra.mxu0 0.0
      %621 = vmatprep.subr.mxu0 0.0
      %622 = vmatpush1.xpose.msra.mxu0 0.0
      %623 = vmatprep.subr.mxu0 0.0
      %624 = vmatpush1.xpose.msra.mxu0 0.0
      %625 = vmatprep.subr.mxu0 0.0
      %626 = vmatpush1.xpose.msra.mxu0 0.0
      %627 = vmatprep.subr.mxu0 0.0
      %628 = vmatpush1.xpose.msra.mxu0 0.0
      %629 = vmatprep.subr.mxu0 0.0
      %630 = vmatpush1.xpose.msra.mxu0 0.0
      %631 = vmatprep.subr.mxu0 0.0
      %632 = vmatpush1.xpose.msra.mxu0 0.0
      %633 = vmatprep.subr.mxu0 0.0
      %634 = vmatpush1.xpose.msra.mxu0 0.0
      %635 = vmatprep.subr.mxu0 0.0
      %636 = vmatpush1.xpose.msra.mxu0 0.0
      %637 = vmatprep.mubr.f32.mxu0 0.0
      %638 = vmatmul.mubr.f32.gmra.mrb[0].mxu0 %v526
      %v639 = vpop.f32.mrb[0].mxu0
      %v640 = vadd.f32 0.0, %v639
      %v641 = vpop.f32.mrb[0].mxu0
      %642 = vmatprep.mubr.f32.mxu0 0.0
      %643 = vmatmul.mubr.f32.gmra.mrb[0].mxu0 %v529
      %v644 = vpop.f32.mrb[0].mxu0
      %v645 = vadd.f32 0.0, %v644
      %v646 = vpop.f32.mrb[0].mxu0
      %647 = vmatprep.mubr.f32.mxu0 0.0
      %648 = vmatmul.mubr.f32.gmra.mrb[0].mxu0 %v532
      %v649 = vpop.f32.mrb[0].mxu0
      %v650 = vadd.f32 0.0, %v649
      %v651 = vpop.f32.mrb[0].mxu0
      %652 = vmatprep.mubr.f32.mxu0 0.0
      %653 = vmatmul.mubr.f32.gmra.mrb[0].mxu0 %v535
      %v654 = vpop.f32.mrb[0].mxu0
      %v655 = vadd.f32 0.0, %v654
      %v656 = vpop.f32.mrb[0].mxu0
      %657 = vmatprep.mubr.f32.mxu0 0.0
      %658 = vmatmul.mubr.f32.gmra.mrb[0].mxu0 %v538
      %v659 = vpop.f32.mrb[0].mxu0
      %v660 = vadd.f32 0.0, %v659
      %v661 = vpop.f32.mrb[0].mxu0
      %662 = vmatprep.mubr.f32.mxu0 0.0
      %663 = vmatmul.mubr.f32.gmra.mrb[0].mxu0 %v541
      %v664 = vpop.f32.mrb[0].mxu0
      %v665 = vadd.f32 0.0, %v664
      %v666 = vpop.f32.mrb[0].mxu0
      %667 = vmatprep.mubr.f32.mxu0 0.0
      %668 = vmatmul.mubr.f32.gmra.mrb[0].mxu0 %v544
      %v669 = vpop.f32.mrb[0].mxu0
      %v670 = vadd.f32 0.0, %v669
      %v671 = vpop.f32.mrb[0].mxu0
      %672 = vmatprep.mubr.f32.mxu0 0.0
      %673 = vmatmul.mubr.f32.gmra.mrb[0].mxu0 %v547
      %v674 = vpop.f32.mrb[0].mxu0
      %v675 = vadd.f32 0.0, %v674
      %v676 = vpop.f32.mrb[0].mxu0
      %677 = vdwg.mxu0
      %v678 = vmax.f32 %v640, 0.0
      %v679 = vmax.f32 %v645, 0.0
      %v680 = vmax.f32 %v650, 0.0
      %v681 = vmax.f32 %v655, 0.0
      %v682 = vmax.f32 %v660, 0.0
      %v683 = vmax.f32 %v665, 0.0
      %v684 = vmax.f32 %v670, 0.0
      %v685 = vmax.f32 %v675, 0.0
      %v686 = vmul.f32 %v678, -10.0
      %v687 = vmul.f32 %v679, -10.0
      %v688 = vmul.f32 %v680, -10.0
      %v689 = vmul.f32 %v681, -10.0
      %v690 = vmul.f32 %v682, -10.0
      %v691 = vmul.f32 %v683, -10.0
      %v692 = vmul.f32 %v684, -10.0
      %v693 = vmul.f32 %v685, -10.0
      %v694 = vmul.f32 %v686, 1.442695
      %v695 = vpow.pop %v694
      %v696 = vmul.f32 %v687, 1.442695
      %v697 = vpow.pop %v696
      %v698 = vmul.f32 %v688, 1.442695
      %v699 = vpow.pop %v698
      %v700 = vmul.f32 %v689, 1.442695
      %v701 = vpow.pop %v700
      %v702 = vmul.f32 %v690, 1.442695
      %v703 = vpow.pop %v702
      %v704 = vmul.f32 %v691, 1.442695
      %v705 = vpow.pop %v704
      %v706 = vmul.f32 %v692, 1.442695
      %v707 = vpow.pop %v706
      %v708 = vmul.f32 %v693, 1.442695
      %v709 = vpow.pop %v708
      %vm710 = vcmask 523264
      %v712 = vsel %vm710, %v695, 0
      %v715 = vsel %vm710, %v697, 0
      %v718 = vsel %vm710, %v699, 0
      %v721 = vsel %vm710, %v701, 0
      %v724 = vsel %vm710, %v703, 0
      %v727 = vsel %vm710, %v705, 0
      %v730 = vsel %vm710, %v707, 0
      %v733 = vsel %vm710, %v709, 0
      %735 = vmatprep.subr.mxu0 0.0
      %736 = vmatpush1.msra.mxu0 %v316
      %737 = vmatprep.subr.mxu0 0.0
      %738 = vmatpush1.msra.mxu0 %v321
      %739 = vmatprep.subr.mxu0 0.0
      %740 = vmatpush1.msra.mxu0 %v326
      %741 = vmatprep.subr.mxu0 0.0
      %742 = vmatpush1.msra.mxu0 %v331
      %743 = vmatprep.subr.mxu0 0.0
      %744 = vmatpush1.msra.mxu0 %v336
      %745 = vmatprep.subr.mxu0 0.0
      %746 = vmatpush1.msra.mxu0 %v341
      %747 = vmatprep.subr.mxu0 0.0
      %748 = vmatpush1.msra.mxu0 %v346
      %749 = vmatprep.subr.mxu0 0.0
      %750 = vmatpush1.msra.mxu0 %v351
      %751 = vmatprep.subr.mxu0 0.0
      %752 = vmatpush1.msra.mxu0 0.0
      %753 = vmatprep.subr.mxu0 0.0
      %754 = vmatpush1.msra.mxu0 0.0
      %755 = vmatprep.subr.mxu0 0.0
      %756 = vmatpush1.msra.mxu0 0.0
      %757 = vmatprep.subr.mxu0 0.0
      %758 = vmatpush1.msra.mxu0 0.0
      %759 = vmatprep.subr.mxu0 0.0
      %760 = vmatpush1.msra.mxu0 0.0
      %761 = vmatprep.subr.mxu0 0.0
      %762 = vmatpush1.msra.mxu0 0.0
      %763 = vmatprep.subr.mxu0 0.0
      %764 = vmatpush1.msra.mxu0 0.0
      %765 = vmatprep.subr.mxu0 0.0
      %766 = vmatpush1.msra.mxu0 0.0
      %767 = vmatprep.subr.mxu0 0.0
      %768 = vmatpush1.msra.mxu0 0.0
      %769 = vmatprep.subr.mxu0 0.0
      %770 = vmatpush1.msra.mxu0 0.0
      %771 = vmatprep.subr.mxu0 0.0
      %772 = vmatpush1.msra.mxu0 0.0
      %773 = vmatprep.subr.mxu0 0.0
      %774 = vmatpush1.msra.mxu0 0.0
      %775 = vmatprep.subr.mxu0 0.0
      %776 = vmatpush1.msra.mxu0 0.0
      %777 = vmatprep.subr.mxu0 0.0
      %778 = vmatpush1.msra.mxu0 0.0
      %779 = vmatprep.subr.mxu0 0.0
      %780 = vmatpush1.msra.mxu0 0.0
      %781 = vmatprep.subr.mxu0 0.0
      %782 = vmatpush1.msra.mxu0 0.0
      %783 = vmatprep.subr.mxu0 0.0
      %784 = vmatpush1.msra.mxu0 0.0
      %785 = vmatprep.subr.mxu0 0.0
      %786 = vmatpush1.msra.mxu0 0.0
      %787 = vmatprep.subr.mxu0 0.0
      %788 = vmatpush1.msra.mxu0 0.0
      %789 = vmatprep.subr.mxu0 0.0
      %790 = vmatpush1.msra.mxu0 0.0
      %791 = vmatprep.subr.mxu0 0.0
      %792 = vmatpush1.msra.mxu0 0.0
      %793 = vmatprep.subr.mxu0 0.0
      %794 = vmatpush1.msra.mxu0 0.0
      %795 = vmatprep.subr.mxu0 0.0
      %796 = vmatpush1.msra.mxu0 0.0
      %797 = vmatprep.subr.mxu0 0.0
      %798 = vmatpush1.msra.mxu0 0.0
      %799 = vmatprep.mubr.f32.mxu0 0.0
      %800 = vmatmul.mubr.f32.gmra.mrb[0].mxu0 %v712
      %v801 = vpop.f32.mrb[0].mxu0
      %v802 = vadd.f32 0.0, %v801
      %v803 = vpop.f32.mrb[0].mxu0
      %804 = vmatprep.mubr.f32.mxu0 0.0
      %805 = vmatmul.mubr.f32.gmra.mrb[0].mxu0 %v715
      %v806 = vpop.f32.mrb[0].mxu0
      %v807 = vadd.f32 0.0, %v806
      %v808 = vpop.f32.mrb[0].mxu0
      %809 = vmatprep.mubr.f32.mxu0 0.0
      %810 = vmatmul.mubr.f32.gmra.mrb[0].mxu0 %v718
      %v811 = vpop.f32.mrb[0].mxu0
      %v812 = vadd.f32 0.0, %v811
      %v813 = vpop.f32.mrb[0].mxu0
      %814 = vmatprep.mubr.f32.mxu0 0.0
      %815 = vmatmul.mubr.f32.gmra.mrb[0].mxu0 %v721
      %v816 = vpop.f32.mrb[0].mxu0
      %v817 = vadd.f32 0.0, %v816
      %v818 = vpop.f32.mrb[0].mxu0
      %819 = vmatprep.mubr.f32.mxu0 0.0
      %820 = vmatmul.mubr.f32.gmra.mrb[0].mxu0 %v724
      %v821 = vpop.f32.mrb[0].mxu0
      %v822 = vadd.f32 0.0, %v821
      %v823 = vpop.f32.mrb[0].mxu0
      %824 = vmatprep.mubr.f32.mxu0 0.0
      %825 = vmatmul.mubr.f32.gmra.mrb[0].mxu0 %v727
      %v826 = vpop.f32.mrb[0].mxu0
      %v827 = vadd.f32 0.0, %v826
      %v828 = vpop.f32.mrb[0].mxu0
      %829 = vmatprep.mubr.f32.mxu0 0.0
      %830 = vmatmul.mubr.f32.gmra.mrb[0].mxu0 %v730
      %v831 = vpop.f32.mrb[0].mxu0
      %v832 = vadd.f32 0.0, %v831
      %v833 = vpop.f32.mrb[0].mxu0
      %834 = vmatprep.mubr.f32.mxu0 0.0
      %835 = vmatmul.mubr.f32.gmra.mrb[0].mxu0 %v733
      %v836 = vpop.f32.mrb[0].mxu0
      %v837 = vadd.f32 0.0, %v836
      %v838 = vpop.f32.mrb[0].mxu0
      %839 = vdwg.mxu0
      %v840 = vlaneseq
      %v841 = vshrl.u32 %v840, 7
      %v842 = vsub.s32 0, %v841
      %v843 = vrot.slane %v695, %v842
      %845 = vbcast.lane.b32.xlu0 %v843, 256
      %v846 = vpop.permute.xlu0 %845
      %s848 = sor.u32 256, 8
      %849 = vbcast.lane.b32.xlu0 %v843, %s848
      %v850 = vpop.permute.xlu0 %849
      %s852 = sor.u32 256, 16
      %853 = vbcast.lane.b32.xlu0 %v843, %s852
      %v854 = vpop.permute.xlu0 %853
      %s856 = sor.u32 256, 24
      %857 = vbcast.lane.b32.xlu0 %v843, %s856
      %v858 = vpop.permute.xlu0 %857
      %s860 = sor.u32 256, 32
      %861 = vbcast.lane.b32.xlu0 %v843, %s860
      %v862 = vpop.permute.xlu0 %861
      %s864 = sor.u32 256, 40
      %865 = vbcast.lane.b32.xlu0 %v843, %s864
      %v866 = vpop.permute.xlu0 %865
      %s868 = sor.u32 256, 48
      %869 = vbcast.lane.b32.xlu0 %v843, %s868
      %v870 = vpop.permute.xlu0 %869
      %s872 = sor.u32 256, 56
      %873 = vbcast.lane.b32.xlu0 %v843, %s872
      %v874 = vpop.permute.xlu0 %873
      %v875 = vlaneseq
      %v876 = vshrl.u32 %v875, 7
      %v877 = vsub.s32 1, %v876
      %v878 = vrot.slane %v695, %v877
      %880 = vbcast.lane.b32.xlu0 %v878, 256
      %v881 = vpop.permute.xlu0 %880
      %s883 = sor.u32 256, 8
      %884 = vbcast.lane.b32.xlu0 %v878, %s883
      %v885 = vpop.permute.xlu0 %884
      %s887 = sor.u32 256, 16
      %888 = vbcast.lane.b32.xlu0 %v878, %s887
      %v889 = vpop.permute.xlu0 %888
      %s891 = sor.u32 256, 24
      %892 = vbcast.lane.b32.xlu0 %v878, %s891
      %v893 = vpop.permute.xlu0 %892
      %s895 = sor.u32 256, 32
      %896 = vbcast.lane.b32.xlu0 %v878, %s895
      %v897 = vpop.permute.xlu0 %896
      %s899 = sor.u32 256, 40
      %900 = vbcast.lane.b32.xlu0 %v878, %s899
      %v901 = vpop.permute.xlu0 %900
      %s903 = sor.u32 256, 48
      %904 = vbcast.lane.b32.xlu0 %v878, %s903
      %v905 = vpop.permute.xlu0 %904
      %s907 = sor.u32 256, 56
      %908 = vbcast.lane.b32.xlu0 %v878, %s907
      %v909 = vpop.permute.xlu0 %908
      %v910 = vlaneseq
      %v911 = vshrl.u32 %v910, 7
      %v912 = vsub.s32 2, %v911
      %v913 = vrot.slane %v695, %v912
      %915 = vbcast.lane.b32.xlu0 %v913, 256
      %v916 = vpop.permute.xlu0 %915
      %s918 = sor.u32 256, 8
      %919 = vbcast.lane.b32.xlu0 %v913, %s918
      %v920 = vpop.permute.xlu0 %919
      %s922 = sor.u32 256, 16
      %923 = vbcast.lane.b32.xlu0 %v913, %s922
      %v924 = vpop.permute.xlu0 %923
      %s926 = sor.u32 256, 24
      %927 = vbcast.lane.b32.xlu0 %v913, %s926
      %v928 = vpop.permute.xlu0 %927
      %s930 = sor.u32 256, 32
      %931 = vbcast.lane.b32.xlu0 %v913, %s930
      %v932 = vpop.permute.xlu0 %931
      %s934 = sor.u32 256, 40
      %935 = vbcast.lane.b32.xlu0 %v913, %s934
      %v936 = vpop.permute.xlu0 %935
      %s938 = sor.u32 256, 48
      %939 = vbcast.lane.b32.xlu0 %v913, %s938
      %v940 = vpop.permute.xlu0 %939
      %s942 = sor.u32 256, 56
      %943 = vbcast.lane.b32.xlu0 %v913, %s942
      %v944 = vpop.permute.xlu0 %943
      %v945 = vlaneseq
      %v946 = vshrl.u32 %v945, 7
      %v947 = vsub.s32 3, %v946
      %v948 = vrot.slane %v695, %v947
      %950 = vbcast.lane.b32.xlu0 %v948, 256
      %v951 = vpop.permute.xlu0 %950
      %s953 = sor.u32 256, 8
      %954 = vbcast.lane.b32.xlu0 %v948, %s953
      %v955 = vpop.permute.xlu0 %954
      %s957 = sor.u32 256, 16
      %958 = vbcast.lane.b32.xlu0 %v948, %s957
      %v959 = vpop.permute.xlu0 %958
      %s961 = sor.u32 256, 24
      %962 = vbcast.lane.b32.xlu0 %v948, %s961
      %v963 = vpop.permute.xlu0 %962
      %s965 = sor.u32 256, 32
      %966 = vbcast.lane.b32.xlu0 %v948, %s965
      %v967 = vpop.permute.xlu0 %966
      %s969 = sor.u32 256, 40
      %970 = vbcast.lane.b32.xlu0 %v948, %s969
      %v971 = vpop.permute.xlu0 %970
      %s973 = sor.u32 256, 48
      %974 = vbcast.lane.b32.xlu0 %v948, %s973
      %v975 = vpop.permute.xlu0 %974
      %s977 = sor.u32 256, 56
      %978 = vbcast.lane.b32.xlu0 %v948, %s977
      %v979 = vpop.permute.xlu0 %978
      %v980 = vlaneseq
      %v981 = vshrl.u32 %v980, 7
      %v982 = vsub.s32 4, %v981
      %v983 = vrot.slane %v695, %v982
      %985 = vbcast.lane.b32.xlu0 %v983, 256
      %v986 = vpop.permute.xlu0 %985
      %s988 = sor.u32 256, 8
      %989 = vbcast.lane.b32.xlu0 %v983, %s988
      %v990 = vpop.permute.xlu0 %989
      %s992 = sor.u32 256, 16
      %993 = vbcast.lane.b32.xlu0 %v983, %s992
      %v994 = vpop.permute.xlu0 %993
      %s996 = sor.u32 256, 24
      %997 = vbcast.lane.b32.xlu0 %v983, %s996
      %v998 = vpop.permute.xlu0 %997
      %s1000 = sor.u32 256, 32
      %1001 = vbcast.lane.b32.xlu0 %v983, %s1000
      %v1002 = vpop.permute.xlu0 %1001
      %s1004 = sor.u32 256, 40
      %1005 = vbcast.lane.b32.xlu0 %v983, %s1004
      %v1006 = vpop.permute.xlu0 %1005
      %s1008 = sor.u32 256, 48
      %1009 = vbcast.lane.b32.xlu0 %v983, %s1008
      %v1010 = vpop.permute.xlu0 %1009
      %s1012 = sor.u32 256, 56
      %1013 = vbcast.lane.b32.xlu0 %v983, %s1012
      %v1014 = vpop.permute.xlu0 %1013
      %v1015 = vlaneseq
      %v1016 = vshrl.u32 %v1015, 7
      %v1017 = vsub.s32 5, %v1016
      %v1018 = vrot.slane %v695, %v1017
      %1020 = vbcast.lane.b32.xlu0 %v1018, 256
      %v1021 = vpop.permute.xlu0 %1020
      %s1023 = sor.u32 256, 8
      %1024 = vbcast.lane.b32.xlu0 %v1018, %s1023
      %v1025 = vpop.permute.xlu0 %1024
      %s1027 = sor.u32 256, 16
      %1028 = vbcast.lane.b32.xlu0 %v1018, %s1027
      %v1029 = vpop.permute.xlu0 %1028
      %s1031 = sor.u32 256, 24
      %1032 = vbcast.lane.b32.xlu0 %v1018, %s1031
      %v1033 = vpop.permute.xlu0 %1032
      %s1035 = sor.u32 256, 32
      %1036 = vbcast.lane.b32.xlu0 %v1018, %s1035
      %v1037 = vpop.permute.xlu0 %1036
      %s1039 = sor.u32 256, 40
      %1040 = vbcast.lane.b32.xlu0 %v1018, %s1039
      %v1041 = vpop.permute.xlu0 %1040
      %s1043 = sor.u32 256, 48
      %1044 = vbcast.lane.b32.xlu0 %v1018, %s1043
      %v1045 = vpop.permute.xlu0 %1044
      %s1047 = sor.u32 256, 56
      %1048 = vbcast.lane.b32.xlu0 %v1018, %s1047
      %v1049 = vpop.permute.xlu0 %1048
      %v1050 = vlaneseq
      %v1051 = vshrl.u32 %v1050, 7
      %v1052 = vsub.s32 6, %v1051
      %v1053 = vrot.slane %v695, %v1052
      %1055 = vbcast.lane.b32.xlu0 %v1053, 256
      %v1056 = vpop.permute.xlu0 %1055
      %s1058 = sor.u32 256, 8
      %1059 = vbcast.lane.b32.xlu0 %v1053, %s1058
      %v1060 = vpop.permute.xlu0 %1059
      %s1062 = sor.u32 256, 16
      %1063 = vbcast.lane.b32.xlu0 %v1053, %s1062
      %v1064 = vpop.permute.xlu0 %1063
      %s1066 = sor.u32 256, 24
      %1067 = vbcast.lane.b32.xlu0 %v1053, %s1066
      %v1068 = vpop.permute.xlu0 %1067
      %s1070 = sor.u32 256, 32
      %1071 = vbcast.lane.b32.xlu0 %v1053, %s1070
      %v1072 = vpop.permute.xlu0 %1071
      %s1074 = sor.u32 256, 40
      %1075 = vbcast.lane.b32.xlu0 %v1053, %s1074
      %v1076 = vpop.permute.xlu0 %1075
      %s1078 = sor.u32 256, 48
      %1079 = vbcast.lane.b32.xlu0 %v1053, %s1078
      %v1080 = vpop.permute.xlu0 %1079
      %s1082 = sor.u32 256, 56
      %1083 = vbcast.lane.b32.xlu0 %v1053, %s1082
      %v1084 = vpop.permute.xlu0 %1083
      %v1085 = vlaneseq
      %v1086 = vshrl.u32 %v1085, 7
      %v1087 = vsub.s32 7, %v1086
      %v1088 = vrot.slane %v695, %v1087
      %1090 = vbcast.lane.b32.xlu0 %v1088, 256
      %v1091 = vpop.permute.xlu0 %1090
      %s1093 = sor.u32 256, 8
      %1094 = vbcast.lane.b32.xlu0 %v1088, %s1093
      %v1095 = vpop.permute.xlu0 %1094
      %s1097 = sor.u32 256, 16
      %1098 = vbcast.lane.b32.xlu0 %v1088, %s1097
      %v1099 = vpop.permute.xlu0 %1098
      %s1101 = sor.u32 256, 24
      %1102 = vbcast.lane.b32.xlu0 %v1088, %s1101
      %v1103 = vpop.permute.xlu0 %1102
      %s1105 = sor.u32 256, 32
      %1106 = vbcast.lane.b32.xlu0 %v1088, %s1105
      %v1107 = vpop.permute.xlu0 %1106
      %s1109 = sor.u32 256, 40
      %1110 = vbcast.lane.b32.xlu0 %v1088, %s1109
      %v1111 = vpop.permute.xlu0 %1110
      %s1113 = sor.u32 256, 48
      %1114 = vbcast.lane.b32.xlu0 %v1088, %s1113
      %v1115 = vpop.permute.xlu0 %1114
      %s1117 = sor.u32 256, 56
      %1118 = vbcast.lane.b32.xlu0 %v1088, %s1117
      %v1119 = vpop.permute.xlu0 %1118
      %v1120 = vlaneseq
      %v1121 = vshrl.u32 %v1120, 7
      %v1122 = vsub.s32 0, %v1121
      %v1123 = vrot.slane %v697, %v1122
      %1125 = vbcast.lane.b32.xlu0 %v1123, 256
      %v1126 = vpop.permute.xlu0 %1125
      %s1128 = sor.u32 256, 8
      %1129 = vbcast.lane.b32.xlu0 %v1123, %s1128
      %v1130 = vpop.permute.xlu0 %1129
      %s1132 = sor.u32 256, 16
      %1133 = vbcast.lane.b32.xlu0 %v1123, %s1132
      %v1134 = vpop.permute.xlu0 %1133
      %s1136 = sor.u32 256, 24
      %1137 = vbcast.lane.b32.xlu0 %v1123, %s1136
      %v1138 = vpop.permute.xlu0 %1137
      %s1140 = sor.u32 256, 32
      %1141 = vbcast.lane.b32.xlu0 %v1123, %s1140
      %v1142 = vpop.permute.xlu0 %1141
      %s1144 = sor.u32 256, 40
      %1145 = vbcast.lane.b32.xlu0 %v1123, %s1144
      %v1146 = vpop.permute.xlu0 %1145
      %s1148 = sor.u32 256, 48
      %1149 = vbcast.lane.b32.xlu0 %v1123, %s1148
      %v1150 = vpop.permute.xlu0 %1149
      %s1152 = sor.u32 256, 56
      %1153 = vbcast.lane.b32.xlu0 %v1123, %s1152
      %v1154 = vpop.permute.xlu0 %1153
      %v1155 = vlaneseq
      %v1156 = vshrl.u32 %v1155, 7
      %v1157 = vsub.s32 1, %v1156
      %v1158 = vrot.slane %v697, %v1157
      %1160 = vbcast.lane.b32.xlu0 %v1158, 256
      %v1161 = vpop.permute.xlu0 %1160
      %s1163 = sor.u32 256, 8
      %1164 = vbcast.lane.b32.xlu0 %v1158, %s1163
      %v1165 = vpop.permute.xlu0 %1164
      %s1167 = sor.u32 256, 16
      %1168 = vbcast.lane.b32.xlu0 %v1158, %s1167
      %v1169 = vpop.permute.xlu0 %1168
      %s1171 = sor.u32 256, 24
      %1172 = vbcast.lane.b32.xlu0 %v1158, %s1171
      %v1173 = vpop.permute.xlu0 %1172
      %s1175 = sor.u32 256, 32
      %1176 = vbcast.lane.b32.xlu0 %v1158, %s1175
      %v1177 = vpop.permute.xlu0 %1176
      %s1179 = sor.u32 256, 40
      %1180 = vbcast.lane.b32.xlu0 %v1158, %s1179
      %v1181 = vpop.permute.xlu0 %1180
      %s1183 = sor.u32 256, 48
      %1184 = vbcast.lane.b32.xlu0 %v1158, %s1183
      %v1185 = vpop.permute.xlu0 %1184
      %s1187 = sor.u32 256, 56
      %1188 = vbcast.lane.b32.xlu0 %v1158, %s1187
      %v1189 = vpop.permute.xlu0 %1188
      %v1190 = vlaneseq
      %v1191 = vshrl.u32 %v1190, 7
      %v1192 = vsub.s32 2, %v1191
      %v1193 = vrot.slane %v697, %v1192
      %1195 = vbcast.lane.b32.xlu0 %v1193, 256
      %v1196 = vpop.permute.xlu0 %1195
      %s1198 = sor.u32 256, 8
      %1199 = vbcast.lane.b32.xlu0 %v1193, %s1198
      %v1200 = vpop.permute.xlu0 %1199
      %s1202 = sor.u32 256, 16
      %1203 = vbcast.lane.b32.xlu0 %v1193, %s1202
      %v1204 = vpop.permute.xlu0 %1203
      %s1206 = sor.u32 256, 24
      %1207 = vbcast.lane.b32.xlu0 %v1193, %s1206
      %v1208 = vpop.permute.xlu0 %1207
      %s1210 = sor.u32 256, 32
      %1211 = vbcast.lane.b32.xlu0 %v1193, %s1210
      %v1212 = vpop.permute.xlu0 %1211
      %s1214 = sor.u32 256, 40
      %1215 = vbcast.lane.b32.xlu0 %v1193, %s1214
      %v1216 = vpop.permute.xlu0 %1215
      %s1218 = sor.u32 256, 48
      %1219 = vbcast.lane.b32.xlu0 %v1193, %s1218
      %v1220 = vpop.permute.xlu0 %1219
      %s1222 = sor.u32 256, 56
      %1223 = vbcast.lane.b32.xlu0 %v1193, %s1222
      %v1224 = vpop.permute.xlu0 %1223
      %v1225 = vlaneseq
      %v1226 = vshrl.u32 %v1225, 7
      %v1227 = vsub.s32 3, %v1226
      %v1228 = vrot.slane %v697, %v1227
      %1230 = vbcast.lane.b32.xlu0 %v1228, 256
      %v1231 = vpop.permute.xlu0 %1230
      %s1233 = sor.u32 256, 8
      %1234 = vbcast.lane.b32.xlu0 %v1228, %s1233
      %v1235 = vpop.permute.xlu0 %1234
      %s1237 = sor.u32 256, 16
      %1238 = vbcast.lane.b32.xlu0 %v1228, %s1237
      %v1239 = vpop.permute.xlu0 %1238
      %s1241 = sor.u32 256, 24
      %1242 = vbcast.lane.b32.xlu0 %v1228, %s1241
      %v1243 = vpop.permute.xlu0 %1242
      %s1245 = sor.u32 256, 32
      %1246 = vbcast.lane.b32.xlu0 %v1228, %s1245
      %v1247 = vpop.permute.xlu0 %1246
      %s1249 = sor.u32 256, 40
      %1250 = vbcast.lane.b32.xlu0 %v1228, %s1249
      %v1251 = vpop.permute.xlu0 %1250
      %s1253 = sor.u32 256, 48
      %1254 = vbcast.lane.b32.xlu0 %v1228, %s1253
      %v1255 = vpop.permute.xlu0 %1254
      %s1257 = sor.u32 256, 56
      %1258 = vbcast.lane.b32.xlu0 %v1228, %s1257
      %v1259 = vpop.permute.xlu0 %1258
      %v1260 = vlaneseq
      %v1261 = vshrl.u32 %v1260, 7
      %v1262 = vsub.s32 4, %v1261
      %v1263 = vrot.slane %v697, %v1262
      %1265 = vbcast.lane.b32.xlu0 %v1263, 256
      %v1266 = vpop.permute.xlu0 %1265
      %s1268 = sor.u32 256, 8
      %1269 = vbcast.lane.b32.xlu0 %v1263, %s1268
      %v1270 = vpop.permute.xlu0 %1269
      %s1272 = sor.u32 256, 16
      %1273 = vbcast.lane.b32.xlu0 %v1263, %s1272
      %v1274 = vpop.permute.xlu0 %1273
      %s1276 = sor.u32 256, 24
      %1277 = vbcast.lane.b32.xlu0 %v1263, %s1276
      %v1278 = vpop.permute.xlu0 %1277
      %s1280 = sor.u32 256, 32
      %1281 = vbcast.lane.b32.xlu0 %v1263, %s1280
      %v1282 = vpop.permute.xlu0 %1281
      %s1284 = sor.u32 256, 40
      %1285 = vbcast.lane.b32.xlu0 %v1263, %s1284
      %v1286 = vpop.permute.xlu0 %1285
      %s1288 = sor.u32 256, 48
      %1289 = vbcast.lane.b32.xlu0 %v1263, %s1288
      %v1290 = vpop.permute.xlu0 %1289
      %s1292 = sor.u32 256, 56
      %1293 = vbcast.lane.b32.xlu0 %v1263, %s1292
      %v1294 = vpop.permute.xlu0 %1293
      %v1295 = vlaneseq
      %v1296 = vshrl.u32 %v1295, 7
      %v1297 = vsub.s32 5, %v1296
      %v1298 = vrot.slane %v697, %v1297
      %1300 = vbcast.lane.b32.xlu0 %v1298, 256
      %v1301 = vpop.permute.xlu0 %1300
      %s1303 = sor.u32 256, 8
      %1304 = vbcast.lane.b32.xlu0 %v1298, %s1303
      %v1305 = vpop.permute.xlu0 %1304
      %s1307 = sor.u32 256, 16
      %1308 = vbcast.lane.b32.xlu0 %v1298, %s1307
      %v1309 = vpop.permute.xlu0 %1308
      %s1311 = sor.u32 256, 24
      %1312 = vbcast.lane.b32.xlu0 %v1298, %s1311
      %v1313 = vpop.permute.xlu0 %1312
      %s1315 = sor.u32 256, 32
      %1316 = vbcast.lane.b32.xlu0 %v1298, %s1315
      %v1317 = vpop.permute.xlu0 %1316
      %s1319 = sor.u32 256, 40
      %1320 = vbcast.lane.b32.xlu0 %v1298, %s1319
      %v1321 = vpop.permute.xlu0 %1320
      %s1323 = sor.u32 256, 48
      %1324 = vbcast.lane.b32.xlu0 %v1298, %s1323
      %v1325 = vpop.permute.xlu0 %1324
      %s1327 = sor.u32 256, 56
      %1328 = vbcast.lane.b32.xlu0 %v1298, %s1327
      %v1329 = vpop.permute.xlu0 %1328
      %v1330 = vlaneseq
      %v1331 = vshrl.u32 %v1330, 7
      %v1332 = vsub.s32 6, %v1331
      %v1333 = vrot.slane %v697, %v1332
      %1335 = vbcast.lane.b32.xlu0 %v1333, 256
      %v1336 = vpop.permute.xlu0 %1335
      %s1338 = sor.u32 256, 8
      %1339 = vbcast.lane.b32.xlu0 %v1333, %s1338
      %v1340 = vpop.permute.xlu0 %1339
      %s1342 = sor.u32 256, 16
      %1343 = vbcast.lane.b32.xlu0 %v1333, %s1342
      %v1344 = vpop.permute.xlu0 %1343
      %s1346 = sor.u32 256, 24
      %1347 = vbcast.lane.b32.xlu0 %v1333, %s1346
      %v1348 = vpop.permute.xlu0 %1347
      %s1350 = sor.u32 256, 32
      %1351 = vbcast.lane.b32.xlu0 %v1333, %s1350
      %v1352 = vpop.permute.xlu0 %1351
      %s1354 = sor.u32 256, 40
      %1355 = vbcast.lane.b32.xlu0 %v1333, %s1354
      %v1356 = vpop.permute.xlu0 %1355
      %s1358 = sor.u32 256, 48
      %1359 = vbcast.lane.b32.xlu0 %v1333, %s1358
      %v1360 = vpop.permute.xlu0 %1359
      %s1362 = sor.u32 256, 56
      %1363 = vbcast.lane.b32.xlu0 %v1333, %s1362
      %v1364 = vpop.permute.xlu0 %1363
      %v1365 = vlaneseq
      %v1366 = vshrl.u32 %v1365, 7
      %v1367 = vsub.s32 7, %v1366
      %v1368 = vrot.slane %v697, %v1367
      %1370 = vbcast.lane.b32.xlu0 %v1368, 256
      %v1371 = vpop.permute.xlu0 %1370
      %s1373 = sor.u32 256, 8
      %1374 = vbcast.lane.b32.xlu0 %v1368, %s1373
      %v1375 = vpop.permute.xlu0 %1374
      %s1377 = sor.u32 256, 16
      %1378 = vbcast.lane.b32.xlu0 %v1368, %s1377
      %v1379 = vpop.permute.xlu0 %1378
      %s1381 = sor.u32 256, 24
      %1382 = vbcast.lane.b32.xlu0 %v1368, %s1381
      %v1383 = vpop.permute.xlu0 %1382
      %s1385 = sor.u32 256, 32
      %1386 = vbcast.lane.b32.xlu0 %v1368, %s1385
      %v1387 = vpop.permute.xlu0 %1386
      %s1389 = sor.u32 256, 40
      %1390 = vbcast.lane.b32.xlu0 %v1368, %s1389
      %v1391 = vpop.permute.xlu0 %1390
      %s1393 = sor.u32 256, 48
      %1394 = vbcast.lane.b32.xlu0 %v1368, %s1393
      %v1395 = vpop.permute.xlu0 %1394
      %s1397 = sor.u32 256, 56
      %1398 = vbcast.lane.b32.xlu0 %v1368, %s1397
      %v1399 = vpop.permute.xlu0 %1398
      %v1400 = vlaneseq
      %v1401 = vshrl.u32 %v1400, 7
      %v1402 = vsub.s32 0, %v1401
      %v1403 = vrot.slane %v699, %v1402
      %1405 = vbcast.lane.b32.xlu0 %v1403, 256
      %v1406 = vpop.permute.xlu0 %1405
      %s1408 = sor.u32 256, 8
      %1409 = vbcast.lane.b32.xlu0 %v1403, %s1408
      %v1410 = vpop.permute.xlu0 %1409
      %s1412 = sor.u32 256, 16
      %1413 = vbcast.lane.b32.xlu0 %v1403, %s1412
      %v1414 = vpop.permute.xlu0 %1413
      %s1416 = sor.u32 256, 24
      %1417 = vbcast.lane.b32.xlu0 %v1403, %s1416
      %v1418 = vpop.permute.xlu0 %1417
      %s1420 = sor.u32 256, 32
      %1421 = vbcast.lane.b32.xlu0 %v1403, %s1420
      %v1422 = vpop.permute.xlu0 %1421
      %s1424 = sor.u32 256, 40
      %1425 = vbcast.lane.b32.xlu0 %v1403, %s1424
      %v1426 = vpop.permute.xlu0 %1425
      %s1428 = sor.u32 256, 48
      %1429 = vbcast.lane.b32.xlu0 %v1403, %s1428
      %v1430 = vpop.permute.xlu0 %1429
      %s1432 = sor.u32 256, 56
      %1433 = vbcast.lane.b32.xlu0 %v1403, %s1432
      %v1434 = vpop.permute.xlu0 %1433
      %v1435 = vlaneseq
      %v1436 = vshrl.u32 %v1435, 7
      %v1437 = vsub.s32 1, %v1436
      %v1438 = vrot.slane %v699, %v1437
      %1440 = vbcast.lane.b32.xlu0 %v1438, 256
      %v1441 = vpop.permute.xlu0 %1440
      %s1443 = sor.u32 256, 8
      %1444 = vbcast.lane.b32.xlu0 %v1438, %s1443
      %v1445 = vpop.permute.xlu0 %1444
      %s1447 = sor.u32 256, 16
      %1448 = vbcast.lane.b32.xlu0 %v1438, %s1447
      %v1449 = vpop.permute.xlu0 %1448
      %s1451 = sor.u32 256, 24
      %1452 = vbcast.lane.b32.xlu0 %v1438, %s1451
      %v1453 = vpop.permute.xlu0 %1452
      %s1455 = sor.u32 256, 32
      %1456 = vbcast.lane.b32.xlu0 %v1438, %s1455
      %v1457 = vpop.permute.xlu0 %1456
      %s1459 = sor.u32 256, 40
      %1460 = vbcast.lane.b32.xlu0 %v1438, %s1459
      %v1461 = vpop.permute.xlu0 %1460
      %s1463 = sor.u32 256, 48
      %1464 = vbcast.lane.b32.xlu0 %v1438, %s1463
      %v1465 = vpop.permute.xlu0 %1464
      %s1467 = sor.u32 256, 56
      %1468 = vbcast.lane.b32.xlu0 %v1438, %s1467
      %v1469 = vpop.permute.xlu0 %1468
      %v1470 = vlaneseq
      %v1471 = vshrl.u32 %v1470, 7
      %v1472 = vsub.s32 2, %v1471
      %v1473 = vrot.slane %v699, %v1472
      %1475 = vbcast.lane.b32.xlu0 %v1473, 256
      %v1476 = vpop.permute.xlu0 %1475
      %s1478 = sor.u32 256, 8
      %1479 = vbcast.lane.b32.xlu0 %v1473, %s1478
      %v1480 = vpop.permute.xlu0 %1479
      %s1482 = sor.u32 256, 16
      %1483 = vbcast.lane.b32.xlu0 %v1473, %s1482
      %v1484 = vpop.permute.xlu0 %1483
      %s1486 = sor.u32 256, 24
      %1487 = vbcast.lane.b32.xlu0 %v1473, %s1486
      %v1488 = vpop.permute.xlu0 %1487
      %s1490 = sor.u32 256, 32
      %1491 = vbcast.lane.b32.xlu0 %v1473, %s1490
      %v1492 = vpop.permute.xlu0 %1491
      %s1494 = sor.u32 256, 40
      %1495 = vbcast.lane.b32.xlu0 %v1473, %s1494
      %v1496 = vpop.permute.xlu0 %1495
      %s1498 = sor.u32 256, 48
      %1499 = vbcast.lane.b32.xlu0 %v1473, %s1498
      %v1500 = vpop.permute.xlu0 %1499
      %s1502 = sor.u32 256, 56
      %1503 = vbcast.lane.b32.xlu0 %v1473, %s1502
      %v1504 = vpop.permute.xlu0 %1503
      %v1505 = vlaneseq
      %v1506 = vshrl.u32 %v1505, 7
      %v1507 = vsub.s32 3, %v1506
      %v1508 = vrot.slane %v699, %v1507
      %1510 = vbcast.lane.b32.xlu0 %v1508, 256
      %v1511 = vpop.permute.xlu0 %1510
      %s1513 = sor.u32 256, 8
      %1514 = vbcast.lane.b32.xlu0 %v1508, %s1513
      %v1515 = vpop.permute.xlu0 %1514
      %s1517 = sor.u32 256, 16
      %1518 = vbcast.lane.b32.xlu0 %v1508, %s1517
      %v1519 = vpop.permute.xlu0 %1518
      %s1521 = sor.u32 256, 24
      %1522 = vbcast.lane.b32.xlu0 %v1508, %s1521
      %v1523 = vpop.permute.xlu0 %1522
      %s1525 = sor.u32 256, 32
      %1526 = vbcast.lane.b32.xlu0 %v1508, %s1525
      %v1527 = vpop.permute.xlu0 %1526
      %s1529 = sor.u32 256, 40
      %1530 = vbcast.lane.b32.xlu0 %v1508, %s1529
      %v1531 = vpop.permute.xlu0 %1530
      %s1533 = sor.u32 256, 48
      %1534 = vbcast.lane.b32.xlu0 %v1508, %s1533
      %v1535 = vpop.permute.xlu0 %1534
      %s1537 = sor.u32 256, 56
      %1538 = vbcast.lane.b32.xlu0 %v1508, %s1537
      %v1539 = vpop.permute.xlu0 %1538
      %v1540 = vlaneseq
      %v1541 = vshrl.u32 %v1540, 7
      %v1542 = vsub.s32 4, %v1541
      %v1543 = vrot.slane %v699, %v1542
      %1545 = vbcast.lane.b32.xlu0 %v1543, 256
      %v1546 = vpop.permute.xlu0 %1545
      %s1548 = sor.u32 256, 8
      %1549 = vbcast.lane.b32.xlu0 %v1543, %s1548
      %v1550 = vpop.permute.xlu0 %1549
      %s1552 = sor.u32 256, 16
      %1553 = vbcast.lane.b32.xlu0 %v1543, %s1552
      %v1554 = vpop.permute.xlu0 %1553
      %s1556 = sor.u32 256, 24
      %1557 = vbcast.lane.b32.xlu0 %v1543, %s1556
      %v1558 = vpop.permute.xlu0 %1557
      %s1560 = sor.u32 256, 32
      %1561 = vbcast.lane.b32.xlu0 %v1543, %s1560
      %v1562 = vpop.permute.xlu0 %1561
      %s1564 = sor.u32 256, 40
      %1565 = vbcast.lane.b32.xlu0 %v1543, %s1564
      %v1566 = vpop.permute.xlu0 %1565
      %s1568 = sor.u32 256, 48
      %1569 = vbcast.lane.b32.xlu0 %v1543, %s1568
      %v1570 = vpop.permute.xlu0 %1569
      %s1572 = sor.u32 256, 56
      %1573 = vbcast.lane.b32.xlu0 %v1543, %s1572
      %v1574 = vpop.permute.xlu0 %1573
      %v1575 = vlaneseq
      %v1576 = vshrl.u32 %v1575, 7
      %v1577 = vsub.s32 5, %v1576
      %v1578 = vrot.slane %v699, %v1577
      %1580 = vbcast.lane.b32.xlu0 %v1578, 256
      %v1581 = vpop.permute.xlu0 %1580
      %s1583 = sor.u32 256, 8
      %1584 = vbcast.lane.b32.xlu0 %v1578, %s1583
      %v1585 = vpop.permute.xlu0 %1584
      %s1587 = sor.u32 256, 16
      %1588 = vbcast.lane.b32.xlu0 %v1578, %s1587
      %v1589 = vpop.permute.xlu0 %1588
      %s1591 = sor.u32 256, 24
      %1592 = vbcast.lane.b32.xlu0 %v1578, %s1591
      %v1593 = vpop.permute.xlu0 %1592
      %s1595 = sor.u32 256, 32
      %1596 = vbcast.lane.b32.xlu0 %v1578, %s1595
      %v1597 = vpop.permute.xlu0 %1596
      %s1599 = sor.u32 256, 40
      %1600 = vbcast.lane.b32.xlu0 %v1578, %s1599
      %v1601 = vpop.permute.xlu0 %1600
      %s1603 = sor.u32 256, 48
      %1604 = vbcast.lane.b32.xlu0 %v1578, %s1603
      %v1605 = vpop.permute.xlu0 %1604
      %s1607 = sor.u32 256, 56
      %1608 = vbcast.lane.b32.xlu0 %v1578, %s1607
      %v1609 = vpop.permute.xlu0 %1608
      %v1610 = vlaneseq
      %v1611 = vshrl.u32 %v1610, 7
      %v1612 = vsub.s32 6, %v1611
      %v1613 = vrot.slane %v699, %v1612
      %1615 = vbcast.lane.b32.xlu0 %v1613, 256
      %v1616 = vpop.permute.xlu0 %1615
      %s1618 = sor.u32 256, 8
      %1619 = vbcast.lane.b32.xlu0 %v1613, %s1618
      %v1620 = vpop.permute.xlu0 %1619
      %s1622 = sor.u32 256, 16
      %1623 = vbcast.lane.b32.xlu0 %v1613, %s1622
      %v1624 = vpop.permute.xlu0 %1623
      %s1626 = sor.u32 256, 24
      %1627 = vbcast.lane.b32.xlu0 %v1613, %s1626
      %v1628 = vpop.permute.xlu0 %1627
      %s1630 = sor.u32 256, 32
      %1631 = vbcast.lane.b32.xlu0 %v1613, %s1630
      %v1632 = vpop.permute.xlu0 %1631
      %s1634 = sor.u32 256, 40
      %1635 = vbcast.lane.b32.xlu0 %v1613, %s1634
      %v1636 = vpop.permute.xlu0 %1635
      %s1638 = sor.u32 256, 48
      %1639 = vbcast.lane.b32.xlu0 %v1613, %s1638
      %v1640 = vpop.permute.xlu0 %1639
      %s1642 = sor.u32 256, 56
      %1643 = vbcast.lane.b32.xlu0 %v1613, %s1642
      %v1644 = vpop.permute.xlu0 %1643
      %v1645 = vlaneseq
      %v1646 = vshrl.u32 %v1645, 7
      %v1647 = vsub.s32 7, %v1646
      %v1648 = vrot.slane %v699, %v1647
      %1650 = vbcast.lane.b32.xlu0 %v1648, 256
      %v1651 = vpop.permute.xlu0 %1650
      %s1653 = sor.u32 256, 8
      %1654 = vbcast.lane.b32.xlu0 %v1648, %s1653
      %v1655 = vpop.permute.xlu0 %1654
      %s1657 = sor.u32 256, 16
      %1658 = vbcast.lane.b32.xlu0 %v1648, %s1657
      %v1659 = vpop.permute.xlu0 %1658
      %s1661 = sor.u32 256, 24
      %1662 = vbcast.lane.b32.xlu0 %v1648, %s1661
      %v1663 = vpop.permute.xlu0 %1662
      %s1665 = sor.u32 256, 32
      %1666 = vbcast.lane.b32.xlu0 %v1648, %s1665
      %v1667 = vpop.permute.xlu0 %1666
      %s1669 = sor.u32 256, 40
      %1670 = vbcast.lane.b32.xlu0 %v1648, %s1669
      %v1671 = vpop.permute.xlu0 %1670
      %s1673 = sor.u32 256, 48
      %1674 = vbcast.lane.b32.xlu0 %v1648, %s1673
      %v1675 = vpop.permute.xlu0 %1674
      %s1677 = sor.u32 256, 56
      %1678 = vbcast.lane.b32.xlu0 %v1648, %s1677
      %v1679 = vpop.permute.xlu0 %1678
      %v1680 = vlaneseq
      %v1681 = vshrl.u32 %v1680, 7
      %v1682 = vsub.s32 0, %v1681
      %v1683 = vrot.slane %v701, %v1682
      %1685 = vbcast.lane.b32.xlu0 %v1683, 256
      %v1686 = vpop.permute.xlu0 %1685
      %s1688 = sor.u32 256, 8
      %1689 = vbcast.lane.b32.xlu0 %v1683, %s1688
      %v1690 = vpop.permute.xlu0 %1689
      %s1692 = sor.u32 256, 16
      %1693 = vbcast.lane.b32.xlu0 %v1683, %s1692
      %v1694 = vpop.permute.xlu0 %1693
      %s1696 = sor.u32 256, 24
      %1697 = vbcast.lane.b32.xlu0 %v1683, %s1696
      %v1698 = vpop.permute.xlu0 %1697
      %s1700 = sor.u32 256, 32
      %1701 = vbcast.lane.b32.xlu0 %v1683, %s1700
      %v1702 = vpop.permute.xlu0 %1701
      %s1704 = sor.u32 256, 40
      %1705 = vbcast.lane.b32.xlu0 %v1683, %s1704
      %v1706 = vpop.permute.xlu0 %1705
      %s1708 = sor.u32 256, 48
      %1709 = vbcast.lane.b32.xlu0 %v1683, %s1708
      %v1710 = vpop.permute.xlu0 %1709
      %s1712 = sor.u32 256, 56
      %1713 = vbcast.lane.b32.xlu0 %v1683, %s1712
      %v1714 = vpop.permute.xlu0 %1713
      %v1715 = vlaneseq
      %v1716 = vshrl.u32 %v1715, 7
      %v1717 = vsub.s32 1, %v1716
      %v1718 = vrot.slane %v701, %v1717
      %1720 = vbcast.lane.b32.xlu0 %v1718, 256
      %v1721 = vpop.permute.xlu0 %1720
      %s1723 = sor.u32 256, 8
      %1724 = vbcast.lane.b32.xlu0 %v1718, %s1723
      %v1725 = vpop.permute.xlu0 %1724
      %s1727 = sor.u32 256, 16
      %1728 = vbcast.lane.b32.xlu0 %v1718, %s1727
      %v1729 = vpop.permute.xlu0 %1728
      %s1731 = sor.u32 256, 24
      %1732 = vbcast.lane.b32.xlu0 %v1718, %s1731
      %v1733 = vpop.permute.xlu0 %1732
      %s1735 = sor.u32 256, 32
      %1736 = vbcast.lane.b32.xlu0 %v1718, %s1735
      %v1737 = vpop.permute.xlu0 %1736
      %s1739 = sor.u32 256, 40
      %1740 = vbcast.lane.b32.xlu0 %v1718, %s1739
      %v1741 = vpop.permute.xlu0 %1740
      %s1743 = sor.u32 256, 48
      %1744 = vbcast.lane.b32.xlu0 %v1718, %s1743
      %v1745 = vpop.permute.xlu0 %1744
      %s1747 = sor.u32 256, 56
      %1748 = vbcast.lane.b32.xlu0 %v1718, %s1747
      %v1749 = vpop.permute.xlu0 %1748
      %v1750 = vlaneseq
      %v1751 = vshrl.u32 %v1750, 7
      %v1752 = vsub.s32 2, %v1751
      %v1753 = vrot.slane %v701, %v1752
      %1755 = vbcast.lane.b32.xlu0 %v1753, 256
      %v1756 = vpop.permute.xlu0 %1755
      %s1758 = sor.u32 256, 8
      %1759 = vbcast.lane.b32.xlu0 %v1753, %s1758
      %v1760 = vpop.permute.xlu0 %1759
      %s1762 = sor.u32 256, 16
      %1763 = vbcast.lane.b32.xlu0 %v1753, %s1762
      %v1764 = vpop.permute.xlu0 %1763
      %s1766 = sor.u32 256, 24
      %1767 = vbcast.lane.b32.xlu0 %v1753, %s1766
      %v1768 = vpop.permute.xlu0 %1767
      %s1770 = sor.u32 256, 32
      %1771 = vbcast.lane.b32.xlu0 %v1753, %s1770
      %v1772 = vpop.permute.xlu0 %1771
      %s1774 = sor.u32 256, 40
      %1775 = vbcast.lane.b32.xlu0 %v1753, %s1774
      %v1776 = vpop.permute.xlu0 %1775
      %s1778 = sor.u32 256, 48
      %1779 = vbcast.lane.b32.xlu0 %v1753, %s1778
      %v1780 = vpop.permute.xlu0 %1779
      %s1782 = sor.u32 256, 56
      %1783 = vbcast.lane.b32.xlu0 %v1753, %s1782
      %v1784 = vpop.permute.xlu0 %1783
      %v1785 = vlaneseq
      %v1786 = vshrl.u32 %v1785, 7
      %v1787 = vsub.s32 3, %v1786
      %v1788 = vrot.slane %v701, %v1787
      %1790 = vbcast.lane.b32.xlu0 %v1788, 256
      %v1791 = vpop.permute.xlu0 %1790
      %s1793 = sor.u32 256, 8
      %1794 = vbcast.lane.b32.xlu0 %v1788, %s1793
      %v1795 = vpop.permute.xlu0 %1794
      %s1797 = sor.u32 256, 16
      %1798 = vbcast.lane.b32.xlu0 %v1788, %s1797
      %v1799 = vpop.permute.xlu0 %1798
      %s1801 = sor.u32 256, 24
      %1802 = vbcast.lane.b32.xlu0 %v1788, %s1801
      %v1803 = vpop.permute.xlu0 %1802
      %s1805 = sor.u32 256, 32
      %1806 = vbcast.lane.b32.xlu0 %v1788, %s1805
      %v1807 = vpop.permute.xlu0 %1806
      %s1809 = sor.u32 256, 40
      %1810 = vbcast.lane.b32.xlu0 %v1788, %s1809
      %v1811 = vpop.permute.xlu0 %1810
      %s1813 = sor.u32 256, 48
      %1814 = vbcast.lane.b32.xlu0 %v1788, %s1813
      %v1815 = vpop.permute.xlu0 %1814
      %s1817 = sor.u32 256, 56
      %1818 = vbcast.lane.b32.xlu0 %v1788, %s1817
      %v1819 = vpop.permute.xlu0 %1818
      %v1820 = vlaneseq
      %v1821 = vshrl.u32 %v1820, 7
      %v1822 = vsub.s32 4, %v1821
      %v1823 = vrot.slane %v701, %v1822
      %1825 = vbcast.lane.b32.xlu0 %v1823, 256
      %v1826 = vpop.permute.xlu0 %1825
      %s1828 = sor.u32 256, 8
      %1829 = vbcast.lane.b32.xlu0 %v1823, %s1828
      %v1830 = vpop.permute.xlu0 %1829
      %s1832 = sor.u32 256, 16
      %1833 = vbcast.lane.b32.xlu0 %v1823, %s1832
      %v1834 = vpop.permute.xlu0 %1833
      %s1836 = sor.u32 256, 24
      %1837 = vbcast.lane.b32.xlu0 %v1823, %s1836
      %v1838 = vpop.permute.xlu0 %1837
      %s1840 = sor.u32 256, 32
      %1841 = vbcast.lane.b32.xlu0 %v1823, %s1840
      %v1842 = vpop.permute.xlu0 %1841
      %s1844 = sor.u32 256, 40
      %1845 = vbcast.lane.b32.xlu0 %v1823, %s1844
      %v1846 = vpop.permute.xlu0 %1845
      %s1848 = sor.u32 256, 48
      %1849 = vbcast.lane.b32.xlu0 %v1823, %s1848
      %v1850 = vpop.permute.xlu0 %1849
      %s1852 = sor.u32 256, 56
      %1853 = vbcast.lane.b32.xlu0 %v1823, %s1852
      %v1854 = vpop.permute.xlu0 %1853
      %v1855 = vlaneseq
      %v1856 = vshrl.u32 %v1855, 7
      %v1857 = vsub.s32 5, %v1856
      %v1858 = vrot.slane %v701, %v1857
      %1860 = vbcast.lane.b32.xlu0 %v1858, 256
      %v1861 = vpop.permute.xlu0 %1860
      %s1863 = sor.u32 256, 8
      %1864 = vbcast.lane.b32.xlu0 %v1858, %s1863
      %v1865 = vpop.permute.xlu0 %1864
      %s1867 = sor.u32 256, 16
      %1868 = vbcast.lane.b32.xlu0 %v1858, %s1867
      %v1869 = vpop.permute.xlu0 %1868
      %s1871 = sor.u32 256, 24
      %1872 = vbcast.lane.b32.xlu0 %v1858, %s1871
      %v1873 = vpop.permute.xlu0 %1872
      %s1875 = sor.u32 256, 32
      %1876 = vbcast.lane.b32.xlu0 %v1858, %s1875
      %v1877 = vpop.permute.xlu0 %1876
      %s1879 = sor.u32 256, 40
      %1880 = vbcast.lane.b32.xlu0 %v1858, %s1879
      %v1881 = vpop.permute.xlu0 %1880
      %s1883 = sor.u32 256, 48
      %1884 = vbcast.lane.b32.xlu0 %v1858, %s1883
      %v1885 = vpop.permute.xlu0 %1884
      %s1887 = sor.u32 256, 56
      %1888 = vbcast.lane.b32.xlu0 %v1858, %s1887
      %v1889 = vpop.permute.xlu0 %1888
      %v1890 = vlaneseq
      %v1891 = vshrl.u32 %v1890, 7
      %v1892 = vsub.s32 6, %v1891
      %v1893 = vrot.slane %v701, %v1892
      %1895 = vbcast.lane.b32.xlu0 %v1893, 256
      %v1896 = vpop.permute.xlu0 %1895
      %s1898 = sor.u32 256, 8
      %1899 = vbcast.lane.b32.xlu0 %v1893, %s1898
      %v1900 = vpop.permute.xlu0 %1899
      %s1902 = sor.u32 256, 16
      %1903 = vbcast.lane.b32.xlu0 %v1893, %s1902
      %v1904 = vpop.permute.xlu0 %1903
      %s1906 = sor.u32 256, 24
      %1907 = vbcast.lane.b32.xlu0 %v1893, %s1906
      %v1908 = vpop.permute.xlu0 %1907
      %s1910 = sor.u32 256, 32
      %1911 = vbcast.lane.b32.xlu0 %v1893, %s1910
      %v1912 = vpop.permute.xlu0 %1911
      %s1914 = sor.u32 256, 40
      %1915 = vbcast.lane.b32.xlu0 %v1893, %s1914
      %v1916 = vpop.permute.xlu0 %1915
      %s1918 = sor.u32 256, 48
      %1919 = vbcast.lane.b32.xlu0 %v1893, %s1918
      %v1920 = vpop.permute.xlu0 %1919
      %s1922 = sor.u32 256, 56
      %1923 = vbcast.lane.b32.xlu0 %v1893, %s1922
      %v1924 = vpop.permute.xlu0 %1923
      %v1925 = vlaneseq
      %v1926 = vshrl.u32 %v1925, 7
      %v1927 = vsub.s32 7, %v1926
      %v1928 = vrot.slane %v701, %v1927
      %1930 = vbcast.lane.b32.xlu0 %v1928, 256
      %v1931 = vpop.permute.xlu0 %1930
      %s1933 = sor.u32 256, 8
      %1934 = vbcast.lane.b32.xlu0 %v1928, %s1933
      %v1935 = vpop.permute.xlu0 %1934
      %s1937 = sor.u32 256, 16
      %1938 = vbcast.lane.b32.xlu0 %v1928, %s1937
      %v1939 = vpop.permute.xlu0 %1938
      %s1941 = sor.u32 256, 24
      %1942 = vbcast.lane.b32.xlu0 %v1928, %s1941
      %v1943 = vpop.permute.xlu0 %1942
      %s1945 = sor.u32 256, 32
      %1946 = vbcast.lane.b32.xlu0 %v1928, %s1945
      %v1947 = vpop.permute.xlu0 %1946
      %s1949 = sor.u32 256, 40
      %1950 = vbcast.lane.b32.xlu0 %v1928, %s1949
      %v1951 = vpop.permute.xlu0 %1950
      %s1953 = sor.u32 256, 48
      %1954 = vbcast.lane.b32.xlu0 %v1928, %s1953
      %v1955 = vpop.permute.xlu0 %1954
      %s1957 = sor.u32 256, 56
      %1958 = vbcast.lane.b32.xlu0 %v1928, %s1957
      %v1959 = vpop.permute.xlu0 %1958
      %v1960 = vlaneseq
      %v1961 = vshrl.u32 %v1960, 7
      %v1962 = vsub.s32 0, %v1961
      %v1963 = vrot.slane %v703, %v1962
      %1965 = vbcast.lane.b32.xlu0 %v1963, 256
      %v1966 = vpop.permute.xlu0 %1965
      %s1968 = sor.u32 256, 8
      %1969 = vbcast.lane.b32.xlu0 %v1963, %s1968
      %v1970 = vpop.permute.xlu0 %1969
      %s1972 = sor.u32 256, 16
      %1973 = vbcast.lane.b32.xlu0 %v1963, %s1972
      %v1974 = vpop.permute.xlu0 %1973
      %s1976 = sor.u32 256, 24
      %1977 = vbcast.lane.b32.xlu0 %v1963, %s1976
      %v1978 = vpop.permute.xlu0 %1977
      %s1980 = sor.u32 256, 32
      %1981 = vbcast.lane.b32.xlu0 %v1963, %s1980
      %v1982 = vpop.permute.xlu0 %1981
      %s1984 = sor.u32 256, 40
      %1985 = vbcast.lane.b32.xlu0 %v1963, %s1984
      %v1986 = vpop.permute.xlu0 %1985
      %s1988 = sor.u32 256, 48
      %1989 = vbcast.lane.b32.xlu0 %v1963, %s1988
      %v1990 = vpop.permute.xlu0 %1989
      %s1992 = sor.u32 256, 56
      %1993 = vbcast.lane.b32.xlu0 %v1963, %s1992
      %v1994 = vpop.permute.xlu0 %1993
      %v1995 = vlaneseq
      %v1996 = vshrl.u32 %v1995, 7
      %v1997 = vsub.s32 1, %v1996
      %v1998 = vrot.slane %v703, %v1997
      %2000 = vbcast.lane.b32.xlu0 %v1998, 256
      %v2001 = vpop.permute.xlu0 %2000
      %s2003 = sor.u32 256, 8
      %2004 = vbcast.lane.b32.xlu0 %v1998, %s2003
      %v2005 = vpop.permute.xlu0 %2004
      %s2007 = sor.u32 256, 16
      %2008 = vbcast.lane.b32.xlu0 %v1998, %s2007
      %v2009 = vpop.permute.xlu0 %2008
      %s2011 = sor.u32 256, 24
      %2012 = vbcast.lane.b32.xlu0 %v1998, %s2011
      %v2013 = vpop.permute.xlu0 %2012
      %s2015 = sor.u32 256, 32
      %2016 = vbcast.lane.b32.xlu0 %v1998, %s2015
      %v2017 = vpop.permute.xlu0 %2016
      %s2019 = sor.u32 256, 40
      %2020 = vbcast.lane.b32.xlu0 %v1998, %s2019
      %v2021 = vpop.permute.xlu0 %2020
      %s2023 = sor.u32 256, 48
      %2024 = vbcast.lane.b32.xlu0 %v1998, %s2023
      %v2025 = vpop.permute.xlu0 %2024
      %s2027 = sor.u32 256, 56
      %2028 = vbcast.lane.b32.xlu0 %v1998, %s2027
      %v2029 = vpop.permute.xlu0 %2028
      %v2030 = vlaneseq
      %v2031 = vshrl.u32 %v2030, 7
      %v2032 = vsub.s32 2, %v2031
      %v2033 = vrot.slane %v703, %v2032
      %2035 = vbcast.lane.b32.xlu0 %v2033, 256
      %v2036 = vpop.permute.xlu0 %2035
      %s2038 = sor.u32 256, 8
      %2039 = vbcast.lane.b32.xlu0 %v2033, %s2038
      %v2040 = vpop.permute.xlu0 %2039
      %s2042 = sor.u32 256, 16
      %2043 = vbcast.lane.b32.xlu0 %v2033, %s2042
      %v2044 = vpop.permute.xlu0 %2043
      %s2046 = sor.u32 256, 24
      %2047 = vbcast.lane.b32.xlu0 %v2033, %s2046
      %v2048 = vpop.permute.xlu0 %2047
      %s2050 = sor.u32 256, 32
      %2051 = vbcast.lane.b32.xlu0 %v2033, %s2050
      %v2052 = vpop.permute.xlu0 %2051
      %s2054 = sor.u32 256, 40
      %2055 = vbcast.lane.b32.xlu0 %v2033, %s2054
      %v2056 = vpop.permute.xlu0 %2055
      %s2058 = sor.u32 256, 48
      %2059 = vbcast.lane.b32.xlu0 %v2033, %s2058
      %v2060 = vpop.permute.xlu0 %2059
      %s2062 = sor.u32 256, 56
      %2063 = vbcast.lane.b32.xlu0 %v2033, %s2062
      %v2064 = vpop.permute.xlu0 %2063
      %v2065 = vlaneseq
      %v2066 = vshrl.u32 %v2065, 7
      %v2067 = vsub.s32 3, %v2066
      %v2068 = vrot.slane %v703, %v2067
      %2070 = vbcast.lane.b32.xlu0 %v2068, 256
      %v2071 = vpop.permute.xlu0 %2070
      %s2073 = sor.u32 256, 8
      %2074 = vbcast.lane.b32.xlu0 %v2068, %s2073
      %v2075 = vpop.permute.xlu0 %2074
      %s2077 = sor.u32 256, 16
      %2078 = vbcast.lane.b32.xlu0 %v2068, %s2077
      %v2079 = vpop.permute.xlu0 %2078
      %s2081 = sor.u32 256, 24
      %2082 = vbcast.lane.b32.xlu0 %v2068, %s2081
      %v2083 = vpop.permute.xlu0 %2082
      %s2085 = sor.u32 256, 32
      %2086 = vbcast.lane.b32.xlu0 %v2068, %s2085
      %v2087 = vpop.permute.xlu0 %2086
      %s2089 = sor.u32 256, 40
      %2090 = vbcast.lane.b32.xlu0 %v2068, %s2089
      %v2091 = vpop.permute.xlu0 %2090
      %s2093 = sor.u32 256, 48
      %2094 = vbcast.lane.b32.xlu0 %v2068, %s2093
      %v2095 = vpop.permute.xlu0 %2094
      %s2097 = sor.u32 256, 56
      %2098 = vbcast.lane.b32.xlu0 %v2068, %s2097
      %v2099 = vpop.permute.xlu0 %2098
      %v2100 = vlaneseq
      %v2101 = vshrl.u32 %v2100, 7
      %v2102 = vsub.s32 4, %v2101
      %v2103 = vrot.slane %v703, %v2102
      %2105 = vbcast.lane.b32.xlu0 %v2103, 256
      %v2106 = vpop.permute.xlu0 %2105
      %s2108 = sor.u32 256, 8
      %2109 = vbcast.lane.b32.xlu0 %v2103, %s2108
      %v2110 = vpop.permute.xlu0 %2109
      %s2112 = sor.u32 256, 16
      %2113 = vbcast.lane.b32.xlu0 %v2103, %s2112
      %v2114 = vpop.permute.xlu0 %2113
      %s2116 = sor.u32 256, 24
      %2117 = vbcast.lane.b32.xlu0 %v2103, %s2116
      %v2118 = vpop.permute.xlu0 %2117
      %s2120 = sor.u32 256, 32
      %2121 = vbcast.lane.b32.xlu0 %v2103, %s2120
      %v2122 = vpop.permute.xlu0 %2121
      %s2124 = sor.u32 256, 40
      %2125 = vbcast.lane.b32.xlu0 %v2103, %s2124
      %v2126 = vpop.permute.xlu0 %2125
      %s2128 = sor.u32 256, 48
      %2129 = vbcast.lane.b32.xlu0 %v2103, %s2128
      %v2130 = vpop.permute.xlu0 %2129
      %s2132 = sor.u32 256, 56
      %2133 = vbcast.lane.b32.xlu0 %v2103, %s2132
      %v2134 = vpop.permute.xlu0 %2133
      %v2135 = vlaneseq
      %v2136 = vshrl.u32 %v2135, 7
      %v2137 = vsub.s32 5, %v2136
      %v2138 = vrot.slane %v703, %v2137
      %2140 = vbcast.lane.b32.xlu0 %v2138, 256
      %v2141 = vpop.permute.xlu0 %2140
      %s2143 = sor.u32 256, 8
      %2144 = vbcast.lane.b32.xlu0 %v2138, %s2143
      %v2145 = vpop.permute.xlu0 %2144
      %s2147 = sor.u32 256, 16
      %2148 = vbcast.lane.b32.xlu0 %v2138, %s2147
      %v2149 = vpop.permute.xlu0 %2148
      %s2151 = sor.u32 256, 24
      %2152 = vbcast.lane.b32.xlu0 %v2138, %s2151
      %v2153 = vpop.permute.xlu0 %2152
      %s2155 = sor.u32 256, 32
      %2156 = vbcast.lane.b32.xlu0 %v2138, %s2155
      %v2157 = vpop.permute.xlu0 %2156
      %s2159 = sor.u32 256, 40
      %2160 = vbcast.lane.b32.xlu0 %v2138, %s2159
      %v2161 = vpop.permute.xlu0 %2160
      %s2163 = sor.u32 256, 48
      %2164 = vbcast.lane.b32.xlu0 %v2138, %s2163
      %v2165 = vpop.permute.xlu0 %2164
      %s2167 = sor.u32 256, 56
      %2168 = vbcast.lane.b32.xlu0 %v2138, %s2167
      %v2169 = vpop.permute.xlu0 %2168
      %v2170 = vlaneseq
      %v2171 = vshrl.u32 %v2170, 7
      %v2172 = vsub.s32 6, %v2171
      %v2173 = vrot.slane %v703, %v2172
      %2175 = vbcast.lane.b32.xlu0 %v2173, 256
      %v2176 = vpop.permute.xlu0 %2175
      %s2178 = sor.u32 256, 8
      %2179 = vbcast.lane.b32.xlu0 %v2173, %s2178
      %v2180 = vpop.permute.xlu0 %2179
      %s2182 = sor.u32 256, 16
      %2183 = vbcast.lane.b32.xlu0 %v2173, %s2182
      %v2184 = vpop.permute.xlu0 %2183
      %s2186 = sor.u32 256, 24
      %2187 = vbcast.lane.b32.xlu0 %v2173, %s2186
      %v2188 = vpop.permute.xlu0 %2187
      %s2190 = sor.u32 256, 32
      %2191 = vbcast.lane.b32.xlu0 %v2173, %s2190
      %v2192 = vpop.permute.xlu0 %2191
      %s2194 = sor.u32 256, 40
      %2195 = vbcast.lane.b32.xlu0 %v2173, %s2194
      %v2196 = vpop.permute.xlu0 %2195
      %s2198 = sor.u32 256, 48
      %2199 = vbcast.lane.b32.xlu0 %v2173, %s2198
      %v2200 = vpop.permute.xlu0 %2199
      %s2202 = sor.u32 256, 56
      %2203 = vbcast.lane.b32.xlu0 %v2173, %s2202
      %v2204 = vpop.permute.xlu0 %2203
      %v2205 = vlaneseq
      %v2206 = vshrl.u32 %v2205, 7
      %v2207 = vsub.s32 7, %v2206
      %v2208 = vrot.slane %v703, %v2207
      %2210 = vbcast.lane.b32.xlu0 %v2208, 256
      %v2211 = vpop.permute.xlu0 %2210
      %s2213 = sor.u32 256, 8
      %2214 = vbcast.lane.b32.xlu0 %v2208, %s2213
      %v2215 = vpop.permute.xlu0 %2214
      %s2217 = sor.u32 256, 16
      %2218 = vbcast.lane.b32.xlu0 %v2208, %s2217
      %v2219 = vpop.permute.xlu0 %2218
      %s2221 = sor.u32 256, 24
      %2222 = vbcast.lane.b32.xlu0 %v2208, %s2221
      %v2223 = vpop.permute.xlu0 %2222
      %s2225 = sor.u32 256, 32
      %2226 = vbcast.lane.b32.xlu0 %v2208, %s2225
      %v2227 = vpop.permute.xlu0 %2226
      %s2229 = sor.u32 256, 40
      %2230 = vbcast.lane.b32.xlu0 %v2208, %s2229
      %v2231 = vpop.permute.xlu0 %2230
      %s2233 = sor.u32 256, 48
      %2234 = vbcast.lane.b32.xlu0 %v2208, %s2233
      %v2235 = vpop.permute.xlu0 %2234
      %s2237 = sor.u32 256, 56
      %2238 = vbcast.lane.b32.xlu0 %v2208, %s2237
      %v2239 = vpop.permute.xlu0 %2238
      %v2240 = vlaneseq
      %v2241 = vshrl.u32 %v2240, 7
      %v2242 = vsub.s32 0, %v2241
      %v2243 = vrot.slane %v705, %v2242
      %2245 = vbcast.lane.b32.xlu0 %v2243, 256
      %v2246 = vpop.permute.xlu0 %2245
      %s2248 = sor.u32 256, 8
      %2249 = vbcast.lane.b32.xlu0 %v2243, %s2248
      %v2250 = vpop.permute.xlu0 %2249
      %s2252 = sor.u32 256, 16
      %2253 = vbcast.lane.b32.xlu0 %v2243, %s2252
      %v2254 = vpop.permute.xlu0 %2253
      %s2256 = sor.u32 256, 24
      %2257 = vbcast.lane.b32.xlu0 %v2243, %s2256
      %v2258 = vpop.permute.xlu0 %2257
      %s2260 = sor.u32 256, 32
      %2261 = vbcast.lane.b32.xlu0 %v2243, %s2260
      %v2262 = vpop.permute.xlu0 %2261
      %s2264 = sor.u32 256, 40
      %2265 = vbcast.lane.b32.xlu0 %v2243, %s2264
      %v2266 = vpop.permute.xlu0 %2265
      %s2268 = sor.u32 256, 48
      %2269 = vbcast.lane.b32.xlu0 %v2243, %s2268
      %v2270 = vpop.permute.xlu0 %2269
      %s2272 = sor.u32 256, 56
      %2273 = vbcast.lane.b32.xlu0 %v2243, %s2272
      %v2274 = vpop.permute.xlu0 %2273
      %v2275 = vlaneseq
      %v2276 = vshrl.u32 %v2275, 7
      %v2277 = vsub.s32 1, %v2276
      %v2278 = vrot.slane %v705, %v2277
      %2280 = vbcast.lane.b32.xlu0 %v2278, 256
      %v2281 = vpop.permute.xlu0 %2280
      %s2283 = sor.u32 256, 8
      %2284 = vbcast.lane.b32.xlu0 %v2278, %s2283
      %v2285 = vpop.permute.xlu0 %2284
      %s2287 = sor.u32 256, 16
      %2288 = vbcast.lane.b32.xlu0 %v2278, %s2287
      %v2289 = vpop.permute.xlu0 %2288
      %s2291 = sor.u32 256, 24
      %2292 = vbcast.lane.b32.xlu0 %v2278, %s2291
      %v2293 = vpop.permute.xlu0 %2292
      %s2295 = sor.u32 256, 32
      %2296 = vbcast.lane.b32.xlu0 %v2278, %s2295
      %v2297 = vpop.permute.xlu0 %2296
      %s2299 = sor.u32 256, 40
      %2300 = vbcast.lane.b32.xlu0 %v2278, %s2299
      %v2301 = vpop.permute.xlu0 %2300
      %s2303 = sor.u32 256, 48
      %2304 = vbcast.lane.b32.xlu0 %v2278, %s2303
      %v2305 = vpop.permute.xlu0 %2304
      %s2307 = sor.u32 256, 56
      %2308 = vbcast.lane.b32.xlu0 %v2278, %s2307
      %v2309 = vpop.permute.xlu0 %2308
      %v2310 = vlaneseq
      %v2311 = vshrl.u32 %v2310, 7
      %v2312 = vsub.s32 2, %v2311
      %v2313 = vrot.slane %v705, %v2312
      %2315 = vbcast.lane.b32.xlu0 %v2313, 256
      %v2316 = vpop.permute.xlu0 %2315
      %s2318 = sor.u32 256, 8
      %2319 = vbcast.lane.b32.xlu0 %v2313, %s2318
      %v2320 = vpop.permute.xlu0 %2319
      %s2322 = sor.u32 256, 16
      %2323 = vbcast.lane.b32.xlu0 %v2313, %s2322
      %v2324 = vpop.permute.xlu0 %2323
      %s2326 = sor.u32 256, 24
      %2327 = vbcast.lane.b32.xlu0 %v2313, %s2326
      %v2328 = vpop.permute.xlu0 %2327
      %s2330 = sor.u32 256, 32
      %2331 = vbcast.lane.b32.xlu0 %v2313, %s2330
      %v2332 = vpop.permute.xlu0 %2331
      %s2334 = sor.u32 256, 40
      %2335 = vbcast.lane.b32.xlu0 %v2313, %s2334
      %v2336 = vpop.permute.xlu0 %2335
      %s2338 = sor.u32 256, 48
      %2339 = vbcast.lane.b32.xlu0 %v2313, %s2338
      %v2340 = vpop.permute.xlu0 %2339
      %s2342 = sor.u32 256, 56
      %2343 = vbcast.lane.b32.xlu0 %v2313, %s2342
      %v2344 = vpop.permute.xlu0 %2343
      %v2345 = vlaneseq
      %v2346 = vshrl.u32 %v2345, 7
      %v2347 = vsub.s32 3, %v2346
      %v2348 = vrot.slane %v705, %v2347
      %2350 = vbcast.lane.b32.xlu0 %v2348, 256
      %v2351 = vpop.permute.xlu0 %2350
      %s2353 = sor.u32 256, 8
      %2354 = vbcast.lane.b32.xlu0 %v2348, %s2353
      %v2355 = vpop.permute.xlu0 %2354
      %s2357 = sor.u32 256, 16
      %2358 = vbcast.lane.b32.xlu0 %v2348, %s2357
      %v2359 = vpop.permute.xlu0 %2358
      %s2361 = sor.u32 256, 24
      %2362 = vbcast.lane.b32.xlu0 %v2348, %s2361
      %v2363 = vpop.permute.xlu0 %2362
      %s2365 = sor.u32 256, 32
      %2366 = vbcast.lane.b32.xlu0 %v2348, %s2365
      %v2367 = vpop.permute.xlu0 %2366
      %s2369 = sor.u32 256, 40
      %2370 = vbcast.lane.b32.xlu0 %v2348, %s2369
      %v2371 = vpop.permute.xlu0 %2370
      %s2373 = sor.u32 256, 48
      %2374 = vbcast.lane.b32.xlu0 %v2348, %s2373
      %v2375 = vpop.permute.xlu0 %2374
      %s2377 = sor.u32 256, 56
      %2378 = vbcast.lane.b32.xlu0 %v2348, %s2377
      %v2379 = vpop.permute.xlu0 %2378
      %v2380 = vlaneseq
      %v2381 = vshrl.u32 %v2380, 7
      %v2382 = vsub.s32 4, %v2381
      %v2383 = vrot.slane %v705, %v2382
      %2385 = vbcast.lane.b32.xlu0 %v2383, 256
      %v2386 = vpop.permute.xlu0 %2385
      %s2388 = sor.u32 256, 8
      %2389 = vbcast.lane.b32.xlu0 %v2383, %s2388
      %v2390 = vpop.permute.xlu0 %2389
      %s2392 = sor.u32 256, 16
      %2393 = vbcast.lane.b32.xlu0 %v2383, %s2392
      %v2394 = vpop.permute.xlu0 %2393
      %s2396 = sor.u32 256, 24
      %2397 = vbcast.lane.b32.xlu0 %v2383, %s2396
      %v2398 = vpop.permute.xlu0 %2397
      %s2400 = sor.u32 256, 32
      %2401 = vbcast.lane.b32.xlu0 %v2383, %s2400
      %v2402 = vpop.permute.xlu0 %2401
      %s2404 = sor.u32 256, 40
      %2405 = vbcast.lane.b32.xlu0 %v2383, %s2404
      %v2406 = vpop.permute.xlu0 %2405
      %s2408 = sor.u32 256, 48
      %2409 = vbcast.lane.b32.xlu0 %v2383, %s2408
      %v2410 = vpop.permute.xlu0 %2409
      %s2412 = sor.u32 256, 56
      %2413 = vbcast.lane.b32.xlu0 %v2383, %s2412
      %v2414 = vpop.permute.xlu0 %2413
      %v2415 = vlaneseq
      %v2416 = vshrl.u32 %v2415, 7
      %v2417 = vsub.s32 5, %v2416
      %v2418 = vrot.slane %v705, %v2417
      %2420 = vbcast.lane.b32.xlu0 %v2418, 256
      %v2421 = vpop.permute.xlu0 %2420
      %s2423 = sor.u32 256, 8
      %2424 = vbcast.lane.b32.xlu0 %v2418, %s2423
      %v2425 = vpop.permute.xlu0 %2424
      %s2427 = sor.u32 256, 16
      %2428 = vbcast.lane.b32.xlu0 %v2418, %s2427
      %v2429 = vpop.permute.xlu0 %2428
      %s2431 = sor.u32 256, 24
      %2432 = vbcast.lane.b32.xlu0 %v2418, %s2431
      %v2433 = vpop.permute.xlu0 %2432
      %s2435 = sor.u32 256, 32
      %2436 = vbcast.lane.b32.xlu0 %v2418, %s2435
      %v2437 = vpop.permute.xlu0 %2436
      %s2439 = sor.u32 256, 40
      %2440 = vbcast.lane.b32.xlu0 %v2418, %s2439
      %v2441 = vpop.permute.xlu0 %2440
      %s2443 = sor.u32 256, 48
      %2444 = vbcast.lane.b32.xlu0 %v2418, %s2443
      %v2445 = vpop.permute.xlu0 %2444
      %s2447 = sor.u32 256, 56
      %2448 = vbcast.lane.b32.xlu0 %v2418, %s2447
      %v2449 = vpop.permute.xlu0 %2448
      %v2450 = vlaneseq
      %v2451 = vshrl.u32 %v2450, 7
      %v2452 = vsub.s32 6, %v2451
      %v2453 = vrot.slane %v705, %v2452
      %2455 = vbcast.lane.b32.xlu0 %v2453, 256
      %v2456 = vpop.permute.xlu0 %2455
      %s2458 = sor.u32 256, 8
      %2459 = vbcast.lane.b32.xlu0 %v2453, %s2458
      %v2460 = vpop.permute.xlu0 %2459
      %s2462 = sor.u32 256, 16
      %2463 = vbcast.lane.b32.xlu0 %v2453, %s2462
      %v2464 = vpop.permute.xlu0 %2463
      %s2466 = sor.u32 256, 24
      %2467 = vbcast.lane.b32.xlu0 %v2453, %s2466
      %v2468 = vpop.permute.xlu0 %2467
      %s2470 = sor.u32 256, 32
      %2471 = vbcast.lane.b32.xlu0 %v2453, %s2470
      %v2472 = vpop.permute.xlu0 %2471
      %s2474 = sor.u32 256, 40
      %2475 = vbcast.lane.b32.xlu0 %v2453, %s2474
      %v2476 = vpop.permute.xlu0 %2475
      %s2478 = sor.u32 256, 48
      %2479 = vbcast.lane.b32.xlu0 %v2453, %s2478
      %v2480 = vpop.permute.xlu0 %2479
      %s2482 = sor.u32 256, 56
      %2483 = vbcast.lane.b32.xlu0 %v2453, %s2482
      %v2484 = vpop.permute.xlu0 %2483
      %v2485 = vlaneseq
      %v2486 = vshrl.u32 %v2485, 7
      %v2487 = vsub.s32 7, %v2486
      %v2488 = vrot.slane %v705, %v2487
      %2490 = vbcast.lane.b32.xlu0 %v2488, 256
      %v2491 = vpop.permute.xlu0 %2490
      %s2493 = sor.u32 256, 8
      %2494 = vbcast.lane.b32.xlu0 %v2488, %s2493
      %v2495 = vpop.permute.xlu0 %2494
      %s2497 = sor.u32 256, 16
      %2498 = vbcast.lane.b32.xlu0 %v2488, %s2497
      %v2499 = vpop.permute.xlu0 %2498
      %s2501 = sor.u32 256, 24
      %2502 = vbcast.lane.b32.xlu0 %v2488, %s2501
      %v2503 = vpop.permute.xlu0 %2502
      %s2505 = sor.u32 256, 32
      %2506 = vbcast.lane.b32.xlu0 %v2488, %s2505
      %v2507 = vpop.permute.xlu0 %2506
      %s2509 = sor.u32 256, 40
      %2510 = vbcast.lane.b32.xlu0 %v2488, %s2509
      %v2511 = vpop.permute.xlu0 %2510
      %s2513 = sor.u32 256, 48
      %2514 = vbcast.lane.b32.xlu0 %v2488, %s2513
      %v2515 = vpop.permute.xlu0 %2514
      %s2517 = sor.u32 256, 56
      %2518 = vbcast.lane.b32.xlu0 %v2488, %s2517
      %v2519 = vpop.permute.xlu0 %2518
      %v2520 = vlaneseq
      %v2521 = vshrl.u32 %v2520, 7
      %v2522 = vsub.s32 0, %v2521
      %v2523 = vrot.slane %v707, %v2522
      %2525 = vbcast.lane.b32.xlu0 %v2523, 256
      %v2526 = vpop.permute.xlu0 %2525
      %s2528 = sor.u32 256, 8
      %2529 = vbcast.lane.b32.xlu0 %v2523, %s2528
      %v2530 = vpop.permute.xlu0 %2529
      %s2532 = sor.u32 256, 16
      %2533 = vbcast.lane.b32.xlu0 %v2523, %s2532
      %v2534 = vpop.permute.xlu0 %2533
      %s2536 = sor.u32 256, 24
      %2537 = vbcast.lane.b32.xlu0 %v2523, %s2536
      %v2538 = vpop.permute.xlu0 %2537
      %s2540 = sor.u32 256, 32
      %2541 = vbcast.lane.b32.xlu0 %v2523, %s2540
      %v2542 = vpop.permute.xlu0 %2541
      %s2544 = sor.u32 256, 40
      %2545 = vbcast.lane.b32.xlu0 %v2523, %s2544
      %v2546 = vpop.permute.xlu0 %2545
      %s2548 = sor.u32 256, 48
      %2549 = vbcast.lane.b32.xlu0 %v2523, %s2548
      %v2550 = vpop.permute.xlu0 %2549
      %s2552 = sor.u32 256, 56
      %2553 = vbcast.lane.b32.xlu0 %v2523, %s2552
      %v2554 = vpop.permute.xlu0 %2553
      %v2555 = vlaneseq
      %v2556 = vshrl.u32 %v2555, 7
      %v2557 = vsub.s32 1, %v2556
      %v2558 = vrot.slane %v707, %v2557
      %2560 = vbcast.lane.b32.xlu0 %v2558, 256
      %v2561 = vpop.permute.xlu0 %2560
      %s2563 = sor.u32 256, 8
      %2564 = vbcast.lane.b32.xlu0 %v2558, %s2563
      %v2565 = vpop.permute.xlu0 %2564
      %s2567 = sor.u32 256, 16
      %2568 = vbcast.lane.b32.xlu0 %v2558, %s2567
      %v2569 = vpop.permute.xlu0 %2568
      %s2571 = sor.u32 256, 24
      %2572 = vbcast.lane.b32.xlu0 %v2558, %s2571
      %v2573 = vpop.permute.xlu0 %2572
      %s2575 = sor.u32 256, 32
      %2576 = vbcast.lane.b32.xlu0 %v2558, %s2575
      %v2577 = vpop.permute.xlu0 %2576
      %s2579 = sor.u32 256, 40
      %2580 = vbcast.lane.b32.xlu0 %v2558, %s2579
      %v2581 = vpop.permute.xlu0 %2580
      %s2583 = sor.u32 256, 48
      %2584 = vbcast.lane.b32.xlu0 %v2558, %s2583
      %v2585 = vpop.permute.xlu0 %2584
      %s2587 = sor.u32 256, 56
      %2588 = vbcast.lane.b32.xlu0 %v2558, %s2587
      %v2589 = vpop.permute.xlu0 %2588
      %v2590 = vlaneseq
      %v2591 = vshrl.u32 %v2590, 7
      %v2592 = vsub.s32 2, %v2591
      %v2593 = vrot.slane %v707, %v2592
      %2595 = vbcast.lane.b32.xlu0 %v2593, 256
      %v2596 = vpop.permute.xlu0 %2595
      %s2598 = sor.u32 256, 8
      %2599 = vbcast.lane.b32.xlu0 %v2593, %s2598
      %v2600 = vpop.permute.xlu0 %2599
      %s2602 = sor.u32 256, 16
      %2603 = vbcast.lane.b32.xlu0 %v2593, %s2602
      %v2604 = vpop.permute.xlu0 %2603
      %s2606 = sor.u32 256, 24
      %2607 = vbcast.lane.b32.xlu0 %v2593, %s2606
      %v2608 = vpop.permute.xlu0 %2607
      %s2610 = sor.u32 256, 32
      %2611 = vbcast.lane.b32.xlu0 %v2593, %s2610
      %v2612 = vpop.permute.xlu0 %2611
      %s2614 = sor.u32 256, 40
      %2615 = vbcast.lane.b32.xlu0 %v2593, %s2614
      %v2616 = vpop.permute.xlu0 %2615
      %s2618 = sor.u32 256, 48
      %2619 = vbcast.lane.b32.xlu0 %v2593, %s2618
      %v2620 = vpop.permute.xlu0 %2619
      %s2622 = sor.u32 256, 56
      %2623 = vbcast.lane.b32.xlu0 %v2593, %s2622
      %v2624 = vpop.permute.xlu0 %2623
      %v2625 = vlaneseq
      %v2626 = vshrl.u32 %v2625, 7
      %v2627 = vsub.s32 3, %v2626
      %v2628 = vrot.slane %v707, %v2627
      %2630 = vbcast.lane.b32.xlu0 %v2628, 256
      %v2631 = vpop.permute.xlu0 %2630
      %s2633 = sor.u32 256, 8
      %2634 = vbcast.lane.b32.xlu0 %v2628, %s2633
      %v2635 = vpop.permute.xlu0 %2634
      %s2637 = sor.u32 256, 16
      %2638 = vbcast.lane.b32.xlu0 %v2628, %s2637
      %v2639 = vpop.permute.xlu0 %2638
      %s2641 = sor.u32 256, 24
      %2642 = vbcast.lane.b32.xlu0 %v2628, %s2641
      %v2643 = vpop.permute.xlu0 %2642
      %s2645 = sor.u32 256, 32
      %2646 = vbcast.lane.b32.xlu0 %v2628, %s2645
      %v2647 = vpop.permute.xlu0 %2646
      %s2649 = sor.u32 256, 40
      %2650 = vbcast.lane.b32.xlu0 %v2628, %s2649
      %v2651 = vpop.permute.xlu0 %2650
      %s2653 = sor.u32 256, 48
      %2654 = vbcast.lane.b32.xlu0 %v2628, %s2653
      %v2655 = vpop.permute.xlu0 %2654
      %s2657 = sor.u32 256, 56
      %2658 = vbcast.lane.b32.xlu0 %v2628, %s2657
      %v2659 = vpop.permute.xlu0 %2658
      %v2660 = vlaneseq
      %v2661 = vshrl.u32 %v2660, 7
      %v2662 = vsub.s32 4, %v2661
      %v2663 = vrot.slane %v707, %v2662
      %2665 = vbcast.lane.b32.xlu0 %v2663, 256
      %v2666 = vpop.permute.xlu0 %2665
      %s2668 = sor.u32 256, 8
      %2669 = vbcast.lane.b32.xlu0 %v2663, %s2668
      %v2670 = vpop.permute.xlu0 %2669
      %s2672 = sor.u32 256, 16
      %2673 = vbcast.lane.b32.xlu0 %v2663, %s2672
      %v2674 = vpop.permute.xlu0 %2673
      %s2676 = sor.u32 256, 24
      %2677 = vbcast.lane.b32.xlu0 %v2663, %s2676
      %v2678 = vpop.permute.xlu0 %2677
      %s2680 = sor.u32 256, 32
      %2681 = vbcast.lane.b32.xlu0 %v2663, %s2680
      %v2682 = vpop.permute.xlu0 %2681
      %s2684 = sor.u32 256, 40
      %2685 = vbcast.lane.b32.xlu0 %v2663, %s2684
      %v2686 = vpop.permute.xlu0 %2685
      %s2688 = sor.u32 256, 48
      %2689 = vbcast.lane.b32.xlu0 %v2663, %s2688
      %v2690 = vpop.permute.xlu0 %2689
      %s2692 = sor.u32 256, 56
      %2693 = vbcast.lane.b32.xlu0 %v2663, %s2692
      %v2694 = vpop.permute.xlu0 %2693
      %v2695 = vlaneseq
      %v2696 = vshrl.u32 %v2695, 7
      %v2697 = vsub.s32 5, %v2696
      %v2698 = vrot.slane %v707, %v2697
      %2700 = vbcast.lane.b32.xlu0 %v2698, 256
      %v2701 = vpop.permute.xlu0 %2700
      %s2703 = sor.u32 256, 8
      %2704 = vbcast.lane.b32.xlu0 %v2698, %s2703
      %v2705 = vpop.permute.xlu0 %2704
      %s2707 = sor.u32 256, 16
      %2708 = vbcast.lane.b32.xlu0 %v2698, %s2707
      %v2709 = vpop.permute.xlu0 %2708
      %s2711 = sor.u32 256, 24
      %2712 = vbcast.lane.b32.xlu0 %v2698, %s2711
      %v2713 = vpop.permute.xlu0 %2712
      %s2715 = sor.u32 256, 32
      %2716 = vbcast.lane.b32.xlu0 %v2698, %s2715
      %v2717 = vpop.permute.xlu0 %2716
      %s2719 = sor.u32 256, 40
      %2720 = vbcast.lane.b32.xlu0 %v2698, %s2719
      %v2721 = vpop.permute.xlu0 %2720
      %s2723 = sor.u32 256, 48
      %2724 = vbcast.lane.b32.xlu0 %v2698, %s2723
      %v2725 = vpop.permute.xlu0 %2724
      %s2727 = sor.u32 256, 56
      %2728 = vbcast.lane.b32.xlu0 %v2698, %s2727
      %v2729 = vpop.permute.xlu0 %2728
      %v2730 = vlaneseq
      %v2731 = vshrl.u32 %v2730, 7
      %v2732 = vsub.s32 6, %v2731
      %v2733 = vrot.slane %v707, %v2732
      %2735 = vbcast.lane.b32.xlu0 %v2733, 256
      %v2736 = vpop.permute.xlu0 %2735
      %s2738 = sor.u32 256, 8
      %2739 = vbcast.lane.b32.xlu0 %v2733, %s2738
      %v2740 = vpop.permute.xlu0 %2739
      %s2742 = sor.u32 256, 16
      %2743 = vbcast.lane.b32.xlu0 %v2733, %s2742
      %v2744 = vpop.permute.xlu0 %2743
      %s2746 = sor.u32 256, 24
      %2747 = vbcast.lane.b32.xlu0 %v2733, %s2746
      %v2748 = vpop.permute.xlu0 %2747
      %s2750 = sor.u32 256, 32
      %2751 = vbcast.lane.b32.xlu0 %v2733, %s2750
      %v2752 = vpop.permute.xlu0 %2751
      %s2754 = sor.u32 256, 40
      %2755 = vbcast.lane.b32.xlu0 %v2733, %s2754
      %v2756 = vpop.permute.xlu0 %2755
      %s2758 = sor.u32 256, 48
      %2759 = vbcast.lane.b32.xlu0 %v2733, %s2758
      %v2760 = vpop.permute.xlu0 %2759
      %s2762 = sor.u32 256, 56
      %2763 = vbcast.lane.b32.xlu0 %v2733, %s2762
      %v2764 = vpop.permute.xlu0 %2763
      %v2765 = vlaneseq
      %v2766 = vshrl.u32 %v2765, 7
      %v2767 = vsub.s32 7, %v2766
      %v2768 = vrot.slane %v707, %v2767
      %2770 = vbcast.lane.b32.xlu0 %v2768, 256
      %v2771 = vpop.permute.xlu0 %2770
      %s2773 = sor.u32 256, 8
      %2774 = vbcast.lane.b32.xlu0 %v2768, %s2773
      %v2775 = vpop.permute.xlu0 %2774
      %s2777 = sor.u32 256, 16
      %2778 = vbcast.lane.b32.xlu0 %v2768, %s2777
      %v2779 = vpop.permute.xlu0 %2778
      %s2781 = sor.u32 256, 24
      %2782 = vbcast.lane.b32.xlu0 %v2768, %s2781
      %v2783 = vpop.permute.xlu0 %2782
      %s2785 = sor.u32 256, 32
      %2786 = vbcast.lane.b32.xlu0 %v2768, %s2785
      %v2787 = vpop.permute.xlu0 %2786
      %s2789 = sor.u32 256, 40
      %2790 = vbcast.lane.b32.xlu0 %v2768, %s2789
      %v2791 = vpop.permute.xlu0 %2790
      %s2793 = sor.u32 256, 48
      %2794 = vbcast.lane.b32.xlu0 %v2768, %s2793
      %v2795 = vpop.permute.xlu0 %2794
      %s2797 = sor.u32 256, 56
      %2798 = vbcast.lane.b32.xlu0 %v2768, %s2797
      %v2799 = vpop.permute.xlu0 %2798
      %v2800 = vlaneseq
      %v2801 = vshrl.u32 %v2800, 7
      %v2802 = vsub.s32 0, %v2801
      %v2803 = vrot.slane %v709, %v2802
      %2805 = vbcast.lane.b32.xlu0 %v2803, 256
      %v2806 = vpop.permute.xlu0 %2805
      %s2808 = sor.u32 256, 8
      %2809 = vbcast.lane.b32.xlu0 %v2803, %s2808
      %v2810 = vpop.permute.xlu0 %2809
      %s2812 = sor.u32 256, 16
      %2813 = vbcast.lane.b32.xlu0 %v2803, %s2812
      %v2814 = vpop.permute.xlu0 %2813
      %s2816 = sor.u32 256, 24
      %2817 = vbcast.lane.b32.xlu0 %v2803, %s2816
      %v2818 = vpop.permute.xlu0 %2817
      %s2820 = sor.u32 256, 32
      %2821 = vbcast.lane.b32.xlu0 %v2803, %s2820
      %v2822 = vpop.permute.xlu0 %2821
      %s2824 = sor.u32 256, 40
      %2825 = vbcast.lane.b32.xlu0 %v2803, %s2824
      %v2826 = vpop.permute.xlu0 %2825
      %s2828 = sor.u32 256, 48
      %2829 = vbcast.lane.b32.xlu0 %v2803, %s2828
      %v2830 = vpop.permute.xlu0 %2829
      %s2832 = sor.u32 256, 56
      %2833 = vbcast.lane.b32.xlu0 %v2803, %s2832
      %v2834 = vpop.permute.xlu0 %2833
      %v2835 = vlaneseq
      %v2836 = vshrl.u32 %v2835, 7
      %v2837 = vsub.s32 1, %v2836
      %v2838 = vrot.slane %v709, %v2837
      %2840 = vbcast.lane.b32.xlu0 %v2838, 256
      %v2841 = vpop.permute.xlu0 %2840
      %s2843 = sor.u32 256, 8
      %2844 = vbcast.lane.b32.xlu0 %v2838, %s2843
      %v2845 = vpop.permute.xlu0 %2844
      %s2847 = sor.u32 256, 16
      %2848 = vbcast.lane.b32.xlu0 %v2838, %s2847
      %v2849 = vpop.permute.xlu0 %2848
      %s2851 = sor.u32 256, 24
      %2852 = vbcast.lane.b32.xlu0 %v2838, %s2851
      %v2853 = vpop.permute.xlu0 %2852
      %s2855 = sor.u32 256, 32
      %2856 = vbcast.lane.b32.xlu0 %v2838, %s2855
      %v2857 = vpop.permute.xlu0 %2856
      %s2859 = sor.u32 256, 40
      %2860 = vbcast.lane.b32.xlu0 %v2838, %s2859
      %v2861 = vpop.permute.xlu0 %2860
      %s2863 = sor.u32 256, 48
      %2864 = vbcast.lane.b32.xlu0 %v2838, %s2863
      %v2865 = vpop.permute.xlu0 %2864
      %s2867 = sor.u32 256, 56
      %2868 = vbcast.lane.b32.xlu0 %v2838, %s2867
      %v2869 = vpop.permute.xlu0 %2868
      %v2870 = vlaneseq
      %v2871 = vshrl.u32 %v2870, 7
      %v2872 = vsub.s32 2, %v2871
      %v2873 = vrot.slane %v709, %v2872
      %2875 = vbcast.lane.b32.xlu0 %v2873, 256
      %v2876 = vpop.permute.xlu0 %2875
      %s2878 = sor.u32 256, 8
      %2879 = vbcast.lane.b32.xlu0 %v2873, %s2878
      %v2880 = vpop.permute.xlu0 %2879
      %s2882 = sor.u32 256, 16
      %2883 = vbcast.lane.b32.xlu0 %v2873, %s2882
      %v2884 = vpop.permute.xlu0 %2883
      %s2886 = sor.u32 256, 24
      %2887 = vbcast.lane.b32.xlu0 %v2873, %s2886
      %v2888 = vpop.permute.xlu0 %2887
      %s2890 = sor.u32 256, 32
      %2891 = vbcast.lane.b32.xlu0 %v2873, %s2890
      %v2892 = vpop.permute.xlu0 %2891
      %s2894 = sor.u32 256, 40
      %2895 = vbcast.lane.b32.xlu0 %v2873, %s2894
      %v2896 = vpop.permute.xlu0 %2895
      %s2898 = sor.u32 256, 48
      %2899 = vbcast.lane.b32.xlu0 %v2873, %s2898
      %v2900 = vpop.permute.xlu0 %2899
      %s2902 = sor.u32 256, 56
      %2903 = vbcast.lane.b32.xlu0 %v2873, %s2902
      %v2904 = vpop.permute.xlu0 %2903
      %v2905 = vlaneseq
      %v2906 = vshrl.u32 %v2905, 7
      %v2907 = vsub.s32 3, %v2906
      %v2908 = vrot.slane %v709, %v2907
      %2910 = vbcast.lane.b32.xlu0 %v2908, 256
      %v2911 = vpop.permute.xlu0 %2910
      %s2913 = sor.u32 256, 8
      %2914 = vbcast.lane.b32.xlu0 %v2908, %s2913
      %v2915 = vpop.permute.xlu0 %2914
      %s2917 = sor.u32 256, 16
      %2918 = vbcast.lane.b32.xlu0 %v2908, %s2917
      %v2919 = vpop.permute.xlu0 %2918
      %s2921 = sor.u32 256, 24
      %2922 = vbcast.lane.b32.xlu0 %v2908, %s2921
      %v2923 = vpop.permute.xlu0 %2922
      %s2925 = sor.u32 256, 32
      %2926 = vbcast.lane.b32.xlu0 %v2908, %s2925
      %v2927 = vpop.permute.xlu0 %2926
      %s2929 = sor.u32 256, 40
      %2930 = vbcast.lane.b32.xlu0 %v2908, %s2929
      %v2931 = vpop.permute.xlu0 %2930
      %s2933 = sor.u32 256, 48
      %2934 = vbcast.lane.b32.xlu0 %v2908, %s2933
      %v2935 = vpop.permute.xlu0 %2934
      %s2937 = sor.u32 256, 56
      %2938 = vbcast.lane.b32.xlu0 %v2908, %s2937
      %v2939 = vpop.permute.xlu0 %2938
      %v2940 = vlaneseq
      %v2941 = vshrl.u32 %v2940, 7
      %v2942 = vsub.s32 4, %v2941
      %v2943 = vrot.slane %v709, %v2942
      %2945 = vbcast.lane.b32.xlu0 %v2943, 256
      %v2946 = vpop.permute.xlu0 %2945
      %s2948 = sor.u32 256, 8
      %2949 = vbcast.lane.b32.xlu0 %v2943, %s2948
      %v2950 = vpop.permute.xlu0 %2949
      %s2952 = sor.u32 256, 16
      %2953 = vbcast.lane.b32.xlu0 %v2943, %s2952
      %v2954 = vpop.permute.xlu0 %2953
      %s2956 = sor.u32 256, 24
      %2957 = vbcast.lane.b32.xlu0 %v2943, %s2956
      %v2958 = vpop.permute.xlu0 %2957
      %s2960 = sor.u32 256, 32
      %2961 = vbcast.lane.b32.xlu0 %v2943, %s2960
      %v2962 = vpop.permute.xlu0 %2961
      %s2964 = sor.u32 256, 40
      %2965 = vbcast.lane.b32.xlu0 %v2943, %s2964
      %v2966 = vpop.permute.xlu0 %2965
      %s2968 = sor.u32 256, 48
      %2969 = vbcast.lane.b32.xlu0 %v2943, %s2968
      %v2970 = vpop.permute.xlu0 %2969
      %s2972 = sor.u32 256, 56
      %2973 = vbcast.lane.b32.xlu0 %v2943, %s2972
      %v2974 = vpop.permute.xlu0 %2973
      %v2975 = vlaneseq
      %v2976 = vshrl.u32 %v2975, 7
      %v2977 = vsub.s32 5, %v2976
      %v2978 = vrot.slane %v709, %v2977
      %2980 = vbcast.lane.b32.xlu0 %v2978, 256
      %v2981 = vpop.permute.xlu0 %2980
      %s2983 = sor.u32 256, 8
      %2984 = vbcast.lane.b32.xlu0 %v2978, %s2983
      %v2985 = vpop.permute.xlu0 %2984
      %s2987 = sor.u32 256, 16
      %2988 = vbcast.lane.b32.xlu0 %v2978, %s2987
      %v2989 = vpop.permute.xlu0 %2988
      %s2991 = sor.u32 256, 24
      %2992 = vbcast.lane.b32.xlu0 %v2978, %s2991
      %v2993 = vpop.permute.xlu0 %2992
      %s2995 = sor.u32 256, 32
      %2996 = vbcast.lane.b32.xlu0 %v2978, %s2995
      %v2997 = vpop.permute.xlu0 %2996
      %s2999 = sor.u32 256, 40
      %3000 = vbcast.lane.b32.xlu0 %v2978, %s2999
      %v3001 = vpop.permute.xlu0 %3000
      %s3003 = sor.u32 256, 48
      %3004 = vbcast.lane.b32.xlu0 %v2978, %s3003
      %v3005 = vpop.permute.xlu0 %3004
      %s3007 = sor.u32 256, 56
      %3008 = vbcast.lane.b32.xlu0 %v2978, %s3007
      %v3009 = vpop.permute.xlu0 %3008
      %v3010 = vlaneseq
      %v3011 = vshrl.u32 %v3010, 7
      %v3012 = vsub.s32 6, %v3011
      %v3013 = vrot.slane %v709, %v3012
      %3015 = vbcast.lane.b32.xlu0 %v3013, 256
      %v3016 = vpop.permute.xlu0 %3015
      %s3018 = sor.u32 256, 8
      %3019 = vbcast.lane.b32.xlu0 %v3013, %s3018
      %v3020 = vpop.permute.xlu0 %3019
      %s3022 = sor.u32 256, 16
      %3023 = vbcast.lane.b32.xlu0 %v3013, %s3022
      %v3024 = vpop.permute.xlu0 %3023
      %s3026 = sor.u32 256, 24
      %3027 = vbcast.lane.b32.xlu0 %v3013, %s3026
      %v3028 = vpop.permute.xlu0 %3027
      %s3030 = sor.u32 256, 32
      %3031 = vbcast.lane.b32.xlu0 %v3013, %s3030
      %v3032 = vpop.permute.xlu0 %3031
      %s3034 = sor.u32 256, 40
      %3035 = vbcast.lane.b32.xlu0 %v3013, %s3034
      %v3036 = vpop.permute.xlu0 %3035
      %s3038 = sor.u32 256, 48
      %3039 = vbcast.lane.b32.xlu0 %v3013, %s3038
      %v3040 = vpop.permute.xlu0 %3039
      %s3042 = sor.u32 256, 56
      %3043 = vbcast.lane.b32.xlu0 %v3013, %s3042
      %v3044 = vpop.permute.xlu0 %3043
      %v3045 = vlaneseq
      %v3046 = vshrl.u32 %v3045, 7
      %v3047 = vsub.s32 7, %v3046
      %v3048 = vrot.slane %v709, %v3047
      %3050 = vbcast.lane.b32.xlu0 %v3048, 256
      %v3051 = vpop.permute.xlu0 %3050
      %s3053 = sor.u32 256, 8
      %3054 = vbcast.lane.b32.xlu0 %v3048, %s3053
      %v3055 = vpop.permute.xlu0 %3054
      %s3057 = sor.u32 256, 16
      %3058 = vbcast.lane.b32.xlu0 %v3048, %s3057
      %v3059 = vpop.permute.xlu0 %3058
      %s3061 = sor.u32 256, 24
      %3062 = vbcast.lane.b32.xlu0 %v3048, %s3061
      %v3063 = vpop.permute.xlu0 %3062
      %s3065 = sor.u32 256, 32
      %3066 = vbcast.lane.b32.xlu0 %v3048, %s3065
      %v3067 = vpop.permute.xlu0 %3066
      %s3069 = sor.u32 256, 40
      %3070 = vbcast.lane.b32.xlu0 %v3048, %s3069
      %v3071 = vpop.permute.xlu0 %3070
      %s3073 = sor.u32 256, 48
      %3074 = vbcast.lane.b32.xlu0 %v3048, %s3073
      %v3075 = vpop.permute.xlu0 %3074
      %s3077 = sor.u32 256, 56
      %3078 = vbcast.lane.b32.xlu0 %v3048, %s3077
      %v3079 = vpop.permute.xlu0 %3078
      %v3080 = vcombine.high %v316, %v316
      %v3082 = vunpack.c.l.s4 1966171168
      %v3083 = vunpack.c.0.s8 %v3082
      %v3084 = vlaneseq
      %v3085 = vshrl.u32 %v3084, 7
      %v3086 = vsub.s32 %v3083, %v3085
      %v3087 = vrot.slane %v316, %v3086
      %v3089 = vunpack.c.l.s4 1966171168
      %v3090 = vunpack.c.0.s8 %v3089
      %v3091 = vlaneseq
      %v3092 = vshrl.u32 %v3091, 7
      %v3093 = vsub.s32 %v3090, %v3092
      %v3094 = vrot.slane %v3080, %v3093
      %v3095 = vcombine.high %v3087, %v3087
      %v3096 = vcombine.high %v3094, %v3094
      %v3098 = vunpack.c.l.s4 1966171168
      %v3099 = vunpack.c.0.s8 %v3098
      %v3100 = vlaneseq
      %v3101 = vshrl.u32 %v3100, 7
      %v3102 = vsub.s32 %v3099, %v3101
      %v3103 = vrot.slane %v3087, %v3102
      %v3105 = vunpack.c.l.s4 1966171168
      %v3106 = vunpack.c.0.s8 %v3105
      %v3107 = vlaneseq
      %v3108 = vshrl.u32 %v3107, 7
      %v3109 = vsub.s32 %v3106, %v3108
      %v3110 = vrot.slane %v3094, %v3109
      %v3112 = vunpack.c.l.s4 1966171168
      %v3113 = vunpack.c.0.s8 %v3112
      %v3114 = vlaneseq
      %v3115 = vshrl.u32 %v3114, 7
      %v3116 = vsub.s32 %v3113, %v3115
      %v3117 = vrot.slane %v3095, %v3116
      %v3119 = vunpack.c.l.s4 1966171168
      %v3120 = vunpack.c.0.s8 %v3119
      %v3121 = vlaneseq
      %v3122 = vshrl.u32 %v3121, 7
      %v3123 = vsub.s32 %v3120, %v3122
      %v3124 = vrot.slane %v3096, %v3123
      %v3125 = vcombine.high %v3103, %v3103
      %v3126 = vcombine.high %v3110, %v3110
      %v3127 = vcombine.high %v3117, %v3117
      %v3128 = vcombine.high %v3124, %v3124
      %v3129 = vcombine.high %v321, %v321
      %v3131 = vunpack.c.l.s4 1966171168
      %v3132 = vunpack.c.0.s8 %v3131
      %v3133 = vlaneseq
      %v3134 = vshrl.u32 %v3133, 7
      %v3135 = vsub.s32 %v3132, %v3134
      %v3136 = vrot.slane %v321, %v3135
      %v3138 = vunpack.c.l.s4 1966171168
      %v3139 = vunpack.c.0.s8 %v3138
      %v3140 = vlaneseq
      %v3141 = vshrl.u32 %v3140, 7
      %v3142 = vsub.s32 %v3139, %v3141
      %v3143 = vrot.slane %v3129, %v3142
      %v3144 = vcombine.high %v3136, %v3136
      %v3145 = vcombine.high %v3143, %v3143
      %v3147 = vunpack.c.l.s4 1966171168
      %v3148 = vunpack.c.0.s8 %v3147
      %v3149 = vlaneseq
      %v3150 = vshrl.u32 %v3149, 7
      %v3151 = vsub.s32 %v3148, %v3150
      %v3152 = vrot.slane %v3136, %v3151
      %v3154 = vunpack.c.l.s4 1966171168
      %v3155 = vunpack.c.0.s8 %v3154
      %v3156 = vlaneseq
      %v3157 = vshrl.u32 %v3156, 7
      %v3158 = vsub.s32 %v3155, %v3157
      %v3159 = vrot.slane %v3143, %v3158
      %v3161 = vunpack.c.l.s4 1966171168
      %v3162 = vunpack.c.0.s8 %v3161
      %v3163 = vlaneseq
      %v3164 = vshrl.u32 %v3163, 7
      %v3165 = vsub.s32 %v3162, %v3164
      %v3166 = vrot.slane %v3144, %v3165
      %v3168 = vunpack.c.l.s4 1966171168
      %v3169 = vunpack.c.0.s8 %v3168
      %v3170 = vlaneseq
      %v3171 = vshrl.u32 %v3170, 7
      %v3172 = vsub.s32 %v3169, %v3171
      %v3173 = vrot.slane %v3145, %v3172
      %v3174 = vcombine.high %v3152, %v3152
      %v3175 = vcombine.high %v3159, %v3159
      %v3176 = vcombine.high %v3166, %v3166
      %v3177 = vcombine.high %v3173, %v3173
      %v3178 = vcombine.high %v326, %v326
      %v3180 = vunpack.c.l.s4 1966171168
      %v3181 = vunpack.c.0.s8 %v3180
      %v3182 = vlaneseq
      %v3183 = vshrl.u32 %v3182, 7
      %v3184 = vsub.s32 %v3181, %v3183
      %v3185 = vrot.slane %v326, %v3184
      %v3187 = vunpack.c.l.s4 1966171168
      %v3188 = vunpack.c.0.s8 %v3187
      %v3189 = vlaneseq
      %v3190 = vshrl.u32 %v3189, 7
      %v3191 = vsub.s32 %v3188, %v3190
      %v3192 = vrot.slane %v3178, %v3191
      %v3193 = vcombine.high %v3185, %v3185
      %v3194 = vcombine.high %v3192, %v3192
      %v3196 = vunpack.c.l.s4 1966171168
      %v3197 = vunpack.c.0.s8 %v3196
      %v3198 = vlaneseq
      %v3199 = vshrl.u32 %v3198, 7
      %v3200 = vsub.s32 %v3197, %v3199
      %v3201 = vrot.slane %v3185, %v3200
      %v3203 = vunpack.c.l.s4 1966171168
      %v3204 = vunpack.c.0.s8 %v3203
      %v3205 = vlaneseq
      %v3206 = vshrl.u32 %v3205, 7
      %v3207 = vsub.s32 %v3204, %v3206
      %v3208 = vrot.slane %v3192, %v3207
      %v3210 = vunpack.c.l.s4 1966171168
      %v3211 = vunpack.c.0.s8 %v3210
      %v3212 = vlaneseq
      %v3213 = vshrl.u32 %v3212, 7
      %v3214 = vsub.s32 %v3211, %v3213
      %v3215 = vrot.slane %v3193, %v3214
      %v3217 = vunpack.c.l.s4 1966171168
      %v3218 = vunpack.c.0.s8 %v3217
      %v3219 = vlaneseq
      %v3220 = vshrl.u32 %v3219, 7
      %v3221 = vsub.s32 %v3218, %v3220
      %v3222 = vrot.slane %v3194, %v3221
      %v3223 = vcombine.high %v3201, %v3201
      %v3224 = vcombine.high %v3208, %v3208
      %v3225 = vcombine.high %v3215, %v3215
      %v3226 = vcombine.high %v3222, %v3222
      %v3227 = vcombine.high %v331, %v331
      %v3229 = vunpack.c.l.s4 1966171168
      %v3230 = vunpack.c.0.s8 %v3229
      %v3231 = vlaneseq
      %v3232 = vshrl.u32 %v3231, 7
      %v3233 = vsub.s32 %v3230, %v3232
      %v3234 = vrot.slane %v331, %v3233
      %v3236 = vunpack.c.l.s4 1966171168
      %v3237 = vunpack.c.0.s8 %v3236
      %v3238 = vlaneseq
      %v3239 = vshrl.u32 %v3238, 7
      %v3240 = vsub.s32 %v3237, %v3239
      %v3241 = vrot.slane %v3227, %v3240
      %v3242 = vcombine.high %v3234, %v3234
      %v3243 = vcombine.high %v3241, %v3241
      %v3245 = vunpack.c.l.s4 1966171168
      %v3246 = vunpack.c.0.s8 %v3245
      %v3247 = vlaneseq
      %v3248 = vshrl.u32 %v3247, 7
      %v3249 = vsub.s32 %v3246, %v3248
      %v3250 = vrot.slane %v3234, %v3249
      %v3252 = vunpack.c.l.s4 1966171168
      %v3253 = vunpack.c.0.s8 %v3252
      %v3254 = vlaneseq
      %v3255 = vshrl.u32 %v3254, 7
      %v3256 = vsub.s32 %v3253, %v3255
      %v3257 = vrot.slane %v3241, %v3256
      %v3259 = vunpack.c.l.s4 1966171168
      %v3260 = vunpack.c.0.s8 %v3259
      %v3261 = vlaneseq
      %v3262 = vshrl.u32 %v3261, 7
      %v3263 = vsub.s32 %v3260, %v3262
      %v3264 = vrot.slane %v3242, %v3263
      %v3266 = vunpack.c.l.s4 1966171168
      %v3267 = vunpack.c.0.s8 %v3266
      %v3268 = vlaneseq
      %v3269 = vshrl.u32 %v3268, 7
      %v3270 = vsub.s32 %v3267, %v3269
      %v3271 = vrot.slane %v3243, %v3270
      %v3272 = vcombine.high %v3250, %v3250
      %v3273 = vcombine.high %v3257, %v3257
      %v3274 = vcombine.high %v3264, %v3264
      %v3275 = vcombine.high %v3271, %v3271
      %v3276 = vcombine.high %v336, %v336
      %v3278 = vunpack.c.l.s4 1966171168
      %v3279 = vunpack.c.0.s8 %v3278
      %v3280 = vlaneseq
      %v3281 = vshrl.u32 %v3280, 7
      %v3282 = vsub.s32 %v3279, %v3281
      %v3283 = vrot.slane %v336, %v3282
      %v3285 = vunpack.c.l.s4 1966171168
      %v3286 = vunpack.c.0.s8 %v3285
      %v3287 = vlaneseq
      %v3288 = vshrl.u32 %v3287, 7
      %v3289 = vsub.s32 %v3286, %v3288
      %v3290 = vrot.slane %v3276, %v3289
      %v3291 = vcombine.high %v3283, %v3283
      %v3292 = vcombine.high %v3290, %v3290
      %v3294 = vunpack.c.l.s4 1966171168
      %v3295 = vunpack.c.0.s8 %v3294
      %v3296 = vlaneseq
      %v3297 = vshrl.u32 %v3296, 7
      %v3298 = vsub.s32 %v3295, %v3297
      %v3299 = vrot.slane %v3283, %v3298
      %v3301 = vunpack.c.l.s4 1966171168
      %v3302 = vunpack.c.0.s8 %v3301
      %v3303 = vlaneseq
      %v3304 = vshrl.u32 %v3303, 7
      %v3305 = vsub.s32 %v3302, %v3304
      %v3306 = vrot.slane %v3290, %v3305
      %v3308 = vunpack.c.l.s4 1966171168
      %v3309 = vunpack.c.0.s8 %v3308
      %v3310 = vlaneseq
      %v3311 = vshrl.u32 %v3310, 7
      %v3312 = vsub.s32 %v3309, %v3311
      %v3313 = vrot.slane %v3291, %v3312
      %v3315 = vunpack.c.l.s4 1966171168
      %v3316 = vunpack.c.0.s8 %v3315
      %v3317 = vlaneseq
      %v3318 = vshrl.u32 %v3317, 7
      %v3319 = vsub.s32 %v3316, %v3318
      %v3320 = vrot.slane %v3292, %v3319
      %v3321 = vcombine.high %v3299, %v3299
      %v3322 = vcombine.high %v3306, %v3306
      %v3323 = vcombine.high %v3313, %v3313
      %v3324 = vcombine.high %v3320, %v3320
      %v3325 = vcombine.high %v341, %v341
      %v3327 = vunpack.c.l.s4 1966171168
      %v3328 = vunpack.c.0.s8 %v3327
      %v3329 = vlaneseq
      %v3330 = vshrl.u32 %v3329, 7
      %v3331 = vsub.s32 %v3328, %v3330
      %v3332 = vrot.slane %v341, %v3331
      %v3334 = vunpack.c.l.s4 1966171168
      %v3335 = vunpack.c.0.s8 %v3334
      %v3336 = vlaneseq
      %v3337 = vshrl.u32 %v3336, 7
      %v3338 = vsub.s32 %v3335, %v3337
      %v3339 = vrot.slane %v3325, %v3338
      %v3340 = vcombine.high %v3332, %v3332
      %v3341 = vcombine.high %v3339, %v3339
      %v3343 = vunpack.c.l.s4 1966171168
      %v3344 = vunpack.c.0.s8 %v3343
      %v3345 = vlaneseq
      %v3346 = vshrl.u32 %v3345, 7
      %v3347 = vsub.s32 %v3344, %v3346
      %v3348 = vrot.slane %v3332, %v3347
      %v3350 = vunpack.c.l.s4 1966171168
      %v3351 = vunpack.c.0.s8 %v3350
      %v3352 = vlaneseq
      %v3353 = vshrl.u32 %v3352, 7
      %v3354 = vsub.s32 %v3351, %v3353
      %v3355 = vrot.slane %v3339, %v3354
      %v3357 = vunpack.c.l.s4 1966171168
      %v3358 = vunpack.c.0.s8 %v3357
      %v3359 = vlaneseq
      %v3360 = vshrl.u32 %v3359, 7
      %v3361 = vsub.s32 %v3358, %v3360
      %v3362 = vrot.slane %v3340, %v3361
      %v3364 = vunpack.c.l.s4 1966171168
      %v3365 = vunpack.c.0.s8 %v3364
      %v3366 = vlaneseq
      %v3367 = vshrl.u32 %v3366, 7
      %v3368 = vsub.s32 %v3365, %v3367
      %v3369 = vrot.slane %v3341, %v3368
      %v3370 = vcombine.high %v3348, %v3348
      %v3371 = vcombine.high %v3355, %v3355
      %v3372 = vcombine.high %v3362, %v3362
      %v3373 = vcombine.high %v3369, %v3369
      %v3374 = vcombine.high %v346, %v346
      %v3376 = vunpack.c.l.s4 1966171168
      %v3377 = vunpack.c.0.s8 %v3376
      %v3378 = vlaneseq
      %v3379 = vshrl.u32 %v3378, 7
      %v3380 = vsub.s32 %v3377, %v3379
      %v3381 = vrot.slane %v346, %v3380
      %v3383 = vunpack.c.l.s4 1966171168
      %v3384 = vunpack.c.0.s8 %v3383
      %v3385 = vlaneseq
      %v3386 = vshrl.u32 %v3385, 7
      %v3387 = vsub.s32 %v3384, %v3386
      %v3388 = vrot.slane %v3374, %v3387
      %v3389 = vcombine.high %v3381, %v3381
      %v3390 = vcombine.high %v3388, %v3388
      %v3392 = vunpack.c.l.s4 1966171168
      %v3393 = vunpack.c.0.s8 %v3392
      %v3394 = vlaneseq
      %v3395 = vshrl.u32 %v3394, 7
      %v3396 = vsub.s32 %v3393, %v3395
      %v3397 = vrot.slane %v3381, %v3396
      %v3399 = vunpack.c.l.s4 1966171168
      %v3400 = vunpack.c.0.s8 %v3399
      %v3401 = vlaneseq
      %v3402 = vshrl.u32 %v3401, 7
      %v3403 = vsub.s32 %v3400, %v3402
      %v3404 = vrot.slane %v3388, %v3403
      %v3406 = vunpack.c.l.s4 1966171168
      %v3407 = vunpack.c.0.s8 %v3406
      %v3408 = vlaneseq
      %v3409 = vshrl.u32 %v3408, 7
      %v3410 = vsub.s32 %v3407, %v3409
      %v3411 = vrot.slane %v3389, %v3410
      %v3413 = vunpack.c.l.s4 1966171168
      %v3414 = vunpack.c.0.s8 %v3413
      %v3415 = vlaneseq
      %v3416 = vshrl.u32 %v3415, 7
      %v3417 = vsub.s32 %v3414, %v3416
      %v3418 = vrot.slane %v3390, %v3417
      %v3419 = vcombine.high %v3397, %v3397
      %v3420 = vcombine.high %v3404, %v3404
      %v3421 = vcombine.high %v3411, %v3411
      %v3422 = vcombine.high %v3418, %v3418
      %v3423 = vcombine.high %v351, %v351
      %v3425 = vunpack.c.l.s4 1966171168
      %v3426 = vunpack.c.0.s8 %v3425
      %v3427 = vlaneseq
      %v3428 = vshrl.u32 %v3427, 7
      %v3429 = vsub.s32 %v3426, %v3428
      %v3430 = vrot.slane %v351, %v3429
      %v3432 = vunpack.c.l.s4 1966171168
      %v3433 = vunpack.c.0.s8 %v3432
      %v3434 = vlaneseq
      %v3435 = vshrl.u32 %v3434, 7
      %v3436 = vsub.s32 %v3433, %v3435
      %v3437 = vrot.slane %v3423, %v3436
      %v3438 = vcombine.high %v3430, %v3430
      %v3439 = vcombine.high %v3437, %v3437
      %v3441 = vunpack.c.l.s4 1966171168
      %v3442 = vunpack.c.0.s8 %v3441
      %v3443 = vlaneseq
      %v3444 = vshrl.u32 %v3443, 7
      %v3445 = vsub.s32 %v3442, %v3444
      %v3446 = vrot.slane %v3430, %v3445
      %v3448 = vunpack.c.l.s4 1966171168
      %v3449 = vunpack.c.0.s8 %v3448
      %v3450 = vlaneseq
      %v3451 = vshrl.u32 %v3450, 7
      %v3452 = vsub.s32 %v3449, %v3451
      %v3453 = vrot.slane %v3437, %v3452
      %v3455 = vunpack.c.l.s4 1966171168
      %v3456 = vunpack.c.0.s8 %v3455
      %v3457 = vlaneseq
      %v3458 = vshrl.u32 %v3457, 7
      %v3459 = vsub.s32 %v3456, %v3458
      %v3460 = vrot.slane %v3438, %v3459
      %v3462 = vunpack.c.l.s4 1966171168
      %v3463 = vunpack.c.0.s8 %v3462
      %v3464 = vlaneseq
      %v3465 = vshrl.u32 %v3464, 7
      %v3466 = vsub.s32 %v3463, %v3465
      %v3467 = vrot.slane %v3439, %v3466
      %v3468 = vcombine.high %v3446, %v3446
      %v3469 = vcombine.high %v3453, %v3453
      %v3470 = vcombine.high %v3460, %v3460
      %v3471 = vcombine.high %v3467, %v3467
      %v3472 = vlaneseq
      %v3473 = vshrl.u32 %v3472, 7
      %v3474 = vsub.s32 0, %v3473
      %v3475 = vrot.slane %v3103, %v3474
      %v3476 = vlaneseq
      %v3477 = vshrl.u32 %v3476, 7
      %v3478 = vsub.s32 0, %v3477
      %v3479 = vrot.slane %v3117, %v3478
      %v3480 = vlaneseq
      %v3481 = vshrl.u32 %v3480, 7
      %v3482 = vsub.s32 0, %v3481
      %v3483 = vrot.slane %v3125, %v3482
      %v3484 = vlaneseq
      %v3485 = vshrl.u32 %v3484, 7
      %v3486 = vsub.s32 0, %v3485
      %v3487 = vrot.slane %v3127, %v3486
      %v3488 = vlaneseq
      %v3489 = vshrl.u32 %v3488, 7
      %v3490 = vsub.s32 0, %v3489
      %v3491 = vrot.slane %v3110, %v3490
      %v3492 = vlaneseq
      %v3493 = vshrl.u32 %v3492, 7
      %v3494 = vsub.s32 0, %v3493
      %v3495 = vrot.slane %v3124, %v3494
      %v3496 = vlaneseq
      %v3497 = vshrl.u32 %v3496, 7
      %v3498 = vsub.s32 0, %v3497
      %v3499 = vrot.slane %v3126, %v3498
      %v3500 = vlaneseq
      %v3501 = vshrl.u32 %v3500, 7
      %v3502 = vsub.s32 0, %v3501
      %v3503 = vrot.slane %v3128, %v3502
      %v3504 = vlaneseq
      %v3505 = vshrl.u32 %v3504, 7
      %v3506 = vsub.s32 0, %v3505
      %v3507 = vrot.slane %v3152, %v3506
      %v3508 = vlaneseq
      %v3509 = vshrl.u32 %v3508, 7
      %v3510 = vsub.s32 0, %v3509
      %v3511 = vrot.slane %v3166, %v3510
      %v3512 = vlaneseq
      %v3513 = vshrl.u32 %v3512, 7
      %v3514 = vsub.s32 0, %v3513
      %v3515 = vrot.slane %v3174, %v3514
      %v3516 = vlaneseq
      %v3517 = vshrl.u32 %v3516, 7
      %v3518 = vsub.s32 0, %v3517
      %v3519 = vrot.slane %v3176, %v3518
      %v3520 = vlaneseq
      %v3521 = vshrl.u32 %v3520, 7
      %v3522 = vsub.s32 0, %v3521
      %v3523 = vrot.slane %v3159, %v3522
      %v3524 = vlaneseq
      %v3525 = vshrl.u32 %v3524, 7
      %v3526 = vsub.s32 0, %v3525
      %v3527 = vrot.slane %v3173, %v3526
      %v3528 = vlaneseq
      %v3529 = vshrl.u32 %v3528, 7
      %v3530 = vsub.s32 0, %v3529
      %v3531 = vrot.slane %v3175, %v3530
      %v3532 = vlaneseq
      %v3533 = vshrl.u32 %v3532, 7
      %v3534 = vsub.s32 0, %v3533
      %v3535 = vrot.slane %v3177, %v3534
      %v3536 = vlaneseq
      %v3537 = vshrl.u32 %v3536, 7
      %v3538 = vsub.s32 0, %v3537
      %v3539 = vrot.slane %v3201, %v3538
      %v3540 = vlaneseq
      %v3541 = vshrl.u32 %v3540, 7
      %v3542 = vsub.s32 0, %v3541
      %v3543 = vrot.slane %v3215, %v3542
      %v3544 = vlaneseq
      %v3545 = vshrl.u32 %v3544, 7
      %v3546 = vsub.s32 0, %v3545
      %v3547 = vrot.slane %v3223, %v3546
      %v3548 = vlaneseq
      %v3549 = vshrl.u32 %v3548, 7
      %v3550 = vsub.s32 0, %v3549
      %v3551 = vrot.slane %v3225, %v3550
      %v3552 = vlaneseq
      %v3553 = vshrl.u32 %v3552, 7
      %v3554 = vsub.s32 0, %v3553
      %v3555 = vrot.slane %v3208, %v3554
      %v3556 = vlaneseq
      %v3557 = vshrl.u32 %v3556, 7
      %v3558 = vsub.s32 0, %v3557
      %v3559 = vrot.slane %v3222, %v3558
      %v3560 = vlaneseq
      %v3561 = vshrl.u32 %v3560, 7
      %v3562 = vsub.s32 0, %v3561
      %v3563 = vrot.slane %v3224, %v3562
      %v3564 = vlaneseq
      %v3565 = vshrl.u32 %v3564, 7
      %v3566 = vsub.s32 0, %v3565
      %v3567 = vrot.slane %v3226, %v3566
      %v3568 = vlaneseq
      %v3569 = vshrl.u32 %v3568, 7
      %v3570 = vsub.s32 0, %v3569
      %v3571 = vrot.slane %v3250, %v3570
      %v3572 = vlaneseq
      %v3573 = vshrl.u32 %v3572, 7
      %v3574 = vsub.s32 0, %v3573
      %v3575 = vrot.slane %v3264, %v3574
      %v3576 = vlaneseq
      %v3577 = vshrl.u32 %v3576, 7
      %v3578 = vsub.s32 0, %v3577
      %v3579 = vrot.slane %v3272, %v3578
      %v3580 = vlaneseq
      %v3581 = vshrl.u32 %v3580, 7
      %v3582 = vsub.s32 0, %v3581
      %v3583 = vrot.slane %v3274, %v3582
      %v3584 = vlaneseq
      %v3585 = vshrl.u32 %v3584, 7
      %v3586 = vsub.s32 0, %v3585
      %v3587 = vrot.slane %v3257, %v3586
      %v3588 = vlaneseq
      %v3589 = vshrl.u32 %v3588, 7
      %v3590 = vsub.s32 0, %v3589
      %v3591 = vrot.slane %v3271, %v3590
      %v3592 = vlaneseq
      %v3593 = vshrl.u32 %v3592, 7
      %v3594 = vsub.s32 0, %v3593
      %v3595 = vrot.slane %v3273, %v3594
      %v3596 = vlaneseq
      %v3597 = vshrl.u32 %v3596, 7
      %v3598 = vsub.s32 0, %v3597
      %v3599 = vrot.slane %v3275, %v3598
      %v3600 = vlaneseq
      %v3601 = vshrl.u32 %v3600, 7
      %v3602 = vsub.s32 0, %v3601
      %v3603 = vrot.slane %v3299, %v3602
      %v3604 = vlaneseq
      %v3605 = vshrl.u32 %v3604, 7
      %v3606 = vsub.s32 0, %v3605
      %v3607 = vrot.slane %v3313, %v3606
      %v3608 = vlaneseq
      %v3609 = vshrl.u32 %v3608, 7
      %v3610 = vsub.s32 0, %v3609
      %v3611 = vrot.slane %v3321, %v3610
      %v3612 = vlaneseq
      %v3613 = vshrl.u32 %v3612, 7
      %v3614 = vsub.s32 0, %v3613
      %v3615 = vrot.slane %v3323, %v3614
      %v3616 = vlaneseq
      %v3617 = vshrl.u32 %v3616, 7
      %v3618 = vsub.s32 0, %v3617
      %v3619 = vrot.slane %v3306, %v3618
      %v3620 = vlaneseq
      %v3621 = vshrl.u32 %v3620, 7
      %v3622 = vsub.s32 0, %v3621
      %v3623 = vrot.slane %v3320, %v3622
      %v3624 = vlaneseq
      %v3625 = vshrl.u32 %v3624, 7
      %v3626 = vsub.s32 0, %v3625
      %v3627 = vrot.slane %v3322, %v3626
      %v3628 = vlaneseq
      %v3629 = vshrl.u32 %v3628, 7
      %v3630 = vsub.s32 0, %v3629
      %v3631 = vrot.slane %v3324, %v3630
      %v3632 = vlaneseq
      %v3633 = vshrl.u32 %v3632, 7
      %v3634 = vsub.s32 0, %v3633
      %v3635 = vrot.slane %v3348, %v3634
      %v3636 = vlaneseq
      %v3637 = vshrl.u32 %v3636, 7
      %v3638 = vsub.s32 0, %v3637
      %v3639 = vrot.slane %v3362, %v3638
      %v3640 = vlaneseq
      %v3641 = vshrl.u32 %v3640, 7
      %v3642 = vsub.s32 0, %v3641
      %v3643 = vrot.slane %v3370, %v3642
      %v3644 = vlaneseq
      %v3645 = vshrl.u32 %v3644, 7
      %v3646 = vsub.s32 0, %v3645
      %v3647 = vrot.slane %v3372, %v3646
      %v3648 = vlaneseq
      %v3649 = vshrl.u32 %v3648, 7
      %v3650 = vsub.s32 0, %v3649
      %v3651 = vrot.slane %v3355, %v3650
      %v3652 = vlaneseq
      %v3653 = vshrl.u32 %v3652, 7
      %v3654 = vsub.s32 0, %v3653
      %v3655 = vrot.slane %v3369, %v3654
      %v3656 = vlaneseq
      %v3657 = vshrl.u32 %v3656, 7
      %v3658 = vsub.s32 0, %v3657
      %v3659 = vrot.slane %v3371, %v3658
      %v3660 = vlaneseq
      %v3661 = vshrl.u32 %v3660, 7
      %v3662 = vsub.s32 0, %v3661
      %v3663 = vrot.slane %v3373, %v3662
      %v3664 = vlaneseq
      %v3665 = vshrl.u32 %v3664, 7
      %v3666 = vsub.s32 0, %v3665
      %v3667 = vrot.slane %v3397, %v3666
      %v3668 = vlaneseq
      %v3669 = vshrl.u32 %v3668, 7
      %v3670 = vsub.s32 0, %v3669
      %v3671 = vrot.slane %v3411, %v3670
      %v3672 = vlaneseq
      %v3673 = vshrl.u32 %v3672, 7
      %v3674 = vsub.s32 0, %v3673
      %v3675 = vrot.slane %v3419, %v3674
      %v3676 = vlaneseq
      %v3677 = vshrl.u32 %v3676, 7
      %v3678 = vsub.s32 0, %v3677
      %v3679 = vrot.slane %v3421, %v3678
      %v3680 = vlaneseq
      %v3681 = vshrl.u32 %v3680, 7
      %v3682 = vsub.s32 0, %v3681
      %v3683 = vrot.slane %v3404, %v3682
      %v3684 = vlaneseq
      %v3685 = vshrl.u32 %v3684, 7
      %v3686 = vsub.s32 0, %v3685
      %v3687 = vrot.slane %v3418, %v3686
      %v3688 = vlaneseq
      %v3689 = vshrl.u32 %v3688, 7
      %v3690 = vsub.s32 0, %v3689
      %v3691 = vrot.slane %v3420, %v3690
      %v3692 = vlaneseq
      %v3693 = vshrl.u32 %v3692, 7
      %v3694 = vsub.s32 0, %v3693
      %v3695 = vrot.slane %v3422, %v3694
      %v3696 = vlaneseq
      %v3697 = vshrl.u32 %v3696, 7
      %v3698 = vsub.s32 0, %v3697
      %v3699 = vrot.slane %v3446, %v3698
      %v3700 = vlaneseq
      %v3701 = vshrl.u32 %v3700, 7
      %v3702 = vsub.s32 0, %v3701
      %v3703 = vrot.slane %v3460, %v3702
      %v3704 = vlaneseq
      %v3705 = vshrl.u32 %v3704, 7
      %v3706 = vsub.s32 0, %v3705
      %v3707 = vrot.slane %v3468, %v3706
      %v3708 = vlaneseq
      %v3709 = vshrl.u32 %v3708, 7
      %v3710 = vsub.s32 0, %v3709
      %v3711 = vrot.slane %v3470, %v3710
      %v3712 = vlaneseq
      %v3713 = vshrl.u32 %v3712, 7
      %v3714 = vsub.s32 0, %v3713
      %v3715 = vrot.slane %v3453, %v3714
      %v3716 = vlaneseq
      %v3717 = vshrl.u32 %v3716, 7
      %v3718 = vsub.s32 0, %v3717
      %v3719 = vrot.slane %v3467, %v3718
      %v3720 = vlaneseq
      %v3721 = vshrl.u32 %v3720, 7
      %v3722 = vsub.s32 0, %v3721
      %v3723 = vrot.slane %v3469, %v3722
      %v3724 = vlaneseq
      %v3725 = vshrl.u32 %v3724, 7
      %v3726 = vsub.s32 0, %v3725
      %v3727 = vrot.slane %v3471, %v3726
      %v3792 = vmul.f32 %v846, %v3475
      %v3793 = vmul.f32 %v850, %v3475
      %v3794 = vmul.f32 %v854, %v3475
      %v3795 = vmul.f32 %v858, %v3475
      %v3796 = vmul.f32 %v862, %v3475
      %v3797 = vmul.f32 %v866, %v3475
      %v3798 = vmul.f32 %v870, %v3475
      %v3799 = vmul.f32 %v874, %v3475
      %v3800 = vmul.f32 %v881, %v3479
      %v3801 = vmul.f32 %v885, %v3479
      %v3802 = vmul.f32 %v889, %v3479
      %v3803 = vmul.f32 %v893, %v3479
      %v3804 = vmul.f32 %v897, %v3479
      %v3805 = vmul.f32 %v901, %v3479
      %v3806 = vmul.f32 %v905, %v3479
      %v3807 = vmul.f32 %v909, %v3479
      %v3808 = vmul.f32 %v916, %v3483
      %v3809 = vmul.f32 %v920, %v3483
      %v3810 = vmul.f32 %v924, %v3483
      %v3811 = vmul.f32 %v928, %v3483
      %v3812 = vmul.f32 %v932, %v3483
      %v3813 = vmul.f32 %v936, %v3483
      %v3814 = vmul.f32 %v940, %v3483
      %v3815 = vmul.f32 %v944, %v3483
      %v3816 = vmul.f32 %v951, %v3487
      %v3817 = vmul.f32 %v955, %v3487
      %v3818 = vmul.f32 %v959, %v3487
      %v3819 = vmul.f32 %v963, %v3487
      %v3820 = vmul.f32 %v967, %v3487
      %v3821 = vmul.f32 %v971, %v3487
      %v3822 = vmul.f32 %v975, %v3487
      %v3823 = vmul.f32 %v979, %v3487
      %v3824 = vmul.f32 %v986, %v3491
      %v3825 = vmul.f32 %v990, %v3491
      %v3826 = vmul.f32 %v994, %v3491
      %v3827 = vmul.f32 %v998, %v3491
      %v3828 = vmul.f32 %v1002, %v3491
      %v3829 = vmul.f32 %v1006, %v3491
      %v3830 = vmul.f32 %v1010, %v3491
      %v3831 = vmul.f32 %v1014, %v3491
      %v3832 = vmul.f32 %v1021, %v3495
      %v3833 = vmul.f32 %v1025, %v3495
      %v3834 = vmul.f32 %v1029, %v3495
      %v3835 = vmul.f32 %v1033, %v3495
      %v3836 = vmul.f32 %v1037, %v3495
      %v3837 = vmul.f32 %v1041, %v3495
      %v3838 = vmul.f32 %v1045, %v3495
      %v3839 = vmul.f32 %v1049, %v3495
      %v3840 = vmul.f32 %v1056, %v3499
      %v3841 = vmul.f32 %v1060, %v3499
      %v3842 = vmul.f32 %v1064, %v3499
      %v3843 = vmul.f32 %v1068, %v3499
      %v3844 = vmul.f32 %v1072, %v3499
      %v3845 = vmul.f32 %v1076, %v3499
      %v3846 = vmul.f32 %v1080, %v3499
      %v3847 = vmul.f32 %v1084, %v3499
      %v3848 = vmul.f32 %v1091, %v3503
      %v3849 = vmul.f32 %v1095, %v3503
      %v3850 = vmul.f32 %v1099, %v3503
      %v3851 = vmul.f32 %v1103, %v3503
      %v3852 = vmul.f32 %v1107, %v3503
      %v3853 = vmul.f32 %v1111, %v3503
      %v3854 = vmul.f32 %v1115, %v3503
      %v3855 = vmul.f32 %v1119, %v3503
      %v3856 = vmul.f32 %v1126, %v3507
      %v3857 = vmul.f32 %v1130, %v3507
      %v3858 = vmul.f32 %v1134, %v3507
      %v3859 = vmul.f32 %v1138, %v3507
      %v3860 = vmul.f32 %v1142, %v3507
      %v3861 = vmul.f32 %v1146, %v3507
      %v3862 = vmul.f32 %v1150, %v3507
      %v3863 = vmul.f32 %v1154, %v3507
      %v3864 = vmul.f32 %v1161, %v3511
      %v3865 = vmul.f32 %v1165, %v3511
      %v3866 = vmul.f32 %v1169, %v3511
      %v3867 = vmul.f32 %v1173, %v3511
      %v3868 = vmul.f32 %v1177, %v3511
      %v3869 = vmul.f32 %v1181, %v3511
      %v3870 = vmul.f32 %v1185, %v3511
      %v3871 = vmul.f32 %v1189, %v3511
      %v3872 = vmul.f32 %v1196, %v3515
      %v3873 = vmul.f32 %v1200, %v3515
      %v3874 = vmul.f32 %v1204, %v3515
      %v3875 = vmul.f32 %v1208, %v3515
      %v3876 = vmul.f32 %v1212, %v3515
      %v3877 = vmul.f32 %v1216, %v3515
      %v3878 = vmul.f32 %v1220, %v3515
      %v3879 = vmul.f32 %v1224, %v3515
      %v3880 = vmul.f32 %v1231, %v3519
      %v3881 = vmul.f32 %v1235, %v3519
      %v3882 = vmul.f32 %v1239, %v3519
      %v3883 = vmul.f32 %v1243, %v3519
      %v3884 = vmul.f32 %v1247, %v3519
      %v3885 = vmul.f32 %v1251, %v3519
      %v3886 = vmul.f32 %v1255, %v3519
      %v3887 = vmul.f32 %v1259, %v3519
      %v3888 = vmul.f32 %v1266, %v3523
      %v3889 = vmul.f32 %v1270, %v3523
      %v3890 = vmul.f32 %v1274, %v3523
      %v3891 = vmul.f32 %v1278, %v3523
      %v3892 = vmul.f32 %v1282, %v3523
      %v3893 = vmul.f32 %v1286, %v3523
      %v3894 = vmul.f32 %v1290, %v3523
      %v3895 = vmul.f32 %v1294, %v3523
      %v3896 = vmul.f32 %v1301, %v3527
      %v3897 = vmul.f32 %v1305, %v3527
      %v3898 = vmul.f32 %v1309, %v3527
      %v3899 = vmul.f32 %v1313, %v3527
      %v3900 = vmul.f32 %v1317, %v3527
      %v3901 = vmul.f32 %v1321, %v3527
      %v3902 = vmul.f32 %v1325, %v3527
      %v3903 = vmul.f32 %v1329, %v3527
      %v3904 = vmul.f32 %v1336, %v3531
      %v3905 = vmul.f32 %v1340, %v3531
      %v3906 = vmul.f32 %v1344, %v3531
      %v3907 = vmul.f32 %v1348, %v3531
      %v3908 = vmul.f32 %v1352, %v3531
      %v3909 = vmul.f32 %v1356, %v3531
      %v3910 = vmul.f32 %v1360, %v3531
      %v3911 = vmul.f32 %v1364, %v3531
      %v3912 = vmul.f32 %v1371, %v3535
      %v3913 = vmul.f32 %v1375, %v3535
      %v3914 = vmul.f32 %v1379, %v3535
      %v3915 = vmul.f32 %v1383, %v3535
      %v3916 = vmul.f32 %v1387, %v3535
      %v3917 = vmul.f32 %v1391, %v3535
      %v3918 = vmul.f32 %v1395, %v3535
      %v3919 = vmul.f32 %v1399, %v3535
      %v3920 = vmul.f32 %v1406, %v3539
      %v3921 = vmul.f32 %v1410, %v3539
      %v3922 = vmul.f32 %v1414, %v3539
      %v3923 = vmul.f32 %v1418, %v3539
      %v3924 = vmul.f32 %v1422, %v3539
      %v3925 = vmul.f32 %v1426, %v3539
      %v3926 = vmul.f32 %v1430, %v3539
      %v3927 = vmul.f32 %v1434, %v3539
      %v3928 = vmul.f32 %v1441, %v3543
      %v3929 = vmul.f32 %v1445, %v3543
      %v3930 = vmul.f32 %v1449, %v3543
      %v3931 = vmul.f32 %v1453, %v3543
      %v3932 = vmul.f32 %v1457, %v3543
      %v3933 = vmul.f32 %v1461, %v3543
      %v3934 = vmul.f32 %v1465, %v3543
      %v3935 = vmul.f32 %v1469, %v3543
      %v3936 = vmul.f32 %v1476, %v3547
      %v3937 = vmul.f32 %v1480, %v3547
      %v3938 = vmul.f32 %v1484, %v3547
      %v3939 = vmul.f32 %v1488, %v3547
      %v3940 = vmul.f32 %v1492, %v3547
      %v3941 = vmul.f32 %v1496, %v3547
      %v3942 = vmul.f32 %v1500, %v3547
      %v3943 = vmul.f32 %v1504, %v3547
      %v3944 = vmul.f32 %v1511, %v3551
      %v3945 = vmul.f32 %v1515, %v3551
      %v3946 = vmul.f32 %v1519, %v3551
      %v3947 = vmul.f32 %v1523, %v3551
      %v3948 = vmul.f32 %v1527, %v3551
      %v3949 = vmul.f32 %v1531, %v3551
      %v3950 = vmul.f32 %v1535, %v3551
      %v3951 = vmul.f32 %v1539, %v3551
      %v3952 = vmul.f32 %v1546, %v3555
      %v3953 = vmul.f32 %v1550, %v3555
      %v3954 = vmul.f32 %v1554, %v3555
      %v3955 = vmul.f32 %v1558, %v3555
      %v3956 = vmul.f32 %v1562, %v3555
      %v3957 = vmul.f32 %v1566, %v3555
      %v3958 = vmul.f32 %v1570, %v3555
      %v3959 = vmul.f32 %v1574, %v3555
      %v3960 = vmul.f32 %v1581, %v3559
      %v3961 = vmul.f32 %v1585, %v3559
      %v3962 = vmul.f32 %v1589, %v3559
      %v3963 = vmul.f32 %v1593, %v3559
      %v3964 = vmul.f32 %v1597, %v3559
      %v3965 = vmul.f32 %v1601, %v3559
      %v3966 = vmul.f32 %v1605, %v3559
      %v3967 = vmul.f32 %v1609, %v3559
      %v3968 = vmul.f32 %v1616, %v3563
      %v3969 = vmul.f32 %v1620, %v3563
      %v3970 = vmul.f32 %v1624, %v3563
      %v3971 = vmul.f32 %v1628, %v3563
      %v3972 = vmul.f32 %v1632, %v3563
      %v3973 = vmul.f32 %v1636, %v3563
      %v3974 = vmul.f32 %v1640, %v3563
      %v3975 = vmul.f32 %v1644, %v3563
      %v3976 = vmul.f32 %v1651, %v3567
      %v3977 = vmul.f32 %v1655, %v3567
      %v3978 = vmul.f32 %v1659, %v3567
      %v3979 = vmul.f32 %v1663, %v3567
      %v3980 = vmul.f32 %v1667, %v3567
      %v3981 = vmul.f32 %v1671, %v3567
      %v3982 = vmul.f32 %v1675, %v3567
      %v3983 = vmul.f32 %v1679, %v3567
      %v3984 = vmul.f32 %v1686, %v3571
      %v3985 = vmul.f32 %v1690, %v3571
      %v3986 = vmul.f32 %v1694, %v3571
      %v3987 = vmul.f32 %v1698, %v3571
      %v3988 = vmul.f32 %v1702, %v3571
      %v3989 = vmul.f32 %v1706, %v3571
      %v3990 = vmul.f32 %v1710, %v3571
      %v3991 = vmul.f32 %v1714, %v3571
      %v3992 = vmul.f32 %v1721, %v3575
      %v3993 = vmul.f32 %v1725, %v3575
      %v3994 = vmul.f32 %v1729, %v3575
      %v3995 = vmul.f32 %v1733, %v3575
      %v3996 = vmul.f32 %v1737, %v3575
      %v3997 = vmul.f32 %v1741, %v3575
      %v3998 = vmul.f32 %v1745, %v3575
      %v3999 = vmul.f32 %v1749, %v3575
      %v4000 = vmul.f32 %v1756, %v3579
      %v4001 = vmul.f32 %v1760, %v3579
      %v4002 = vmul.f32 %v1764, %v3579
      %v4003 = vmul.f32 %v1768, %v3579
      %v4004 = vmul.f32 %v1772, %v3579
      %v4005 = vmul.f32 %v1776, %v3579
      %v4006 = vmul.f32 %v1780, %v3579
      %v4007 = vmul.f32 %v1784, %v3579
      %v4008 = vmul.f32 %v1791, %v3583
      %v4009 = vmul.f32 %v1795, %v3583
      %v4010 = vmul.f32 %v1799, %v3583
      %v4011 = vmul.f32 %v1803, %v3583
      %v4012 = vmul.f32 %v1807, %v3583
      %v4013 = vmul.f32 %v1811, %v3583
      %v4014 = vmul.f32 %v1815, %v3583
      %v4015 = vmul.f32 %v1819, %v3583
      %v4016 = vmul.f32 %v1826, %v3587
      %v4017 = vmul.f32 %v1830, %v3587
      %v4018 = vmul.f32 %v1834, %v3587
      %v4019 = vmul.f32 %v1838, %v3587
      %v4020 = vmul.f32 %v1842, %v3587
      %v4021 = vmul.f32 %v1846, %v3587
      %v4022 = vmul.f32 %v1850, %v3587
      %v4023 = vmul.f32 %v1854, %v3587
      %v4024 = vmul.f32 %v1861, %v3591
      %v4025 = vmul.f32 %v1865, %v3591
      %v4026 = vmul.f32 %v1869, %v3591
      %v4027 = vmul.f32 %v1873, %v3591
      %v4028 = vmul.f32 %v1877, %v3591
      %v4029 = vmul.f32 %v1881, %v3591
      %v4030 = vmul.f32 %v1885, %v3591
      %v4031 = vmul.f32 %v1889, %v3591
      %v4032 = vmul.f32 %v1896, %v3595
      %v4033 = vmul.f32 %v1900, %v3595
      %v4034 = vmul.f32 %v1904, %v3595
      %v4035 = vmul.f32 %v1908, %v3595
      %v4036 = vmul.f32 %v1912, %v3595
      %v4037 = vmul.f32 %v1916, %v3595
      %v4038 = vmul.f32 %v1920, %v3595
      %v4039 = vmul.f32 %v1924, %v3595
      %v4040 = vmul.f32 %v1931, %v3599
      %v4041 = vmul.f32 %v1935, %v3599
      %v4042 = vmul.f32 %v1939, %v3599
      %v4043 = vmul.f32 %v1943, %v3599
      %v4044 = vmul.f32 %v1947, %v3599
      %v4045 = vmul.f32 %v1951, %v3599
      %v4046 = vmul.f32 %v1955, %v3599
      %v4047 = vmul.f32 %v1959, %v3599
      %v4048 = vmul.f32 %v1966, %v3603
      %v4049 = vmul.f32 %v1970, %v3603
      %v4050 = vmul.f32 %v1974, %v3603
      %v4051 = vmul.f32 %v1978, %v3603
      %v4052 = vmul.f32 %v1982, %v3603
      %v4053 = vmul.f32 %v1986, %v3603
      %v4054 = vmul.f32 %v1990, %v3603
      %v4055 = vmul.f32 %v1994, %v3603
      %v4056 = vmul.f32 %v2001, %v3607
      %v4057 = vmul.f32 %v2005, %v3607
      %v4058 = vmul.f32 %v2009, %v3607
      %v4059 = vmul.f32 %v2013, %v3607
      %v4060 = vmul.f32 %v2017, %v3607
      %v4061 = vmul.f32 %v2021, %v3607
      %v4062 = vmul.f32 %v2025, %v3607
      %v4063 = vmul.f32 %v2029, %v3607
      %v4064 = vmul.f32 %v2036, %v3611
      %v4065 = vmul.f32 %v2040, %v3611
      %v4066 = vmul.f32 %v2044, %v3611
      %v4067 = vmul.f32 %v2048, %v3611
      %v4068 = vmul.f32 %v2052, %v3611
      %v4069 = vmul.f32 %v2056, %v3611
      %v4070 = vmul.f32 %v2060, %v3611
      %v4071 = vmul.f32 %v2064, %v3611
      %v4072 = vmul.f32 %v2071, %v3615
      %v4073 = vmul.f32 %v2075, %v3615
      %v4074 = vmul.f32 %v2079, %v3615
      %v4075 = vmul.f32 %v2083, %v3615
      %v4076 = vmul.f32 %v2087, %v3615
      %v4077 = vmul.f32 %v2091, %v3615
      %v4078 = vmul.f32 %v2095, %v3615
      %v4079 = vmul.f32 %v2099, %v3615
      %v4080 = vmul.f32 %v2106, %v3619
      %v4081 = vmul.f32 %v2110, %v3619
      %v4082 = vmul.f32 %v2114, %v3619
      %v4083 = vmul.f32 %v2118, %v3619
      %v4084 = vmul.f32 %v2122, %v3619
      %v4085 = vmul.f32 %v2126, %v3619
      %v4086 = vmul.f32 %v2130, %v3619
      %v4087 = vmul.f32 %v2134, %v3619
      %v4088 = vmul.f32 %v2141, %v3623
      %v4089 = vmul.f32 %v2145, %v3623
      %v4090 = vmul.f32 %v2149, %v3623
      %v4091 = vmul.f32 %v2153, %v3623
      %v4092 = vmul.f32 %v2157, %v3623
      %v4093 = vmul.f32 %v2161, %v3623
      %v4094 = vmul.f32 %v2165, %v3623
      %v4095 = vmul.f32 %v2169, %v3623
      %v4096 = vmul.f32 %v2176, %v3627
      %v4097 = vmul.f32 %v2180, %v3627
      %v4098 = vmul.f32 %v2184, %v3627
      %v4099 = vmul.f32 %v2188, %v3627
      %v4100 = vmul.f32 %v2192, %v3627
      %v4101 = vmul.f32 %v2196, %v3627
      %v4102 = vmul.f32 %v2200, %v3627
      %v4103 = vmul.f32 %v2204, %v3627
      %v4104 = vmul.f32 %v2211, %v3631
      %v4105 = vmul.f32 %v2215, %v3631
      %v4106 = vmul.f32 %v2219, %v3631
      %v4107 = vmul.f32 %v2223, %v3631
      %v4108 = vmul.f32 %v2227, %v3631
      %v4109 = vmul.f32 %v2231, %v3631
      %v4110 = vmul.f32 %v2235, %v3631
      %v4111 = vmul.f32 %v2239, %v3631
      %v4112 = vmul.f32 %v2246, %v3635
      %v4113 = vmul.f32 %v2250, %v3635
      %v4114 = vmul.f32 %v2254, %v3635
      %v4115 = vmul.f32 %v2258, %v3635
      %v4116 = vmul.f32 %v2262, %v3635
      %v4117 = vmul.f32 %v2266, %v3635
      %v4118 = vmul.f32 %v2270, %v3635
      %v4119 = vmul.f32 %v2274, %v3635
      %v4120 = vmul.f32 %v2281, %v3639
      %v4121 = vmul.f32 %v2285, %v3639
      %v4122 = vmul.f32 %v2289, %v3639
      %v4123 = vmul.f32 %v2293, %v3639
      %v4124 = vmul.f32 %v2297, %v3639
      %v4125 = vmul.f32 %v2301, %v3639
      %v4126 = vmul.f32 %v2305, %v3639
      %v4127 = vmul.f32 %v2309, %v3639
      %v4128 = vmul.f32 %v2316, %v3643
      %v4129 = vmul.f32 %v2320, %v3643
      %v4130 = vmul.f32 %v2324, %v3643
      %v4131 = vmul.f32 %v2328, %v3643
      %v4132 = vmul.f32 %v2332, %v3643
      %v4133 = vmul.f32 %v2336, %v3643
      %v4134 = vmul.f32 %v2340, %v3643
      %v4135 = vmul.f32 %v2344, %v3643
      %v4136 = vmul.f32 %v2351, %v3647
      %v4137 = vmul.f32 %v2355, %v3647
      %v4138 = vmul.f32 %v2359, %v3647
      %v4139 = vmul.f32 %v2363, %v3647
      %v4140 = vmul.f32 %v2367, %v3647
      %v4141 = vmul.f32 %v2371, %v3647
      %v4142 = vmul.f32 %v2375, %v3647
      %v4143 = vmul.f32 %v2379, %v3647
      %v4144 = vmul.f32 %v2386, %v3651
      %v4145 = vmul.f32 %v2390, %v3651
      %v4146 = vmul.f32 %v2394, %v3651
      %v4147 = vmul.f32 %v2398, %v3651
      %v4148 = vmul.f32 %v2402, %v3651
      %v4149 = vmul.f32 %v2406, %v3651
      %v4150 = vmul.f32 %v2410, %v3651
      %v4151 = vmul.f32 %v2414, %v3651
      %v4152 = vmul.f32 %v2421, %v3655
      %v4153 = vmul.f32 %v2425, %v3655
      %v4154 = vmul.f32 %v2429, %v3655
      %v4155 = vmul.f32 %v2433, %v3655
      %v4156 = vmul.f32 %v2437, %v3655
      %v4157 = vmul.f32 %v2441, %v3655
      %v4158 = vmul.f32 %v2445, %v3655
      %v4159 = vmul.f32 %v2449, %v3655
      %v4160 = vmul.f32 %v2456, %v3659
      %v4161 = vmul.f32 %v2460, %v3659
      %v4162 = vmul.f32 %v2464, %v3659
      %v4163 = vmul.f32 %v2468, %v3659
      %v4164 = vmul.f32 %v2472, %v3659
      %v4165 = vmul.f32 %v2476, %v3659
      %v4166 = vmul.f32 %v2480, %v3659
      %v4167 = vmul.f32 %v2484, %v3659
      %v4168 = vmul.f32 %v2491, %v3663
      %v4169 = vmul.f32 %v2495, %v3663
      %v4170 = vmul.f32 %v2499, %v3663
      %v4171 = vmul.f32 %v2503, %v3663
      %v4172 = vmul.f32 %v2507, %v3663
      %v4173 = vmul.f32 %v2511, %v3663
      %v4174 = vmul.f32 %v2515, %v3663
      %v4175 = vmul.f32 %v2519, %v3663
      %v4176 = vmul.f32 %v2526, %v3667
      %v4177 = vmul.f32 %v2530, %v3667
      %v4178 = vmul.f32 %v2534, %v3667
      %v4179 = vmul.f32 %v2538, %v3667
      %v4180 = vmul.f32 %v2542, %v3667
      %v4181 = vmul.f32 %v2546, %v3667
      %v4182 = vmul.f32 %v2550, %v3667
      %v4183 = vmul.f32 %v2554, %v3667
      %v4184 = vmul.f32 %v2561, %v3671
      %v4185 = vmul.f32 %v2565, %v3671
      %v4186 = vmul.f32 %v2569, %v3671
      %v4187 = vmul.f32 %v2573, %v3671
      %v4188 = vmul.f32 %v2577, %v3671
      %v4189 = vmul.f32 %v2581, %v3671
      %v4190 = vmul.f32 %v2585, %v3671
      %v4191 = vmul.f32 %v2589, %v3671
      %v4192 = vmul.f32 %v2596, %v3675
      %v4193 = vmul.f32 %v2600, %v3675
      %v4194 = vmul.f32 %v2604, %v3675
      %v4195 = vmul.f32 %v2608, %v3675
      %v4196 = vmul.f32 %v2612, %v3675
      %v4197 = vmul.f32 %v2616, %v3675
      %v4198 = vmul.f32 %v2620, %v3675
      %v4199 = vmul.f32 %v2624, %v3675
      %v4200 = vmul.f32 %v2631, %v3679
      %v4201 = vmul.f32 %v2635, %v3679
      %v4202 = vmul.f32 %v2639, %v3679
      %v4203 = vmul.f32 %v2643, %v3679
      %v4204 = vmul.f32 %v2647, %v3679
      %v4205 = vmul.f32 %v2651, %v3679
      %v4206 = vmul.f32 %v2655, %v3679
      %v4207 = vmul.f32 %v2659, %v3679
      %v4208 = vmul.f32 %v2666, %v3683
      %v4209 = vmul.f32 %v2670, %v3683
      %v4210 = vmul.f32 %v2674, %v3683
      %v4211 = vmul.f32 %v2678, %v3683
      %v4212 = vmul.f32 %v2682, %v3683
      %v4213 = vmul.f32 %v2686, %v3683
      %v4214 = vmul.f32 %v2690, %v3683
      %v4215 = vmul.f32 %v2694, %v3683
      %v4216 = vmul.f32 %v2701, %v3687
      %v4217 = vmul.f32 %v2705, %v3687
      %v4218 = vmul.f32 %v2709, %v3687
      %v4219 = vmul.f32 %v2713, %v3687
      %v4220 = vmul.f32 %v2717, %v3687
      %v4221 = vmul.f32 %v2721, %v3687
      %v4222 = vmul.f32 %v2725, %v3687
      %v4223 = vmul.f32 %v2729, %v3687
      %v4224 = vmul.f32 %v2736, %v3691
      %v4225 = vmul.f32 %v2740, %v3691
      %v4226 = vmul.f32 %v2744, %v3691
      %v4227 = vmul.f32 %v2748, %v3691
      %v4228 = vmul.f32 %v2752, %v3691
      %v4229 = vmul.f32 %v2756, %v3691
      %v4230 = vmul.f32 %v2760, %v3691
      %v4231 = vmul.f32 %v2764, %v3691
      %v4232 = vmul.f32 %v2771, %v3695
      %v4233 = vmul.f32 %v2775, %v3695
      %v4234 = vmul.f32 %v2779, %v3695
      %v4235 = vmul.f32 %v2783, %v3695
      %v4236 = vmul.f32 %v2787, %v3695
      %v4237 = vmul.f32 %v2791, %v3695
      %v4238 = vmul.f32 %v2795, %v3695
      %v4239 = vmul.f32 %v2799, %v3695
      %v4240 = vmul.f32 %v2806, %v3699
      %v4241 = vmul.f32 %v2810, %v3699
      %v4242 = vmul.f32 %v2814, %v3699
      %v4243 = vmul.f32 %v2818, %v3699
      %v4244 = vmul.f32 %v2822, %v3699
      %v4245 = vmul.f32 %v2826, %v3699
      %v4246 = vmul.f32 %v2830, %v3699
      %v4247 = vmul.f32 %v2834, %v3699
      %v4248 = vmul.f32 %v2841, %v3703
      %v4249 = vmul.f32 %v2845, %v3703
      %v4250 = vmul.f32 %v2849, %v3703
      %v4251 = vmul.f32 %v2853, %v3703
      %v4252 = vmul.f32 %v2857, %v3703
      %v4253 = vmul.f32 %v2861, %v3703
      %v4254 = vmul.f32 %v2865, %v3703
      %v4255 = vmul.f32 %v2869, %v3703
      %v4256 = vmul.f32 %v2876, %v3707
      %v4257 = vmul.f32 %v2880, %v3707
      %v4258 = vmul.f32 %v2884, %v3707
      %v4259 = vmul.f32 %v2888, %v3707
      %v4260 = vmul.f32 %v2892, %v3707
      %v4261 = vmul.f32 %v2896, %v3707
      %v4262 = vmul.f32 %v2900, %v3707
      %v4263 = vmul.f32 %v2904, %v3707
      %v4264 = vmul.f32 %v2911, %v3711
      %v4265 = vmul.f32 %v2915, %v3711
      %v4266 = vmul.f32 %v2919, %v3711
      %v4267 = vmul.f32 %v2923, %v3711
      %v4268 = vmul.f32 %v2927, %v3711
      %v4269 = vmul.f32 %v2931, %v3711
      %v4270 = vmul.f32 %v2935, %v3711
      %v4271 = vmul.f32 %v2939, %v3711
      %v4272 = vmul.f32 %v2946, %v3715
      %v4273 = vmul.f32 %v2950, %v3715
      %v4274 = vmul.f32 %v2954, %v3715
      %v4275 = vmul.f32 %v2958, %v3715
      %v4276 = vmul.f32 %v2962, %v3715
      %v4277 = vmul.f32 %v2966, %v3715
      %v4278 = vmul.f32 %v2970, %v3715
      %v4279 = vmul.f32 %v2974, %v3715
      %v4280 = vmul.f32 %v2981, %v3719
      %v4281 = vmul.f32 %v2985, %v3719
      %v4282 = vmul.f32 %v2989, %v3719
      %v4283 = vmul.f32 %v2993, %v3719
      %v4284 = vmul.f32 %v2997, %v3719
      %v4285 = vmul.f32 %v3001, %v3719
      %v4286 = vmul.f32 %v3005, %v3719
      %v4287 = vmul.f32 %v3009, %v3719
      %v4288 = vmul.f32 %v3016, %v3723
      %v4289 = vmul.f32 %v3020, %v3723
      %v4290 = vmul.f32 %v3024, %v3723
      %v4291 = vmul.f32 %v3028, %v3723
      %v4292 = vmul.f32 %v3032, %v3723
      %v4293 = vmul.f32 %v3036, %v3723
      %v4294 = vmul.f32 %v3040, %v3723
      %v4295 = vmul.f32 %v3044, %v3723
      %v4296 = vmul.f32 %v3051, %v3727
      %v4297 = vmul.f32 %v3055, %v3727
      %v4298 = vmul.f32 %v3059, %v3727
      %v4299 = vmul.f32 %v3063, %v3727
      %v4300 = vmul.f32 %v3067, %v3727
      %v4301 = vmul.f32 %v3071, %v3727
      %v4302 = vmul.f32 %v3075, %v3727
      %v4303 = vmul.f32 %v3079, %v3727
      %vm4304 = vcmask 261120
      %v4305 = vsel %vm4304, %v3792, -inf
      %v4306 = vsel %vm4304, %v3800, -inf
      %v4307 = vmax.f32 %v4305, %v4306
      %v4308 = vsel %vm4304, %v3808, -inf
      %v4309 = vmax.f32 %v4307, %v4308
      %v4310 = vsel %vm4304, %v3816, -inf
      %v4311 = vmax.f32 %v4309, %v4310
      %v4312 = vsel %vm4304, %v3824, -inf
      %v4313 = vmax.f32 %v4311, %v4312
      %v4314 = vsel %vm4304, %v3832, -inf
      %v4315 = vmax.f32 %v4313, %v4314
      %v4316 = vsel %vm4304, %v3840, -inf
      %v4317 = vmax.f32 %v4315, %v4316
      %v4318 = vsel %vm4304, %v3848, -inf
      %v4319 = vmax.f32 %v4317, %v4318
      %v4320 = vsel %vm4304, %v3856, -inf
      %v4321 = vmax.f32 %v4319, %v4320
      %v4322 = vsel %vm4304, %v3864, -inf
      %v4323 = vmax.f32 %v4321, %v4322
      %v4324 = vsel %vm4304, %v3872, -inf
      %v4325 = vmax.f32 %v4323, %v4324
      %v4326 = vsel %vm4304, %v3880, -inf
      %v4327 = vmax.f32 %v4325, %v4326
      %v4328 = vsel %vm4304, %v3888, -inf
      %v4329 = vmax.f32 %v4327, %v4328
      %v4330 = vsel %vm4304, %v3896, -inf
      %v4331 = vmax.f32 %v4329, %v4330
      %v4332 = vsel %vm4304, %v3904, -inf
      %v4333 = vmax.f32 %v4331, %v4332
      %v4334 = vsel %vm4304, %v3912, -inf
      %v4335 = vmax.f32 %v4333, %v4334
      %v4336 = vsel %vm4304, %v3920, -inf
      %v4337 = vmax.f32 %v4335, %v4336
      %v4338 = vsel %vm4304, %v3928, -inf
      %v4339 = vmax.f32 %v4337, %v4338
      %v4340 = vsel %vm4304, %v3936, -inf
      %v4341 = vmax.f32 %v4339, %v4340
      %v4342 = vsel %vm4304, %v3944, -inf
      %v4343 = vmax.f32 %v4341, %v4342
      %v4344 = vsel %vm4304, %v3952, -inf
      %v4345 = vmax.f32 %v4343, %v4344
      %v4346 = vsel %vm4304, %v3960, -inf
      %v4347 = vmax.f32 %v4345, %v4346
      %v4348 = vsel %vm4304, %v3968, -inf
      %v4349 = vmax.f32 %v4347, %v4348
      %v4350 = vsel %vm4304, %v3976, -inf
      %v4351 = vmax.f32 %v4349, %v4350
      %v4352 = vsel %vm4304, %v3984, -inf
      %v4353 = vmax.f32 %v4351, %v4352
      %v4354 = vsel %vm4304, %v3992, -inf
      %v4355 = vmax.f32 %v4353, %v4354
      %v4356 = vsel %vm4304, %v4000, -inf
      %v4357 = vmax.f32 %v4355, %v4356
      %v4358 = vsel %vm4304, %v4008, -inf
      %v4359 = vmax.f32 %v4357, %v4358
      %v4360 = vsel %vm4304, %v4016, -inf
      %v4361 = vmax.f32 %v4359, %v4360
      %v4362 = vsel %vm4304, %v4024, -inf
      %v4363 = vmax.f32 %v4361, %v4362
      %v4364 = vsel %vm4304, %v4032, -inf
      %v4365 = vmax.f32 %v4363, %v4364
      %v4366 = vsel %vm4304, %v4040, -inf
      %v4367 = vmax.f32 %v4365, %v4366
      %v4368 = vsel %vm4304, %v4048, -inf
      %v4369 = vmax.f32 %v4367, %v4368
      %v4370 = vsel %vm4304, %v4056, -inf
      %v4371 = vmax.f32 %v4369, %v4370
      %v4372 = vsel %vm4304, %v4064, -inf
      %v4373 = vmax.f32 %v4371, %v4372
      %v4374 = vsel %vm4304, %v4072, -inf
      %v4375 = vmax.f32 %v4373, %v4374
      %v4376 = vsel %vm4304, %v4080, -inf
      %v4377 = vmax.f32 %v4375, %v4376
      %v4378 = vsel %vm4304, %v4088, -inf
      %v4379 = vmax.f32 %v4377, %v4378
      %v4380 = vsel %vm4304, %v4096, -inf
      %v4381 = vmax.f32 %v4379, %v4380
      %v4382 = vsel %vm4304, %v4104, -inf
      %v4383 = vmax.f32 %v4381, %v4382
      %v4384 = vsel %vm4304, %v4112, -inf
      %v4385 = vmax.f32 %v4383, %v4384
      %v4386 = vsel %vm4304, %v4120, -inf
      %v4387 = vmax.f32 %v4385, %v4386
      %v4388 = vsel %vm4304, %v4128, -inf
      %v4389 = vmax.f32 %v4387, %v4388
      %v4390 = vsel %vm4304, %v4136, -inf
      %v4391 = vmax.f32 %v4389, %v4390
      %v4392 = vsel %vm4304, %v4144, -inf
      %v4393 = vmax.f32 %v4391, %v4392
      %v4394 = vsel %vm4304, %v4152, -inf
      %v4395 = vmax.f32 %v4393, %v4394
      %v4396 = vsel %vm4304, %v4160, -inf
      %v4397 = vmax.f32 %v4395, %v4396
      %v4398 = vsel %vm4304, %v4168, -inf
      %v4399 = vmax.f32 %v4397, %v4398
      %v4400 = vsel %vm4304, %v4176, -inf
      %v4401 = vmax.f32 %v4399, %v4400
      %v4402 = vsel %vm4304, %v4184, -inf
      %v4403 = vmax.f32 %v4401, %v4402
      %v4404 = vsel %vm4304, %v4192, -inf
      %v4405 = vmax.f32 %v4403, %v4404
      %v4406 = vsel %vm4304, %v4200, -inf
      %v4407 = vmax.f32 %v4405, %v4406
      %v4408 = vsel %vm4304, %v4208, -inf
      %v4409 = vmax.f32 %v4407, %v4408
      %v4410 = vsel %vm4304, %v4216, -inf
      %v4411 = vmax.f32 %v4409, %v4410
      %v4412 = vsel %vm4304, %v4224, -inf
      %v4413 = vmax.f32 %v4411, %v4412
      %v4414 = vsel %vm4304, %v4232, -inf
      %v4415 = vmax.f32 %v4413, %v4414
      %v4416 = vsel %vm4304, %v4240, -inf
      %v4417 = vmax.f32 %v4415, %v4416
      %v4418 = vsel %vm4304, %v4248, -inf
      %v4419 = vmax.f32 %v4417, %v4418
      %v4420 = vsel %vm4304, %v4256, -inf
      %v4421 = vmax.f32 %v4419, %v4420
      %v4422 = vsel %vm4304, %v4264, -inf
      %v4423 = vmax.f32 %v4421, %v4422
      %v4424 = vsel %vm4304, %v4272, -inf
      %v4425 = vmax.f32 %v4423, %v4424
      %v4426 = vsel %vm4304, %v4280, -inf
      %v4427 = vmax.f32 %v4425, %v4426
      %v4428 = vsel %vm4304, %v4288, -inf
      %v4429 = vmax.f32 %v4427, %v4428
      %v4430 = vsel %vm4304, %v4296, -inf
      %v4431 = vmax.f32 %v4429, %v4430
      %v4432 = vsel %vm4304, %v3793, -inf
      %v4433 = vsel %vm4304, %v3801, -inf
      %v4434 = vmax.f32 %v4432, %v4433
      %v4435 = vsel %vm4304, %v3809, -inf
      %v4436 = vmax.f32 %v4434, %v4435
      %v4437 = vsel %vm4304, %v3817, -inf
      %v4438 = vmax.f32 %v4436, %v4437
      %v4439 = vsel %vm4304, %v3825, -inf
      %v4440 = vmax.f32 %v4438, %v4439
      %v4441 = vsel %vm4304, %v3833, -inf
      %v4442 = vmax.f32 %v4440, %v4441
      %v4443 = vsel %vm4304, %v3841, -inf
      %v4444 = vmax.f32 %v4442, %v4443
      %v4445 = vsel %vm4304, %v3849, -inf
      %v4446 = vmax.f32 %v4444, %v4445
      %v4447 = vsel %vm4304, %v3857, -inf
      %v4448 = vmax.f32 %v4446, %v4447
      %v4449 = vsel %vm4304, %v3865, -inf
      %v4450 = vmax.f32 %v4448, %v4449
      %v4451 = vsel %vm4304, %v3873, -inf
      %v4452 = vmax.f32 %v4450, %v4451
      %v4453 = vsel %vm4304, %v3881, -inf
      %v4454 = vmax.f32 %v4452, %v4453
      %v4455 = vsel %vm4304, %v3889, -inf
      %v4456 = vmax.f32 %v4454, %v4455
      %v4457 = vsel %vm4304, %v3897, -inf
      %v4458 = vmax.f32 %v4456, %v4457
      %v4459 = vsel %vm4304, %v3905, -inf
      %v4460 = vmax.f32 %v4458, %v4459
      %v4461 = vsel %vm4304, %v3913, -inf
      %v4462 = vmax.f32 %v4460, %v4461
      %v4463 = vsel %vm4304, %v3921, -inf
      %v4464 = vmax.f32 %v4462, %v4463
      %v4465 = vsel %vm4304, %v3929, -inf
      %v4466 = vmax.f32 %v4464, %v4465
      %v4467 = vsel %vm4304, %v3937, -inf
      %v4468 = vmax.f32 %v4466, %v4467
      %v4469 = vsel %vm4304, %v3945, -inf
      %v4470 = vmax.f32 %v4468, %v4469
      %v4471 = vsel %vm4304, %v3953, -inf
      %v4472 = vmax.f32 %v4470, %v4471
      %v4473 = vsel %vm4304, %v3961, -inf
      %v4474 = vmax.f32 %v4472, %v4473
      %v4475 = vsel %vm4304, %v3969, -inf
      %v4476 = vmax.f32 %v4474, %v4475
      %v4477 = vsel %vm4304, %v3977, -inf
      %v4478 = vmax.f32 %v4476, %v4477
      %v4479 = vsel %vm4304, %v3985, -inf
      %v4480 = vmax.f32 %v4478, %v4479
      %v4481 = vsel %vm4304, %v3993, -inf
      %v4482 = vmax.f32 %v4480, %v4481
      %v4483 = vsel %vm4304, %v4001, -inf
      %v4484 = vmax.f32 %v4482, %v4483
      %v4485 = vsel %vm4304, %v4009, -inf
      %v4486 = vmax.f32 %v4484, %v4485
      %v4487 = vsel %vm4304, %v4017, -inf
      %v4488 = vmax.f32 %v4486, %v4487
      %v4489 = vsel %vm4304, %v4025, -inf
      %v4490 = vmax.f32 %v4488, %v4489
      %v4491 = vsel %vm4304, %v4033, -inf
      %v4492 = vmax.f32 %v4490, %v4491
      %v4493 = vsel %vm4304, %v4041, -inf
      %v4494 = vmax.f32 %v4492, %v4493
      %v4495 = vsel %vm4304, %v4049, -inf
      %v4496 = vmax.f32 %v4494, %v4495
      %v4497 = vsel %vm4304, %v4057, -inf
      %v4498 = vmax.f32 %v4496, %v4497
      %v4499 = vsel %vm4304, %v4065, -inf
      %v4500 = vmax.f32 %v4498, %v4499
      %v4501 = vsel %vm4304, %v4073, -inf
      %v4502 = vmax.f32 %v4500, %v4501
      %v4503 = vsel %vm4304, %v4081, -inf
      %v4504 = vmax.f32 %v4502, %v4503
      %v4505 = vsel %vm4304, %v4089, -inf
      %v4506 = vmax.f32 %v4504, %v4505
      %v4507 = vsel %vm4304, %v4097, -inf
      %v4508 = vmax.f32 %v4506, %v4507
      %v4509 = vsel %vm4304, %v4105, -inf
      %v4510 = vmax.f32 %v4508, %v4509
      %v4511 = vsel %vm4304, %v4113, -inf
      %v4512 = vmax.f32 %v4510, %v4511
      %v4513 = vsel %vm4304, %v4121, -inf
      %v4514 = vmax.f32 %v4512, %v4513
      %v4515 = vsel %vm4304, %v4129, -inf
      %v4516 = vmax.f32 %v4514, %v4515
      %v4517 = vsel %vm4304, %v4137, -inf
      %v4518 = vmax.f32 %v4516, %v4517
      %v4519 = vsel %vm4304, %v4145, -inf
      %v4520 = vmax.f32 %v4518, %v4519
      %v4521 = vsel %vm4304, %v4153, -inf
      %v4522 = vmax.f32 %v4520, %v4521
      %v4523 = vsel %vm4304, %v4161, -inf
      %v4524 = vmax.f32 %v4522, %v4523
      %v4525 = vsel %vm4304, %v4169, -inf
      %v4526 = vmax.f32 %v4524, %v4525
      %v4527 = vsel %vm4304, %v4177, -inf
      %v4528 = vmax.f32 %v4526, %v4527
      %v4529 = vsel %vm4304, %v4185, -inf
      %v4530 = vmax.f32 %v4528, %v4529
      %v4531 = vsel %vm4304, %v4193, -inf
      %v4532 = vmax.f32 %v4530, %v4531
      %v4533 = vsel %vm4304, %v4201, -inf
      %v4534 = vmax.f32 %v4532, %v4533
      %v4535 = vsel %vm4304, %v4209, -inf
      %v4536 = vmax.f32 %v4534, %v4535
      %v4537 = vsel %vm4304, %v4217, -inf
      %v4538 = vmax.f32 %v4536, %v4537
      %v4539 = vsel %vm4304, %v4225, -inf
      %v4540 = vmax.f32 %v4538, %v4539
      %v4541 = vsel %vm4304, %v4233, -inf
      %v4542 = vmax.f32 %v4540, %v4541
      %v4543 = vsel %vm4304, %v4241, -inf
      %v4544 = vmax.f32 %v4542, %v4543
      %v4545 = vsel %vm4304, %v4249, -inf
      %v4546 = vmax.f32 %v4544, %v4545
      %v4547 = vsel %vm4304, %v4257, -inf
      %v4548 = vmax.f32 %v4546, %v4547
      %v4549 = vsel %vm4304, %v4265, -inf
      %v4550 = vmax.f32 %v4548, %v4549
      %v4551 = vsel %vm4304, %v4273, -inf
      %v4552 = vmax.f32 %v4550, %v4551
      %v4553 = vsel %vm4304, %v4281, -inf
      %v4554 = vmax.f32 %v4552, %v4553
      %v4555 = vsel %vm4304, %v4289, -inf
      %v4556 = vmax.f32 %v4554, %v4555
      %v4557 = vsel %vm4304, %v4297, -inf
      %v4558 = vmax.f32 %v4556, %v4557
      %v4559 = vsel %vm4304, %v3794, -inf
      %v4560 = vsel %vm4304, %v3802, -inf
      %v4561 = vmax.f32 %v4559, %v4560
      %v4562 = vsel %vm4304, %v3810, -inf
      %v4563 = vmax.f32 %v4561, %v4562
      %v4564 = vsel %vm4304, %v3818, -inf
      %v4565 = vmax.f32 %v4563, %v4564
      %v4566 = vsel %vm4304, %v3826, -inf
      %v4567 = vmax.f32 %v4565, %v4566
      %v4568 = vsel %vm4304, %v3834, -inf
      %v4569 = vmax.f32 %v4567, %v4568
      %v4570 = vsel %vm4304, %v3842, -inf
      %v4571 = vmax.f32 %v4569, %v4570
      %v4572 = vsel %vm4304, %v3850, -inf
      %v4573 = vmax.f32 %v4571, %v4572
      %v4574 = vsel %vm4304, %v3858, -inf
      %v4575 = vmax.f32 %v4573, %v4574
      %v4576 = vsel %vm4304, %v3866, -inf
      %v4577 = vmax.f32 %v4575, %v4576
      %v4578 = vsel %vm4304, %v3874, -inf
      %v4579 = vmax.f32 %v4577, %v4578
      %v4580 = vsel %vm4304, %v3882, -inf
      %v4581 = vmax.f32 %v4579, %v4580
      %v4582 = vsel %vm4304, %v3890, -inf
      %v4583 = vmax.f32 %v4581, %v4582
      %v4584 = vsel %vm4304, %v3898, -inf
      %v4585 = vmax.f32 %v4583, %v4584
      %v4586 = vsel %vm4304, %v3906, -inf
      %v4587 = vmax.f32 %v4585, %v4586
      %v4588 = vsel %vm4304, %v3914, -inf
      %v4589 = vmax.f32 %v4587, %v4588
      %v4590 = vsel %vm4304, %v3922, -inf
      %v4591 = vmax.f32 %v4589, %v4590
      %v4592 = vsel %vm4304, %v3930, -inf
      %v4593 = vmax.f32 %v4591, %v4592
      %v4594 = vsel %vm4304, %v3938, -inf
      %v4595 = vmax.f32 %v4593, %v4594
      %v4596 = vsel %vm4304, %v3946, -inf
      %v4597 = vmax.f32 %v4595, %v4596
      %v4598 = vsel %vm4304, %v3954, -inf
      %v4599 = vmax.f32 %v4597, %v4598
      %v4600 = vsel %vm4304, %v3962, -inf
      %v4601 = vmax.f32 %v4599, %v4600
      %v4602 = vsel %vm4304, %v3970, -inf
      %v4603 = vmax.f32 %v4601, %v4602
      %v4604 = vsel %vm4304, %v3978, -inf
      %v4605 = vmax.f32 %v4603, %v4604
      %v4606 = vsel %vm4304, %v3986, -inf
      %v4607 = vmax.f32 %v4605, %v4606
      %v4608 = vsel %vm4304, %v3994, -inf
      %v4609 = vmax.f32 %v4607, %v4608
      %v4610 = vsel %vm4304, %v4002, -inf
      %v4611 = vmax.f32 %v4609, %v4610
      %v4612 = vsel %vm4304, %v4010, -inf
      %v4613 = vmax.f32 %v4611, %v4612
      %v4614 = vsel %vm4304, %v4018, -inf
      %v4615 = vmax.f32 %v4613, %v4614
      %v4616 = vsel %vm4304, %v4026, -inf
      %v4617 = vmax.f32 %v4615, %v4616
      %v4618 = vsel %vm4304, %v4034, -inf
      %v4619 = vmax.f32 %v4617, %v4618
      %v4620 = vsel %vm4304, %v4042, -inf
      %v4621 = vmax.f32 %v4619, %v4620
      %v4622 = vsel %vm4304, %v4050, -inf
      %v4623 = vmax.f32 %v4621, %v4622
      %v4624 = vsel %vm4304, %v4058, -inf
      %v4625 = vmax.f32 %v4623, %v4624
      %v4626 = vsel %vm4304, %v4066, -inf
      %v4627 = vmax.f32 %v4625, %v4626
      %v4628 = vsel %vm4304, %v4074, -inf
      %v4629 = vmax.f32 %v4627, %v4628
      %v4630 = vsel %vm4304, %v4082, -inf
      %v4631 = vmax.f32 %v4629, %v4630
      %v4632 = vsel %vm4304, %v4090, -inf
      %v4633 = vmax.f32 %v4631, %v4632
      %v4634 = vsel %vm4304, %v4098, -inf
      %v4635 = vmax.f32 %v4633, %v4634
      %v4636 = vsel %vm4304, %v4106, -inf
      %v4637 = vmax.f32 %v4635, %v4636
      %v4638 = vsel %vm4304, %v4114, -inf
      %v4639 = vmax.f32 %v4637, %v4638
      %v4640 = vsel %vm4304, %v4122, -inf
      %v4641 = vmax.f32 %v4639, %v4640
      %v4642 = vsel %vm4304, %v4130, -inf
      %v4643 = vmax.f32 %v4641, %v4642
      %v4644 = vsel %vm4304, %v4138, -inf
      %v4645 = vmax.f32 %v4643, %v4644
      %v4646 = vsel %vm4304, %v4146, -inf
      %v4647 = vmax.f32 %v4645, %v4646
      %v4648 = vsel %vm4304, %v4154, -inf
      %v4649 = vmax.f32 %v4647, %v4648
      %v4650 = vsel %vm4304, %v4162, -inf
      %v4651 = vmax.f32 %v4649, %v4650
      %v4652 = vsel %vm4304, %v4170, -inf
      %v4653 = vmax.f32 %v4651, %v4652
      %v4654 = vsel %vm4304, %v4178, -inf
      %v4655 = vmax.f32 %v4653, %v4654
      %v4656 = vsel %vm4304, %v4186, -inf
      %v4657 = vmax.f32 %v4655, %v4656
      %v4658 = vsel %vm4304, %v4194, -inf
      %v4659 = vmax.f32 %v4657, %v4658
      %v4660 = vsel %vm4304, %v4202, -inf
      %v4661 = vmax.f32 %v4659, %v4660
      %v4662 = vsel %vm4304, %v4210, -inf
      %v4663 = vmax.f32 %v4661, %v4662
      %v4664 = vsel %vm4304, %v4218, -inf
      %v4665 = vmax.f32 %v4663, %v4664
      %v4666 = vsel %vm4304, %v4226, -inf
      %v4667 = vmax.f32 %v4665, %v4666
      %v4668 = vsel %vm4304, %v4234, -inf
      %v4669 = vmax.f32 %v4667, %v4668
      %v4670 = vsel %vm4304, %v4242, -inf
      %v4671 = vmax.f32 %v4669, %v4670
      %v4672 = vsel %vm4304, %v4250, -inf
      %v4673 = vmax.f32 %v4671, %v4672
      %v4674 = vsel %vm4304, %v4258, -inf
      %v4675 = vmax.f32 %v4673, %v4674
      %v4676 = vsel %vm4304, %v4266, -inf
      %v4677 = vmax.f32 %v4675, %v4676
      %v4678 = vsel %vm4304, %v4274, -inf
      %v4679 = vmax.f32 %v4677, %v4678
      %v4680 = vsel %vm4304, %v4282, -inf
      %v4681 = vmax.f32 %v4679, %v4680
      %v4682 = vsel %vm4304, %v4290, -inf
      %v4683 = vmax.f32 %v4681, %v4682
      %v4684 = vsel %vm4304, %v4298, -inf
      %v4685 = vmax.f32 %v4683, %v4684
      %v4686 = vsel %vm4304, %v3795, -inf
      %v4687 = vsel %vm4304, %v3803, -inf
      %v4688 = vmax.f32 %v4686, %v4687
      %v4689 = vsel %vm4304, %v3811, -inf
      %v4690 = vmax.f32 %v4688, %v4689
      %v4691 = vsel %vm4304, %v3819, -inf
      %v4692 = vmax.f32 %v4690, %v4691
      %v4693 = vsel %vm4304, %v3827, -inf
      %v4694 = vmax.f32 %v4692, %v4693
      %v4695 = vsel %vm4304, %v3835, -inf
      %v4696 = vmax.f32 %v4694, %v4695
      %v4697 = vsel %vm4304, %v3843, -inf
      %v4698 = vmax.f32 %v4696, %v4697
      %v4699 = vsel %vm4304, %v3851, -inf
      %v4700 = vmax.f32 %v4698, %v4699
      %v4701 = vsel %vm4304, %v3859, -inf
      %v4702 = vmax.f32 %v4700, %v4701
      %v4703 = vsel %vm4304, %v3867, -inf
      %v4704 = vmax.f32 %v4702, %v4703
      %v4705 = vsel %vm4304, %v3875, -inf
      %v4706 = vmax.f32 %v4704, %v4705
      %v4707 = vsel %vm4304, %v3883, -inf
      %v4708 = vmax.f32 %v4706, %v4707
      %v4709 = vsel %vm4304, %v3891, -inf
      %v4710 = vmax.f32 %v4708, %v4709
      %v4711 = vsel %vm4304, %v3899, -inf
      %v4712 = vmax.f32 %v4710, %v4711
      %v4713 = vsel %vm4304, %v3907, -inf
      %v4714 = vmax.f32 %v4712, %v4713
      %v4715 = vsel %vm4304, %v3915, -inf
      %v4716 = vmax.f32 %v4714, %v4715
      %v4717 = vsel %vm4304, %v3923, -inf
      %v4718 = vmax.f32 %v4716, %v4717
      %v4719 = vsel %vm4304, %v3931, -inf
      %v4720 = vmax.f32 %v4718, %v4719
      %v4721 = vsel %vm4304, %v3939, -inf
      %v4722 = vmax.f32 %v4720, %v4721
      %v4723 = vsel %vm4304, %v3947, -inf
      %v4724 = vmax.f32 %v4722, %v4723
      %v4725 = vsel %vm4304, %v3955, -inf
      %v4726 = vmax.f32 %v4724, %v4725
      %v4727 = vsel %vm4304, %v3963, -inf
      %v4728 = vmax.f32 %v4726, %v4727
      %v4729 = vsel %vm4304, %v3971, -inf
      %v4730 = vmax.f32 %v4728, %v4729
      %v4731 = vsel %vm4304, %v3979, -inf
      %v4732 = vmax.f32 %v4730, %v4731
      %v4733 = vsel %vm4304, %v3987, -inf
      %v4734 = vmax.f32 %v4732, %v4733
      %v4735 = vsel %vm4304, %v3995, -inf
      %v4736 = vmax.f32 %v4734, %v4735
      %v4737 = vsel %vm4304, %v4003, -inf
      %v4738 = vmax.f32 %v4736, %v4737
      %v4739 = vsel %vm4304, %v4011, -inf
      %v4740 = vmax.f32 %v4738, %v4739
      %v4741 = vsel %vm4304, %v4019, -inf
      %v4742 = vmax.f32 %v4740, %v4741
      %v4743 = vsel %vm4304, %v4027, -inf
      %v4744 = vmax.f32 %v4742, %v4743
      %v4745 = vsel %vm4304, %v4035, -inf
      %v4746 = vmax.f32 %v4744, %v4745
      %v4747 = vsel %vm4304, %v4043, -inf
      %v4748 = vmax.f32 %v4746, %v4747
      %v4749 = vsel %vm4304, %v4051, -inf
      %v4750 = vmax.f32 %v4748, %v4749
      %v4751 = vsel %vm4304, %v4059, -inf
      %v4752 = vmax.f32 %v4750, %v4751
      %v4753 = vsel %vm4304, %v4067, -inf
      %v4754 = vmax.f32 %v4752, %v4753
      %v4755 = vsel %vm4304, %v4075, -inf
      %v4756 = vmax.f32 %v4754, %v4755
      %v4757 = vsel %vm4304, %v4083, -inf
      %v4758 = vmax.f32 %v4756, %v4757
      %v4759 = vsel %vm4304, %v4091, -inf
      %v4760 = vmax.f32 %v4758, %v4759
      %v4761 = vsel %vm4304, %v4099, -inf
      %v4762 = vmax.f32 %v4760, %v4761
      %v4763 = vsel %vm4304, %v4107, -inf
      %v4764 = vmax.f32 %v4762, %v4763
      %v4765 = vsel %vm4304, %v4115, -inf
      %v4766 = vmax.f32 %v4764, %v4765
      %v4767 = vsel %vm4304, %v4123, -inf
      %v4768 = vmax.f32 %v4766, %v4767
      %v4769 = vsel %vm4304, %v4131, -inf
      %v4770 = vmax.f32 %v4768, %v4769
      %v4771 = vsel %vm4304, %v4139, -inf
      %v4772 = vmax.f32 %v4770, %v4771
      %v4773 = vsel %vm4304, %v4147, -inf
      %v4774 = vmax.f32 %v4772, %v4773
      %v4775 = vsel %vm4304, %v4155, -inf
      %v4776 = vmax.f32 %v4774, %v4775
      %v4777 = vsel %vm4304, %v4163, -inf
      %v4778 = vmax.f32 %v4776, %v4777
      %v4779 = vsel %vm4304, %v4171, -inf
      %v4780 = vmax.f32 %v4778, %v4779
      %v4781 = vsel %vm4304, %v4179, -inf
      %v4782 = vmax.f32 %v4780, %v4781
      %v4783 = vsel %vm4304, %v4187, -inf
      %v4784 = vmax.f32 %v4782, %v4783
      %v4785 = vsel %vm4304, %v4195, -inf
      %v4786 = vmax.f32 %v4784, %v4785
      %v4787 = vsel %vm4304, %v4203, -inf
      %v4788 = vmax.f32 %v4786, %v4787
      %v4789 = vsel %vm4304, %v4211, -inf
      %v4790 = vmax.f32 %v4788, %v4789
      %v4791 = vsel %vm4304, %v4219, -inf
      %v4792 = vmax.f32 %v4790, %v4791
      %v4793 = vsel %vm4304, %v4227, -inf
      %v4794 = vmax.f32 %v4792, %v4793
      %v4795 = vsel %vm4304, %v4235, -inf
      %v4796 = vmax.f32 %v4794, %v4795
      %v4797 = vsel %vm4304, %v4243, -inf
      %v4798 = vmax.f32 %v4796, %v4797
      %v4799 = vsel %vm4304, %v4251, -inf
      %v4800 = vmax.f32 %v4798, %v4799
      %v4801 = vsel %vm4304, %v4259, -inf
      %v4802 = vmax.f32 %v4800, %v4801
      %v4803 = vsel %vm4304, %v4267, -inf
      %v4804 = vmax.f32 %v4802, %v4803
      %v4805 = vsel %vm4304, %v4275, -inf
      %v4806 = vmax.f32 %v4804, %v4805
      %v4807 = vsel %vm4304, %v4283, -inf
      %v4808 = vmax.f32 %v4806, %v4807
      %v4809 = vsel %vm4304, %v4291, -inf
      %v4810 = vmax.f32 %v4808, %v4809
      %v4811 = vsel %vm4304, %v4299, -inf
      %v4812 = vmax.f32 %v4810, %v4811
      %v4813 = vsel %vm4304, %v3796, -inf
      %v4814 = vsel %vm4304, %v3804, -inf
      %v4815 = vmax.f32 %v4813, %v4814
      %v4816 = vsel %vm4304, %v3812, -inf
      %v4817 = vmax.f32 %v4815, %v4816
      %v4818 = vsel %vm4304, %v3820, -inf
      %v4819 = vmax.f32 %v4817, %v4818
      %v4820 = vsel %vm4304, %v3828, -inf
      %v4821 = vmax.f32 %v4819, %v4820
      %v4822 = vsel %vm4304, %v3836, -inf
      %v4823 = vmax.f32 %v4821, %v4822
      %v4824 = vsel %vm4304, %v3844, -inf
      %v4825 = vmax.f32 %v4823, %v4824
      %v4826 = vsel %vm4304, %v3852, -inf
      %v4827 = vmax.f32 %v4825, %v4826
      %v4828 = vsel %vm4304, %v3860, -inf
      %v4829 = vmax.f32 %v4827, %v4828
      %v4830 = vsel %vm4304, %v3868, -inf
      %v4831 = vmax.f32 %v4829, %v4830
      %v4832 = vsel %vm4304, %v3876, -inf
      %v4833 = vmax.f32 %v4831, %v4832
      %v4834 = vsel %vm4304, %v3884, -inf
      %v4835 = vmax.f32 %v4833, %v4834
      %v4836 = vsel %vm4304, %v3892, -inf
      %v4837 = vmax.f32 %v4835, %v4836
      %v4838 = vsel %vm4304, %v3900, -inf
      %v4839 = vmax.f32 %v4837, %v4838
      %v4840 = vsel %vm4304, %v3908, -inf
      %v4841 = vmax.f32 %v4839, %v4840
      %v4842 = vsel %vm4304, %v3916, -inf
      %v4843 = vmax.f32 %v4841, %v4842
      %v4844 = vsel %vm4304, %v3924, -inf
      %v4845 = vmax.f32 %v4843, %v4844
      %v4846 = vsel %vm4304, %v3932, -inf
      %v4847 = vmax.f32 %v4845, %v4846
      %v4848 = vsel %vm4304, %v3940, -inf
      %v4849 = vmax.f32 %v4847, %v4848
      %v4850 = vsel %vm4304, %v3948, -inf
      %v4851 = vmax.f32 %v4849, %v4850
      %v4852 = vsel %vm4304, %v3956, -inf
      %v4853 = vmax.f32 %v4851, %v4852
      %v4854 = vsel %vm4304, %v3964, -inf
      %v4855 = vmax.f32 %v4853, %v4854
      %v4856 = vsel %vm4304, %v3972, -inf
      %v4857 = vmax.f32 %v4855, %v4856
      %v4858 = vsel %vm4304, %v3980, -inf
      %v4859 = vmax.f32 %v4857, %v4858
      %v4860 = vsel %vm4304, %v3988, -inf
      %v4861 = vmax.f32 %v4859, %v4860
      %v4862 = vsel %vm4304, %v3996, -inf
      %v4863 = vmax.f32 %v4861, %v4862
      %v4864 = vsel %vm4304, %v4004, -inf
      %v4865 = vmax.f32 %v4863, %v4864
      %v4866 = vsel %vm4304, %v4012, -inf
      %v4867 = vmax.f32 %v4865, %v4866
      %v4868 = vsel %vm4304, %v4020, -inf
      %v4869 = vmax.f32 %v4867, %v4868
      %v4870 = vsel %vm4304, %v4028, -inf
      %v4871 = vmax.f32 %v4869, %v4870
      %v4872 = vsel %vm4304, %v4036, -inf
      %v4873 = vmax.f32 %v4871, %v4872
      %v4874 = vsel %vm4304, %v4044, -inf
      %v4875 = vmax.f32 %v4873, %v4874
      %v4876 = vsel %vm4304, %v4052, -inf
      %v4877 = vmax.f32 %v4875, %v4876
      %v4878 = vsel %vm4304, %v4060, -inf
      %v4879 = vmax.f32 %v4877, %v4878
      %v4880 = vsel %vm4304, %v4068, -inf
      %v4881 = vmax.f32 %v4879, %v4880
      %v4882 = vsel %vm4304, %v4076, -inf
      %v4883 = vmax.f32 %v4881, %v4882
      %v4884 = vsel %vm4304, %v4084, -inf
      %v4885 = vmax.f32 %v4883, %v4884
      %v4886 = vsel %vm4304, %v4092, -inf
      %v4887 = vmax.f32 %v4885, %v4886
      %v4888 = vsel %vm4304, %v4100, -inf
      %v4889 = vmax.f32 %v4887, %v4888
      %v4890 = vsel %vm4304, %v4108, -inf
      %v4891 = vmax.f32 %v4889, %v4890
      %v4892 = vsel %vm4304, %v4116, -inf
      %v4893 = vmax.f32 %v4891, %v4892
      %v4894 = vsel %vm4304, %v4124, -inf
      %v4895 = vmax.f32 %v4893, %v4894
      %v4896 = vsel %vm4304, %v4132, -inf
      %v4897 = vmax.f32 %v4895, %v4896
      %v4898 = vsel %vm4304, %v4140, -inf
      %v4899 = vmax.f32 %v4897, %v4898
      %v4900 = vsel %vm4304, %v4148, -inf
      %v4901 = vmax.f32 %v4899, %v4900
      %v4902 = vsel %vm4304, %v4156, -inf
      %v4903 = vmax.f32 %v4901, %v4902
      %v4904 = vsel %vm4304, %v4164, -inf
      %v4905 = vmax.f32 %v4903, %v4904
      %v4906 = vsel %vm4304, %v4172, -inf
      %v4907 = vmax.f32 %v4905, %v4906
      %v4908 = vsel %vm4304, %v4180, -inf
      %v4909 = vmax.f32 %v4907, %v4908
      %v4910 = vsel %vm4304, %v4188, -inf
      %v4911 = vmax.f32 %v4909, %v4910
      %v4912 = vsel %vm4304, %v4196, -inf
      %v4913 = vmax.f32 %v4911, %v4912
      %v4914 = vsel %vm4304, %v4204, -inf
      %v4915 = vmax.f32 %v4913, %v4914
      %v4916 = vsel %vm4304, %v4212, -inf
      %v4917 = vmax.f32 %v4915, %v4916
      %v4918 = vsel %vm4304, %v4220, -inf
      %v4919 = vmax.f32 %v4917, %v4918
      %v4920 = vsel %vm4304, %v4228, -inf
      %v4921 = vmax.f32 %v4919, %v4920
      %v4922 = vsel %vm4304, %v4236, -inf
      %v4923 = vmax.f32 %v4921, %v4922
      %v4924 = vsel %vm4304, %v4244, -inf
      %v4925 = vmax.f32 %v4923, %v4924
      %v4926 = vsel %vm4304, %v4252, -inf
      %v4927 = vmax.f32 %v4925, %v4926
      %v4928 = vsel %vm4304, %v4260, -inf
      %v4929 = vmax.f32 %v4927, %v4928
      %v4930 = vsel %vm4304, %v4268, -inf
      %v4931 = vmax.f32 %v4929, %v4930
      %v4932 = vsel %vm4304, %v4276, -inf
      %v4933 = vmax.f32 %v4931, %v4932
      %v4934 = vsel %vm4304, %v4284, -inf
      %v4935 = vmax.f32 %v4933, %v4934
      %v4936 = vsel %vm4304, %v4292, -inf
      %v4937 = vmax.f32 %v4935, %v4936
      %v4938 = vsel %vm4304, %v4300, -inf
      %v4939 = vmax.f32 %v4937, %v4938
      %v4940 = vsel %vm4304, %v3797, -inf
      %v4941 = vsel %vm4304, %v3805, -inf
      %v4942 = vmax.f32 %v4940, %v4941
      %v4943 = vsel %vm4304, %v3813, -inf
      %v4944 = vmax.f32 %v4942, %v4943
      %v4945 = vsel %vm4304, %v3821, -inf
      %v4946 = vmax.f32 %v4944, %v4945
      %v4947 = vsel %vm4304, %v3829, -inf
      %v4948 = vmax.f32 %v4946, %v4947
      %v4949 = vsel %vm4304, %v3837, -inf
      %v4950 = vmax.f32 %v4948, %v4949
      %v4951 = vsel %vm4304, %v3845, -inf
      %v4952 = vmax.f32 %v4950, %v4951
      %v4953 = vsel %vm4304, %v3853, -inf
      %v4954 = vmax.f32 %v4952, %v4953
      %v4955 = vsel %vm4304, %v3861, -inf
      %v4956 = vmax.f32 %v4954, %v4955
      %v4957 = vsel %vm4304, %v3869, -inf
      %v4958 = vmax.f32 %v4956, %v4957
      %v4959 = vsel %vm4304, %v3877, -inf
      %v4960 = vmax.f32 %v4958, %v4959
      %v4961 = vsel %vm4304, %v3885, -inf
      %v4962 = vmax.f32 %v4960, %v4961
      %v4963 = vsel %vm4304, %v3893, -inf
      %v4964 = vmax.f32 %v4962, %v4963
      %v4965 = vsel %vm4304, %v3901, -inf
      %v4966 = vmax.f32 %v4964, %v4965
      %v4967 = vsel %vm4304, %v3909, -inf
      %v4968 = vmax.f32 %v4966, %v4967
      %v4969 = vsel %vm4304, %v3917, -inf
      %v4970 = vmax.f32 %v4968, %v4969
      %v4971 = vsel %vm4304, %v3925, -inf
      %v4972 = vmax.f32 %v4970, %v4971
      %v4973 = vsel %vm4304, %v3933, -inf
      %v4974 = vmax.f32 %v4972, %v4973
      %v4975 = vsel %vm4304, %v3941, -inf
      %v4976 = vmax.f32 %v4974, %v4975
      %v4977 = vsel %vm4304, %v3949, -inf
      %v4978 = vmax.f32 %v4976, %v4977
      %v4979 = vsel %vm4304, %v3957, -inf
      %v4980 = vmax.f32 %v4978, %v4979
      %v4981 = vsel %vm4304, %v3965, -inf
      %v4982 = vmax.f32 %v4980, %v4981
      %v4983 = vsel %vm4304, %v3973, -inf
      %v4984 = vmax.f32 %v4982, %v4983
      %v4985 = vsel %vm4304, %v3981, -inf
      %v4986 = vmax.f32 %v4984, %v4985
      %v4987 = vsel %vm4304, %v3989, -inf
      %v4988 = vmax.f32 %v4986, %v4987
      %v4989 = vsel %vm4304, %v3997, -inf
      %v4990 = vmax.f32 %v4988, %v4989
      %v4991 = vsel %vm4304, %v4005, -inf
      %v4992 = vmax.f32 %v4990, %v4991
      %v4993 = vsel %vm4304, %v4013, -inf
      %v4994 = vmax.f32 %v4992, %v4993
      %v4995 = vsel %vm4304, %v4021, -inf
      %v4996 = vmax.f32 %v4994, %v4995
      %v4997 = vsel %vm4304, %v4029, -inf
      %v4998 = vmax.f32 %v4996, %v4997
      %v4999 = vsel %vm4304, %v4037, -inf
      %v5000 = vmax.f32 %v4998, %v4999
      %v5001 = vsel %vm4304, %v4045, -inf
      %v5002 = vmax.f32 %v5000, %v5001
      %v5003 = vsel %vm4304, %v4053, -inf
      %v5004 = vmax.f32 %v5002, %v5003
      %v5005 = vsel %vm4304, %v4061, -inf
      %v5006 = vmax.f32 %v5004, %v5005
      %v5007 = vsel %vm4304, %v4069, -inf
      %v5008 = vmax.f32 %v5006, %v5007
      %v5009 = vsel %vm4304, %v4077, -inf
      %v5010 = vmax.f32 %v5008, %v5009
      %v5011 = vsel %vm4304, %v4085, -inf
      %v5012 = vmax.f32 %v5010, %v5011
      %v5013 = vsel %vm4304, %v4093, -inf
      %v5014 = vmax.f32 %v5012, %v5013
      %v5015 = vsel %vm4304, %v4101, -inf
      %v5016 = vmax.f32 %v5014, %v5015
      %v5017 = vsel %vm4304, %v4109, -inf
      %v5018 = vmax.f32 %v5016, %v5017
      %v5019 = vsel %vm4304, %v4117, -inf
      %v5020 = vmax.f32 %v5018, %v5019
      %v5021 = vsel %vm4304, %v4125, -inf
      %v5022 = vmax.f32 %v5020, %v5021
      %v5023 = vsel %vm4304, %v4133, -inf
      %v5024 = vmax.f32 %v5022, %v5023
      %v5025 = vsel %vm4304, %v4141, -inf
      %v5026 = vmax.f32 %v5024, %v5025
      %v5027 = vsel %vm4304, %v4149, -inf
      %v5028 = vmax.f32 %v5026, %v5027
      %v5029 = vsel %vm4304, %v4157, -inf
      %v5030 = vmax.f32 %v5028, %v5029
      %v5031 = vsel %vm4304, %v4165, -inf
      %v5032 = vmax.f32 %v5030, %v5031
      %v5033 = vsel %vm4304, %v4173, -inf
      %v5034 = vmax.f32 %v5032, %v5033
      %v5035 = vsel %vm4304, %v4181, -inf
      %v5036 = vmax.f32 %v5034, %v5035
      %v5037 = vsel %vm4304, %v4189, -inf
      %v5038 = vmax.f32 %v5036, %v5037
      %v5039 = vsel %vm4304, %v4197, -inf
      %v5040 = vmax.f32 %v5038, %v5039
      %v5041 = vsel %vm4304, %v4205, -inf
      %v5042 = vmax.f32 %v5040, %v5041
      %v5043 = vsel %vm4304, %v4213, -inf
      %v5044 = vmax.f32 %v5042, %v5043
      %v5045 = vsel %vm4304, %v4221, -inf
      %v5046 = vmax.f32 %v5044, %v5045
      %v5047 = vsel %vm4304, %v4229, -inf
      %v5048 = vmax.f32 %v5046, %v5047
      %v5049 = vsel %vm4304, %v4237, -inf
      %v5050 = vmax.f32 %v5048, %v5049
      %v5051 = vsel %vm4304, %v4245, -inf
      %v5052 = vmax.f32 %v5050, %v5051
      %v5053 = vsel %vm4304, %v4253, -inf
      %v5054 = vmax.f32 %v5052, %v5053
      %v5055 = vsel %vm4304, %v4261, -inf
      %v5056 = vmax.f32 %v5054, %v5055
      %v5057 = vsel %vm4304, %v4269, -inf
      %v5058 = vmax.f32 %v5056, %v5057
      %v5059 = vsel %vm4304, %v4277, -inf
      %v5060 = vmax.f32 %v5058, %v5059
      %v5061 = vsel %vm4304, %v4285, -inf
      %v5062 = vmax.f32 %v5060, %v5061
      %v5063 = vsel %vm4304, %v4293, -inf
      %v5064 = vmax.f32 %v5062, %v5063
      %v5065 = vsel %vm4304, %v4301, -inf
      %v5066 = vmax.f32 %v5064, %v5065
      %v5067 = vsel %vm4304, %v3798, -inf
      %v5068 = vsel %vm4304, %v3806, -inf
      %v5069 = vmax.f32 %v5067, %v5068
      %v5070 = vsel %vm4304, %v3814, -inf
      %v5071 = vmax.f32 %v5069, %v5070
      %v5072 = vsel %vm4304, %v3822, -inf
      %v5073 = vmax.f32 %v5071, %v5072
      %v5074 = vsel %vm4304, %v3830, -inf
      %v5075 = vmax.f32 %v5073, %v5074
      %v5076 = vsel %vm4304, %v3838, -inf
      %v5077 = vmax.f32 %v5075, %v5076
      %v5078 = vsel %vm4304, %v3846, -inf
      %v5079 = vmax.f32 %v5077, %v5078
      %v5080 = vsel %vm4304, %v3854, -inf
      %v5081 = vmax.f32 %v5079, %v5080
      %v5082 = vsel %vm4304, %v3862, -inf
      %v5083 = vmax.f32 %v5081, %v5082
      %v5084 = vsel %vm4304, %v3870, -inf
      %v5085 = vmax.f32 %v5083, %v5084
      %v5086 = vsel %vm4304, %v3878, -inf
      %v5087 = vmax.f32 %v5085, %v5086
      %v5088 = vsel %vm4304, %v3886, -inf
      %v5089 = vmax.f32 %v5087, %v5088
      %v5090 = vsel %vm4304, %v3894, -inf
      %v5091 = vmax.f32 %v5089, %v5090
      %v5092 = vsel %vm4304, %v3902, -inf
      %v5093 = vmax.f32 %v5091, %v5092
      %v5094 = vsel %vm4304, %v3910, -inf
      %v5095 = vmax.f32 %v5093, %v5094
      %v5096 = vsel %vm4304, %v3918, -inf
      %v5097 = vmax.f32 %v5095, %v5096
      %v5098 = vsel %vm4304, %v3926, -inf
      %v5099 = vmax.f32 %v5097, %v5098
      %v5100 = vsel %vm4304, %v3934, -inf
      %v5101 = vmax.f32 %v5099, %v5100
      %v5102 = vsel %vm4304, %v3942, -inf
      %v5103 = vmax.f32 %v5101, %v5102
      %v5104 = vsel %vm4304, %v3950, -inf
      %v5105 = vmax.f32 %v5103, %v5104
      %v5106 = vsel %vm4304, %v3958, -inf
      %v5107 = vmax.f32 %v5105, %v5106
      %v5108 = vsel %vm4304, %v3966, -inf
      %v5109 = vmax.f32 %v5107, %v5108
      %v5110 = vsel %vm4304, %v3974, -inf
      %v5111 = vmax.f32 %v5109, %v5110
      %v5112 = vsel %vm4304, %v3982, -inf
      %v5113 = vmax.f32 %v5111, %v5112
      %v5114 = vsel %vm4304, %v3990, -inf
      %v5115 = vmax.f32 %v5113, %v5114
      %v5116 = vsel %vm4304, %v3998, -inf
      %v5117 = vmax.f32 %v5115, %v5116
      %v5118 = vsel %vm4304, %v4006, -inf
      %v5119 = vmax.f32 %v5117, %v5118
      %v5120 = vsel %vm4304, %v4014, -inf
      %v5121 = vmax.f32 %v5119, %v5120
      %v5122 = vsel %vm4304, %v4022, -inf
      %v5123 = vmax.f32 %v5121, %v5122
      %v5124 = vsel %vm4304, %v4030, -inf
      %v5125 = vmax.f32 %v5123, %v5124
      %v5126 = vsel %vm4304, %v4038, -inf
      %v5127 = vmax.f32 %v5125, %v5126
      %v5128 = vsel %vm4304, %v4046, -inf
      %v5129 = vmax.f32 %v5127, %v5128
      %v5130 = vsel %vm4304, %v4054, -inf
      %v5131 = vmax.f32 %v5129, %v5130
      %v5132 = vsel %vm4304, %v4062, -inf
      %v5133 = vmax.f32 %v5131, %v5132
      %v5134 = vsel %vm4304, %v4070, -inf
      %v5135 = vmax.f32 %v5133, %v5134
      %v5136 = vsel %vm4304, %v4078, -inf
      %v5137 = vmax.f32 %v5135, %v5136
      %v5138 = vsel %vm4304, %v4086, -inf
      %v5139 = vmax.f32 %v5137, %v5138
      %v5140 = vsel %vm4304, %v4094, -inf
      %v5141 = vmax.f32 %v5139, %v5140
      %v5142 = vsel %vm4304, %v4102, -inf
      %v5143 = vmax.f32 %v5141, %v5142
      %v5144 = vsel %vm4304, %v4110, -inf
      %v5145 = vmax.f32 %v5143, %v5144
      %v5146 = vsel %vm4304, %v4118, -inf
      %v5147 = vmax.f32 %v5145, %v5146
      %v5148 = vsel %vm4304, %v4126, -inf
      %v5149 = vmax.f32 %v5147, %v5148
      %v5150 = vsel %vm4304, %v4134, -inf
      %v5151 = vmax.f32 %v5149, %v5150
      %v5152 = vsel %vm4304, %v4142, -inf
      %v5153 = vmax.f32 %v5151, %v5152
      %v5154 = vsel %vm4304, %v4150, -inf
      %v5155 = vmax.f32 %v5153, %v5154
      %v5156 = vsel %vm4304, %v4158, -inf
      %v5157 = vmax.f32 %v5155, %v5156
      %v5158 = vsel %vm4304, %v4166, -inf
      %v5159 = vmax.f32 %v5157, %v5158
      %v5160 = vsel %vm4304, %v4174, -inf
      %v5161 = vmax.f32 %v5159, %v5160
      %v5162 = vsel %vm4304, %v4182, -inf
      %v5163 = vmax.f32 %v5161, %v5162
      %v5164 = vsel %vm4304, %v4190, -inf
      %v5165 = vmax.f32 %v5163, %v5164
      %v5166 = vsel %vm4304, %v4198, -inf
      %v5167 = vmax.f32 %v5165, %v5166
      %v5168 = vsel %vm4304, %v4206, -inf
      %v5169 = vmax.f32 %v5167, %v5168
      %v5170 = vsel %vm4304, %v4214, -inf
      %v5171 = vmax.f32 %v5169, %v5170
      %v5172 = vsel %vm4304, %v4222, -inf
      %v5173 = vmax.f32 %v5171, %v5172
      %v5174 = vsel %vm4304, %v4230, -inf
      %v5175 = vmax.f32 %v5173, %v5174
      %v5176 = vsel %vm4304, %v4238, -inf
      %v5177 = vmax.f32 %v5175, %v5176
      %v5178 = vsel %vm4304, %v4246, -inf
      %v5179 = vmax.f32 %v5177, %v5178
      %v5180 = vsel %vm4304, %v4254, -inf
      %v5181 = vmax.f32 %v5179, %v5180
      %v5182 = vsel %vm4304, %v4262, -inf
      %v5183 = vmax.f32 %v5181, %v5182
      %v5184 = vsel %vm4304, %v4270, -inf
      %v5185 = vmax.f32 %v5183, %v5184
      %v5186 = vsel %vm4304, %v4278, -inf
      %v5187 = vmax.f32 %v5185, %v5186
      %v5188 = vsel %vm4304, %v4286, -inf
      %v5189 = vmax.f32 %v5187, %v5188
      %v5190 = vsel %vm4304, %v4294, -inf
      %v5191 = vmax.f32 %v5189, %v5190
      %v5192 = vsel %vm4304, %v4302, -inf
      %v5193 = vmax.f32 %v5191, %v5192
      %v5194 = vsel %vm4304, %v3799, -inf
      %v5195 = vsel %vm4304, %v3807, -inf
      %v5196 = vmax.f32 %v5194, %v5195
      %v5197 = vsel %vm4304, %v3815, -inf
      %v5198 = vmax.f32 %v5196, %v5197
      %v5199 = vsel %vm4304, %v3823, -inf
      %v5200 = vmax.f32 %v5198, %v5199
      %v5201 = vsel %vm4304, %v3831, -inf
      %v5202 = vmax.f32 %v5200, %v5201
      %v5203 = vsel %vm4304, %v3839, -inf
      %v5204 = vmax.f32 %v5202, %v5203
      %v5205 = vsel %vm4304, %v3847, -inf
      %v5206 = vmax.f32 %v5204, %v5205
      %v5207 = vsel %vm4304, %v3855, -inf
      %v5208 = vmax.f32 %v5206, %v5207
      %v5209 = vsel %vm4304, %v3863, -inf
      %v5210 = vmax.f32 %v5208, %v5209
      %v5211 = vsel %vm4304, %v3871, -inf
      %v5212 = vmax.f32 %v5210, %v5211
      %v5213 = vsel %vm4304, %v3879, -inf
      %v5214 = vmax.f32 %v5212, %v5213
      %v5215 = vsel %vm4304, %v3887, -inf
      %v5216 = vmax.f32 %v5214, %v5215
      %v5217 = vsel %vm4304, %v3895, -inf
      %v5218 = vmax.f32 %v5216, %v5217
      %v5219 = vsel %vm4304, %v3903, -inf
      %v5220 = vmax.f32 %v5218, %v5219
      %v5221 = vsel %vm4304, %v3911, -inf
      %v5222 = vmax.f32 %v5220, %v5221
      %v5223 = vsel %vm4304, %v3919, -inf
      %v5224 = vmax.f32 %v5222, %v5223
      %v5225 = vsel %vm4304, %v3927, -inf
      %v5226 = vmax.f32 %v5224, %v5225
      %v5227 = vsel %vm4304, %v3935, -inf
      %v5228 = vmax.f32 %v5226, %v5227
      %v5229 = vsel %vm4304, %v3943, -inf
      %v5230 = vmax.f32 %v5228, %v5229
      %v5231 = vsel %vm4304, %v3951, -inf
      %v5232 = vmax.f32 %v5230, %v5231
      %v5233 = vsel %vm4304, %v3959, -inf
      %v5234 = vmax.f32 %v5232, %v5233
      %v5235 = vsel %vm4304, %v3967, -inf
      %v5236 = vmax.f32 %v5234, %v5235
      %v5237 = vsel %vm4304, %v3975, -inf
      %v5238 = vmax.f32 %v5236, %v5237
      %v5239 = vsel %vm4304, %v3983, -inf
      %v5240 = vmax.f32 %v5238, %v5239
      %v5241 = vsel %vm4304, %v3991, -inf
      %v5242 = vmax.f32 %v5240, %v5241
      %v5243 = vsel %vm4304, %v3999, -inf
      %v5244 = vmax.f32 %v5242, %v5243
      %v5245 = vsel %vm4304, %v4007, -inf
      %v5246 = vmax.f32 %v5244, %v5245
      %v5247 = vsel %vm4304, %v4015, -inf
      %v5248 = vmax.f32 %v5246, %v5247
      %v5249 = vsel %vm4304, %v4023, -inf
      %v5250 = vmax.f32 %v5248, %v5249
      %v5251 = vsel %vm4304, %v4031, -inf
      %v5252 = vmax.f32 %v5250, %v5251
      %v5253 = vsel %vm4304, %v4039, -inf
      %v5254 = vmax.f32 %v5252, %v5253
      %v5255 = vsel %vm4304, %v4047, -inf
      %v5256 = vmax.f32 %v5254, %v5255
      %v5257 = vsel %vm4304, %v4055, -inf
      %v5258 = vmax.f32 %v5256, %v5257
      %v5259 = vsel %vm4304, %v4063, -inf
      %v5260 = vmax.f32 %v5258, %v5259
      %v5261 = vsel %vm4304, %v4071, -inf
      %v5262 = vmax.f32 %v5260, %v5261
      %v5263 = vsel %vm4304, %v4079, -inf
      %v5264 = vmax.f32 %v5262, %v5263
      %v5265 = vsel %vm4304, %v4087, -inf
      %v5266 = vmax.f32 %v5264, %v5265
      %v5267 = vsel %vm4304, %v4095, -inf
      %v5268 = vmax.f32 %v5266, %v5267
      %v5269 = vsel %vm4304, %v4103, -inf
      %v5270 = vmax.f32 %v5268, %v5269
      %v5271 = vsel %vm4304, %v4111, -inf
      %v5272 = vmax.f32 %v5270, %v5271
      %v5273 = vsel %vm4304, %v4119, -inf
      %v5274 = vmax.f32 %v5272, %v5273
      %v5275 = vsel %vm4304, %v4127, -inf
      %v5276 = vmax.f32 %v5274, %v5275
      %v5277 = vsel %vm4304, %v4135, -inf
      %v5278 = vmax.f32 %v5276, %v5277
      %v5279 = vsel %vm4304, %v4143, -inf
      %v5280 = vmax.f32 %v5278, %v5279
      %v5281 = vsel %vm4304, %v4151, -inf
      %v5282 = vmax.f32 %v5280, %v5281
      %v5283 = vsel %vm4304, %v4159, -inf
      %v5284 = vmax.f32 %v5282, %v5283
      %v5285 = vsel %vm4304, %v4167, -inf
      %v5286 = vmax.f32 %v5284, %v5285
      %v5287 = vsel %vm4304, %v4175, -inf
      %v5288 = vmax.f32 %v5286, %v5287
      %v5289 = vsel %vm4304, %v4183, -inf
      %v5290 = vmax.f32 %v5288, %v5289
      %v5291 = vsel %vm4304, %v4191, -inf
      %v5292 = vmax.f32 %v5290, %v5291
      %v5293 = vsel %vm4304, %v4199, -inf
      %v5294 = vmax.f32 %v5292, %v5293
      %v5295 = vsel %vm4304, %v4207, -inf
      %v5296 = vmax.f32 %v5294, %v5295
      %v5297 = vsel %vm4304, %v4215, -inf
      %v5298 = vmax.f32 %v5296, %v5297
      %v5299 = vsel %vm4304, %v4223, -inf
      %v5300 = vmax.f32 %v5298, %v5299
      %v5301 = vsel %vm4304, %v4231, -inf
      %v5302 = vmax.f32 %v5300, %v5301
      %v5303 = vsel %vm4304, %v4239, -inf
      %v5304 = vmax.f32 %v5302, %v5303
      %v5305 = vsel %vm4304, %v4247, -inf
      %v5306 = vmax.f32 %v5304, %v5305
      %v5307 = vsel %vm4304, %v4255, -inf
      %v5308 = vmax.f32 %v5306, %v5307
      %v5309 = vsel %vm4304, %v4263, -inf
      %v5310 = vmax.f32 %v5308, %v5309
      %v5311 = vsel %vm4304, %v4271, -inf
      %v5312 = vmax.f32 %v5310, %v5311
      %v5313 = vsel %vm4304, %v4279, -inf
      %v5314 = vmax.f32 %v5312, %v5313
      %v5315 = vsel %vm4304, %v4287, -inf
      %v5316 = vmax.f32 %v5314, %v5315
      %v5317 = vsel %vm4304, %v4295, -inf
      %v5318 = vmax.f32 %v5316, %v5317
      %v5319 = vsel %vm4304, %v4303, -inf
      %v5320 = vmax.f32 %v5318, %v5319
      %5329 = vrot.lane.b32.xlu0 %v802, 16
      %v5330 = vpop.permute.xlu0 %5329
      %5331 = vrot.lane.b32.xlu0 %v807, 16
      %v5332 = vpop.permute.xlu0 %5331
      %5333 = vrot.lane.b32.xlu0 %v812, 16
      %v5334 = vpop.permute.xlu0 %5333
      %5335 = vrot.lane.b32.xlu0 %v817, 16
      %v5336 = vpop.permute.xlu0 %5335
      %5337 = vrot.lane.b32.xlu0 %v822, 16
      %v5338 = vpop.permute.xlu0 %5337
      %5339 = vrot.lane.b32.xlu0 %v827, 16
      %v5340 = vpop.permute.xlu0 %5339
      %5341 = vrot.lane.b32.xlu0 %v832, 16
      %v5342 = vpop.permute.xlu0 %5341
      %5343 = vrot.lane.b32.xlu0 %v837, 16
      %v5344 = vpop.permute.xlu0 %5343
      %5361 = vrot.lane.b32.xlu0 %v4431, 48
      %v5362 = vpop.permute.xlu0 %5361
      %5363 = vrot.lane.b32.xlu0 %v4558, 48
      %v5364 = vpop.permute.xlu0 %5363
      %5365 = vrot.lane.b32.xlu0 %v4685, 48
      %v5366 = vpop.permute.xlu0 %5365
      %5367 = vrot.lane.b32.xlu0 %v4812, 48
      %v5368 = vpop.permute.xlu0 %5367
      %5369 = vrot.lane.b32.xlu0 %v4939, 48
      %v5370 = vpop.permute.xlu0 %5369
      %5371 = vrot.lane.b32.xlu0 %v5066, 48
      %v5372 = vpop.permute.xlu0 %5371
      %5373 = vrot.lane.b32.xlu0 %v5193, 48
      %v5374 = vpop.permute.xlu0 %5373
      %5375 = vrot.lane.b32.xlu0 %v5320, 48
      %v5376 = vpop.permute.xlu0 %5375
      %v5385 = vsel %vm224, %v216, %v5330
      %v5386 = vsel %vm224, %v217, %v5332
      %v5387 = vsel %vm224, %v218, %v5334
      %v5388 = vsel %vm224, %v219, %v5336
      %v5389 = vsel %vm224, %v220, %v5338
      %v5390 = vsel %vm224, %v221, %v5340
      %v5391 = vsel %vm224, %v222, %v5342
      %v5392 = vsel %vm224, %v223, %v5344
      %vm5393 = vcmask 392192
      %v5394 = vsel %vm5393, %v5385, %v5362
      %v5395 = vsel %vm5393, %v5386, %v5364
      %v5396 = vsel %vm5393, %v5387, %v5366
      %v5397 = vsel %vm5393, %v5388, %v5368
      %v5398 = vsel %vm5393, %v5389, %v5370
      %v5399 = vsel %vm5393, %v5390, %v5372
      %v5400 = vsel %vm5393, %v5391, %v5374
      %v5401 = vsel %vm5393, %v5392, %v5376
      %v5403 = vlaneseq
      %v5404 = vshrl.u32 %v5403, 7
      %v5405 = vsub.s32 0, %v5404
      %v5406 = vrot.slane %v215, %v5405
      %vm5408 = vcmask 654336
      %v5410 = vsel %vm5408, %v5394, 0
      %v5413 = vsel %vm5408, %v5395, 0
      %v5416 = vsel %vm5408, %v5396, 0
      %v5419 = vsel %vm5408, %v5397, 0
      %v5422 = vsel %vm5408, %v5398, 0
      %v5425 = vsel %vm5408, %v5399, 0
      %v5428 = vsel %vm5408, %v5400, 0
      %v5431 = vsel %vm5408, %v5401, 0
      %5433 = vmatprep.subr.mxu0 0.0
      %5434 = vmatpush1.msra.mxu0 %v205
      %5435 = vmatprep.subr.mxu0 0.0
      %5436 = vmatpush1.msra.mxu0 %v206
      %5437 = vmatprep.subr.mxu0 0.0
      %5438 = vmatpush1.msra.mxu0 %v207
      %5439 = vmatprep.subr.mxu0 0.0
      %5440 = vmatpush1.msra.mxu0 %v208
      %5441 = vmatprep.subr.mxu0 0.0
      %5442 = vmatpush1.msra.mxu0 %v209
      %5443 = vmatprep.subr.mxu0 0.0
      %5444 = vmatpush1.msra.mxu0 %v210
      %5445 = vmatprep.subr.mxu0 0.0
      %5446 = vmatpush1.msra.mxu0 %v211
      %5447 = vmatprep.subr.mxu0 0.0
      %5448 = vmatpush1.msra.mxu0 %v212
      %5449 = vmatprep.subr.mxu0 0.0
      %5450 = vmatpush1.msra.mxu0 %v213
      %5451 = vmatprep.subr.mxu0 0.0
      %5452 = vmatpush1.msra.mxu0 %v214
      %5453 = vmatprep.subr.mxu0 0.0
      %5454 = vmatpush1.msra.mxu0 0.0
      %5455 = vmatprep.subr.mxu0 0.0
      %5456 = vmatpush1.msra.mxu0 0.0
      %5457 = vmatprep.subr.mxu0 0.0
      %5458 = vmatpush1.msra.mxu0 0.0
      %5459 = vmatprep.subr.mxu0 0.0
      %5460 = vmatpush1.msra.mxu0 0.0
      %5461 = vmatprep.subr.mxu0 0.0
      %5462 = vmatpush1.msra.mxu0 0.0
      %5463 = vmatprep.subr.mxu0 0.0
      %5464 = vmatpush1.msra.mxu0 0.0
      %5465 = vmatprep.subr.mxu0 0.0
      %5466 = vmatpush1.msra.mxu0 0.0
      %5467 = vmatprep.subr.mxu0 0.0
      %5468 = vmatpush1.msra.mxu0 0.0
      %5469 = vmatprep.subr.mxu0 0.0
      %5470 = vmatpush1.msra.mxu0 0.0
      %5471 = vmatprep.subr.mxu0 0.0
      %5472 = vmatpush1.msra.mxu0 0.0
      %5473 = vmatprep.subr.mxu0 0.0
      %5474 = vmatpush1.msra.mxu0 0.0
      %5475 = vmatprep.subr.mxu0 0.0
      %5476 = vmatpush1.msra.mxu0 0.0
      %5477 = vmatprep.subr.mxu0 0.0
      %5478 = vmatpush1.msra.mxu0 0.0
      %5479 = vmatprep.subr.mxu0 0.0
      %5480 = vmatpush1.msra.mxu0 0.0
      %5481 = vmatprep.subr.mxu0 0.0
      %5482 = vmatpush1.msra.mxu0 0.0
      %5483 = vmatprep.subr.mxu0 0.0
      %5484 = vmatpush1.msra.mxu0 0.0
      %5485 = vmatprep.subr.mxu0 0.0
      %5486 = vmatpush1.msra.mxu0 0.0
      %5487 = vmatprep.subr.mxu0 0.0
      %5488 = vmatpush1.msra.mxu0 0.0
      %5489 = vmatprep.subr.mxu0 0.0
      %5490 = vmatpush1.msra.mxu0 0.0
      %5491 = vmatprep.subr.mxu0 0.0
      %5492 = vmatpush1.msra.mxu0 0.0
      %5493 = vmatprep.subr.mxu0 0.0
      %5494 = vmatpush1.msra.mxu0 0.0
      %5495 = vmatprep.subr.mxu0 0.0
      %5496 = vmatpush1.msra.mxu0 0.0
      %5497 = vmatprep.mubr.f32.mxu0 0.0
      %5498 = vmatmul.mubr.f32.gmra.mrb[0].mxu0 %v5410
      %v5499 = vpop.f32.mrb[0].mxu0
      %v5500 = vadd.f32 %v5406, %v5499
      %v5501 = vpop.f32.mrb[0].mxu0
      %5502 = vmatprep.mubr.f32.mxu0 0.0
      %5503 = vmatmul.mubr.f32.gmra.mrb[0].mxu0 %v5413
      %v5504 = vpop.f32.mrb[0].mxu0
      %v5505 = vadd.f32 %v5406, %v5504
      %v5506 = vpop.f32.mrb[0].mxu0
      %5507 = vmatprep.mubr.f32.mxu0 0.0
      %5508 = vmatmul.mubr.f32.gmra.mrb[0].mxu0 %v5416
      %v5509 = vpop.f32.mrb[0].mxu0
      %v5510 = vadd.f32 %v5406, %v5509
      %v5511 = vpop.f32.mrb[0].mxu0
      %5512 = vmatprep.mubr.f32.mxu0 0.0
      %5513 = vmatmul.mubr.f32.gmra.mrb[0].mxu0 %v5419
      %v5514 = vpop.f32.mrb[0].mxu0
      %v5515 = vadd.f32 %v5406, %v5514
      %v5516 = vpop.f32.mrb[0].mxu0
      %5517 = vmatprep.mubr.f32.mxu0 0.0
      %5518 = vmatmul.mubr.f32.gmra.mrb[0].mxu0 %v5422
      %v5519 = vpop.f32.mrb[0].mxu0
      %v5520 = vadd.f32 %v5406, %v5519
      %v5521 = vpop.f32.mrb[0].mxu0
      %5522 = vmatprep.mubr.f32.mxu0 0.0
      %5523 = vmatmul.mubr.f32.gmra.mrb[0].mxu0 %v5425
      %v5524 = vpop.f32.mrb[0].mxu0
      %v5525 = vadd.f32 %v5406, %v5524
      %v5526 = vpop.f32.mrb[0].mxu0
      %5527 = vmatprep.mubr.f32.mxu0 0.0
      %5528 = vmatmul.mubr.f32.gmra.mrb[0].mxu0 %v5428
      %v5529 = vpop.f32.mrb[0].mxu0
      %v5530 = vadd.f32 %v5406, %v5529
      %v5531 = vpop.f32.mrb[0].mxu0
      %5532 = vmatprep.mubr.f32.mxu0 0.0
      %5533 = vmatmul.mubr.f32.gmra.mrb[0].mxu0 %v5431
      %v5534 = vpop.f32.mrb[0].mxu0
      %v5535 = vadd.f32 %v5406, %v5534
      %v5536 = vpop.f32.mrb[0].mxu0
      %5537 = vdwg.mxu0
      %s5538 = scalar_lea.vmem %s196, 64
      %v5539 = vld [vmem:[%s5538] sm:$0xff]
      %v5540 = vld [vmem:[%s5538 + $0x8] sm:$0xff]
      %v5541 = vld [vmem:[%s5538 + $0x10] sm:$0xff]
      %v5542 = vld [vmem:[%s5538 + $0x18] sm:$0xff]
      %v5543 = vld [vmem:[%s5538 + $0x20] sm:$0xff]
      %v5544 = vld [vmem:[%s5538 + $0x28] sm:$0xff]
      %v5545 = vld [vmem:[%s5538 + $0x30] sm:$0xff]
      %v5546 = vld [vmem:[%s5538 + $0x38] sm:$0xff]
      %v5548 = vsel %vm224, %v5539, 0
      %v5551 = vsel %vm224, %v5540, 0
      %v5554 = vsel %vm224, %v5541, 0
      %v5557 = vsel %vm224, %v5542, 0
      %v5560 = vsel %vm224, %v5543, 0
      %v5563 = vsel %vm224, %v5544, 0
      %v5566 = vsel %vm224, %v5545, 0
      %v5569 = vsel %vm224, %v5546, 0
      %5571 = vmatprep.subr.mxu0 0.0
      %5572 = vmatpush1.msra.mxu0 %v203
      %5573 = vmatprep.subr.mxu0 0.0
      %5574 = vmatpush1.msra.mxu0 %v204
      %5575 = vmatprep.subr.mxu0 0.0
      %5576 = vmatpush1.msra.mxu0 0.0
      %5577 = vmatprep.subr.mxu0 0.0
      %5578 = vmatpush1.msra.mxu0 0.0
      %5579 = vmatprep.subr.mxu0 0.0
      %5580 = vmatpush1.msra.mxu0 0.0
      %5581 = vmatprep.subr.mxu0 0.0
      %5582 = vmatpush1.msra.mxu0 0.0
      %5583 = vmatprep.subr.mxu0 0.0
      %5584 = vmatpush1.msra.mxu0 0.0
      %5585 = vmatprep.subr.mxu0 0.0
      %5586 = vmatpush1.msra.mxu0 0.0
      %5587 = vmatprep.subr.mxu0 0.0
      %5588 = vmatpush1.msra.mxu0 0.0
      %5589 = vmatprep.subr.mxu0 0.0
      %5590 = vmatpush1.msra.mxu0 0.0
      %5591 = vmatprep.subr.mxu0 0.0
      %5592 = vmatpush1.msra.mxu0 0.0
      %5593 = vmatprep.subr.mxu0 0.0
      %5594 = vmatpush1.msra.mxu0 0.0
      %5595 = vmatprep.subr.mxu0 0.0
      %5596 = vmatpush1.msra.mxu0 0.0
      %5597 = vmatprep.subr.mxu0 0.0
      %5598 = vmatpush1.msra.mxu0 0.0
      %5599 = vmatprep.subr.mxu0 0.0
      %5600 = vmatpush1.msra.mxu0 0.0
      %5601 = vmatprep.subr.mxu0 0.0
      %5602 = vmatpush1.msra.mxu0 0.0
      %5603 = vmatprep.subr.mxu0 0.0
      %5604 = vmatpush1.msra.mxu0 0.0
      %5605 = vmatprep.subr.mxu0 0.0
      %5606 = vmatpush1.msra.mxu0 0.0
      %5607 = vmatprep.subr.mxu0 0.0
      %5608 = vmatpush1.msra.mxu0 0.0
      %5609 = vmatprep.subr.mxu0 0.0
      %5610 = vmatpush1.msra.mxu0 0.0
      %5611 = vmatprep.subr.mxu0 0.0
      %5612 = vmatpush1.msra.mxu0 0.0
      %5613 = vmatprep.subr.mxu0 0.0
      %5614 = vmatpush1.msra.mxu0 0.0
      %5615 = vmatprep.subr.mxu0 0.0
      %5616 = vmatpush1.msra.mxu0 0.0
      %5617 = vmatprep.subr.mxu0 0.0
      %5618 = vmatpush1.msra.mxu0 0.0
      %5619 = vmatprep.subr.mxu0 0.0
      %5620 = vmatpush1.msra.mxu0 0.0
      %5621 = vmatprep.subr.mxu0 0.0
      %5622 = vmatpush1.msra.mxu0 0.0
      %5623 = vmatprep.subr.mxu0 0.0
      %5624 = vmatpush1.msra.mxu0 0.0
      %5625 = vmatprep.subr.mxu0 0.0
      %5626 = vmatpush1.msra.mxu0 0.0
      %5627 = vmatprep.subr.mxu0 0.0
      %5628 = vmatpush1.msra.mxu0 0.0
      %5629 = vmatprep.subr.mxu0 0.0
      %5630 = vmatpush1.msra.mxu0 0.0
      %5631 = vmatprep.subr.mxu0 0.0
      %5632 = vmatpush1.msra.mxu0 0.0
      %5633 = vmatprep.subr.mxu0 0.0
      %5634 = vmatpush1.msra.mxu0 0.0
      %5635 = vmatprep.mubr.f32.mxu0 0.0
      %5636 = vmatmul.mubr.f32.gmra.mrb[0].mxu0 %v5548
      %v5637 = vpop.f32.mrb[0].mxu0
      %v5638 = vadd.f32 0.0, %v5637
      %v5639 = vpop.f32.mrb[0].mxu0
      %5640 = vmatprep.mubr.f32.mxu0 0.0
      %5641 = vmatmul.mubr.f32.gmra.mrb[0].mxu0 %v5551
      %v5642 = vpop.f32.mrb[0].mxu0
      %v5643 = vadd.f32 0.0, %v5642
      %v5644 = vpop.f32.mrb[0].mxu0
      %5645 = vmatprep.mubr.f32.mxu0 0.0
      %5646 = vmatmul.mubr.f32.gmra.mrb[0].mxu0 %v5554
      %v5647 = vpop.f32.mrb[0].mxu0
      %v5648 = vadd.f32 0.0, %v5647
      %v5649 = vpop.f32.mrb[0].mxu0
      %5650 = vmatprep.mubr.f32.mxu0 0.0
      %5651 = vmatmul.mubr.f32.gmra.mrb[0].mxu0 %v5557
      %v5652 = vpop.f32.mrb[0].mxu0
      %v5653 = vadd.f32 0.0, %v5652
      %v5654 = vpop.f32.mrb[0].mxu0
      %5655 = vmatprep.mubr.f32.mxu0 0.0
      %5656 = vmatmul.mubr.f32.gmra.mrb[0].mxu0 %v5560
      %v5657 = vpop.f32.mrb[0].mxu0
      %v5658 = vadd.f32 0.0, %v5657
      %v5659 = vpop.f32.mrb[0].mxu0
      %5660 = vmatprep.mubr.f32.mxu0 0.0
      %5661 = vmatmul.mubr.f32.gmra.mrb[0].mxu0 %v5563
      %v5662 = vpop.f32.mrb[0].mxu0
      %v5663 = vadd.f32 0.0, %v5662
      %v5664 = vpop.f32.mrb[0].mxu0
      %5665 = vmatprep.mubr.f32.mxu0 0.0
      %5666 = vmatmul.mubr.f32.gmra.mrb[0].mxu0 %v5566
      %v5667 = vpop.f32.mrb[0].mxu0
      %v5668 = vadd.f32 0.0, %v5667
      %v5669 = vpop.f32.mrb[0].mxu0
      %5670 = vmatprep.mubr.f32.mxu0 0.0
      %5671 = vmatmul.mubr.f32.gmra.mrb[0].mxu0 %v5569
      %v5672 = vpop.f32.mrb[0].mxu0
      %v5673 = vadd.f32 0.0, %v5672
      %v5674 = vpop.f32.mrb[0].mxu0
      %5675 = vdwg.mxu0
      %v5676 = vmul.f32 %v5638, %v5638
      %v5677 = vmul.f32 %v5643, %v5643
      %v5678 = vmul.f32 %v5648, %v5648
      %v5679 = vmul.f32 %v5653, %v5653
      %v5680 = vmul.f32 %v5658, %v5658
      %v5681 = vmul.f32 %v5663, %v5663
      %v5682 = vmul.f32 %v5668, %v5668
      %v5683 = vmul.f32 %v5673, %v5673
      %5692 = vrot.lane.b32.xlu0 %v5676, 96
      %v5693 = vpop.permute.xlu0 %5692
      %5694 = vrot.lane.b32.xlu0 %v5677, 96
      %v5695 = vpop.permute.xlu0 %5694
      %5696 = vrot.lane.b32.xlu0 %v5678, 96
      %v5697 = vpop.permute.xlu0 %5696
      %5698 = vrot.lane.b32.xlu0 %v5679, 96
      %v5699 = vpop.permute.xlu0 %5698
      %5700 = vrot.lane.b32.xlu0 %v5680, 96
      %v5701 = vpop.permute.xlu0 %5700
      %5702 = vrot.lane.b32.xlu0 %v5681, 96
      %v5703 = vpop.permute.xlu0 %5702
      %5704 = vrot.lane.b32.xlu0 %v5682, 96
      %v5705 = vpop.permute.xlu0 %5704
      %5706 = vrot.lane.b32.xlu0 %v5683, 96
      %v5707 = vpop.permute.xlu0 %5706
      %v5716 = vsel %vm394, %v5693, 0.0
      %5717 = vadd.xlane.f32.xlu0 %v5716
      %v5718 = vpop.xlane.xlu0 %5717
      %v5719 = vsel %vm394, %v5695, 0.0
      %5720 = vadd.xlane.f32.xlu0 %v5719
      %v5721 = vpop.xlane.xlu0 %5720
      %v5722 = vsel %vm394, %v5697, 0.0
      %5723 = vadd.xlane.f32.xlu0 %v5722
      %v5724 = vpop.xlane.xlu0 %5723
      %v5725 = vsel %vm394, %v5699, 0.0
      %5726 = vadd.xlane.f32.xlu0 %v5725
      %v5727 = vpop.xlane.xlu0 %5726
      %v5728 = vsel %vm394, %v5701, 0.0
      %5729 = vadd.xlane.f32.xlu0 %v5728
      %v5730 = vpop.xlane.xlu0 %5729
      %v5731 = vsel %vm394, %v5703, 0.0
      %5732 = vadd.xlane.f32.xlu0 %v5731
      %v5733 = vpop.xlane.xlu0 %5732
      %v5734 = vsel %vm394, %v5705, 0.0
      %5735 = vadd.xlane.f32.xlu0 %v5734
      %v5736 = vpop.xlane.xlu0 %5735
      %v5737 = vsel %vm394, %v5707, 0.0
      %5738 = vadd.xlane.f32.xlu0 %v5737
      %v5739 = vpop.xlane.xlu0 %5738
      %5748 = vrot.lane.b32.xlu0 %v5638, 96
      %v5749 = vpop.permute.xlu0 %5748
      %5750 = vrot.lane.b32.xlu0 %v5643, 96
      %v5751 = vpop.permute.xlu0 %5750
      %5752 = vrot.lane.b32.xlu0 %v5648, 96
      %v5753 = vpop.permute.xlu0 %5752
      %5754 = vrot.lane.b32.xlu0 %v5653, 96
      %v5755 = vpop.permute.xlu0 %5754
      %5756 = vrot.lane.b32.xlu0 %v5658, 96
      %v5757 = vpop.permute.xlu0 %5756
      %5758 = vrot.lane.b32.xlu0 %v5663, 96
      %v5759 = vpop.permute.xlu0 %5758
      %5760 = vrot.lane.b32.xlu0 %v5668, 96
      %v5761 = vpop.permute.xlu0 %5760
      %5762 = vrot.lane.b32.xlu0 %v5673, 96
      %v5763 = vpop.permute.xlu0 %5762
      %v5772 = vsel %vm394, %v5749, %v5718
      %v5773 = vsel %vm394, %v5751, %v5721
      %v5774 = vsel %vm394, %v5753, %v5724
      %v5775 = vsel %vm394, %v5755, %v5727
      %v5776 = vsel %vm394, %v5757, %v5730
      %v5777 = vsel %vm394, %v5759, %v5733
      %v5778 = vsel %vm394, %v5761, %v5736
      %v5779 = vsel %vm394, %v5763, %v5739
      %v5780 = vsel %vm459, %v5772, 1.0
      %v5781 = vsel %vm459, %v5773, 1.0
      %v5782 = vsel %vm459, %v5774, 1.0
      %v5783 = vsel %vm459, %v5775, 1.0
      %v5784 = vsel %vm459, %v5776, 1.0
      %v5785 = vsel %vm459, %v5777, 1.0
      %v5786 = vsel %vm459, %v5778, 1.0
      %v5787 = vsel %vm459, %v5779, 1.0
      %v5788 = vmul.f32 %v5638, -2.0
      %v5789 = vmul.f32 %v5643, -2.0
      %v5790 = vmul.f32 %v5648, -2.0
      %v5791 = vmul.f32 %v5653, -2.0
      %v5792 = vmul.f32 %v5658, -2.0
      %v5793 = vmul.f32 %v5663, -2.0
      %v5794 = vmul.f32 %v5668, -2.0
      %v5795 = vmul.f32 %v5673, -2.0
      %5804 = vrot.lane.b32.xlu0 %v5788, 96
      %v5805 = vpop.permute.xlu0 %5804
      %5806 = vrot.lane.b32.xlu0 %v5789, 96
      %v5807 = vpop.permute.xlu0 %5806
      %5808 = vrot.lane.b32.xlu0 %v5790, 96
      %v5809 = vpop.permute.xlu0 %5808
      %5810 = vrot.lane.b32.xlu0 %v5791, 96
      %v5811 = vpop.permute.xlu0 %5810
      %5812 = vrot.lane.b32.xlu0 %v5792, 96
      %v5813 = vpop.permute.xlu0 %5812
      %5814 = vrot.lane.b32.xlu0 %v5793, 96
      %v5815 = vpop.permute.xlu0 %5814
      %5816 = vrot.lane.b32.xlu0 %v5794, 96
      %v5817 = vpop.permute.xlu0 %5816
      %5818 = vrot.lane.b32.xlu0 %v5795, 96
      %v5819 = vpop.permute.xlu0 %5818
      %v5828 = vsel %vm394, %v5805, 1.0
      %v5829 = vsel %vm394, %v5807, 1.0
      %v5830 = vsel %vm394, %v5809, 1.0
      %v5831 = vsel %vm394, %v5811, 1.0
      %v5832 = vsel %vm394, %v5813, 1.0
      %v5833 = vsel %vm394, %v5815, 1.0
      %v5834 = vsel %vm394, %v5817, 1.0
      %v5835 = vsel %vm394, %v5819, 1.0
      %v5836 = vsel %vm459, %v5828, %v5718
      %v5837 = vsel %vm459, %v5829, %v5721
      %v5838 = vsel %vm459, %v5830, %v5724
      %v5839 = vsel %vm459, %v5831, %v5727
      %v5840 = vsel %vm459, %v5832, %v5730
      %v5841 = vsel %vm459, %v5833, %v5733
      %v5842 = vsel %vm459, %v5834, %v5736
      %v5843 = vsel %vm459, %v5835, %v5739
      %v5845 = vsel %vm524, %v5780, 0
      %v5848 = vsel %vm524, %v5781, 0
      %v5851 = vsel %vm524, %v5782, 0
      %v5854 = vsel %vm524, %v5783, 0
      %v5857 = vsel %vm524, %v5784, 0
      %v5860 = vsel %vm524, %v5785, 0
      %v5863 = vsel %vm524, %v5786, 0
      %v5866 = vsel %vm524, %v5787, 0
      %v5869 = vsel %vm524, %v5836, 0
      %v5872 = vsel %vm524, %v5837, 0
      %v5875 = vsel %vm524, %v5838, 0
      %v5878 = vsel %vm524, %v5839, 0
      %v5881 = vsel %vm524, %v5840, 0
      %v5884 = vsel %vm524, %v5841, 0
      %v5887 = vsel %vm524, %v5842, 0
      %v5890 = vsel %vm524, %v5843, 0
      %5892 = vmatprep.subr.mxu0 0.0
      %5893 = vmatpush1.xpose.msra.mxu0 %v5869
      %5894 = vmatprep.subr.mxu0 0.0
      %5895 = vmatpush1.xpose.msra.mxu0 %v5872
      %5896 = vmatprep.subr.mxu0 0.0
      %5897 = vmatpush1.xpose.msra.mxu0 %v5875
      %5898 = vmatprep.subr.mxu0 0.0
      %5899 = vmatpush1.xpose.msra.mxu0 %v5878
      %5900 = vmatprep.subr.mxu0 0.0
      %5901 = vmatpush1.xpose.msra.mxu0 %v5881
      %5902 = vmatprep.subr.mxu0 0.0
      %5903 = vmatpush1.xpose.msra.mxu0 %v5884
      %5904 = vmatprep.subr.mxu0 0.0
      %5905 = vmatpush1.xpose.msra.mxu0 %v5887
      %5906 = vmatprep.subr.mxu0 0.0
      %5907 = vmatpush1.xpose.msra.mxu0 %v5890
      %5908 = vmatprep.subr.mxu0 0.0
      %5909 = vmatpush1.xpose.msra.mxu0 0.0
      %5910 = vmatprep.subr.mxu0 0.0
      %5911 = vmatpush1.xpose.msra.mxu0 0.0
      %5912 = vmatprep.subr.mxu0 0.0
      %5913 = vmatpush1.xpose.msra.mxu0 0.0
      %5914 = vmatprep.subr.mxu0 0.0
      %5915 = vmatpush1.xpose.msra.mxu0 0.0
      %5916 = vmatprep.subr.mxu0 0.0
      %5917 = vmatpush1.xpose.msra.mxu0 0.0
      %5918 = vmatprep.subr.mxu0 0.0
      %5919 = vmatpush1.xpose.msra.mxu0 0.0
      %5920 = vmatprep.subr.mxu0 0.0
      %5921 = vmatpush1.xpose.msra.mxu0 0.0
      %5922 = vmatprep.subr.mxu0 0.0
      %5923 = vmatpush1.xpose.msra.mxu0 0.0
      %5924 = vmatprep.subr.mxu0 0.0
      %5925 = vmatpush1.xpose.msra.mxu0 0.0
      %5926 = vmatprep.subr.mxu0 0.0
      %5927 = vmatpush1.xpose.msra.mxu0 0.0
      %5928 = vmatprep.subr.mxu0 0.0
      %5929 = vmatpush1.xpose.msra.mxu0 0.0
      %5930 = vmatprep.subr.mxu0 0.0
      %5931 = vmatpush1.xpose.msra.mxu0 0.0
      %5932 = vmatprep.subr.mxu0 0.0
      %5933 = vmatpush1.xpose.msra.mxu0 0.0
      %5934 = vmatprep.subr.mxu0 0.0
      %5935 = vmatpush1.xpose.msra.mxu0 0.0
      %5936 = vmatprep.subr.mxu0 0.0
      %5937 = vmatpush1.xpose.msra.mxu0 0.0
      %5938 = vmatprep.subr.mxu0 0.0
      %5939 = vmatpush1.xpose.msra.mxu0 0.0
      %5940 = vmatprep.subr.mxu0 0.0
      %5941 = vmatpush1.xpose.msra.mxu0 0.0
      %5942 = vmatprep.subr.mxu0 0.0
      %5943 = vmatpush1.xpose.msra.mxu0 0.0
      %5944 = vmatprep.subr.mxu0 0.0
      %5945 = vmatpush1.xpose.msra.mxu0 0.0
      %5946 = vmatprep.subr.mxu0 0.0
      %5947 = vmatpush1.xpose.msra.mxu0 0.0
      %5948 = vmatprep.subr.mxu0 0.0
      %5949 = vmatpush1.xpose.msra.mxu0 0.0
      %5950 = vmatprep.subr.mxu0 0.0
      %5951 = vmatpush1.xpose.msra.mxu0 0.0
      %5952 = vmatprep.subr.mxu0 0.0
      %5953 = vmatpush1.xpose.msra.mxu0 0.0
      %5954 = vmatprep.subr.mxu0 0.0
      %5955 = vmatpush1.xpose.msra.mxu0 0.0
      %5956 = vmatprep.mubr.f32.mxu0 0.0
      %5957 = vmatmul.mubr.f32.gmra.mrb[0].mxu0 %v5845
      %v5958 = vpop.f32.mrb[0].mxu0
      %v5959 = vadd.f32 0.0, %v5958
      %v5960 = vpop.f32.mrb[0].mxu0
      %5961 = vmatprep.mubr.f32.mxu0 0.0
      %5962 = vmatmul.mubr.f32.gmra.mrb[0].mxu0 %v5848
      %v5963 = vpop.f32.mrb[0].mxu0
      %v5964 = vadd.f32 0.0, %v5963
      %v5965 = vpop.f32.mrb[0].mxu0
      %5966 = vmatprep.mubr.f32.mxu0 0.0
      %5967 = vmatmul.mubr.f32.gmra.mrb[0].mxu0 %v5851
      %v5968 = vpop.f32.mrb[0].mxu0
      %v5969 = vadd.f32 0.0, %v5968
      %v5970 = vpop.f32.mrb[0].mxu0
      %5971 = vmatprep.mubr.f32.mxu0 0.0
      %5972 = vmatmul.mubr.f32.gmra.mrb[0].mxu0 %v5854
      %v5973 = vpop.f32.mrb[0].mxu0
      %v5974 = vadd.f32 0.0, %v5973
      %v5975 = vpop.f32.mrb[0].mxu0
      %5976 = vmatprep.mubr.f32.mxu0 0.0
      %5977 = vmatmul.mubr.f32.gmra.mrb[0].mxu0 %v5857
      %v5978 = vpop.f32.mrb[0].mxu0
      %v5979 = vadd.f32 0.0, %v5978
      %v5980 = vpop.f32.mrb[0].mxu0
      %5981 = vmatprep.mubr.f32.mxu0 0.0
      %5982 = vmatmul.mubr.f32.gmra.mrb[0].mxu0 %v5860
      %v5983 = vpop.f32.mrb[0].mxu0
      %v5984 = vadd.f32 0.0, %v5983
      %v5985 = vpop.f32.mrb[0].mxu0
      %5986 = vmatprep.mubr.f32.mxu0 0.0
      %5987 = vmatmul.mubr.f32.gmra.mrb[0].mxu0 %v5863
      %v5988 = vpop.f32.mrb[0].mxu0
      %v5989 = vadd.f32 0.0, %v5988
      %v5990 = vpop.f32.mrb[0].mxu0
      %5991 = vmatprep.mubr.f32.mxu0 0.0
      %5992 = vmatmul.mubr.f32.gmra.mrb[0].mxu0 %v5866
      %v5993 = vpop.f32.mrb[0].mxu0
      %v5994 = vadd.f32 0.0, %v5993
      %v5995 = vpop.f32.mrb[0].mxu0
      %5996 = vdwg.mxu0
      %v5997 = vmax.f32 %v5959, 0.0
      %v5998 = vmax.f32 %v5964, 0.0
      %v5999 = vmax.f32 %v5969, 0.0
      %v6000 = vmax.f32 %v5974, 0.0
      %v6001 = vmax.f32 %v5979, 0.0
      %v6002 = vmax.f32 %v5984, 0.0
      %v6003 = vmax.f32 %v5989, 0.0
      %v6004 = vmax.f32 %v5994, 0.0
      %v6005 = vmul.f32 %v5997, -10.0
      %v6006 = vmul.f32 %v5998, -10.0
      %v6007 = vmul.f32 %v5999, -10.0
      %v6008 = vmul.f32 %v6000, -10.0
      %v6009 = vmul.f32 %v6001, -10.0
      %v6010 = vmul.f32 %v6002, -10.0
      %v6011 = vmul.f32 %v6003, -10.0
      %v6012 = vmul.f32 %v6004, -10.0
      %v6013 = vmul.f32 %v6005, 1.442695
      %v6014 = vpow.pop %v6013
      %v6015 = vmul.f32 %v6006, 1.442695
      %v6016 = vpow.pop %v6015
      %v6017 = vmul.f32 %v6007, 1.442695
      %v6018 = vpow.pop %v6017
      %v6019 = vmul.f32 %v6008, 1.442695
      %v6020 = vpow.pop %v6019
      %v6021 = vmul.f32 %v6009, 1.442695
      %v6022 = vpow.pop %v6021
      %v6023 = vmul.f32 %v6010, 1.442695
      %v6024 = vpow.pop %v6023
      %v6025 = vmul.f32 %v6011, 1.442695
      %v6026 = vpow.pop %v6025
      %v6027 = vmul.f32 %v6012, 1.442695
      %v6028 = vpow.pop %v6027
      %v6030 = vsel %vm710, %v6014, 0
      %v6033 = vsel %vm710, %v6016, 0
      %v6036 = vsel %vm710, %v6018, 0
      %v6039 = vsel %vm710, %v6020, 0
      %v6042 = vsel %vm710, %v6022, 0
      %v6045 = vsel %vm710, %v6024, 0
      %v6048 = vsel %vm710, %v6026, 0
      %v6051 = vsel %vm710, %v6028, 0
      %6053 = vmatprep.subr.mxu0 0.0
      %6054 = vmatpush1.msra.mxu0 %v5638
      %6055 = vmatprep.subr.mxu0 0.0
      %6056 = vmatpush1.msra.mxu0 %v5643
      %6057 = vmatprep.subr.mxu0 0.0
      %6058 = vmatpush1.msra.mxu0 %v5648
      %6059 = vmatprep.subr.mxu0 0.0
      %6060 = vmatpush1.msra.mxu0 %v5653
      %6061 = vmatprep.subr.mxu0 0.0
      %6062 = vmatpush1.msra.mxu0 %v5658
      %6063 = vmatprep.subr.mxu0 0.0
      %6064 = vmatpush1.msra.mxu0 %v5663
      %6065 = vmatprep.subr.mxu0 0.0
      %6066 = vmatpush1.msra.mxu0 %v5668
      %6067 = vmatprep.subr.mxu0 0.0
      %6068 = vmatpush1.msra.mxu0 %v5673
      %6069 = vmatprep.subr.mxu0 0.0
      %6070 = vmatpush1.msra.mxu0 0.0
      %6071 = vmatprep.subr.mxu0 0.0
      %6072 = vmatpush1.msra.mxu0 0.0
      %6073 = vmatprep.subr.mxu0 0.0
      %6074 = vmatpush1.msra.mxu0 0.0
      %6075 = vmatprep.subr.mxu0 0.0
      %6076 = vmatpush1.msra.mxu0 0.0
      %6077 = vmatprep.subr.mxu0 0.0
      %6078 = vmatpush1.msra.mxu0 0.0
      %6079 = vmatprep.subr.mxu0 0.0
      %6080 = vmatpush1.msra.mxu0 0.0
      %6081 = vmatprep.subr.mxu0 0.0
      %6082 = vmatpush1.msra.mxu0 0.0
      %6083 = vmatprep.subr.mxu0 0.0
      %6084 = vmatpush1.msra.mxu0 0.0
      %6085 = vmatprep.subr.mxu0 0.0
      %6086 = vmatpush1.msra.mxu0 0.0
      %6087 = vmatprep.subr.mxu0 0.0
      %6088 = vmatpush1.msra.mxu0 0.0
      %6089 = vmatprep.subr.mxu0 0.0
      %6090 = vmatpush1.msra.mxu0 0.0
      %6091 = vmatprep.subr.mxu0 0.0
      %6092 = vmatpush1.msra.mxu0 0.0
      %6093 = vmatprep.subr.mxu0 0.0
      %6094 = vmatpush1.msra.mxu0 0.0
      %6095 = vmatprep.subr.mxu0 0.0
      %6096 = vmatpush1.msra.mxu0 0.0
      %6097 = vmatprep.subr.mxu0 0.0
      %6098 = vmatpush1.msra.mxu0 0.0
      %6099 = vmatprep.subr.mxu0 0.0
      %6100 = vmatpush1.msra.mxu0 0.0
      %6101 = vmatprep.subr.mxu0 0.0
      %6102 = vmatpush1.msra.mxu0 0.0
      %6103 = vmatprep.subr.mxu0 0.0
      %6104 = vmatpush1.msra.mxu0 0.0
      %6105 = vmatprep.subr.mxu0 0.0
      %6106 = vmatpush1.msra.mxu0 0.0
      %6107 = vmatprep.subr.mxu0 0.0
      %6108 = vmatpush1.msra.mxu0 0.0
      %6109 = vmatprep.subr.mxu0 0.0
      %6110 = vmatpush1.msra.mxu0 0.0
      %6111 = vmatprep.subr.mxu0 0.0
      %6112 = vmatpush1.msra.mxu0 0.0
      %6113 = vmatprep.subr.mxu0 0.0
      %6114 = vmatpush1.msra.mxu0 0.0
      %6115 = vmatprep.subr.mxu0 0.0
      %6116 = vmatpush1.msra.mxu0 0.0
      %6117 = vmatprep.mubr.f32.mxu0 0.0
      %6118 = vmatmul.mubr.f32.gmra.mrb[0].mxu0 %v6030
      %v6119 = vpop.f32.mrb[0].mxu0
      %v6120 = vadd.f32 0.0, %v6119
      %v6121 = vpop.f32.mrb[0].mxu0
      %6122 = vmatprep.mubr.f32.mxu0 0.0
      %6123 = vmatmul.mubr.f32.gmra.mrb[0].mxu0 %v6033
      %v6124 = vpop.f32.mrb[0].mxu0
      %v6125 = vadd.f32 0.0, %v6124
      %v6126 = vpop.f32.mrb[0].mxu0
      %6127 = vmatprep.mubr.f32.mxu0 0.0
      %6128 = vmatmul.mubr.f32.gmra.mrb[0].mxu0 %v6036
      %v6129 = vpop.f32.mrb[0].mxu0
      %v6130 = vadd.f32 0.0, %v6129
      %v6131 = vpop.f32.mrb[0].mxu0
      %6132 = vmatprep.mubr.f32.mxu0 0.0
      %6133 = vmatmul.mubr.f32.gmra.mrb[0].mxu0 %v6039
      %v6134 = vpop.f32.mrb[0].mxu0
      %v6135 = vadd.f32 0.0, %v6134
      %v6136 = vpop.f32.mrb[0].mxu0
      %6137 = vmatprep.mubr.f32.mxu0 0.0
      %6138 = vmatmul.mubr.f32.gmra.mrb[0].mxu0 %v6042
      %v6139 = vpop.f32.mrb[0].mxu0
      %v6140 = vadd.f32 0.0, %v6139
      %v6141 = vpop.f32.mrb[0].mxu0
      %6142 = vmatprep.mubr.f32.mxu0 0.0
      %6143 = vmatmul.mubr.f32.gmra.mrb[0].mxu0 %v6045
      %v6144 = vpop.f32.mrb[0].mxu0
      %v6145 = vadd.f32 0.0, %v6144
      %v6146 = vpop.f32.mrb[0].mxu0
      %6147 = vmatprep.mubr.f32.mxu0 0.0
      %6148 = vmatmul.mubr.f32.gmra.mrb[0].mxu0 %v6048
      %v6149 = vpop.f32.mrb[0].mxu0
      %v6150 = vadd.f32 0.0, %v6149
      %v6151 = vpop.f32.mrb[0].mxu0
      %6152 = vmatprep.mubr.f32.mxu0 0.0
      %6153 = vmatmul.mubr.f32.gmra.mrb[0].mxu0 %v6051
      %v6154 = vpop.f32.mrb[0].mxu0
      %v6155 = vadd.f32 0.0, %v6154
      %v6156 = vpop.f32.mrb[0].mxu0
      %6157 = vdwg.mxu0
      %v6158 = vlaneseq
      %v6159 = vshrl.u32 %v6158, 7
      %v6160 = vsub.s32 0, %v6159
      %v6161 = vrot.slane %v6014, %v6160
      %6163 = vbcast.lane.b32.xlu0 %v6161, 256
      %v6164 = vpop.permute.xlu0 %6163
      %s6166 = sor.u32 256, 8
      %6167 = vbcast.lane.b32.xlu0 %v6161, %s6166
      %v6168 = vpop.permute.xlu0 %6167
      %s6170 = sor.u32 256, 16
      %6171 = vbcast.lane.b32.xlu0 %v6161, %s6170
      %v6172 = vpop.permute.xlu0 %6171
      %s6174 = sor.u32 256, 24
      %6175 = vbcast.lane.b32.xlu0 %v6161, %s6174
      %v6176 = vpop.permute.xlu0 %6175
      %s6178 = sor.u32 256, 32
      %6179 = vbcast.lane.b32.xlu0 %v6161, %s6178
      %v6180 = vpop.permute.xlu0 %6179
      %s6182 = sor.u32 256, 40
      %6183 = vbcast.lane.b32.xlu0 %v6161, %s6182
      %v6184 = vpop.permute.xlu0 %6183
      %s6186 = sor.u32 256, 48
      %6187 = vbcast.lane.b32.xlu0 %v6161, %s6186
      %v6188 = vpop.permute.xlu0 %6187
      %s6190 = sor.u32 256, 56
      %6191 = vbcast.lane.b32.xlu0 %v6161, %s6190
      %v6192 = vpop.permute.xlu0 %6191
      %v6193 = vlaneseq
      %v6194 = vshrl.u32 %v6193, 7
      %v6195 = vsub.s32 1, %v6194
      %v6196 = vrot.slane %v6014, %v6195
      %6198 = vbcast.lane.b32.xlu0 %v6196, 256
      %v6199 = vpop.permute.xlu0 %6198
      %s6201 = sor.u32 256, 8
      %6202 = vbcast.lane.b32.xlu0 %v6196, %s6201
      %v6203 = vpop.permute.xlu0 %6202
      %s6205 = sor.u32 256, 16
      %6206 = vbcast.lane.b32.xlu0 %v6196, %s6205
      %v6207 = vpop.permute.xlu0 %6206
      %s6209 = sor.u32 256, 24
      %6210 = vbcast.lane.b32.xlu0 %v6196, %s6209
      %v6211 = vpop.permute.xlu0 %6210
      %s6213 = sor.u32 256, 32
      %6214 = vbcast.lane.b32.xlu0 %v6196, %s6213
      %v6215 = vpop.permute.xlu0 %6214
      %s6217 = sor.u32 256, 40
      %6218 = vbcast.lane.b32.xlu0 %v6196, %s6217
      %v6219 = vpop.permute.xlu0 %6218
      %s6221 = sor.u32 256, 48
      %6222 = vbcast.lane.b32.xlu0 %v6196, %s6221
      %v6223 = vpop.permute.xlu0 %6222
      %s6225 = sor.u32 256, 56
      %6226 = vbcast.lane.b32.xlu0 %v6196, %s6225
      %v6227 = vpop.permute.xlu0 %6226
      %v6228 = vlaneseq
      %v6229 = vshrl.u32 %v6228, 7
      %v6230 = vsub.s32 2, %v6229
      %v6231 = vrot.slane %v6014, %v6230
      %6233 = vbcast.lane.b32.xlu0 %v6231, 256
      %v6234 = vpop.permute.xlu0 %6233
      %s6236 = sor.u32 256, 8
      %6237 = vbcast.lane.b32.xlu0 %v6231, %s6236
      %v6238 = vpop.permute.xlu0 %6237
      %s6240 = sor.u32 256, 16
      %6241 = vbcast.lane.b32.xlu0 %v6231, %s6240
      %v6242 = vpop.permute.xlu0 %6241
      %s6244 = sor.u32 256, 24
      %6245 = vbcast.lane.b32.xlu0 %v6231, %s6244
      %v6246 = vpop.permute.xlu0 %6245
      %s6248 = sor.u32 256, 32
      %6249 = vbcast.lane.b32.xlu0 %v6231, %s6248
      %v6250 = vpop.permute.xlu0 %6249
      %s6252 = sor.u32 256, 40
      %6253 = vbcast.lane.b32.xlu0 %v6231, %s6252
      %v6254 = vpop.permute.xlu0 %6253
      %s6256 = sor.u32 256, 48
      %6257 = vbcast.lane.b32.xlu0 %v6231, %s6256
      %v6258 = vpop.permute.xlu0 %6257
      %s6260 = sor.u32 256, 56
      %6261 = vbcast.lane.b32.xlu0 %v6231, %s6260
      %v6262 = vpop.permute.xlu0 %6261
      %v6263 = vlaneseq
      %v6264 = vshrl.u32 %v6263, 7
      %v6265 = vsub.s32 3, %v6264
      %v6266 = vrot.slane %v6014, %v6265
      %6268 = vbcast.lane.b32.xlu0 %v6266, 256
      %v6269 = vpop.permute.xlu0 %6268
      %s6271 = sor.u32 256, 8
      %6272 = vbcast.lane.b32.xlu0 %v6266, %s6271
      %v6273 = vpop.permute.xlu0 %6272
      %s6275 = sor.u32 256, 16
      %6276 = vbcast.lane.b32.xlu0 %v6266, %s6275
      %v6277 = vpop.permute.xlu0 %6276
      %s6279 = sor.u32 256, 24
      %6280 = vbcast.lane.b32.xlu0 %v6266, %s6279
      %v6281 = vpop.permute.xlu0 %6280
      %s6283 = sor.u32 256, 32
      %6284 = vbcast.lane.b32.xlu0 %v6266, %s6283
      %v6285 = vpop.permute.xlu0 %6284
      %s6287 = sor.u32 256, 40
      %6288 = vbcast.lane.b32.xlu0 %v6266, %s6287
      %v6289 = vpop.permute.xlu0 %6288
      %s6291 = sor.u32 256, 48
      %6292 = vbcast.lane.b32.xlu0 %v6266, %s6291
      %v6293 = vpop.permute.xlu0 %6292
      %s6295 = sor.u32 256, 56
      %6296 = vbcast.lane.b32.xlu0 %v6266, %s6295
      %v6297 = vpop.permute.xlu0 %6296
      %v6298 = vlaneseq
      %v6299 = vshrl.u32 %v6298, 7
      %v6300 = vsub.s32 4, %v6299
      %v6301 = vrot.slane %v6014, %v6300
      %6303 = vbcast.lane.b32.xlu0 %v6301, 256
      %v6304 = vpop.permute.xlu0 %6303
      %s6306 = sor.u32 256, 8
      %6307 = vbcast.lane.b32.xlu0 %v6301, %s6306
      %v6308 = vpop.permute.xlu0 %6307
      %s6310 = sor.u32 256, 16
      %6311 = vbcast.lane.b32.xlu0 %v6301, %s6310
      %v6312 = vpop.permute.xlu0 %6311
      %s6314 = sor.u32 256, 24
      %6315 = vbcast.lane.b32.xlu0 %v6301, %s6314
      %v6316 = vpop.permute.xlu0 %6315
      %s6318 = sor.u32 256, 32
      %6319 = vbcast.lane.b32.xlu0 %v6301, %s6318
      %v6320 = vpop.permute.xlu0 %6319
      %s6322 = sor.u32 256, 40
      %6323 = vbcast.lane.b32.xlu0 %v6301, %s6322
      %v6324 = vpop.permute.xlu0 %6323
      %s6326 = sor.u32 256, 48
      %6327 = vbcast.lane.b32.xlu0 %v6301, %s6326
      %v6328 = vpop.permute.xlu0 %6327
      %s6330 = sor.u32 256, 56
      %6331 = vbcast.lane.b32.xlu0 %v6301, %s6330
      %v6332 = vpop.permute.xlu0 %6331
      %v6333 = vlaneseq
      %v6334 = vshrl.u32 %v6333, 7
      %v6335 = vsub.s32 5, %v6334
      %v6336 = vrot.slane %v6014, %v6335
      %6338 = vbcast.lane.b32.xlu0 %v6336, 256
      %v6339 = vpop.permute.xlu0 %6338
      %s6341 = sor.u32 256, 8
      %6342 = vbcast.lane.b32.xlu0 %v6336, %s6341
      %v6343 = vpop.permute.xlu0 %6342
      %s6345 = sor.u32 256, 16
      %6346 = vbcast.lane.b32.xlu0 %v6336, %s6345
      %v6347 = vpop.permute.xlu0 %6346
      %s6349 = sor.u32 256, 24
      %6350 = vbcast.lane.b32.xlu0 %v6336, %s6349
      %v6351 = vpop.permute.xlu0 %6350
      %s6353 = sor.u32 256, 32
      %6354 = vbcast.lane.b32.xlu0 %v6336, %s6353
      %v6355 = vpop.permute.xlu0 %6354
      %s6357 = sor.u32 256, 40
      %6358 = vbcast.lane.b32.xlu0 %v6336, %s6357
      %v6359 = vpop.permute.xlu0 %6358
      %s6361 = sor.u32 256, 48
      %6362 = vbcast.lane.b32.xlu0 %v6336, %s6361
      %v6363 = vpop.permute.xlu0 %6362
      %s6365 = sor.u32 256, 56
      %6366 = vbcast.lane.b32.xlu0 %v6336, %s6365
      %v6367 = vpop.permute.xlu0 %6366
      %v6368 = vlaneseq
      %v6369 = vshrl.u32 %v6368, 7
      %v6370 = vsub.s32 6, %v6369
      %v6371 = vrot.slane %v6014, %v6370
      %6373 = vbcast.lane.b32.xlu0 %v6371, 256
      %v6374 = vpop.permute.xlu0 %6373
      %s6376 = sor.u32 256, 8
      %6377 = vbcast.lane.b32.xlu0 %v6371, %s6376
      %v6378 = vpop.permute.xlu0 %6377
      %s6380 = sor.u32 256, 16
      %6381 = vbcast.lane.b32.xlu0 %v6371, %s6380
      %v6382 = vpop.permute.xlu0 %6381
      %s6384 = sor.u32 256, 24
      %6385 = vbcast.lane.b32.xlu0 %v6371, %s6384
      %v6386 = vpop.permute.xlu0 %6385
      %s6388 = sor.u32 256, 32
      %6389 = vbcast.lane.b32.xlu0 %v6371, %s6388
      %v6390 = vpop.permute.xlu0 %6389
      %s6392 = sor.u32 256, 40
      %6393 = vbcast.lane.b32.xlu0 %v6371, %s6392
      %v6394 = vpop.permute.xlu0 %6393
      %s6396 = sor.u32 256, 48
      %6397 = vbcast.lane.b32.xlu0 %v6371, %s6396
      %v6398 = vpop.permute.xlu0 %6397
      %s6400 = sor.u32 256, 56
      %6401 = vbcast.lane.b32.xlu0 %v6371, %s6400
      %v6402 = vpop.permute.xlu0 %6401
      %v6403 = vlaneseq
      %v6404 = vshrl.u32 %v6403, 7
      %v6405 = vsub.s32 7, %v6404
      %v6406 = vrot.slane %v6014, %v6405
      %6408 = vbcast.lane.b32.xlu0 %v6406, 256
      %v6409 = vpop.permute.xlu0 %6408
      %s6411 = sor.u32 256, 8
      %6412 = vbcast.lane.b32.xlu0 %v6406, %s6411
      %v6413 = vpop.permute.xlu0 %6412
      %s6415 = sor.u32 256, 16
      %6416 = vbcast.lane.b32.xlu0 %v6406, %s6415
      %v6417 = vpop.permute.xlu0 %6416
      %s6419 = sor.u32 256, 24
      %6420 = vbcast.lane.b32.xlu0 %v6406, %s6419
      %v6421 = vpop.permute.xlu0 %6420
      %s6423 = sor.u32 256, 32
      %6424 = vbcast.lane.b32.xlu0 %v6406, %s6423
      %v6425 = vpop.permute.xlu0 %6424
      %s6427 = sor.u32 256, 40
      %6428 = vbcast.lane.b32.xlu0 %v6406, %s6427
      %v6429 = vpop.permute.xlu0 %6428
      %s6431 = sor.u32 256, 48
      %6432 = vbcast.lane.b32.xlu0 %v6406, %s6431
      %v6433 = vpop.permute.xlu0 %6432
      %s6435 = sor.u32 256, 56
      %6436 = vbcast.lane.b32.xlu0 %v6406, %s6435
      %v6437 = vpop.permute.xlu0 %6436
      %v6438 = vlaneseq
      %v6439 = vshrl.u32 %v6438, 7
      %v6440 = vsub.s32 0, %v6439
      %v6441 = vrot.slane %v6016, %v6440
      %6443 = vbcast.lane.b32.xlu0 %v6441, 256
      %v6444 = vpop.permute.xlu0 %6443
      %s6446 = sor.u32 256, 8
      %6447 = vbcast.lane.b32.xlu0 %v6441, %s6446
      %v6448 = vpop.permute.xlu0 %6447
      %s6450 = sor.u32 256, 16
      %6451 = vbcast.lane.b32.xlu0 %v6441, %s6450
      %v6452 = vpop.permute.xlu0 %6451
      %s6454 = sor.u32 256, 24
      %6455 = vbcast.lane.b32.xlu0 %v6441, %s6454
      %v6456 = vpop.permute.xlu0 %6455
      %s6458 = sor.u32 256, 32
      %6459 = vbcast.lane.b32.xlu0 %v6441, %s6458
      %v6460 = vpop.permute.xlu0 %6459
      %s6462 = sor.u32 256, 40
      %6463 = vbcast.lane.b32.xlu0 %v6441, %s6462
      %v6464 = vpop.permute.xlu0 %6463
      %s6466 = sor.u32 256, 48
      %6467 = vbcast.lane.b32.xlu0 %v6441, %s6466
      %v6468 = vpop.permute.xlu0 %6467
      %s6470 = sor.u32 256, 56
      %6471 = vbcast.lane.b32.xlu0 %v6441, %s6470
      %v6472 = vpop.permute.xlu0 %6471
      %v6473 = vlaneseq
      %v6474 = vshrl.u32 %v6473, 7
      %v6475 = vsub.s32 1, %v6474
      %v6476 = vrot.slane %v6016, %v6475
      %6478 = vbcast.lane.b32.xlu0 %v6476, 256
      %v6479 = vpop.permute.xlu0 %6478
      %s6481 = sor.u32 256, 8
      %6482 = vbcast.lane.b32.xlu0 %v6476, %s6481
      %v6483 = vpop.permute.xlu0 %6482
      %s6485 = sor.u32 256, 16
      %6486 = vbcast.lane.b32.xlu0 %v6476, %s6485
      %v6487 = vpop.permute.xlu0 %6486
      %s6489 = sor.u32 256, 24
      %6490 = vbcast.lane.b32.xlu0 %v6476, %s6489
      %v6491 = vpop.permute.xlu0 %6490
      %s6493 = sor.u32 256, 32
      %6494 = vbcast.lane.b32.xlu0 %v6476, %s6493
      %v6495 = vpop.permute.xlu0 %6494
      %s6497 = sor.u32 256, 40
      %6498 = vbcast.lane.b32.xlu0 %v6476, %s6497
      %v6499 = vpop.permute.xlu0 %6498
      %s6501 = sor.u32 256, 48
      %6502 = vbcast.lane.b32.xlu0 %v6476, %s6501
      %v6503 = vpop.permute.xlu0 %6502
      %s6505 = sor.u32 256, 56
      %6506 = vbcast.lane.b32.xlu0 %v6476, %s6505
      %v6507 = vpop.permute.xlu0 %6506
      %v6508 = vlaneseq
      %v6509 = vshrl.u32 %v6508, 7
      %v6510 = vsub.s32 2, %v6509
      %v6511 = vrot.slane %v6016, %v6510
      %6513 = vbcast.lane.b32.xlu0 %v6511, 256
      %v6514 = vpop.permute.xlu0 %6513
      %s6516 = sor.u32 256, 8
      %6517 = vbcast.lane.b32.xlu0 %v6511, %s6516
      %v6518 = vpop.permute.xlu0 %6517
      %s6520 = sor.u32 256, 16
      %6521 = vbcast.lane.b32.xlu0 %v6511, %s6520
      %v6522 = vpop.permute.xlu0 %6521
      %s6524 = sor.u32 256, 24
      %6525 = vbcast.lane.b32.xlu0 %v6511, %s6524
      %v6526 = vpop.permute.xlu0 %6525
      %s6528 = sor.u32 256, 32
      %6529 = vbcast.lane.b32.xlu0 %v6511, %s6528
      %v6530 = vpop.permute.xlu0 %6529
      %s6532 = sor.u32 256, 40
      %6533 = vbcast.lane.b32.xlu0 %v6511, %s6532
      %v6534 = vpop.permute.xlu0 %6533
      %s6536 = sor.u32 256, 48
      %6537 = vbcast.lane.b32.xlu0 %v6511, %s6536
      %v6538 = vpop.permute.xlu0 %6537
      %s6540 = sor.u32 256, 56
      %6541 = vbcast.lane.b32.xlu0 %v6511, %s6540
      %v6542 = vpop.permute.xlu0 %6541
      %v6543 = vlaneseq
      %v6544 = vshrl.u32 %v6543, 7
      %v6545 = vsub.s32 3, %v6544
      %v6546 = vrot.slane %v6016, %v6545
      %6548 = vbcast.lane.b32.xlu0 %v6546, 256
      %v6549 = vpop.permute.xlu0 %6548
      %s6551 = sor.u32 256, 8
      %6552 = vbcast.lane.b32.xlu0 %v6546, %s6551
      %v6553 = vpop.permute.xlu0 %6552
      %s6555 = sor.u32 256, 16
      %6556 = vbcast.lane.b32.xlu0 %v6546, %s6555
      %v6557 = vpop.permute.xlu0 %6556
      %s6559 = sor.u32 256, 24
      %6560 = vbcast.lane.b32.xlu0 %v6546, %s6559
      %v6561 = vpop.permute.xlu0 %6560
      %s6563 = sor.u32 256, 32
      %6564 = vbcast.lane.b32.xlu0 %v6546, %s6563
      %v6565 = vpop.permute.xlu0 %6564
      %s6567 = sor.u32 256, 40
      %6568 = vbcast.lane.b32.xlu0 %v6546, %s6567
      %v6569 = vpop.permute.xlu0 %6568
      %s6571 = sor.u32 256, 48
      %6572 = vbcast.lane.b32.xlu0 %v6546, %s6571
      %v6573 = vpop.permute.xlu0 %6572
      %s6575 = sor.u32 256, 56
      %6576 = vbcast.lane.b32.xlu0 %v6546, %s6575
      %v6577 = vpop.permute.xlu0 %6576
      %v6578 = vlaneseq
      %v6579 = vshrl.u32 %v6578, 7
      %v6580 = vsub.s32 4, %v6579
      %v6581 = vrot.slane %v6016, %v6580
      %6583 = vbcast.lane.b32.xlu0 %v6581, 256
      %v6584 = vpop.permute.xlu0 %6583
      %s6586 = sor.u32 256, 8
      %6587 = vbcast.lane.b32.xlu0 %v6581, %s6586
      %v6588 = vpop.permute.xlu0 %6587
      %s6590 = sor.u32 256, 16
      %6591 = vbcast.lane.b32.xlu0 %v6581, %s6590
      %v6592 = vpop.permute.xlu0 %6591
      %s6594 = sor.u32 256, 24
      %6595 = vbcast.lane.b32.xlu0 %v6581, %s6594
      %v6596 = vpop.permute.xlu0 %6595
      %s6598 = sor.u32 256, 32
      %6599 = vbcast.lane.b32.xlu0 %v6581, %s6598
      %v6600 = vpop.permute.xlu0 %6599
      %s6602 = sor.u32 256, 40
      %6603 = vbcast.lane.b32.xlu0 %v6581, %s6602
      %v6604 = vpop.permute.xlu0 %6603
      %s6606 = sor.u32 256, 48
      %6607 = vbcast.lane.b32.xlu0 %v6581, %s6606
      %v6608 = vpop.permute.xlu0 %6607
      %s6610 = sor.u32 256, 56
      %6611 = vbcast.lane.b32.xlu0 %v6581, %s6610
      %v6612 = vpop.permute.xlu0 %6611
      %v6613 = vlaneseq
      %v6614 = vshrl.u32 %v6613, 7
      %v6615 = vsub.s32 5, %v6614
      %v6616 = vrot.slane %v6016, %v6615
      %6618 = vbcast.lane.b32.xlu0 %v6616, 256
      %v6619 = vpop.permute.xlu0 %6618
      %s6621 = sor.u32 256, 8
      %6622 = vbcast.lane.b32.xlu0 %v6616, %s6621
      %v6623 = vpop.permute.xlu0 %6622
      %s6625 = sor.u32 256, 16
      %6626 = vbcast.lane.b32.xlu0 %v6616, %s6625
      %v6627 = vpop.permute.xlu0 %6626
      %s6629 = sor.u32 256, 24
      %6630 = vbcast.lane.b32.xlu0 %v6616, %s6629
      %v6631 = vpop.permute.xlu0 %6630
      %s6633 = sor.u32 256, 32
      %6634 = vbcast.lane.b32.xlu0 %v6616, %s6633
      %v6635 = vpop.permute.xlu0 %6634
      %s6637 = sor.u32 256, 40
      %6638 = vbcast.lane.b32.xlu0 %v6616, %s6637
      %v6639 = vpop.permute.xlu0 %6638
      %s6641 = sor.u32 256, 48
      %6642 = vbcast.lane.b32.xlu0 %v6616, %s6641
      %v6643 = vpop.permute.xlu0 %6642
      %s6645 = sor.u32 256, 56
      %6646 = vbcast.lane.b32.xlu0 %v6616, %s6645
      %v6647 = vpop.permute.xlu0 %6646
      %v6648 = vlaneseq
      %v6649 = vshrl.u32 %v6648, 7
      %v6650 = vsub.s32 6, %v6649
      %v6651 = vrot.slane %v6016, %v6650
      %6653 = vbcast.lane.b32.xlu0 %v6651, 256
      %v6654 = vpop.permute.xlu0 %6653
      %s6656 = sor.u32 256, 8
      %6657 = vbcast.lane.b32.xlu0 %v6651, %s6656
      %v6658 = vpop.permute.xlu0 %6657
      %s6660 = sor.u32 256, 16
      %6661 = vbcast.lane.b32.xlu0 %v6651, %s6660
      %v6662 = vpop.permute.xlu0 %6661
      %s6664 = sor.u32 256, 24
      %6665 = vbcast.lane.b32.xlu0 %v6651, %s6664
      %v6666 = vpop.permute.xlu0 %6665
      %s6668 = sor.u32 256, 32
      %6669 = vbcast.lane.b32.xlu0 %v6651, %s6668
      %v6670 = vpop.permute.xlu0 %6669
      %s6672 = sor.u32 256, 40
      %6673 = vbcast.lane.b32.xlu0 %v6651, %s6672
      %v6674 = vpop.permute.xlu0 %6673
      %s6676 = sor.u32 256, 48
      %6677 = vbcast.lane.b32.xlu0 %v6651, %s6676
      %v6678 = vpop.permute.xlu0 %6677
      %s6680 = sor.u32 256, 56
      %6681 = vbcast.lane.b32.xlu0 %v6651, %s6680
      %v6682 = vpop.permute.xlu0 %6681
      %v6683 = vlaneseq
      %v6684 = vshrl.u32 %v6683, 7
      %v6685 = vsub.s32 7, %v6684
      %v6686 = vrot.slane %v6016, %v6685
      %6688 = vbcast.lane.b32.xlu0 %v6686, 256
      %v6689 = vpop.permute.xlu0 %6688
      %s6691 = sor.u32 256, 8
      %6692 = vbcast.lane.b32.xlu0 %v6686, %s6691
      %v6693 = vpop.permute.xlu0 %6692
      %s6695 = sor.u32 256, 16
      %6696 = vbcast.lane.b32.xlu0 %v6686, %s6695
      %v6697 = vpop.permute.xlu0 %6696
      %s6699 = sor.u32 256, 24
      %6700 = vbcast.lane.b32.xlu0 %v6686, %s6699
      %v6701 = vpop.permute.xlu0 %6700
      %s6703 = sor.u32 256, 32
      %6704 = vbcast.lane.b32.xlu0 %v6686, %s6703
      %v6705 = vpop.permute.xlu0 %6704
      %s6707 = sor.u32 256, 40
      %6708 = vbcast.lane.b32.xlu0 %v6686, %s6707
      %v6709 = vpop.permute.xlu0 %6708
      %s6711 = sor.u32 256, 48
      %6712 = vbcast.lane.b32.xlu0 %v6686, %s6711
      %v6713 = vpop.permute.xlu0 %6712
      %s6715 = sor.u32 256, 56
      %6716 = vbcast.lane.b32.xlu0 %v6686, %s6715
      %v6717 = vpop.permute.xlu0 %6716
      %v6718 = vlaneseq
      %v6719 = vshrl.u32 %v6718, 7
      %v6720 = vsub.s32 0, %v6719
      %v6721 = vrot.slane %v6018, %v6720
      %6723 = vbcast.lane.b32.xlu0 %v6721, 256
      %v6724 = vpop.permute.xlu0 %6723
      %s6726 = sor.u32 256, 8
      %6727 = vbcast.lane.b32.xlu0 %v6721, %s6726
      %v6728 = vpop.permute.xlu0 %6727
      %s6730 = sor.u32 256, 16
      %6731 = vbcast.lane.b32.xlu0 %v6721, %s6730
      %v6732 = vpop.permute.xlu0 %6731
      %s6734 = sor.u32 256, 24
      %6735 = vbcast.lane.b32.xlu0 %v6721, %s6734
      %v6736 = vpop.permute.xlu0 %6735
      %s6738 = sor.u32 256, 32
      %6739 = vbcast.lane.b32.xlu0 %v6721, %s6738
      %v6740 = vpop.permute.xlu0 %6739
      %s6742 = sor.u32 256, 40
      %6743 = vbcast.lane.b32.xlu0 %v6721, %s6742
      %v6744 = vpop.permute.xlu0 %6743
      %s6746 = sor.u32 256, 48
      %6747 = vbcast.lane.b32.xlu0 %v6721, %s6746
      %v6748 = vpop.permute.xlu0 %6747
      %s6750 = sor.u32 256, 56
      %6751 = vbcast.lane.b32.xlu0 %v6721, %s6750
      %v6752 = vpop.permute.xlu0 %6751
      %v6753 = vlaneseq
      %v6754 = vshrl.u32 %v6753, 7
      %v6755 = vsub.s32 1, %v6754
      %v6756 = vrot.slane %v6018, %v6755
      %6758 = vbcast.lane.b32.xlu0 %v6756, 256
      %v6759 = vpop.permute.xlu0 %6758
      %s6761 = sor.u32 256, 8
      %6762 = vbcast.lane.b32.xlu0 %v6756, %s6761
      %v6763 = vpop.permute.xlu0 %6762
      %s6765 = sor.u32 256, 16
      %6766 = vbcast.lane.b32.xlu0 %v6756, %s6765
      %v6767 = vpop.permute.xlu0 %6766
      %s6769 = sor.u32 256, 24
      %6770 = vbcast.lane.b32.xlu0 %v6756, %s6769
      %v6771 = vpop.permute.xlu0 %6770
      %s6773 = sor.u32 256, 32
      %6774 = vbcast.lane.b32.xlu0 %v6756, %s6773
      %v6775 = vpop.permute.xlu0 %6774
      %s6777 = sor.u32 256, 40
      %6778 = vbcast.lane.b32.xlu0 %v6756, %s6777
      %v6779 = vpop.permute.xlu0 %6778
      %s6781 = sor.u32 256, 48
      %6782 = vbcast.lane.b32.xlu0 %v6756, %s6781
      %v6783 = vpop.permute.xlu0 %6782
      %s6785 = sor.u32 256, 56
      %6786 = vbcast.lane.b32.xlu0 %v6756, %s6785
      %v6787 = vpop.permute.xlu0 %6786
      %v6788 = vlaneseq
      %v6789 = vshrl.u32 %v6788, 7
      %v6790 = vsub.s32 2, %v6789
      %v6791 = vrot.slane %v6018, %v6790
      %6793 = vbcast.lane.b32.xlu0 %v6791, 256
      %v6794 = vpop.permute.xlu0 %6793
      %s6796 = sor.u32 256, 8
      %6797 = vbcast.lane.b32.xlu0 %v6791, %s6796
      %v6798 = vpop.permute.xlu0 %6797
      %s6800 = sor.u32 256, 16
      %6801 = vbcast.lane.b32.xlu0 %v6791, %s6800
      %v6802 = vpop.permute.xlu0 %6801
      %s6804 = sor.u32 256, 24
      %6805 = vbcast.lane.b32.xlu0 %v6791, %s6804
      %v6806 = vpop.permute.xlu0 %6805
      %s6808 = sor.u32 256, 32
      %6809 = vbcast.lane.b32.xlu0 %v6791, %s6808
      %v6810 = vpop.permute.xlu0 %6809
      %s6812 = sor.u32 256, 40
      %6813 = vbcast.lane.b32.xlu0 %v6791, %s6812
      %v6814 = vpop.permute.xlu0 %6813
      %s6816 = sor.u32 256, 48
      %6817 = vbcast.lane.b32.xlu0 %v6791, %s6816
      %v6818 = vpop.permute.xlu0 %6817
      %s6820 = sor.u32 256, 56
      %6821 = vbcast.lane.b32.xlu0 %v6791, %s6820
      %v6822 = vpop.permute.xlu0 %6821
      %v6823 = vlaneseq
      %v6824 = vshrl.u32 %v6823, 7
      %v6825 = vsub.s32 3, %v6824
      %v6826 = vrot.slane %v6018, %v6825
      %6828 = vbcast.lane.b32.xlu0 %v6826, 256
      %v6829 = vpop.permute.xlu0 %6828
      %s6831 = sor.u32 256, 8
      %6832 = vbcast.lane.b32.xlu0 %v6826, %s6831
      %v6833 = vpop.permute.xlu0 %6832
      %s6835 = sor.u32 256, 16
      %6836 = vbcast.lane.b32.xlu0 %v6826, %s6835
      %v6837 = vpop.permute.xlu0 %6836
      %s6839 = sor.u32 256, 24
      %6840 = vbcast.lane.b32.xlu0 %v6826, %s6839
      %v6841 = vpop.permute.xlu0 %6840
      %s6843 = sor.u32 256, 32
      %6844 = vbcast.lane.b32.xlu0 %v6826, %s6843
      %v6845 = vpop.permute.xlu0 %6844
      %s6847 = sor.u32 256, 40
      %6848 = vbcast.lane.b32.xlu0 %v6826, %s6847
      %v6849 = vpop.permute.xlu0 %6848
      %s6851 = sor.u32 256, 48
      %6852 = vbcast.lane.b32.xlu0 %v6826, %s6851
      %v6853 = vpop.permute.xlu0 %6852
      %s6855 = sor.u32 256, 56
      %6856 = vbcast.lane.b32.xlu0 %v6826, %s6855
      %v6857 = vpop.permute.xlu0 %6856
      %v6858 = vlaneseq
      %v6859 = vshrl.u32 %v6858, 7
      %v6860 = vsub.s32 4, %v6859
      %v6861 = vrot.slane %v6018, %v6860
      %6863 = vbcast.lane.b32.xlu0 %v6861, 256
      %v6864 = vpop.permute.xlu0 %6863
      %s6866 = sor.u32 256, 8
      %6867 = vbcast.lane.b32.xlu0 %v6861, %s6866
      %v6868 = vpop.permute.xlu0 %6867
      %s6870 = sor.u32 256, 16
      %6871 = vbcast.lane.b32.xlu0 %v6861, %s6870
      %v6872 = vpop.permute.xlu0 %6871
      %s6874 = sor.u32 256, 24
      %6875 = vbcast.lane.b32.xlu0 %v6861, %s6874
      %v6876 = vpop.permute.xlu0 %6875
      %s6878 = sor.u32 256, 32
      %6879 = vbcast.lane.b32.xlu0 %v6861, %s6878
      %v6880 = vpop.permute.xlu0 %6879
      %s6882 = sor.u32 256, 40
      %6883 = vbcast.lane.b32.xlu0 %v6861, %s6882
      %v6884 = vpop.permute.xlu0 %6883
      %s6886 = sor.u32 256, 48
      %6887 = vbcast.lane.b32.xlu0 %v6861, %s6886
      %v6888 = vpop.permute.xlu0 %6887
      %s6890 = sor.u32 256, 56
      %6891 = vbcast.lane.b32.xlu0 %v6861, %s6890
      %v6892 = vpop.permute.xlu0 %6891
      %v6893 = vlaneseq
      %v6894 = vshrl.u32 %v6893, 7
      %v6895 = vsub.s32 5, %v6894
      %v6896 = vrot.slane %v6018, %v6895
      %6898 = vbcast.lane.b32.xlu0 %v6896, 256
      %v6899 = vpop.permute.xlu0 %6898
      %s6901 = sor.u32 256, 8
      %6902 = vbcast.lane.b32.xlu0 %v6896, %s6901
      %v6903 = vpop.permute.xlu0 %6902
      %s6905 = sor.u32 256, 16
      %6906 = vbcast.lane.b32.xlu0 %v6896, %s6905
      %v6907 = vpop.permute.xlu0 %6906
      %s6909 = sor.u32 256, 24
      %6910 = vbcast.lane.b32.xlu0 %v6896, %s6909
      %v6911 = vpop.permute.xlu0 %6910
      %s6913 = sor.u32 256, 32
      %6914 = vbcast.lane.b32.xlu0 %v6896, %s6913
      %v6915 = vpop.permute.xlu0 %6914
      %s6917 = sor.u32 256, 40
      %6918 = vbcast.lane.b32.xlu0 %v6896, %s6917
      %v6919 = vpop.permute.xlu0 %6918
      %s6921 = sor.u32 256, 48
      %6922 = vbcast.lane.b32.xlu0 %v6896, %s6921
      %v6923 = vpop.permute.xlu0 %6922
      %s6925 = sor.u32 256, 56
      %6926 = vbcast.lane.b32.xlu0 %v6896, %s6925
      %v6927 = vpop.permute.xlu0 %6926
      %v6928 = vlaneseq
      %v6929 = vshrl.u32 %v6928, 7
      %v6930 = vsub.s32 6, %v6929
      %v6931 = vrot.slane %v6018, %v6930
      %6933 = vbcast.lane.b32.xlu0 %v6931, 256
      %v6934 = vpop.permute.xlu0 %6933
      %s6936 = sor.u32 256, 8
      %6937 = vbcast.lane.b32.xlu0 %v6931, %s6936
      %v6938 = vpop.permute.xlu0 %6937
      %s6940 = sor.u32 256, 16
      %6941 = vbcast.lane.b32.xlu0 %v6931, %s6940
      %v6942 = vpop.permute.xlu0 %6941
      %s6944 = sor.u32 256, 24
      %6945 = vbcast.lane.b32.xlu0 %v6931, %s6944
      %v6946 = vpop.permute.xlu0 %6945
      %s6948 = sor.u32 256, 32
      %6949 = vbcast.lane.b32.xlu0 %v6931, %s6948
      %v6950 = vpop.permute.xlu0 %6949
      %s6952 = sor.u32 256, 40
      %6953 = vbcast.lane.b32.xlu0 %v6931, %s6952
      %v6954 = vpop.permute.xlu0 %6953
      %s6956 = sor.u32 256, 48
      %6957 = vbcast.lane.b32.xlu0 %v6931, %s6956
      %v6958 = vpop.permute.xlu0 %6957
      %s6960 = sor.u32 256, 56
      %6961 = vbcast.lane.b32.xlu0 %v6931, %s6960
      %v6962 = vpop.permute.xlu0 %6961
      %v6963 = vlaneseq
      %v6964 = vshrl.u32 %v6963, 7
      %v6965 = vsub.s32 7, %v6964
      %v6966 = vrot.slane %v6018, %v6965
      %6968 = vbcast.lane.b32.xlu0 %v6966, 256
      %v6969 = vpop.permute.xlu0 %6968
      %s6971 = sor.u32 256, 8
      %6972 = vbcast.lane.b32.xlu0 %v6966, %s6971
      %v6973 = vpop.permute.xlu0 %6972
      %s6975 = sor.u32 256, 16
      %6976 = vbcast.lane.b32.xlu0 %v6966, %s6975
      %v6977 = vpop.permute.xlu0 %6976
      %s6979 = sor.u32 256, 24
      %6980 = vbcast.lane.b32.xlu0 %v6966, %s6979
      %v6981 = vpop.permute.xlu0 %6980
      %s6983 = sor.u32 256, 32
      %6984 = vbcast.lane.b32.xlu0 %v6966, %s6983
      %v6985 = vpop.permute.xlu0 %6984
      %s6987 = sor.u32 256, 40
      %6988 = vbcast.lane.b32.xlu0 %v6966, %s6987
      %v6989 = vpop.permute.xlu0 %6988
      %s6991 = sor.u32 256, 48
      %6992 = vbcast.lane.b32.xlu0 %v6966, %s6991
      %v6993 = vpop.permute.xlu0 %6992
      %s6995 = sor.u32 256, 56
      %6996 = vbcast.lane.b32.xlu0 %v6966, %s6995
      %v6997 = vpop.permute.xlu0 %6996
      %v6998 = vlaneseq
      %v6999 = vshrl.u32 %v6998, 7
      %v7000 = vsub.s32 0, %v6999
      %v7001 = vrot.slane %v6020, %v7000
      %7003 = vbcast.lane.b32.xlu0 %v7001, 256
      %v7004 = vpop.permute.xlu0 %7003
      %s7006 = sor.u32 256, 8
      %7007 = vbcast.lane.b32.xlu0 %v7001, %s7006
      %v7008 = vpop.permute.xlu0 %7007
      %s7010 = sor.u32 256, 16
      %7011 = vbcast.lane.b32.xlu0 %v7001, %s7010
      %v7012 = vpop.permute.xlu0 %7011
      %s7014 = sor.u32 256, 24
      %7015 = vbcast.lane.b32.xlu0 %v7001, %s7014
      %v7016 = vpop.permute.xlu0 %7015
      %s7018 = sor.u32 256, 32
      %7019 = vbcast.lane.b32.xlu0 %v7001, %s7018
      %v7020 = vpop.permute.xlu0 %7019
      %s7022 = sor.u32 256, 40
      %7023 = vbcast.lane.b32.xlu0 %v7001, %s7022
      %v7024 = vpop.permute.xlu0 %7023
      %s7026 = sor.u32 256, 48
      %7027 = vbcast.lane.b32.xlu0 %v7001, %s7026
      %v7028 = vpop.permute.xlu0 %7027
      %s7030 = sor.u32 256, 56
      %7031 = vbcast.lane.b32.xlu0 %v7001, %s7030
      %v7032 = vpop.permute.xlu0 %7031
      %v7033 = vlaneseq
      %v7034 = vshrl.u32 %v7033, 7
      %v7035 = vsub.s32 1, %v7034
      %v7036 = vrot.slane %v6020, %v7035
      %7038 = vbcast.lane.b32.xlu0 %v7036, 256
      %v7039 = vpop.permute.xlu0 %7038
      %s7041 = sor.u32 256, 8
      %7042 = vbcast.lane.b32.xlu0 %v7036, %s7041
      %v7043 = vpop.permute.xlu0 %7042
      %s7045 = sor.u32 256, 16
      %7046 = vbcast.lane.b32.xlu0 %v7036, %s7045
      %v7047 = vpop.permute.xlu0 %7046
      %s7049 = sor.u32 256, 24
      %7050 = vbcast.lane.b32.xlu0 %v7036, %s7049
      %v7051 = vpop.permute.xlu0 %7050
      %s7053 = sor.u32 256, 32
      %7054 = vbcast.lane.b32.xlu0 %v7036, %s7053
      %v7055 = vpop.permute.xlu0 %7054
      %s7057 = sor.u32 256, 40
      %7058 = vbcast.lane.b32.xlu0 %v7036, %s7057
      %v7059 = vpop.permute.xlu0 %7058
      %s7061 = sor.u32 256, 48
      %7062 = vbcast.lane.b32.xlu0 %v7036, %s7061
      %v7063 = vpop.permute.xlu0 %7062
      %s7065 = sor.u32 256, 56
      %7066 = vbcast.lane.b32.xlu0 %v7036, %s7065
      %v7067 = vpop.permute.xlu0 %7066
      %v7068 = vlaneseq
      %v7069 = vshrl.u32 %v7068, 7
      %v7070 = vsub.s32 2, %v7069
      %v7071 = vrot.slane %v6020, %v7070
      %7073 = vbcast.lane.b32.xlu0 %v7071, 256
      %v7074 = vpop.permute.xlu0 %7073
      %s7076 = sor.u32 256, 8
      %7077 = vbcast.lane.b32.xlu0 %v7071, %s7076
      %v7078 = vpop.permute.xlu0 %7077
      %s7080 = sor.u32 256, 16
      %7081 = vbcast.lane.b32.xlu0 %v7071, %s7080
      %v7082 = vpop.permute.xlu0 %7081
      %s7084 = sor.u32 256, 24
      %7085 = vbcast.lane.b32.xlu0 %v7071, %s7084
      %v7086 = vpop.permute.xlu0 %7085
      %s7088 = sor.u32 256, 32
      %7089 = vbcast.lane.b32.xlu0 %v7071, %s7088
      %v7090 = vpop.permute.xlu0 %7089
      %s7092 = sor.u32 256, 40
      %7093 = vbcast.lane.b32.xlu0 %v7071, %s7092
      %v7094 = vpop.permute.xlu0 %7093
      %s7096 = sor.u32 256, 48
      %7097 = vbcast.lane.b32.xlu0 %v7071, %s7096
      %v7098 = vpop.permute.xlu0 %7097
      %s7100 = sor.u32 256, 56
      %7101 = vbcast.lane.b32.xlu0 %v7071, %s7100
      %v7102 = vpop.permute.xlu0 %7101
      %v7103 = vlaneseq
      %v7104 = vshrl.u32 %v7103, 7
      %v7105 = vsub.s32 3, %v7104
      %v7106 = vrot.slane %v6020, %v7105
      %7108 = vbcast.lane.b32.xlu0 %v7106, 256
      %v7109 = vpop.permute.xlu0 %7108
      %s7111 = sor.u32 256, 8
      %7112 = vbcast.lane.b32.xlu0 %v7106, %s7111
      %v7113 = vpop.permute.xlu0 %7112
      %s7115 = sor.u32 256, 16
      %7116 = vbcast.lane.b32.xlu0 %v7106, %s7115
      %v7117 = vpop.permute.xlu0 %7116
      %s7119 = sor.u32 256, 24
      %7120 = vbcast.lane.b32.xlu0 %v7106, %s7119
      %v7121 = vpop.permute.xlu0 %7120
      %s7123 = sor.u32 256, 32
      %7124 = vbcast.lane.b32.xlu0 %v7106, %s7123
      %v7125 = vpop.permute.xlu0 %7124
      %s7127 = sor.u32 256, 40
      %7128 = vbcast.lane.b32.xlu0 %v7106, %s7127
      %v7129 = vpop.permute.xlu0 %7128
      %s7131 = sor.u32 256, 48
      %7132 = vbcast.lane.b32.xlu0 %v7106, %s7131
      %v7133 = vpop.permute.xlu0 %7132
      %s7135 = sor.u32 256, 56
      %7136 = vbcast.lane.b32.xlu0 %v7106, %s7135
      %v7137 = vpop.permute.xlu0 %7136
      %v7138 = vlaneseq
      %v7139 = vshrl.u32 %v7138, 7
      %v7140 = vsub.s32 4, %v7139
      %v7141 = vrot.slane %v6020, %v7140
      %7143 = vbcast.lane.b32.xlu0 %v7141, 256
      %v7144 = vpop.permute.xlu0 %7143
      %s7146 = sor.u32 256, 8
      %7147 = vbcast.lane.b32.xlu0 %v7141, %s7146
      %v7148 = vpop.permute.xlu0 %7147
      %s7150 = sor.u32 256, 16
      %7151 = vbcast.lane.b32.xlu0 %v7141, %s7150
      %v7152 = vpop.permute.xlu0 %7151
      %s7154 = sor.u32 256, 24
      %7155 = vbcast.lane.b32.xlu0 %v7141, %s7154
      %v7156 = vpop.permute.xlu0 %7155
      %s7158 = sor.u32 256, 32
      %7159 = vbcast.lane.b32.xlu0 %v7141, %s7158
      %v7160 = vpop.permute.xlu0 %7159
      %s7162 = sor.u32 256, 40
      %7163 = vbcast.lane.b32.xlu0 %v7141, %s7162
      %v7164 = vpop.permute.xlu0 %7163
      %s7166 = sor.u32 256, 48
      %7167 = vbcast.lane.b32.xlu0 %v7141, %s7166
      %v7168 = vpop.permute.xlu0 %7167
      %s7170 = sor.u32 256, 56
      %7171 = vbcast.lane.b32.xlu0 %v7141, %s7170
      %v7172 = vpop.permute.xlu0 %7171
      %v7173 = vlaneseq
      %v7174 = vshrl.u32 %v7173, 7
      %v7175 = vsub.s32 5, %v7174
      %v7176 = vrot.slane %v6020, %v7175
      %7178 = vbcast.lane.b32.xlu0 %v7176, 256
      %v7179 = vpop.permute.xlu0 %7178
      %s7181 = sor.u32 256, 8
      %7182 = vbcast.lane.b32.xlu0 %v7176, %s7181
      %v7183 = vpop.permute.xlu0 %7182
      %s7185 = sor.u32 256, 16
      %7186 = vbcast.lane.b32.xlu0 %v7176, %s7185
      %v7187 = vpop.permute.xlu0 %7186
      %s7189 = sor.u32 256, 24
      %7190 = vbcast.lane.b32.xlu0 %v7176, %s7189
      %v7191 = vpop.permute.xlu0 %7190
      %s7193 = sor.u32 256, 32
      %7194 = vbcast.lane.b32.xlu0 %v7176, %s7193
      %v7195 = vpop.permute.xlu0 %7194
      %s7197 = sor.u32 256, 40
      %7198 = vbcast.lane.b32.xlu0 %v7176, %s7197
      %v7199 = vpop.permute.xlu0 %7198
      %s7201 = sor.u32 256, 48
      %7202 = vbcast.lane.b32.xlu0 %v7176, %s7201
      %v7203 = vpop.permute.xlu0 %7202
      %s7205 = sor.u32 256, 56
      %7206 = vbcast.lane.b32.xlu0 %v7176, %s7205
      %v7207 = vpop.permute.xlu0 %7206
      %v7208 = vlaneseq
      %v7209 = vshrl.u32 %v7208, 7
      %v7210 = vsub.s32 6, %v7209
      %v7211 = vrot.slane %v6020, %v7210
      %7213 = vbcast.lane.b32.xlu0 %v7211, 256
      %v7214 = vpop.permute.xlu0 %7213
      %s7216 = sor.u32 256, 8
      %7217 = vbcast.lane.b32.xlu0 %v7211, %s7216
      %v7218 = vpop.permute.xlu0 %7217
      %s7220 = sor.u32 256, 16
      %7221 = vbcast.lane.b32.xlu0 %v7211, %s7220
      %v7222 = vpop.permute.xlu0 %7221
      %s7224 = sor.u32 256, 24
      %7225 = vbcast.lane.b32.xlu0 %v7211, %s7224
      %v7226 = vpop.permute.xlu0 %7225
      %s7228 = sor.u32 256, 32
      %7229 = vbcast.lane.b32.xlu0 %v7211, %s7228
      %v7230 = vpop.permute.xlu0 %7229
      %s7232 = sor.u32 256, 40
      %7233 = vbcast.lane.b32.xlu0 %v7211, %s7232
      %v7234 = vpop.permute.xlu0 %7233
      %s7236 = sor.u32 256, 48
      %7237 = vbcast.lane.b32.xlu0 %v7211, %s7236
      %v7238 = vpop.permute.xlu0 %7237
      %s7240 = sor.u32 256, 56
      %7241 = vbcast.lane.b32.xlu0 %v7211, %s7240
      %v7242 = vpop.permute.xlu0 %7241
      %v7243 = vlaneseq
      %v7244 = vshrl.u32 %v7243, 7
      %v7245 = vsub.s32 7, %v7244
      %v7246 = vrot.slane %v6020, %v7245
      %7248 = vbcast.lane.b32.xlu0 %v7246, 256
      %v7249 = vpop.permute.xlu0 %7248
      %s7251 = sor.u32 256, 8
      %7252 = vbcast.lane.b32.xlu0 %v7246, %s7251
      %v7253 = vpop.permute.xlu0 %7252
      %s7255 = sor.u32 256, 16
      %7256 = vbcast.lane.b32.xlu0 %v7246, %s7255
      %v7257 = vpop.permute.xlu0 %7256
      %s7259 = sor.u32 256, 24
      %7260 = vbcast.lane.b32.xlu0 %v7246, %s7259
      %v7261 = vpop.permute.xlu0 %7260
      %s7263 = sor.u32 256, 32
      %7264 = vbcast.lane.b32.xlu0 %v7246, %s7263
      %v7265 = vpop.permute.xlu0 %7264
      %s7267 = sor.u32 256, 40
      %7268 = vbcast.lane.b32.xlu0 %v7246, %s7267
      %v7269 = vpop.permute.xlu0 %7268
      %s7271 = sor.u32 256, 48
      %7272 = vbcast.lane.b32.xlu0 %v7246, %s7271
      %v7273 = vpop.permute.xlu0 %7272
      %s7275 = sor.u32 256, 56
      %7276 = vbcast.lane.b32.xlu0 %v7246, %s7275
      %v7277 = vpop.permute.xlu0 %7276
      %v7278 = vlaneseq
      %v7279 = vshrl.u32 %v7278, 7
      %v7280 = vsub.s32 0, %v7279
      %v7281 = vrot.slane %v6022, %v7280
      %7283 = vbcast.lane.b32.xlu0 %v7281, 256
      %v7284 = vpop.permute.xlu0 %7283
      %s7286 = sor.u32 256, 8
      %7287 = vbcast.lane.b32.xlu0 %v7281, %s7286
      %v7288 = vpop.permute.xlu0 %7287
      %s7290 = sor.u32 256, 16
      %7291 = vbcast.lane.b32.xlu0 %v7281, %s7290
      %v7292 = vpop.permute.xlu0 %7291
      %s7294 = sor.u32 256, 24
      %7295 = vbcast.lane.b32.xlu0 %v7281, %s7294
      %v7296 = vpop.permute.xlu0 %7295
      %s7298 = sor.u32 256, 32
      %7299 = vbcast.lane.b32.xlu0 %v7281, %s7298
      %v7300 = vpop.permute.xlu0 %7299
      %s7302 = sor.u32 256, 40
      %7303 = vbcast.lane.b32.xlu0 %v7281, %s7302
      %v7304 = vpop.permute.xlu0 %7303
      %s7306 = sor.u32 256, 48
      %7307 = vbcast.lane.b32.xlu0 %v7281, %s7306
      %v7308 = vpop.permute.xlu0 %7307
      %s7310 = sor.u32 256, 56
      %7311 = vbcast.lane.b32.xlu0 %v7281, %s7310
      %v7312 = vpop.permute.xlu0 %7311
      %v7313 = vlaneseq
      %v7314 = vshrl.u32 %v7313, 7
      %v7315 = vsub.s32 1, %v7314
      %v7316 = vrot.slane %v6022, %v7315
      %7318 = vbcast.lane.b32.xlu0 %v7316, 256
      %v7319 = vpop.permute.xlu0 %7318
      %s7321 = sor.u32 256, 8
      %7322 = vbcast.lane.b32.xlu0 %v7316, %s7321
      %v7323 = vpop.permute.xlu0 %7322
      %s7325 = sor.u32 256, 16
      %7326 = vbcast.lane.b32.xlu0 %v7316, %s7325
      %v7327 = vpop.permute.xlu0 %7326
      %s7329 = sor.u32 256, 24
      %7330 = vbcast.lane.b32.xlu0 %v7316, %s7329
      %v7331 = vpop.permute.xlu0 %7330
      %s7333 = sor.u32 256, 32
      %7334 = vbcast.lane.b32.xlu0 %v7316, %s7333
      %v7335 = vpop.permute.xlu0 %7334
      %s7337 = sor.u32 256, 40
      %7338 = vbcast.lane.b32.xlu0 %v7316, %s7337
      %v7339 = vpop.permute.xlu0 %7338
      %s7341 = sor.u32 256, 48
      %7342 = vbcast.lane.b32.xlu0 %v7316, %s7341
      %v7343 = vpop.permute.xlu0 %7342
      %s7345 = sor.u32 256, 56
      %7346 = vbcast.lane.b32.xlu0 %v7316, %s7345
      %v7347 = vpop.permute.xlu0 %7346
      %v7348 = vlaneseq
      %v7349 = vshrl.u32 %v7348, 7
      %v7350 = vsub.s32 2, %v7349
      %v7351 = vrot.slane %v6022, %v7350
      %7353 = vbcast.lane.b32.xlu0 %v7351, 256
      %v7354 = vpop.permute.xlu0 %7353
      %s7356 = sor.u32 256, 8
      %7357 = vbcast.lane.b32.xlu0 %v7351, %s7356
      %v7358 = vpop.permute.xlu0 %7357
      %s7360 = sor.u32 256, 16
      %7361 = vbcast.lane.b32.xlu0 %v7351, %s7360
      %v7362 = vpop.permute.xlu0 %7361
      %s7364 = sor.u32 256, 24
      %7365 = vbcast.lane.b32.xlu0 %v7351, %s7364
      %v7366 = vpop.permute.xlu0 %7365
      %s7368 = sor.u32 256, 32
      %7369 = vbcast.lane.b32.xlu0 %v7351, %s7368
      %v7370 = vpop.permute.xlu0 %7369
      %s7372 = sor.u32 256, 40
      %7373 = vbcast.lane.b32.xlu0 %v7351, %s7372
      %v7374 = vpop.permute.xlu0 %7373
      %s7376 = sor.u32 256, 48
      %7377 = vbcast.lane.b32.xlu0 %v7351, %s7376
      %v7378 = vpop.permute.xlu0 %7377
      %s7380 = sor.u32 256, 56
      %7381 = vbcast.lane.b32.xlu0 %v7351, %s7380
      %v7382 = vpop.permute.xlu0 %7381
      %v7383 = vlaneseq
      %v7384 = vshrl.u32 %v7383, 7
      %v7385 = vsub.s32 3, %v7384
      %v7386 = vrot.slane %v6022, %v7385
      %7388 = vbcast.lane.b32.xlu0 %v7386, 256
      %v7389 = vpop.permute.xlu0 %7388
      %s7391 = sor.u32 256, 8
      %7392 = vbcast.lane.b32.xlu0 %v7386, %s7391
      %v7393 = vpop.permute.xlu0 %7392
      %s7395 = sor.u32 256, 16
      %7396 = vbcast.lane.b32.xlu0 %v7386, %s7395
      %v7397 = vpop.permute.xlu0 %7396
      %s7399 = sor.u32 256, 24
      %7400 = vbcast.lane.b32.xlu0 %v7386, %s7399
      %v7401 = vpop.permute.xlu0 %7400
      %s7403 = sor.u32 256, 32
      %7404 = vbcast.lane.b32.xlu0 %v7386, %s7403
      %v7405 = vpop.permute.xlu0 %7404
      %s7407 = sor.u32 256, 40
      %7408 = vbcast.lane.b32.xlu0 %v7386, %s7407
      %v7409 = vpop.permute.xlu0 %7408
      %s7411 = sor.u32 256, 48
      %7412 = vbcast.lane.b32.xlu0 %v7386, %s7411
      %v7413 = vpop.permute.xlu0 %7412
      %s7415 = sor.u32 256, 56
      %7416 = vbcast.lane.b32.xlu0 %v7386, %s7415
      %v7417 = vpop.permute.xlu0 %7416
      %v7418 = vlaneseq
      %v7419 = vshrl.u32 %v7418, 7
      %v7420 = vsub.s32 4, %v7419
      %v7421 = vrot.slane %v6022, %v7420
      %7423 = vbcast.lane.b32.xlu0 %v7421, 256
      %v7424 = vpop.permute.xlu0 %7423
      %s7426 = sor.u32 256, 8
      %7427 = vbcast.lane.b32.xlu0 %v7421, %s7426
      %v7428 = vpop.permute.xlu0 %7427
      %s7430 = sor.u32 256, 16
      %7431 = vbcast.lane.b32.xlu0 %v7421, %s7430
      %v7432 = vpop.permute.xlu0 %7431
      %s7434 = sor.u32 256, 24
      %7435 = vbcast.lane.b32.xlu0 %v7421, %s7434
      %v7436 = vpop.permute.xlu0 %7435
      %s7438 = sor.u32 256, 32
      %7439 = vbcast.lane.b32.xlu0 %v7421, %s7438
      %v7440 = vpop.permute.xlu0 %7439
      %s7442 = sor.u32 256, 40
      %7443 = vbcast.lane.b32.xlu0 %v7421, %s7442
      %v7444 = vpop.permute.xlu0 %7443
      %s7446 = sor.u32 256, 48
      %7447 = vbcast.lane.b32.xlu0 %v7421, %s7446
      %v7448 = vpop.permute.xlu0 %7447
      %s7450 = sor.u32 256, 56
      %7451 = vbcast.lane.b32.xlu0 %v7421, %s7450
      %v7452 = vpop.permute.xlu0 %7451
      %v7453 = vlaneseq
      %v7454 = vshrl.u32 %v7453, 7
      %v7455 = vsub.s32 5, %v7454
      %v7456 = vrot.slane %v6022, %v7455
      %7458 = vbcast.lane.b32.xlu0 %v7456, 256
      %v7459 = vpop.permute.xlu0 %7458
      %s7461 = sor.u32 256, 8
      %7462 = vbcast.lane.b32.xlu0 %v7456, %s7461
      %v7463 = vpop.permute.xlu0 %7462
      %s7465 = sor.u32 256, 16
      %7466 = vbcast.lane.b32.xlu0 %v7456, %s7465
      %v7467 = vpop.permute.xlu0 %7466
      %s7469 = sor.u32 256, 24
      %7470 = vbcast.lane.b32.xlu0 %v7456, %s7469
      %v7471 = vpop.permute.xlu0 %7470
      %s7473 = sor.u32 256, 32
      %7474 = vbcast.lane.b32.xlu0 %v7456, %s7473
      %v7475 = vpop.permute.xlu0 %7474
      %s7477 = sor.u32 256, 40
      %7478 = vbcast.lane.b32.xlu0 %v7456, %s7477
      %v7479 = vpop.permute.xlu0 %7478
      %s7481 = sor.u32 256, 48
      %7482 = vbcast.lane.b32.xlu0 %v7456, %s7481
      %v7483 = vpop.permute.xlu0 %7482
      %s7485 = sor.u32 256, 56
      %7486 = vbcast.lane.b32.xlu0 %v7456, %s7485
      %v7487 = vpop.permute.xlu0 %7486
      %v7488 = vlaneseq
      %v7489 = vshrl.u32 %v7488, 7
      %v7490 = vsub.s32 6, %v7489
      %v7491 = vrot.slane %v6022, %v7490
      %7493 = vbcast.lane.b32.xlu0 %v7491, 256
      %v7494 = vpop.permute.xlu0 %7493
      %s7496 = sor.u32 256, 8
      %7497 = vbcast.lane.b32.xlu0 %v7491, %s7496
      %v7498 = vpop.permute.xlu0 %7497
      %s7500 = sor.u32 256, 16
      %7501 = vbcast.lane.b32.xlu0 %v7491, %s7500
      %v7502 = vpop.permute.xlu0 %7501
      %s7504 = sor.u32 256, 24
      %7505 = vbcast.lane.b32.xlu0 %v7491, %s7504
      %v7506 = vpop.permute.xlu0 %7505
      %s7508 = sor.u32 256, 32
      %7509 = vbcast.lane.b32.xlu0 %v7491, %s7508
      %v7510 = vpop.permute.xlu0 %7509
      %s7512 = sor.u32 256, 40
      %7513 = vbcast.lane.b32.xlu0 %v7491, %s7512
      %v7514 = vpop.permute.xlu0 %7513
      %s7516 = sor.u32 256, 48
      %7517 = vbcast.lane.b32.xlu0 %v7491, %s7516
      %v7518 = vpop.permute.xlu0 %7517
      %s7520 = sor.u32 256, 56
      %7521 = vbcast.lane.b32.xlu0 %v7491, %s7520
      %v7522 = vpop.permute.xlu0 %7521
      %v7523 = vlaneseq
      %v7524 = vshrl.u32 %v7523, 7
      %v7525 = vsub.s32 7, %v7524
      %v7526 = vrot.slane %v6022, %v7525
      %7528 = vbcast.lane.b32.xlu0 %v7526, 256
      %v7529 = vpop.permute.xlu0 %7528
      %s7531 = sor.u32 256, 8
      %7532 = vbcast.lane.b32.xlu0 %v7526, %s7531
      %v7533 = vpop.permute.xlu0 %7532
      %s7535 = sor.u32 256, 16
      %7536 = vbcast.lane.b32.xlu0 %v7526, %s7535
      %v7537 = vpop.permute.xlu0 %7536
      %s7539 = sor.u32 256, 24
      %7540 = vbcast.lane.b32.xlu0 %v7526, %s7539
      %v7541 = vpop.permute.xlu0 %7540
      %s7543 = sor.u32 256, 32
      %7544 = vbcast.lane.b32.xlu0 %v7526, %s7543
      %v7545 = vpop.permute.xlu0 %7544
      %s7547 = sor.u32 256, 40
      %7548 = vbcast.lane.b32.xlu0 %v7526, %s7547
      %v7549 = vpop.permute.xlu0 %7548
      %s7551 = sor.u32 256, 48
      %7552 = vbcast.lane.b32.xlu0 %v7526, %s7551
      %v7553 = vpop.permute.xlu0 %7552
      %s7555 = sor.u32 256, 56
      %7556 = vbcast.lane.b32.xlu0 %v7526, %s7555
      %v7557 = vpop.permute.xlu0 %7556
      %v7558 = vlaneseq
      %v7559 = vshrl.u32 %v7558, 7
      %v7560 = vsub.s32 0, %v7559
      %v7561 = vrot.slane %v6024, %v7560
      %7563 = vbcast.lane.b32.xlu0 %v7561, 256
      %v7564 = vpop.permute.xlu0 %7563
      %s7566 = sor.u32 256, 8
      %7567 = vbcast.lane.b32.xlu0 %v7561, %s7566
      %v7568 = vpop.permute.xlu0 %7567
      %s7570 = sor.u32 256, 16
      %7571 = vbcast.lane.b32.xlu0 %v7561, %s7570
      %v7572 = vpop.permute.xlu0 %7571
      %s7574 = sor.u32 256, 24
      %7575 = vbcast.lane.b32.xlu0 %v7561, %s7574
      %v7576 = vpop.permute.xlu0 %7575
      %s7578 = sor.u32 256, 32
      %7579 = vbcast.lane.b32.xlu0 %v7561, %s7578
      %v7580 = vpop.permute.xlu0 %7579
      %s7582 = sor.u32 256, 40
      %7583 = vbcast.lane.b32.xlu0 %v7561, %s7582
      %v7584 = vpop.permute.xlu0 %7583
      %s7586 = sor.u32 256, 48
      %7587 = vbcast.lane.b32.xlu0 %v7561, %s7586
      %v7588 = vpop.permute.xlu0 %7587
      %s7590 = sor.u32 256, 56
      %7591 = vbcast.lane.b32.xlu0 %v7561, %s7590
      %v7592 = vpop.permute.xlu0 %7591
      %v7593 = vlaneseq
      %v7594 = vshrl.u32 %v7593, 7
      %v7595 = vsub.s32 1, %v7594
      %v7596 = vrot.slane %v6024, %v7595
      %7598 = vbcast.lane.b32.xlu0 %v7596, 256
      %v7599 = vpop.permute.xlu0 %7598
      %s7601 = sor.u32 256, 8
      %7602 = vbcast.lane.b32.xlu0 %v7596, %s7601
      %v7603 = vpop.permute.xlu0 %7602
      %s7605 = sor.u32 256, 16
      %7606 = vbcast.lane.b32.xlu0 %v7596, %s7605
      %v7607 = vpop.permute.xlu0 %7606
      %s7609 = sor.u32 256, 24
      %7610 = vbcast.lane.b32.xlu0 %v7596, %s7609
      %v7611 = vpop.permute.xlu0 %7610
      %s7613 = sor.u32 256, 32
      %7614 = vbcast.lane.b32.xlu0 %v7596, %s7613
      %v7615 = vpop.permute.xlu0 %7614
      %s7617 = sor.u32 256, 40
      %7618 = vbcast.lane.b32.xlu0 %v7596, %s7617
      %v7619 = vpop.permute.xlu0 %7618
      %s7621 = sor.u32 256, 48
      %7622 = vbcast.lane.b32.xlu0 %v7596, %s7621
      %v7623 = vpop.permute.xlu0 %7622
      %s7625 = sor.u32 256, 56
      %7626 = vbcast.lane.b32.xlu0 %v7596, %s7625
      %v7627 = vpop.permute.xlu0 %7626
      %v7628 = vlaneseq
      %v7629 = vshrl.u32 %v7628, 7
      %v7630 = vsub.s32 2, %v7629
      %v7631 = vrot.slane %v6024, %v7630
      %7633 = vbcast.lane.b32.xlu0 %v7631, 256
      %v7634 = vpop.permute.xlu0 %7633
      %s7636 = sor.u32 256, 8
      %7637 = vbcast.lane.b32.xlu0 %v7631, %s7636
      %v7638 = vpop.permute.xlu0 %7637
      %s7640 = sor.u32 256, 16
      %7641 = vbcast.lane.b32.xlu0 %v7631, %s7640
      %v7642 = vpop.permute.xlu0 %7641
      %s7644 = sor.u32 256, 24
      %7645 = vbcast.lane.b32.xlu0 %v7631, %s7644
      %v7646 = vpop.permute.xlu0 %7645
      %s7648 = sor.u32 256, 32
      %7649 = vbcast.lane.b32.xlu0 %v7631, %s7648
      %v7650 = vpop.permute.xlu0 %7649
      %s7652 = sor.u32 256, 40
      %7653 = vbcast.lane.b32.xlu0 %v7631, %s7652
      %v7654 = vpop.permute.xlu0 %7653
      %s7656 = sor.u32 256, 48
      %7657 = vbcast.lane.b32.xlu0 %v7631, %s7656
      %v7658 = vpop.permute.xlu0 %7657
      %s7660 = sor.u32 256, 56
      %7661 = vbcast.lane.b32.xlu0 %v7631, %s7660
      %v7662 = vpop.permute.xlu0 %7661
      %v7663 = vlaneseq
      %v7664 = vshrl.u32 %v7663, 7
      %v7665 = vsub.s32 3, %v7664
      %v7666 = vrot.slane %v6024, %v7665
      %7668 = vbcast.lane.b32.xlu0 %v7666, 256
      %v7669 = vpop.permute.xlu0 %7668
      %s7671 = sor.u32 256, 8
      %7672 = vbcast.lane.b32.xlu0 %v7666, %s7671
      %v7673 = vpop.permute.xlu0 %7672
      %s7675 = sor.u32 256, 16
      %7676 = vbcast.lane.b32.xlu0 %v7666, %s7675
      %v7677 = vpop.permute.xlu0 %7676
      %s7679 = sor.u32 256, 24
      %7680 = vbcast.lane.b32.xlu0 %v7666, %s7679
      %v7681 = vpop.permute.xlu0 %7680
      %s7683 = sor.u32 256, 32
      %7684 = vbcast.lane.b32.xlu0 %v7666, %s7683
      %v7685 = vpop.permute.xlu0 %7684
      %s7687 = sor.u32 256, 40
      %7688 = vbcast.lane.b32.xlu0 %v7666, %s7687
      %v7689 = vpop.permute.xlu0 %7688
      %s7691 = sor.u32 256, 48
      %7692 = vbcast.lane.b32.xlu0 %v7666, %s7691
      %v7693 = vpop.permute.xlu0 %7692
      %s7695 = sor.u32 256, 56
      %7696 = vbcast.lane.b32.xlu0 %v7666, %s7695
      %v7697 = vpop.permute.xlu0 %7696
      %v7698 = vlaneseq
      %v7699 = vshrl.u32 %v7698, 7
      %v7700 = vsub.s32 4, %v7699
      %v7701 = vrot.slane %v6024, %v7700
      %7703 = vbcast.lane.b32.xlu0 %v7701, 256
      %v7704 = vpop.permute.xlu0 %7703
      %s7706 = sor.u32 256, 8
      %7707 = vbcast.lane.b32.xlu0 %v7701, %s7706
      %v7708 = vpop.permute.xlu0 %7707
      %s7710 = sor.u32 256, 16
      %7711 = vbcast.lane.b32.xlu0 %v7701, %s7710
      %v7712 = vpop.permute.xlu0 %7711
      %s7714 = sor.u32 256, 24
      %7715 = vbcast.lane.b32.xlu0 %v7701, %s7714
      %v7716 = vpop.permute.xlu0 %7715
      %s7718 = sor.u32 256, 32
      %7719 = vbcast.lane.b32.xlu0 %v7701, %s7718
      %v7720 = vpop.permute.xlu0 %7719
      %s7722 = sor.u32 256, 40
      %7723 = vbcast.lane.b32.xlu0 %v7701, %s7722
      %v7724 = vpop.permute.xlu0 %7723
      %s7726 = sor.u32 256, 48
      %7727 = vbcast.lane.b32.xlu0 %v7701, %s7726
      %v7728 = vpop.permute.xlu0 %7727
      %s7730 = sor.u32 256, 56
      %7731 = vbcast.lane.b32.xlu0 %v7701, %s7730
      %v7732 = vpop.permute.xlu0 %7731
      %v7733 = vlaneseq
      %v7734 = vshrl.u32 %v7733, 7
      %v7735 = vsub.s32 5, %v7734
      %v7736 = vrot.slane %v6024, %v7735
      %7738 = vbcast.lane.b32.xlu0 %v7736, 256
      %v7739 = vpop.permute.xlu0 %7738
      %s7741 = sor.u32 256, 8
      %7742 = vbcast.lane.b32.xlu0 %v7736, %s7741
      %v7743 = vpop.permute.xlu0 %7742
      %s7745 = sor.u32 256, 16
      %7746 = vbcast.lane.b32.xlu0 %v7736, %s7745
      %v7747 = vpop.permute.xlu0 %7746
      %s7749 = sor.u32 256, 24
      %7750 = vbcast.lane.b32.xlu0 %v7736, %s7749
      %v7751 = vpop.permute.xlu0 %7750
      %s7753 = sor.u32 256, 32
      %7754 = vbcast.lane.b32.xlu0 %v7736, %s7753
      %v7755 = vpop.permute.xlu0 %7754
      %s7757 = sor.u32 256, 40
      %7758 = vbcast.lane.b32.xlu0 %v7736, %s7757
      %v7759 = vpop.permute.xlu0 %7758
      %s7761 = sor.u32 256, 48
      %7762 = vbcast.lane.b32.xlu0 %v7736, %s7761
      %v7763 = vpop.permute.xlu0 %7762
      %s7765 = sor.u32 256, 56
      %7766 = vbcast.lane.b32.xlu0 %v7736, %s7765
      %v7767 = vpop.permute.xlu0 %7766
      %v7768 = vlaneseq
      %v7769 = vshrl.u32 %v7768, 7
      %v7770 = vsub.s32 6, %v7769
      %v7771 = vrot.slane %v6024, %v7770
      %7773 = vbcast.lane.b32.xlu0 %v7771, 256
      %v7774 = vpop.permute.xlu0 %7773
      %s7776 = sor.u32 256, 8
      %7777 = vbcast.lane.b32.xlu0 %v7771, %s7776
      %v7778 = vpop.permute.xlu0 %7777
      %s7780 = sor.u32 256, 16
      %7781 = vbcast.lane.b32.xlu0 %v7771, %s7780
      %v7782 = vpop.permute.xlu0 %7781
      %s7784 = sor.u32 256, 24
      %7785 = vbcast.lane.b32.xlu0 %v7771, %s7784
      %v7786 = vpop.permute.xlu0 %7785
      %s7788 = sor.u32 256, 32
      %7789 = vbcast.lane.b32.xlu0 %v7771, %s7788
      %v7790 = vpop.permute.xlu0 %7789
      %s7792 = sor.u32 256, 40
      %7793 = vbcast.lane.b32.xlu0 %v7771, %s7792
      %v7794 = vpop.permute.xlu0 %7793
      %s7796 = sor.u32 256, 48
      %7797 = vbcast.lane.b32.xlu0 %v7771, %s7796
      %v7798 = vpop.permute.xlu0 %7797
      %s7800 = sor.u32 256, 56
      %7801 = vbcast.lane.b32.xlu0 %v7771, %s7800
      %v7802 = vpop.permute.xlu0 %7801
      %v7803 = vlaneseq
      %v7804 = vshrl.u32 %v7803, 7
      %v7805 = vsub.s32 7, %v7804
      %v7806 = vrot.slane %v6024, %v7805
      %7808 = vbcast.lane.b32.xlu0 %v7806, 256
      %v7809 = vpop.permute.xlu0 %7808
      %s7811 = sor.u32 256, 8
      %7812 = vbcast.lane.b32.xlu0 %v7806, %s7811
      %v7813 = vpop.permute.xlu0 %7812
      %s7815 = sor.u32 256, 16
      %7816 = vbcast.lane.b32.xlu0 %v7806, %s7815
      %v7817 = vpop.permute.xlu0 %7816
      %s7819 = sor.u32 256, 24
      %7820 = vbcast.lane.b32.xlu0 %v7806, %s7819
      %v7821 = vpop.permute.xlu0 %7820
      %s7823 = sor.u32 256, 32
      %7824 = vbcast.lane.b32.xlu0 %v7806, %s7823
      %v7825 = vpop.permute.xlu0 %7824
      %s7827 = sor.u32 256, 40
      %7828 = vbcast.lane.b32.xlu0 %v7806, %s7827
      %v7829 = vpop.permute.xlu0 %7828
      %s7831 = sor.u32 256, 48
      %7832 = vbcast.lane.b32.xlu0 %v7806, %s7831
      %v7833 = vpop.permute.xlu0 %7832
      %s7835 = sor.u32 256, 56
      %7836 = vbcast.lane.b32.xlu0 %v7806, %s7835
      %v7837 = vpop.permute.xlu0 %7836
      %v7838 = vlaneseq
      %v7839 = vshrl.u32 %v7838, 7
      %v7840 = vsub.s32 0, %v7839
      %v7841 = vrot.slane %v6026, %v7840
      %7843 = vbcast.lane.b32.xlu0 %v7841, 256
      %v7844 = vpop.permute.xlu0 %7843
      %s7846 = sor.u32 256, 8
      %7847 = vbcast.lane.b32.xlu0 %v7841, %s7846
      %v7848 = vpop.permute.xlu0 %7847
      %s7850 = sor.u32 256, 16
      %7851 = vbcast.lane.b32.xlu0 %v7841, %s7850
      %v7852 = vpop.permute.xlu0 %7851
      %s7854 = sor.u32 256, 24
      %7855 = vbcast.lane.b32.xlu0 %v7841, %s7854
      %v7856 = vpop.permute.xlu0 %7855
      %s7858 = sor.u32 256, 32
      %7859 = vbcast.lane.b32.xlu0 %v7841, %s7858
      %v7860 = vpop.permute.xlu0 %7859
      %s7862 = sor.u32 256, 40
      %7863 = vbcast.lane.b32.xlu0 %v7841, %s7862
      %v7864 = vpop.permute.xlu0 %7863
      %s7866 = sor.u32 256, 48
      %7867 = vbcast.lane.b32.xlu0 %v7841, %s7866
      %v7868 = vpop.permute.xlu0 %7867
      %s7870 = sor.u32 256, 56
      %7871 = vbcast.lane.b32.xlu0 %v7841, %s7870
      %v7872 = vpop.permute.xlu0 %7871
      %v7873 = vlaneseq
      %v7874 = vshrl.u32 %v7873, 7
      %v7875 = vsub.s32 1, %v7874
      %v7876 = vrot.slane %v6026, %v7875
      %7878 = vbcast.lane.b32.xlu0 %v7876, 256
      %v7879 = vpop.permute.xlu0 %7878
      %s7881 = sor.u32 256, 8
      %7882 = vbcast.lane.b32.xlu0 %v7876, %s7881
      %v7883 = vpop.permute.xlu0 %7882
      %s7885 = sor.u32 256, 16
      %7886 = vbcast.lane.b32.xlu0 %v7876, %s7885
      %v7887 = vpop.permute.xlu0 %7886
      %s7889 = sor.u32 256, 24
      %7890 = vbcast.lane.b32.xlu0 %v7876, %s7889
      %v7891 = vpop.permute.xlu0 %7890
      %s7893 = sor.u32 256, 32
      %7894 = vbcast.lane.b32.xlu0 %v7876, %s7893
      %v7895 = vpop.permute.xlu0 %7894
      %s7897 = sor.u32 256, 40
      %7898 = vbcast.lane.b32.xlu0 %v7876, %s7897
      %v7899 = vpop.permute.xlu0 %7898
      %s7901 = sor.u32 256, 48
      %7902 = vbcast.lane.b32.xlu0 %v7876, %s7901
      %v7903 = vpop.permute.xlu0 %7902
      %s7905 = sor.u32 256, 56
      %7906 = vbcast.lane.b32.xlu0 %v7876, %s7905
      %v7907 = vpop.permute.xlu0 %7906
      %v7908 = vlaneseq
      %v7909 = vshrl.u32 %v7908, 7
      %v7910 = vsub.s32 2, %v7909
      %v7911 = vrot.slane %v6026, %v7910
      %7913 = vbcast.lane.b32.xlu0 %v7911, 256
      %v7914 = vpop.permute.xlu0 %7913
      %s7916 = sor.u32 256, 8
      %7917 = vbcast.lane.b32.xlu0 %v7911, %s7916
      %v7918 = vpop.permute.xlu0 %7917
      %s7920 = sor.u32 256, 16
      %7921 = vbcast.lane.b32.xlu0 %v7911, %s7920
      %v7922 = vpop.permute.xlu0 %7921
      %s7924 = sor.u32 256, 24
      %7925 = vbcast.lane.b32.xlu0 %v7911, %s7924
      %v7926 = vpop.permute.xlu0 %7925
      %s7928 = sor.u32 256, 32
      %7929 = vbcast.lane.b32.xlu0 %v7911, %s7928
      %v7930 = vpop.permute.xlu0 %7929
      %s7932 = sor.u32 256, 40
      %7933 = vbcast.lane.b32.xlu0 %v7911, %s7932
      %v7934 = vpop.permute.xlu0 %7933
      %s7936 = sor.u32 256, 48
      %7937 = vbcast.lane.b32.xlu0 %v7911, %s7936
      %v7938 = vpop.permute.xlu0 %7937
      %s7940 = sor.u32 256, 56
      %7941 = vbcast.lane.b32.xlu0 %v7911, %s7940
      %v7942 = vpop.permute.xlu0 %7941
      %v7943 = vlaneseq
      %v7944 = vshrl.u32 %v7943, 7
      %v7945 = vsub.s32 3, %v7944
      %v7946 = vrot.slane %v6026, %v7945
      %7948 = vbcast.lane.b32.xlu0 %v7946, 256
      %v7949 = vpop.permute.xlu0 %7948
      %s7951 = sor.u32 256, 8
      %7952 = vbcast.lane.b32.xlu0 %v7946, %s7951
      %v7953 = vpop.permute.xlu0 %7952
      %s7955 = sor.u32 256, 16
      %7956 = vbcast.lane.b32.xlu0 %v7946, %s7955
      %v7957 = vpop.permute.xlu0 %7956
      %s7959 = sor.u32 256, 24
      %7960 = vbcast.lane.b32.xlu0 %v7946, %s7959
      %v7961 = vpop.permute.xlu0 %7960
      %s7963 = sor.u32 256, 32
      %7964 = vbcast.lane.b32.xlu0 %v7946, %s7963
      %v7965 = vpop.permute.xlu0 %7964
      %s7967 = sor.u32 256, 40
      %7968 = vbcast.lane.b32.xlu0 %v7946, %s7967
      %v7969 = vpop.permute.xlu0 %7968
      %s7971 = sor.u32 256, 48
      %7972 = vbcast.lane.b32.xlu0 %v7946, %s7971
      %v7973 = vpop.permute.xlu0 %7972
      %s7975 = sor.u32 256, 56
      %7976 = vbcast.lane.b32.xlu0 %v7946, %s7975
      %v7977 = vpop.permute.xlu0 %7976
      %v7978 = vlaneseq
      %v7979 = vshrl.u32 %v7978, 7
      %v7980 = vsub.s32 4, %v7979
      %v7981 = vrot.slane %v6026, %v7980
      %7983 = vbcast.lane.b32.xlu0 %v7981, 256
      %v7984 = vpop.permute.xlu0 %7983
      %s7986 = sor.u32 256, 8
      %7987 = vbcast.lane.b32.xlu0 %v7981, %s7986
      %v7988 = vpop.permute.xlu0 %7987
      %s7990 = sor.u32 256, 16
      %7991 = vbcast.lane.b32.xlu0 %v7981, %s7990
      %v7992 = vpop.permute.xlu0 %7991
      %s7994 = sor.u32 256, 24
      %7995 = vbcast.lane.b32.xlu0 %v7981, %s7994
      %v7996 = vpop.permute.xlu0 %7995
      %s7998 = sor.u32 256, 32
      %7999 = vbcast.lane.b32.xlu0 %v7981, %s7998
      %v8000 = vpop.permute.xlu0 %7999
      %s8002 = sor.u32 256, 40
      %8003 = vbcast.lane.b32.xlu0 %v7981, %s8002
      %v8004 = vpop.permute.xlu0 %8003
      %s8006 = sor.u32 256, 48
      %8007 = vbcast.lane.b32.xlu0 %v7981, %s8006
      %v8008 = vpop.permute.xlu0 %8007
      %s8010 = sor.u32 256, 56
      %8011 = vbcast.lane.b32.xlu0 %v7981, %s8010
      %v8012 = vpop.permute.xlu0 %8011
      %v8013 = vlaneseq
      %v8014 = vshrl.u32 %v8013, 7
      %v8015 = vsub.s32 5, %v8014
      %v8016 = vrot.slane %v6026, %v8015
      %8018 = vbcast.lane.b32.xlu0 %v8016, 256
      %v8019 = vpop.permute.xlu0 %8018
      %s8021 = sor.u32 256, 8
      %8022 = vbcast.lane.b32.xlu0 %v8016, %s8021
      %v8023 = vpop.permute.xlu0 %8022
      %s8025 = sor.u32 256, 16
      %8026 = vbcast.lane.b32.xlu0 %v8016, %s8025
      %v8027 = vpop.permute.xlu0 %8026
      %s8029 = sor.u32 256, 24
      %8030 = vbcast.lane.b32.xlu0 %v8016, %s8029
      %v8031 = vpop.permute.xlu0 %8030
      %s8033 = sor.u32 256, 32
      %8034 = vbcast.lane.b32.xlu0 %v8016, %s8033
      %v8035 = vpop.permute.xlu0 %8034
      %s8037 = sor.u32 256, 40
      %8038 = vbcast.lane.b32.xlu0 %v8016, %s8037
      %v8039 = vpop.permute.xlu0 %8038
      %s8041 = sor.u32 256, 48
      %8042 = vbcast.lane.b32.xlu0 %v8016, %s8041
      %v8043 = vpop.permute.xlu0 %8042
      %s8045 = sor.u32 256, 56
      %8046 = vbcast.lane.b32.xlu0 %v8016, %s8045
      %v8047 = vpop.permute.xlu0 %8046
      %v8048 = vlaneseq
      %v8049 = vshrl.u32 %v8048, 7
      %v8050 = vsub.s32 6, %v8049
      %v8051 = vrot.slane %v6026, %v8050
      %8053 = vbcast.lane.b32.xlu0 %v8051, 256
      %v8054 = vpop.permute.xlu0 %8053
      %s8056 = sor.u32 256, 8
      %8057 = vbcast.lane.b32.xlu0 %v8051, %s8056
      %v8058 = vpop.permute.xlu0 %8057
      %s8060 = sor.u32 256, 16
      %8061 = vbcast.lane.b32.xlu0 %v8051, %s8060
      %v8062 = vpop.permute.xlu0 %8061
      %s8064 = sor.u32 256, 24
      %8065 = vbcast.lane.b32.xlu0 %v8051, %s8064
      %v8066 = vpop.permute.xlu0 %8065
      %s8068 = sor.u32 256, 32
      %8069 = vbcast.lane.b32.xlu0 %v8051, %s8068
      %v8070 = vpop.permute.xlu0 %8069
      %s8072 = sor.u32 256, 40
      %8073 = vbcast.lane.b32.xlu0 %v8051, %s8072
      %v8074 = vpop.permute.xlu0 %8073
      %s8076 = sor.u32 256, 48
      %8077 = vbcast.lane.b32.xlu0 %v8051, %s8076
      %v8078 = vpop.permute.xlu0 %8077
      %s8080 = sor.u32 256, 56
      %8081 = vbcast.lane.b32.xlu0 %v8051, %s8080
      %v8082 = vpop.permute.xlu0 %8081
      %v8083 = vlaneseq
      %v8084 = vshrl.u32 %v8083, 7
      %v8085 = vsub.s32 7, %v8084
      %v8086 = vrot.slane %v6026, %v8085
      %8088 = vbcast.lane.b32.xlu0 %v8086, 256
      %v8089 = vpop.permute.xlu0 %8088
      %s8091 = sor.u32 256, 8
      %8092 = vbcast.lane.b32.xlu0 %v8086, %s8091
      %v8093 = vpop.permute.xlu0 %8092
      %s8095 = sor.u32 256, 16
      %8096 = vbcast.lane.b32.xlu0 %v8086, %s8095
      %v8097 = vpop.permute.xlu0 %8096
      %s8099 = sor.u32 256, 24
      %8100 = vbcast.lane.b32.xlu0 %v8086, %s8099
      %v8101 = vpop.permute.xlu0 %8100
      %s8103 = sor.u32 256, 32
      %8104 = vbcast.lane.b32.xlu0 %v8086, %s8103
      %v8105 = vpop.permute.xlu0 %8104
      %s8107 = sor.u32 256, 40
      %8108 = vbcast.lane.b32.xlu0 %v8086, %s8107
      %v8109 = vpop.permute.xlu0 %8108
      %s8111 = sor.u32 256, 48
      %8112 = vbcast.lane.b32.xlu0 %v8086, %s8111
      %v8113 = vpop.permute.xlu0 %8112
      %s8115 = sor.u32 256, 56
      %8116 = vbcast.lane.b32.xlu0 %v8086, %s8115
      %v8117 = vpop.permute.xlu0 %8116
      %v8118 = vlaneseq
      %v8119 = vshrl.u32 %v8118, 7
      %v8120 = vsub.s32 0, %v8119
      %v8121 = vrot.slane %v6028, %v8120
      %8123 = vbcast.lane.b32.xlu0 %v8121, 256
      %v8124 = vpop.permute.xlu0 %8123
      %s8126 = sor.u32 256, 8
      %8127 = vbcast.lane.b32.xlu0 %v8121, %s8126
      %v8128 = vpop.permute.xlu0 %8127
      %s8130 = sor.u32 256, 16
      %8131 = vbcast.lane.b32.xlu0 %v8121, %s8130
      %v8132 = vpop.permute.xlu0 %8131
      %s8134 = sor.u32 256, 24
      %8135 = vbcast.lane.b32.xlu0 %v8121, %s8134
      %v8136 = vpop.permute.xlu0 %8135
      %s8138 = sor.u32 256, 32
      %8139 = vbcast.lane.b32.xlu0 %v8121, %s8138
      %v8140 = vpop.permute.xlu0 %8139
      %s8142 = sor.u32 256, 40
      %8143 = vbcast.lane.b32.xlu0 %v8121, %s8142
      %v8144 = vpop.permute.xlu0 %8143
      %s8146 = sor.u32 256, 48
      %8147 = vbcast.lane.b32.xlu0 %v8121, %s8146
      %v8148 = vpop.permute.xlu0 %8147
      %s8150 = sor.u32 256, 56
      %8151 = vbcast.lane.b32.xlu0 %v8121, %s8150
      %v8152 = vpop.permute.xlu0 %8151
      %v8153 = vlaneseq
      %v8154 = vshrl.u32 %v8153, 7
      %v8155 = vsub.s32 1, %v8154
      %v8156 = vrot.slane %v6028, %v8155
      %8158 = vbcast.lane.b32.xlu0 %v8156, 256
      %v8159 = vpop.permute.xlu0 %8158
      %s8161 = sor.u32 256, 8
      %8162 = vbcast.lane.b32.xlu0 %v8156, %s8161
      %v8163 = vpop.permute.xlu0 %8162
      %s8165 = sor.u32 256, 16
      %8166 = vbcast.lane.b32.xlu0 %v8156, %s8165
      %v8167 = vpop.permute.xlu0 %8166
      %s8169 = sor.u32 256, 24
      %8170 = vbcast.lane.b32.xlu0 %v8156, %s8169
      %v8171 = vpop.permute.xlu0 %8170
      %s8173 = sor.u32 256, 32
      %8174 = vbcast.lane.b32.xlu0 %v8156, %s8173
      %v8175 = vpop.permute.xlu0 %8174
      %s8177 = sor.u32 256, 40
      %8178 = vbcast.lane.b32.xlu0 %v8156, %s8177
      %v8179 = vpop.permute.xlu0 %8178
      %s8181 = sor.u32 256, 48
      %8182 = vbcast.lane.b32.xlu0 %v8156, %s8181
      %v8183 = vpop.permute.xlu0 %8182
      %s8185 = sor.u32 256, 56
      %8186 = vbcast.lane.b32.xlu0 %v8156, %s8185
      %v8187 = vpop.permute.xlu0 %8186
      %v8188 = vlaneseq
      %v8189 = vshrl.u32 %v8188, 7
      %v8190 = vsub.s32 2, %v8189
      %v8191 = vrot.slane %v6028, %v8190
      %8193 = vbcast.lane.b32.xlu0 %v8191, 256
      %v8194 = vpop.permute.xlu0 %8193
      %s8196 = sor.u32 256, 8
      %8197 = vbcast.lane.b32.xlu0 %v8191, %s8196
      %v8198 = vpop.permute.xlu0 %8197
      %s8200 = sor.u32 256, 16
      %8201 = vbcast.lane.b32.xlu0 %v8191, %s8200
      %v8202 = vpop.permute.xlu0 %8201
      %s8204 = sor.u32 256, 24
      %8205 = vbcast.lane.b32.xlu0 %v8191, %s8204
      %v8206 = vpop.permute.xlu0 %8205
      %s8208 = sor.u32 256, 32
      %8209 = vbcast.lane.b32.xlu0 %v8191, %s8208
      %v8210 = vpop.permute.xlu0 %8209
      %s8212 = sor.u32 256, 40
      %8213 = vbcast.lane.b32.xlu0 %v8191, %s8212
      %v8214 = vpop.permute.xlu0 %8213
      %s8216 = sor.u32 256, 48
      %8217 = vbcast.lane.b32.xlu0 %v8191, %s8216
      %v8218 = vpop.permute.xlu0 %8217
      %s8220 = sor.u32 256, 56
      %8221 = vbcast.lane.b32.xlu0 %v8191, %s8220
      %v8222 = vpop.permute.xlu0 %8221
      %v8223 = vlaneseq
      %v8224 = vshrl.u32 %v8223, 7
      %v8225 = vsub.s32 3, %v8224
      %v8226 = vrot.slane %v6028, %v8225
      %8228 = vbcast.lane.b32.xlu0 %v8226, 256
      %v8229 = vpop.permute.xlu0 %8228
      %s8231 = sor.u32 256, 8
      %8232 = vbcast.lane.b32.xlu0 %v8226, %s8231
      %v8233 = vpop.permute.xlu0 %8232
      %s8235 = sor.u32 256, 16
      %8236 = vbcast.lane.b32.xlu0 %v8226, %s8235
      %v8237 = vpop.permute.xlu0 %8236
      %s8239 = sor.u32 256, 24
      %8240 = vbcast.lane.b32.xlu0 %v8226, %s8239
      %v8241 = vpop.permute.xlu0 %8240
      %s8243 = sor.u32 256, 32
      %8244 = vbcast.lane.b32.xlu0 %v8226, %s8243
      %v8245 = vpop.permute.xlu0 %8244
      %s8247 = sor.u32 256, 40
      %8248 = vbcast.lane.b32.xlu0 %v8226, %s8247
      %v8249 = vpop.permute.xlu0 %8248
      %s8251 = sor.u32 256, 48
      %8252 = vbcast.lane.b32.xlu0 %v8226, %s8251
      %v8253 = vpop.permute.xlu0 %8252
      %s8255 = sor.u32 256, 56
      %8256 = vbcast.lane.b32.xlu0 %v8226, %s8255
      %v8257 = vpop.permute.xlu0 %8256
      %v8258 = vlaneseq
      %v8259 = vshrl.u32 %v8258, 7
      %v8260 = vsub.s32 4, %v8259
      %v8261 = vrot.slane %v6028, %v8260
      %8263 = vbcast.lane.b32.xlu0 %v8261, 256
      %v8264 = vpop.permute.xlu0 %8263
      %s8266 = sor.u32 256, 8
      %8267 = vbcast.lane.b32.xlu0 %v8261, %s8266
      %v8268 = vpop.permute.xlu0 %8267
      %s8270 = sor.u32 256, 16
      %8271 = vbcast.lane.b32.xlu0 %v8261, %s8270
      %v8272 = vpop.permute.xlu0 %8271
      %s8274 = sor.u32 256, 24
      %8275 = vbcast.lane.b32.xlu0 %v8261, %s8274
      %v8276 = vpop.permute.xlu0 %8275
      %s8278 = sor.u32 256, 32
      %8279 = vbcast.lane.b32.xlu0 %v8261, %s8278
      %v8280 = vpop.permute.xlu0 %8279
      %s8282 = sor.u32 256, 40
      %8283 = vbcast.lane.b32.xlu0 %v8261, %s8282
      %v8284 = vpop.permute.xlu0 %8283
      %s8286 = sor.u32 256, 48
      %8287 = vbcast.lane.b32.xlu0 %v8261, %s8286
      %v8288 = vpop.permute.xlu0 %8287
      %s8290 = sor.u32 256, 56
      %8291 = vbcast.lane.b32.xlu0 %v8261, %s8290
      %v8292 = vpop.permute.xlu0 %8291
      %v8293 = vlaneseq
      %v8294 = vshrl.u32 %v8293, 7
      %v8295 = vsub.s32 5, %v8294
      %v8296 = vrot.slane %v6028, %v8295
      %8298 = vbcast.lane.b32.xlu0 %v8296, 256
      %v8299 = vpop.permute.xlu0 %8298
      %s8301 = sor.u32 256, 8
      %8302 = vbcast.lane.b32.xlu0 %v8296, %s8301
      %v8303 = vpop.permute.xlu0 %8302
      %s8305 = sor.u32 256, 16
      %8306 = vbcast.lane.b32.xlu0 %v8296, %s8305
      %v8307 = vpop.permute.xlu0 %8306
      %s8309 = sor.u32 256, 24
      %8310 = vbcast.lane.b32.xlu0 %v8296, %s8309
      %v8311 = vpop.permute.xlu0 %8310
      %s8313 = sor.u32 256, 32
      %8314 = vbcast.lane.b32.xlu0 %v8296, %s8313
      %v8315 = vpop.permute.xlu0 %8314
      %s8317 = sor.u32 256, 40
      %8318 = vbcast.lane.b32.xlu0 %v8296, %s8317
      %v8319 = vpop.permute.xlu0 %8318
      %s8321 = sor.u32 256, 48
      %8322 = vbcast.lane.b32.xlu0 %v8296, %s8321
      %v8323 = vpop.permute.xlu0 %8322
      %s8325 = sor.u32 256, 56
      %8326 = vbcast.lane.b32.xlu0 %v8296, %s8325
      %v8327 = vpop.permute.xlu0 %8326
      %v8328 = vlaneseq
      %v8329 = vshrl.u32 %v8328, 7
      %v8330 = vsub.s32 6, %v8329
      %v8331 = vrot.slane %v6028, %v8330
      %8333 = vbcast.lane.b32.xlu0 %v8331, 256
      %v8334 = vpop.permute.xlu0 %8333
      %s8336 = sor.u32 256, 8
      %8337 = vbcast.lane.b32.xlu0 %v8331, %s8336
      %v8338 = vpop.permute.xlu0 %8337
      %s8340 = sor.u32 256, 16
      %8341 = vbcast.lane.b32.xlu0 %v8331, %s8340
      %v8342 = vpop.permute.xlu0 %8341
      %s8344 = sor.u32 256, 24
      %8345 = vbcast.lane.b32.xlu0 %v8331, %s8344
      %v8346 = vpop.permute.xlu0 %8345
      %s8348 = sor.u32 256, 32
      %8349 = vbcast.lane.b32.xlu0 %v8331, %s8348
      %v8350 = vpop.permute.xlu0 %8349
      %s8352 = sor.u32 256, 40
      %8353 = vbcast.lane.b32.xlu0 %v8331, %s8352
      %v8354 = vpop.permute.xlu0 %8353
      %s8356 = sor.u32 256, 48
      %8357 = vbcast.lane.b32.xlu0 %v8331, %s8356
      %v8358 = vpop.permute.xlu0 %8357
      %s8360 = sor.u32 256, 56
      %8361 = vbcast.lane.b32.xlu0 %v8331, %s8360
      %v8362 = vpop.permute.xlu0 %8361
      %v8363 = vlaneseq
      %v8364 = vshrl.u32 %v8363, 7
      %v8365 = vsub.s32 7, %v8364
      %v8366 = vrot.slane %v6028, %v8365
      %8368 = vbcast.lane.b32.xlu0 %v8366, 256
      %v8369 = vpop.permute.xlu0 %8368
      %s8371 = sor.u32 256, 8
      %8372 = vbcast.lane.b32.xlu0 %v8366, %s8371
      %v8373 = vpop.permute.xlu0 %8372
      %s8375 = sor.u32 256, 16
      %8376 = vbcast.lane.b32.xlu0 %v8366, %s8375
      %v8377 = vpop.permute.xlu0 %8376
      %s8379 = sor.u32 256, 24
      %8380 = vbcast.lane.b32.xlu0 %v8366, %s8379
      %v8381 = vpop.permute.xlu0 %8380
      %s8383 = sor.u32 256, 32
      %8384 = vbcast.lane.b32.xlu0 %v8366, %s8383
      %v8385 = vpop.permute.xlu0 %8384
      %s8387 = sor.u32 256, 40
      %8388 = vbcast.lane.b32.xlu0 %v8366, %s8387
      %v8389 = vpop.permute.xlu0 %8388
      %s8391 = sor.u32 256, 48
      %8392 = vbcast.lane.b32.xlu0 %v8366, %s8391
      %v8393 = vpop.permute.xlu0 %8392
      %s8395 = sor.u32 256, 56
      %8396 = vbcast.lane.b32.xlu0 %v8366, %s8395
      %v8397 = vpop.permute.xlu0 %8396
      %v8398 = vcombine.high %v5638, %v5638
      %v8400 = vunpack.c.l.s4 1966171168
      %v8401 = vunpack.c.0.s8 %v8400
      %v8402 = vlaneseq
      %v8403 = vshrl.u32 %v8402, 7
      %v8404 = vsub.s32 %v8401, %v8403
      %v8405 = vrot.slane %v5638, %v8404
      %v8407 = vunpack.c.l.s4 1966171168
      %v8408 = vunpack.c.0.s8 %v8407
      %v8409 = vlaneseq
      %v8410 = vshrl.u32 %v8409, 7
      %v8411 = vsub.s32 %v8408, %v8410
      %v8412 = vrot.slane %v8398, %v8411
      %v8413 = vcombine.high %v8405, %v8405
      %v8414 = vcombine.high %v8412, %v8412
      %v8416 = vunpack.c.l.s4 1966171168
      %v8417 = vunpack.c.0.s8 %v8416
      %v8418 = vlaneseq
      %v8419 = vshrl.u32 %v8418, 7
      %v8420 = vsub.s32 %v8417, %v8419
      %v8421 = vrot.slane %v8405, %v8420
      %v8423 = vunpack.c.l.s4 1966171168
      %v8424 = vunpack.c.0.s8 %v8423
      %v8425 = vlaneseq
      %v8426 = vshrl.u32 %v8425, 7
      %v8427 = vsub.s32 %v8424, %v8426
      %v8428 = vrot.slane %v8412, %v8427
      %v8430 = vunpack.c.l.s4 1966171168
      %v8431 = vunpack.c.0.s8 %v8430
      %v8432 = vlaneseq
      %v8433 = vshrl.u32 %v8432, 7
      %v8434 = vsub.s32 %v8431, %v8433
      %v8435 = vrot.slane %v8413, %v8434
      %v8437 = vunpack.c.l.s4 1966171168
      %v8438 = vunpack.c.0.s8 %v8437
      %v8439 = vlaneseq
      %v8440 = vshrl.u32 %v8439, 7
      %v8441 = vsub.s32 %v8438, %v8440
      %v8442 = vrot.slane %v8414, %v8441
      %v8443 = vcombine.high %v8421, %v8421
      %v8444 = vcombine.high %v8428, %v8428
      %v8445 = vcombine.high %v8435, %v8435
      %v8446 = vcombine.high %v8442, %v8442
      %v8447 = vcombine.high %v5643, %v5643
      %v8449 = vunpack.c.l.s4 1966171168
      %v8450 = vunpack.c.0.s8 %v8449
      %v8451 = vlaneseq
      %v8452 = vshrl.u32 %v8451, 7
      %v8453 = vsub.s32 %v8450, %v8452
      %v8454 = vrot.slane %v5643, %v8453
      %v8456 = vunpack.c.l.s4 1966171168
      %v8457 = vunpack.c.0.s8 %v8456
      %v8458 = vlaneseq
      %v8459 = vshrl.u32 %v8458, 7
      %v8460 = vsub.s32 %v8457, %v8459
      %v8461 = vrot.slane %v8447, %v8460
      %v8462 = vcombine.high %v8454, %v8454
      %v8463 = vcombine.high %v8461, %v8461
      %v8465 = vunpack.c.l.s4 1966171168
      %v8466 = vunpack.c.0.s8 %v8465
      %v8467 = vlaneseq
      %v8468 = vshrl.u32 %v8467, 7
      %v8469 = vsub.s32 %v8466, %v8468
      %v8470 = vrot.slane %v8454, %v8469
      %v8472 = vunpack.c.l.s4 1966171168
      %v8473 = vunpack.c.0.s8 %v8472
      %v8474 = vlaneseq
      %v8475 = vshrl.u32 %v8474, 7
      %v8476 = vsub.s32 %v8473, %v8475
      %v8477 = vrot.slane %v8461, %v8476
      %v8479 = vunpack.c.l.s4 1966171168
      %v8480 = vunpack.c.0.s8 %v8479
      %v8481 = vlaneseq
      %v8482 = vshrl.u32 %v8481, 7
      %v8483 = vsub.s32 %v8480, %v8482
      %v8484 = vrot.slane %v8462, %v8483
      %v8486 = vunpack.c.l.s4 1966171168
      %v8487 = vunpack.c.0.s8 %v8486
      %v8488 = vlaneseq
      %v8489 = vshrl.u32 %v8488, 7
      %v8490 = vsub.s32 %v8487, %v8489
      %v8491 = vrot.slane %v8463, %v8490
      %v8492 = vcombine.high %v8470, %v8470
      %v8493 = vcombine.high %v8477, %v8477
      %v8494 = vcombine.high %v8484, %v8484
      %v8495 = vcombine.high %v8491, %v8491
      %v8496 = vcombine.high %v5648, %v5648
      %v8498 = vunpack.c.l.s4 1966171168
      %v8499 = vunpack.c.0.s8 %v8498
      %v8500 = vlaneseq
      %v8501 = vshrl.u32 %v8500, 7
      %v8502 = vsub.s32 %v8499, %v8501
      %v8503 = vrot.slane %v5648, %v8502
      %v8505 = vunpack.c.l.s4 1966171168
      %v8506 = vunpack.c.0.s8 %v8505
      %v8507 = vlaneseq
      %v8508 = vshrl.u32 %v8507, 7
      %v8509 = vsub.s32 %v8506, %v8508
      %v8510 = vrot.slane %v8496, %v8509
      %v8511 = vcombine.high %v8503, %v8503
      %v8512 = vcombine.high %v8510, %v8510
      %v8514 = vunpack.c.l.s4 1966171168
      %v8515 = vunpack.c.0.s8 %v8514
      %v8516 = vlaneseq
      %v8517 = vshrl.u32 %v8516, 7
      %v8518 = vsub.s32 %v8515, %v8517
      %v8519 = vrot.slane %v8503, %v8518
      %v8521 = vunpack.c.l.s4 1966171168
      %v8522 = vunpack.c.0.s8 %v8521
      %v8523 = vlaneseq
      %v8524 = vshrl.u32 %v8523, 7
      %v8525 = vsub.s32 %v8522, %v8524
      %v8526 = vrot.slane %v8510, %v8525
      %v8528 = vunpack.c.l.s4 1966171168
      %v8529 = vunpack.c.0.s8 %v8528
      %v8530 = vlaneseq
      %v8531 = vshrl.u32 %v8530, 7
      %v8532 = vsub.s32 %v8529, %v8531
      %v8533 = vrot.slane %v8511, %v8532
      %v8535 = vunpack.c.l.s4 1966171168
      %v8536 = vunpack.c.0.s8 %v8535
      %v8537 = vlaneseq
      %v8538 = vshrl.u32 %v8537, 7
      %v8539 = vsub.s32 %v8536, %v8538
      %v8540 = vrot.slane %v8512, %v8539
      %v8541 = vcombine.high %v8519, %v8519
      %v8542 = vcombine.high %v8526, %v8526
      %v8543 = vcombine.high %v8533, %v8533
      %v8544 = vcombine.high %v8540, %v8540
      %v8545 = vcombine.high %v5653, %v5653
      %v8547 = vunpack.c.l.s4 1966171168
      %v8548 = vunpack.c.0.s8 %v8547
      %v8549 = vlaneseq
      %v8550 = vshrl.u32 %v8549, 7
      %v8551 = vsub.s32 %v8548, %v8550
      %v8552 = vrot.slane %v5653, %v8551
      %v8554 = vunpack.c.l.s4 1966171168
      %v8555 = vunpack.c.0.s8 %v8554
      %v8556 = vlaneseq
      %v8557 = vshrl.u32 %v8556, 7
      %v8558 = vsub.s32 %v8555, %v8557
      %v8559 = vrot.slane %v8545, %v8558
      %v8560 = vcombine.high %v8552, %v8552
      %v8561 = vcombine.high %v8559, %v8559
      %v8563 = vunpack.c.l.s4 1966171168
      %v8564 = vunpack.c.0.s8 %v8563
      %v8565 = vlaneseq
      %v8566 = vshrl.u32 %v8565, 7
      %v8567 = vsub.s32 %v8564, %v8566
      %v8568 = vrot.slane %v8552, %v8567
      %v8570 = vunpack.c.l.s4 1966171168
      %v8571 = vunpack.c.0.s8 %v8570
      %v8572 = vlaneseq
      %v8573 = vshrl.u32 %v8572, 7
      %v8574 = vsub.s32 %v8571, %v8573
      %v8575 = vrot.slane %v8559, %v8574
      %v8577 = vunpack.c.l.s4 1966171168
      %v8578 = vunpack.c.0.s8 %v8577
      %v8579 = vlaneseq
      %v8580 = vshrl.u32 %v8579, 7
      %v8581 = vsub.s32 %v8578, %v8580
      %v8582 = vrot.slane %v8560, %v8581
      %v8584 = vunpack.c.l.s4 1966171168
      %v8585 = vunpack.c.0.s8 %v8584
      %v8586 = vlaneseq
      %v8587 = vshrl.u32 %v8586, 7
      %v8588 = vsub.s32 %v8585, %v8587
      %v8589 = vrot.slane %v8561, %v8588
      %v8590 = vcombine.high %v8568, %v8568
      %v8591 = vcombine.high %v8575, %v8575
      %v8592 = vcombine.high %v8582, %v8582
      %v8593 = vcombine.high %v8589, %v8589
      %v8594 = vcombine.high %v5658, %v5658
      %v8596 = vunpack.c.l.s4 1966171168
      %v8597 = vunpack.c.0.s8 %v8596
      %v8598 = vlaneseq
      %v8599 = vshrl.u32 %v8598, 7
      %v8600 = vsub.s32 %v8597, %v8599
      %v8601 = vrot.slane %v5658, %v8600
      %v8603 = vunpack.c.l.s4 1966171168
      %v8604 = vunpack.c.0.s8 %v8603
      %v8605 = vlaneseq
      %v8606 = vshrl.u32 %v8605, 7
      %v8607 = vsub.s32 %v8604, %v8606
      %v8608 = vrot.slane %v8594, %v8607
      %v8609 = vcombine.high %v8601, %v8601
      %v8610 = vcombine.high %v8608, %v8608
      %v8612 = vunpack.c.l.s4 1966171168
      %v8613 = vunpack.c.0.s8 %v8612
      %v8614 = vlaneseq
      %v8615 = vshrl.u32 %v8614, 7
      %v8616 = vsub.s32 %v8613, %v8615
      %v8617 = vrot.slane %v8601, %v8616
      %v8619 = vunpack.c.l.s4 1966171168
      %v8620 = vunpack.c.0.s8 %v8619
      %v8621 = vlaneseq
      %v8622 = vshrl.u32 %v8621, 7
      %v8623 = vsub.s32 %v8620, %v8622
      %v8624 = vrot.slane %v8608, %v8623
      %v8626 = vunpack.c.l.s4 1966171168
      %v8627 = vunpack.c.0.s8 %v8626
      %v8628 = vlaneseq
      %v8629 = vshrl.u32 %v8628, 7
      %v8630 = vsub.s32 %v8627, %v8629
      %v8631 = vrot.slane %v8609, %v8630
      %v8633 = vunpack.c.l.s4 1966171168
      %v8634 = vunpack.c.0.s8 %v8633
      %v8635 = vlaneseq
      %v8636 = vshrl.u32 %v8635, 7
      %v8637 = vsub.s32 %v8634, %v8636
      %v8638 = vrot.slane %v8610, %v8637
      %v8639 = vcombine.high %v8617, %v8617
      %v8640 = vcombine.high %v8624, %v8624
      %v8641 = vcombine.high %v8631, %v8631
      %v8642 = vcombine.high %v8638, %v8638
      %v8643 = vcombine.high %v5663, %v5663
      %v8645 = vunpack.c.l.s4 1966171168
      %v8646 = vunpack.c.0.s8 %v8645
      %v8647 = vlaneseq
      %v8648 = vshrl.u32 %v8647, 7
      %v8649 = vsub.s32 %v8646, %v8648
      %v8650 = vrot.slane %v5663, %v8649
      %v8652 = vunpack.c.l.s4 1966171168
      %v8653 = vunpack.c.0.s8 %v8652
      %v8654 = vlaneseq
      %v8655 = vshrl.u32 %v8654, 7
      %v8656 = vsub.s32 %v8653, %v8655
      %v8657 = vrot.slane %v8643, %v8656
      %v8658 = vcombine.high %v8650, %v8650
      %v8659 = vcombine.high %v8657, %v8657
      %v8661 = vunpack.c.l.s4 1966171168
      %v8662 = vunpack.c.0.s8 %v8661
      %v8663 = vlaneseq
      %v8664 = vshrl.u32 %v8663, 7
      %v8665 = vsub.s32 %v8662, %v8664
      %v8666 = vrot.slane %v8650, %v8665
      %v8668 = vunpack.c.l.s4 1966171168
      %v8669 = vunpack.c.0.s8 %v8668
      %v8670 = vlaneseq
      %v8671 = vshrl.u32 %v8670, 7
      %v8672 = vsub.s32 %v8669, %v8671
      %v8673 = vrot.slane %v8657, %v8672
      %v8675 = vunpack.c.l.s4 1966171168
      %v8676 = vunpack.c.0.s8 %v8675
      %v8677 = vlaneseq
      %v8678 = vshrl.u32 %v8677, 7
      %v8679 = vsub.s32 %v8676, %v8678
      %v8680 = vrot.slane %v8658, %v8679
      %v8682 = vunpack.c.l.s4 1966171168
      %v8683 = vunpack.c.0.s8 %v8682
      %v8684 = vlaneseq
      %v8685 = vshrl.u32 %v8684, 7
      %v8686 = vsub.s32 %v8683, %v8685
      %v8687 = vrot.slane %v8659, %v8686
      %v8688 = vcombine.high %v8666, %v8666
      %v8689 = vcombine.high %v8673, %v8673
      %v8690 = vcombine.high %v8680, %v8680
      %v8691 = vcombine.high %v8687, %v8687
      %v8692 = vcombine.high %v5668, %v5668
      %v8694 = vunpack.c.l.s4 1966171168
      %v8695 = vunpack.c.0.s8 %v8694
      %v8696 = vlaneseq
      %v8697 = vshrl.u32 %v8696, 7
      %v8698 = vsub.s32 %v8695, %v8697
      %v8699 = vrot.slane %v5668, %v8698
      %v8701 = vunpack.c.l.s4 1966171168
      %v8702 = vunpack.c.0.s8 %v8701
      %v8703 = vlaneseq
      %v8704 = vshrl.u32 %v8703, 7
      %v8705 = vsub.s32 %v8702, %v8704
      %v8706 = vrot.slane %v8692, %v8705
      %v8707 = vcombine.high %v8699, %v8699
      %v8708 = vcombine.high %v8706, %v8706
      %v8710 = vunpack.c.l.s4 1966171168
      %v8711 = vunpack.c.0.s8 %v8710
      %v8712 = vlaneseq
      %v8713 = vshrl.u32 %v8712, 7
      %v8714 = vsub.s32 %v8711, %v8713
      %v8715 = vrot.slane %v8699, %v8714
      %v8717 = vunpack.c.l.s4 1966171168
      %v8718 = vunpack.c.0.s8 %v8717
      %v8719 = vlaneseq
      %v8720 = vshrl.u32 %v8719, 7
      %v8721 = vsub.s32 %v8718, %v8720
      %v8722 = vrot.slane %v8706, %v8721
      %v8724 = vunpack.c.l.s4 1966171168
      %v8725 = vunpack.c.0.s8 %v8724
      %v8726 = vlaneseq
      %v8727 = vshrl.u32 %v8726, 7
      %v8728 = vsub.s32 %v8725, %v8727
      %v8729 = vrot.slane %v8707, %v8728
      %v8731 = vunpack.c.l.s4 1966171168
      %v8732 = vunpack.c.0.s8 %v8731
      %v8733 = vlaneseq
      %v8734 = vshrl.u32 %v8733, 7
      %v8735 = vsub.s32 %v8732, %v8734
      %v8736 = vrot.slane %v8708, %v8735
      %v8737 = vcombine.high %v8715, %v8715
      %v8738 = vcombine.high %v8722, %v8722
      %v8739 = vcombine.high %v8729, %v8729
      %v8740 = vcombine.high %v8736, %v8736
      %v8741 = vcombine.high %v5673, %v5673
      %v8743 = vunpack.c.l.s4 1966171168
      %v8744 = vunpack.c.0.s8 %v8743
      %v8745 = vlaneseq
      %v8746 = vshrl.u32 %v8745, 7
      %v8747 = vsub.s32 %v8744, %v8746
      %v8748 = vrot.slane %v5673, %v8747
      %v8750 = vunpack.c.l.s4 1966171168
      %v8751 = vunpack.c.0.s8 %v8750
      %v8752 = vlaneseq
      %v8753 = vshrl.u32 %v8752, 7
      %v8754 = vsub.s32 %v8751, %v8753
      %v8755 = vrot.slane %v8741, %v8754
      %v8756 = vcombine.high %v8748, %v8748
      %v8757 = vcombine.high %v8755, %v8755
      %v8759 = vunpack.c.l.s4 1966171168
      %v8760 = vunpack.c.0.s8 %v8759
      %v8761 = vlaneseq
      %v8762 = vshrl.u32 %v8761, 7
      %v8763 = vsub.s32 %v8760, %v8762
      %v8764 = vrot.slane %v8748, %v8763
      %v8766 = vunpack.c.l.s4 1966171168
      %v8767 = vunpack.c.0.s8 %v8766
      %v8768 = vlaneseq
      %v8769 = vshrl.u32 %v8768, 7
      %v8770 = vsub.s32 %v8767, %v8769
      %v8771 = vrot.slane %v8755, %v8770
      %v8773 = vunpack.c.l.s4 1966171168
      %v8774 = vunpack.c.0.s8 %v8773
      %v8775 = vlaneseq
      %v8776 = vshrl.u32 %v8775, 7
      %v8777 = vsub.s32 %v8774, %v8776
      %v8778 = vrot.slane %v8756, %v8777
      %v8780 = vunpack.c.l.s4 1966171168
      %v8781 = vunpack.c.0.s8 %v8780
      %v8782 = vlaneseq
      %v8783 = vshrl.u32 %v8782, 7
      %v8784 = vsub.s32 %v8781, %v8783
      %v8785 = vrot.slane %v8757, %v8784
      %v8786 = vcombine.high %v8764, %v8764
      %v8787 = vcombine.high %v8771, %v8771
      %v8788 = vcombine.high %v8778, %v8778
      %v8789 = vcombine.high %v8785, %v8785
      %v8790 = vlaneseq
      %v8791 = vshrl.u32 %v8790, 7
      %v8792 = vsub.s32 0, %v8791
      %v8793 = vrot.slane %v8421, %v8792
      %v8794 = vlaneseq
      %v8795 = vshrl.u32 %v8794, 7
      %v8796 = vsub.s32 0, %v8795
      %v8797 = vrot.slane %v8435, %v8796
      %v8798 = vlaneseq
      %v8799 = vshrl.u32 %v8798, 7
      %v8800 = vsub.s32 0, %v8799
      %v8801 = vrot.slane %v8443, %v8800
      %v8802 = vlaneseq
      %v8803 = vshrl.u32 %v8802, 7
      %v8804 = vsub.s32 0, %v8803
      %v8805 = vrot.slane %v8445, %v8804
      %v8806 = vlaneseq
      %v8807 = vshrl.u32 %v8806, 7
      %v8808 = vsub.s32 0, %v8807
      %v8809 = vrot.slane %v8428, %v8808
      %v8810 = vlaneseq
      %v8811 = vshrl.u32 %v8810, 7
      %v8812 = vsub.s32 0, %v8811
      %v8813 = vrot.slane %v8442, %v8812
      %v8814 = vlaneseq
      %v8815 = vshrl.u32 %v8814, 7
      %v8816 = vsub.s32 0, %v8815
      %v8817 = vrot.slane %v8444, %v8816
      %v8818 = vlaneseq
      %v8819 = vshrl.u32 %v8818, 7
      %v8820 = vsub.s32 0, %v8819
      %v8821 = vrot.slane %v8446, %v8820
      %v8822 = vlaneseq
      %v8823 = vshrl.u32 %v8822, 7
      %v8824 = vsub.s32 0, %v8823
      %v8825 = vrot.slane %v8470, %v8824
      %v8826 = vlaneseq
      %v8827 = vshrl.u32 %v8826, 7
      %v8828 = vsub.s32 0, %v8827
      %v8829 = vrot.slane %v8484, %v8828
      %v8830 = vlaneseq
      %v8831 = vshrl.u32 %v8830, 7
      %v8832 = vsub.s32 0, %v8831
      %v8833 = vrot.slane %v8492, %v8832
      %v8834 = vlaneseq
      %v8835 = vshrl.u32 %v8834, 7
      %v8836 = vsub.s32 0, %v8835
      %v8837 = vrot.slane %v8494, %v8836
      %v8838 = vlaneseq
      %v8839 = vshrl.u32 %v8838, 7
      %v8840 = vsub.s32 0, %v8839
      %v8841 = vrot.slane %v8477, %v8840
      %v8842 = vlaneseq
      %v8843 = vshrl.u32 %v8842, 7
      %v8844 = vsub.s32 0, %v8843
      %v8845 = vrot.slane %v8491, %v8844
      %v8846 = vlaneseq
      %v8847 = vshrl.u32 %v8846, 7
      %v8848 = vsub.s32 0, %v8847
      %v8849 = vrot.slane %v8493, %v8848
      %v8850 = vlaneseq
      %v8851 = vshrl.u32 %v8850, 7
      %v8852 = vsub.s32 0, %v8851
      %v8853 = vrot.slane %v8495, %v8852
      %v8854 = vlaneseq
      %v8855 = vshrl.u32 %v8854, 7
      %v8856 = vsub.s32 0, %v8855
      %v8857 = vrot.slane %v8519, %v8856
      %v8858 = vlaneseq
      %v8859 = vshrl.u32 %v8858, 7
      %v8860 = vsub.s32 0, %v8859
      %v8861 = vrot.slane %v8533, %v8860
      %v8862 = vlaneseq
      %v8863 = vshrl.u32 %v8862, 7
      %v8864 = vsub.s32 0, %v8863
      %v8865 = vrot.slane %v8541, %v8864
      %v8866 = vlaneseq
      %v8867 = vshrl.u32 %v8866, 7
      %v8868 = vsub.s32 0, %v8867
      %v8869 = vrot.slane %v8543, %v8868
      %v8870 = vlaneseq
      %v8871 = vshrl.u32 %v8870, 7
      %v8872 = vsub.s32 0, %v8871
      %v8873 = vrot.slane %v8526, %v8872
      %v8874 = vlaneseq
      %v8875 = vshrl.u32 %v8874, 7
      %v8876 = vsub.s32 0, %v8875
      %v8877 = vrot.slane %v8540, %v8876
      %v8878 = vlaneseq
      %v8879 = vshrl.u32 %v8878, 7
      %v8880 = vsub.s32 0, %v8879
      %v8881 = vrot.slane %v8542, %v8880
      %v8882 = vlaneseq
      %v8883 = vshrl.u32 %v8882, 7
      %v8884 = vsub.s32 0, %v8883
      %v8885 = vrot.slane %v8544, %v8884
      %v8886 = vlaneseq
      %v8887 = vshrl.u32 %v8886, 7
      %v8888 = vsub.s32 0, %v8887
      %v8889 = vrot.slane %v8568, %v8888
      %v8890 = vlaneseq
      %v8891 = vshrl.u32 %v8890, 7
      %v8892 = vsub.s32 0, %v8891
      %v8893 = vrot.slane %v8582, %v8892
      %v8894 = vlaneseq
      %v8895 = vshrl.u32 %v8894, 7
      %v8896 = vsub.s32 0, %v8895
      %v8897 = vrot.slane %v8590, %v8896
      %v8898 = vlaneseq
      %v8899 = vshrl.u32 %v8898, 7
      %v8900 = vsub.s32 0, %v8899
      %v8901 = vrot.slane %v8592, %v8900
      %v8902 = vlaneseq
      %v8903 = vshrl.u32 %v8902, 7
      %v8904 = vsub.s32 0, %v8903
      %v8905 = vrot.slane %v8575, %v8904
      %v8906 = vlaneseq
      %v8907 = vshrl.u32 %v8906, 7
      %v8908 = vsub.s32 0, %v8907
      %v8909 = vrot.slane %v8589, %v8908
      %v8910 = vlaneseq
      %v8911 = vshrl.u32 %v8910, 7
      %v8912 = vsub.s32 0, %v8911
      %v8913 = vrot.slane %v8591, %v8912
      %v8914 = vlaneseq
      %v8915 = vshrl.u32 %v8914, 7
      %v8916 = vsub.s32 0, %v8915
      %v8917 = vrot.slane %v8593, %v8916
      %v8918 = vlaneseq
      %v8919 = vshrl.u32 %v8918, 7
      %v8920 = vsub.s32 0, %v8919
      %v8921 = vrot.slane %v8617, %v8920
      %v8922 = vlaneseq
      %v8923 = vshrl.u32 %v8922, 7
      %v8924 = vsub.s32 0, %v8923
      %v8925 = vrot.slane %v8631, %v8924
      %v8926 = vlaneseq
      %v8927 = vshrl.u32 %v8926, 7
      %v8928 = vsub.s32 0, %v8927
      %v8929 = vrot.slane %v8639, %v8928
      %v8930 = vlaneseq
      %v8931 = vshrl.u32 %v8930, 7
      %v8932 = vsub.s32 0, %v8931
      %v8933 = vrot.slane %v8641, %v8932
      %v8934 = vlaneseq
      %v8935 = vshrl.u32 %v8934, 7
      %v8936 = vsub.s32 0, %v8935
      %v8937 = vrot.slane %v8624, %v8936
      %v8938 = vlaneseq
      %v8939 = vshrl.u32 %v8938, 7
      %v8940 = vsub.s32 0, %v8939
      %v8941 = vrot.slane %v8638, %v8940
      %v8942 = vlaneseq
      %v8943 = vshrl.u32 %v8942, 7
      %v8944 = vsub.s32 0, %v8943
      %v8945 = vrot.slane %v8640, %v8944
      %v8946 = vlaneseq
      %v8947 = vshrl.u32 %v8946, 7
      %v8948 = vsub.s32 0, %v8947
      %v8949 = vrot.slane %v8642, %v8948
      %v8950 = vlaneseq
      %v8951 = vshrl.u32 %v8950, 7
      %v8952 = vsub.s32 0, %v8951
      %v8953 = vrot.slane %v8666, %v8952
      %v8954 = vlaneseq
      %v8955 = vshrl.u32 %v8954, 7
      %v8956 = vsub.s32 0, %v8955
      %v8957 = vrot.slane %v8680, %v8956
      %v8958 = vlaneseq
      %v8959 = vshrl.u32 %v8958, 7
      %v8960 = vsub.s32 0, %v8959
      %v8961 = vrot.slane %v8688, %v8960
      %v8962 = vlaneseq
      %v8963 = vshrl.u32 %v8962, 7
      %v8964 = vsub.s32 0, %v8963
      %v8965 = vrot.slane %v8690, %v8964
      %v8966 = vlaneseq
      %v8967 = vshrl.u32 %v8966, 7
      %v8968 = vsub.s32 0, %v8967
      %v8969 = vrot.slane %v8673, %v8968
      %v8970 = vlaneseq
      %v8971 = vshrl.u32 %v8970, 7
      %v8972 = vsub.s32 0, %v8971
      %v8973 = vrot.slane %v8687, %v8972
      %v8974 = vlaneseq
      %v8975 = vshrl.u32 %v8974, 7
      %v8976 = vsub.s32 0, %v8975
      %v8977 = vrot.slane %v8689, %v8976
      %v8978 = vlaneseq
      %v8979 = vshrl.u32 %v8978, 7
      %v8980 = vsub.s32 0, %v8979
      %v8981 = vrot.slane %v8691, %v8980
      %v8982 = vlaneseq
      %v8983 = vshrl.u32 %v8982, 7
      %v8984 = vsub.s32 0, %v8983
      %v8985 = vrot.slane %v8715, %v8984
      %v8986 = vlaneseq
      %v8987 = vshrl.u32 %v8986, 7
      %v8988 = vsub.s32 0, %v8987
      %v8989 = vrot.slane %v8729, %v8988
      %v8990 = vlaneseq
      %v8991 = vshrl.u32 %v8990, 7
      %v8992 = vsub.s32 0, %v8991
      %v8993 = vrot.slane %v8737, %v8992
      %v8994 = vlaneseq
      %v8995 = vshrl.u32 %v8994, 7
      %v8996 = vsub.s32 0, %v8995
      %v8997 = vrot.slane %v8739, %v8996
      %v8998 = vlaneseq
      %v8999 = vshrl.u32 %v8998, 7
      %v9000 = vsub.s32 0, %v8999
      %v9001 = vrot.slane %v8722, %v9000
      %v9002 = vlaneseq
      %v9003 = vshrl.u32 %v9002, 7
      %v9004 = vsub.s32 0, %v9003
      %v9005 = vrot.slane %v8736, %v9004
      %v9006 = vlaneseq
      %v9007 = vshrl.u32 %v9006, 7
      %v9008 = vsub.s32 0, %v9007
      %v9009 = vrot.slane %v8738, %v9008
      %v9010 = vlaneseq
      %v9011 = vshrl.u32 %v9010, 7
      %v9012 = vsub.s32 0, %v9011
      %v9013 = vrot.slane %v8740, %v9012
      %v9014 = vlaneseq
      %v9015 = vshrl.u32 %v9014, 7
      %v9016 = vsub.s32 0, %v9015
      %v9017 = vrot.slane %v8764, %v9016
      %v9018 = vlaneseq
      %v9019 = vshrl.u32 %v9018, 7
      %v9020 = vsub.s32 0, %v9019
      %v9021 = vrot.slane %v8778, %v9020
      %v9022 = vlaneseq
      %v9023 = vshrl.u32 %v9022, 7
      %v9024 = vsub.s32 0, %v9023
      %v9025 = vrot.slane %v8786, %v9024
      %v9026 = vlaneseq
      %v9027 = vshrl.u32 %v9026, 7
      %v9028 = vsub.s32 0, %v9027
      %v9029 = vrot.slane %v8788, %v9028
      %v9030 = vlaneseq
      %v9031 = vshrl.u32 %v9030, 7
      %v9032 = vsub.s32 0, %v9031
      %v9033 = vrot.slane %v8771, %v9032
      %v9034 = vlaneseq
      %v9035 = vshrl.u32 %v9034, 7
      %v9036 = vsub.s32 0, %v9035
      %v9037 = vrot.slane %v8785, %v9036
      %v9038 = vlaneseq
      %v9039 = vshrl.u32 %v9038, 7
      %v9040 = vsub.s32 0, %v9039
      %v9041 = vrot.slane %v8787, %v9040
      %v9042 = vlaneseq
      %v9043 = vshrl.u32 %v9042, 7
      %v9044 = vsub.s32 0, %v9043
      %v9045 = vrot.slane %v8789, %v9044
      %v9110 = vmul.f32 %v6164, %v8793
      %v9111 = vmul.f32 %v6168, %v8793
      %v9112 = vmul.f32 %v6172, %v8793
      %v9113 = vmul.f32 %v6176, %v8793
      %v9114 = vmul.f32 %v6180, %v8793
      %v9115 = vmul.f32 %v6184, %v8793
      %v9116 = vmul.f32 %v6188, %v8793
      %v9117 = vmul.f32 %v6192, %v8793
      %v9118 = vmul.f32 %v6199, %v8797
      %v9119 = vmul.f32 %v6203, %v8797
      %v9120 = vmul.f32 %v6207, %v8797
      %v9121 = vmul.f32 %v6211, %v8797
      %v9122 = vmul.f32 %v6215, %v8797
      %v9123 = vmul.f32 %v6219, %v8797
      %v9124 = vmul.f32 %v6223, %v8797
      %v9125 = vmul.f32 %v6227, %v8797
      %v9126 = vmul.f32 %v6234, %v8801
      %v9127 = vmul.f32 %v6238, %v8801
      %v9128 = vmul.f32 %v6242, %v8801
      %v9129 = vmul.f32 %v6246, %v8801
      %v9130 = vmul.f32 %v6250, %v8801
      %v9131 = vmul.f32 %v6254, %v8801
      %v9132 = vmul.f32 %v6258, %v8801
      %v9133 = vmul.f32 %v6262, %v8801
      %v9134 = vmul.f32 %v6269, %v8805
      %v9135 = vmul.f32 %v6273, %v8805
      %v9136 = vmul.f32 %v6277, %v8805
      %v9137 = vmul.f32 %v6281, %v8805
      %v9138 = vmul.f32 %v6285, %v8805
      %v9139 = vmul.f32 %v6289, %v8805
      %v9140 = vmul.f32 %v6293, %v8805
      %v9141 = vmul.f32 %v6297, %v8805
      %v9142 = vmul.f32 %v6304, %v8809
      %v9143 = vmul.f32 %v6308, %v8809
      %v9144 = vmul.f32 %v6312, %v8809
      %v9145 = vmul.f32 %v6316, %v8809
      %v9146 = vmul.f32 %v6320, %v8809
      %v9147 = vmul.f32 %v6324, %v8809
      %v9148 = vmul.f32 %v6328, %v8809
      %v9149 = vmul.f32 %v6332, %v8809
      %v9150 = vmul.f32 %v6339, %v8813
      %v9151 = vmul.f32 %v6343, %v8813
      %v9152 = vmul.f32 %v6347, %v8813
      %v9153 = vmul.f32 %v6351, %v8813
      %v9154 = vmul.f32 %v6355, %v8813
      %v9155 = vmul.f32 %v6359, %v8813
      %v9156 = vmul.f32 %v6363, %v8813
      %v9157 = vmul.f32 %v6367, %v8813
      %v9158 = vmul.f32 %v6374, %v8817
      %v9159 = vmul.f32 %v6378, %v8817
      %v9160 = vmul.f32 %v6382, %v8817
      %v9161 = vmul.f32 %v6386, %v8817
      %v9162 = vmul.f32 %v6390, %v8817
      %v9163 = vmul.f32 %v6394, %v8817
      %v9164 = vmul.f32 %v6398, %v8817
      %v9165 = vmul.f32 %v6402, %v8817
      %v9166 = vmul.f32 %v6409, %v8821
      %v9167 = vmul.f32 %v6413, %v8821
      %v9168 = vmul.f32 %v6417, %v8821
      %v9169 = vmul.f32 %v6421, %v8821
      %v9170 = vmul.f32 %v6425, %v8821
      %v9171 = vmul.f32 %v6429, %v8821
      %v9172 = vmul.f32 %v6433, %v8821
      %v9173 = vmul.f32 %v6437, %v8821
      %v9174 = vmul.f32 %v6444, %v8825
      %v9175 = vmul.f32 %v6448, %v8825
      %v9176 = vmul.f32 %v6452, %v8825
      %v9177 = vmul.f32 %v6456, %v8825
      %v9178 = vmul.f32 %v6460, %v8825
      %v9179 = vmul.f32 %v6464, %v8825
      %v9180 = vmul.f32 %v6468, %v8825
      %v9181 = vmul.f32 %v6472, %v8825
      %v9182 = vmul.f32 %v6479, %v8829
      %v9183 = vmul.f32 %v6483, %v8829
      %v9184 = vmul.f32 %v6487, %v8829
      %v9185 = vmul.f32 %v6491, %v8829
      %v9186 = vmul.f32 %v6495, %v8829
      %v9187 = vmul.f32 %v6499, %v8829
      %v9188 = vmul.f32 %v6503, %v8829
      %v9189 = vmul.f32 %v6507, %v8829
      %v9190 = vmul.f32 %v6514, %v8833
      %v9191 = vmul.f32 %v6518, %v8833
      %v9192 = vmul.f32 %v6522, %v8833
      %v9193 = vmul.f32 %v6526, %v8833
      %v9194 = vmul.f32 %v6530, %v8833
      %v9195 = vmul.f32 %v6534, %v8833
      %v9196 = vmul.f32 %v6538, %v8833
      %v9197 = vmul.f32 %v6542, %v8833
      %v9198 = vmul.f32 %v6549, %v8837
      %v9199 = vmul.f32 %v6553, %v8837
      %v9200 = vmul.f32 %v6557, %v8837
      %v9201 = vmul.f32 %v6561, %v8837
      %v9202 = vmul.f32 %v6565, %v8837
      %v9203 = vmul.f32 %v6569, %v8837
      %v9204 = vmul.f32 %v6573, %v8837
      %v9205 = vmul.f32 %v6577, %v8837
      %v9206 = vmul.f32 %v6584, %v8841
      %v9207 = vmul.f32 %v6588, %v8841
      %v9208 = vmul.f32 %v6592, %v8841
      %v9209 = vmul.f32 %v6596, %v8841
      %v9210 = vmul.f32 %v6600, %v8841
      %v9211 = vmul.f32 %v6604, %v8841
      %v9212 = vmul.f32 %v6608, %v8841
      %v9213 = vmul.f32 %v6612, %v8841
      %v9214 = vmul.f32 %v6619, %v8845
      %v9215 = vmul.f32 %v6623, %v8845
      %v9216 = vmul.f32 %v6627, %v8845
      %v9217 = vmul.f32 %v6631, %v8845
      %v9218 = vmul.f32 %v6635, %v8845
      %v9219 = vmul.f32 %v6639, %v8845
      %v9220 = vmul.f32 %v6643, %v8845
      %v9221 = vmul.f32 %v6647, %v8845
      %v9222 = vmul.f32 %v6654, %v8849
      %v9223 = vmul.f32 %v6658, %v8849
      %v9224 = vmul.f32 %v6662, %v8849
      %v9225 = vmul.f32 %v6666, %v8849
      %v9226 = vmul.f32 %v6670, %v8849
      %v9227 = vmul.f32 %v6674, %v8849
      %v9228 = vmul.f32 %v6678, %v8849
      %v9229 = vmul.f32 %v6682, %v8849
      %v9230 = vmul.f32 %v6689, %v8853
      %v9231 = vmul.f32 %v6693, %v8853
      %v9232 = vmul.f32 %v6697, %v8853
      %v9233 = vmul.f32 %v6701, %v8853
      %v9234 = vmul.f32 %v6705, %v8853
      %v9235 = vmul.f32 %v6709, %v8853
      %v9236 = vmul.f32 %v6713, %v8853
      %v9237 = vmul.f32 %v6717, %v8853
      %v9238 = vmul.f32 %v6724, %v8857
      %v9239 = vmul.f32 %v6728, %v8857
      %v9240 = vmul.f32 %v6732, %v8857
      %v9241 = vmul.f32 %v6736, %v8857
      %v9242 = vmul.f32 %v6740, %v8857
      %v9243 = vmul.f32 %v6744, %v8857
      %v9244 = vmul.f32 %v6748, %v8857
      %v9245 = vmul.f32 %v6752, %v8857
      %v9246 = vmul.f32 %v6759, %v8861
      %v9247 = vmul.f32 %v6763, %v8861
      %v9248 = vmul.f32 %v6767, %v8861
      %v9249 = vmul.f32 %v6771, %v8861
      %v9250 = vmul.f32 %v6775, %v8861
      %v9251 = vmul.f32 %v6779, %v8861
      %v9252 = vmul.f32 %v6783, %v8861
      %v9253 = vmul.f32 %v6787, %v8861
      %v9254 = vmul.f32 %v6794, %v8865
      %v9255 = vmul.f32 %v6798, %v8865
      %v9256 = vmul.f32 %v6802, %v8865
      %v9257 = vmul.f32 %v6806, %v8865
      %v9258 = vmul.f32 %v6810, %v8865
      %v9259 = vmul.f32 %v6814, %v8865
      %v9260 = vmul.f32 %v6818, %v8865
      %v9261 = vmul.f32 %v6822, %v8865
      %v9262 = vmul.f32 %v6829, %v8869
      %v9263 = vmul.f32 %v6833, %v8869
      %v9264 = vmul.f32 %v6837, %v8869
      %v9265 = vmul.f32 %v6841, %v8869
      %v9266 = vmul.f32 %v6845, %v8869
      %v9267 = vmul.f32 %v6849, %v8869
      %v9268 = vmul.f32 %v6853, %v8869
      %v9269 = vmul.f32 %v6857, %v8869
      %v9270 = vmul.f32 %v6864, %v8873
      %v9271 = vmul.f32 %v6868, %v8873
      %v9272 = vmul.f32 %v6872, %v8873
      %v9273 = vmul.f32 %v6876, %v8873
      %v9274 = vmul.f32 %v6880, %v8873
      %v9275 = vmul.f32 %v6884, %v8873
      %v9276 = vmul.f32 %v6888, %v8873
      %v9277 = vmul.f32 %v6892, %v8873
      %v9278 = vmul.f32 %v6899, %v8877
      %v9279 = vmul.f32 %v6903, %v8877
      %v9280 = vmul.f32 %v6907, %v8877
      %v9281 = vmul.f32 %v6911, %v8877
      %v9282 = vmul.f32 %v6915, %v8877
      %v9283 = vmul.f32 %v6919, %v8877
      %v9284 = vmul.f32 %v6923, %v8877
      %v9285 = vmul.f32 %v6927, %v8877
      %v9286 = vmul.f32 %v6934, %v8881
      %v9287 = vmul.f32 %v6938, %v8881
      %v9288 = vmul.f32 %v6942, %v8881
      %v9289 = vmul.f32 %v6946, %v8881
      %v9290 = vmul.f32 %v6950, %v8881
      %v9291 = vmul.f32 %v6954, %v8881
      %v9292 = vmul.f32 %v6958, %v8881
      %v9293 = vmul.f32 %v6962, %v8881
      %v9294 = vmul.f32 %v6969, %v8885
      %v9295 = vmul.f32 %v6973, %v8885
      %v9296 = vmul.f32 %v6977, %v8885
      %v9297 = vmul.f32 %v6981, %v8885
      %v9298 = vmul.f32 %v6985, %v8885
      %v9299 = vmul.f32 %v6989, %v8885
      %v9300 = vmul.f32 %v6993, %v8885
      %v9301 = vmul.f32 %v6997, %v8885
      %v9302 = vmul.f32 %v7004, %v8889
      %v9303 = vmul.f32 %v7008, %v8889
      %v9304 = vmul.f32 %v7012, %v8889
      %v9305 = vmul.f32 %v7016, %v8889
      %v9306 = vmul.f32 %v7020, %v8889
      %v9307 = vmul.f32 %v7024, %v8889
      %v9308 = vmul.f32 %v7028, %v8889
      %v9309 = vmul.f32 %v7032, %v8889
      %v9310 = vmul.f32 %v7039, %v8893
      %v9311 = vmul.f32 %v7043, %v8893
      %v9312 = vmul.f32 %v7047, %v8893
      %v9313 = vmul.f32 %v7051, %v8893
      %v9314 = vmul.f32 %v7055, %v8893
      %v9315 = vmul.f32 %v7059, %v8893
      %v9316 = vmul.f32 %v7063, %v8893
      %v9317 = vmul.f32 %v7067, %v8893
      %v9318 = vmul.f32 %v7074, %v8897
      %v9319 = vmul.f32 %v7078, %v8897
      %v9320 = vmul.f32 %v7082, %v8897
      %v9321 = vmul.f32 %v7086, %v8897
      %v9322 = vmul.f32 %v7090, %v8897
      %v9323 = vmul.f32 %v7094, %v8897
      %v9324 = vmul.f32 %v7098, %v8897
      %v9325 = vmul.f32 %v7102, %v8897
      %v9326 = vmul.f32 %v7109, %v8901
      %v9327 = vmul.f32 %v7113, %v8901
      %v9328 = vmul.f32 %v7117, %v8901
      %v9329 = vmul.f32 %v7121, %v8901
      %v9330 = vmul.f32 %v7125, %v8901
      %v9331 = vmul.f32 %v7129, %v8901
      %v9332 = vmul.f32 %v7133, %v8901
      %v9333 = vmul.f32 %v7137, %v8901
      %v9334 = vmul.f32 %v7144, %v8905
      %v9335 = vmul.f32 %v7148, %v8905
      %v9336 = vmul.f32 %v7152, %v8905
      %v9337 = vmul.f32 %v7156, %v8905
      %v9338 = vmul.f32 %v7160, %v8905
      %v9339 = vmul.f32 %v7164, %v8905
      %v9340 = vmul.f32 %v7168, %v8905
      %v9341 = vmul.f32 %v7172, %v8905
      %v9342 = vmul.f32 %v7179, %v8909
      %v9343 = vmul.f32 %v7183, %v8909
      %v9344 = vmul.f32 %v7187, %v8909
      %v9345 = vmul.f32 %v7191, %v8909
      %v9346 = vmul.f32 %v7195, %v8909
      %v9347 = vmul.f32 %v7199, %v8909
      %v9348 = vmul.f32 %v7203, %v8909
      %v9349 = vmul.f32 %v7207, %v8909
      %v9350 = vmul.f32 %v7214, %v8913
      %v9351 = vmul.f32 %v7218, %v8913
      %v9352 = vmul.f32 %v7222, %v8913
      %v9353 = vmul.f32 %v7226, %v8913
      %v9354 = vmul.f32 %v7230, %v8913
      %v9355 = vmul.f32 %v7234, %v8913
      %v9356 = vmul.f32 %v7238, %v8913
      %v9357 = vmul.f32 %v7242, %v8913
      %v9358 = vmul.f32 %v7249, %v8917
      %v9359 = vmul.f32 %v7253, %v8917
      %v9360 = vmul.f32 %v7257, %v8917
      %v9361 = vmul.f32 %v7261, %v8917
      %v9362 = vmul.f32 %v7265, %v8917
      %v9363 = vmul.f32 %v7269, %v8917
      %v9364 = vmul.f32 %v7273, %v8917
      %v9365 = vmul.f32 %v7277, %v8917
      %v9366 = vmul.f32 %v7284, %v8921
      %v9367 = vmul.f32 %v7288, %v8921
      %v9368 = vmul.f32 %v7292, %v8921
      %v9369 = vmul.f32 %v7296, %v8921
      %v9370 = vmul.f32 %v7300, %v8921
      %v9371 = vmul.f32 %v7304, %v8921
      %v9372 = vmul.f32 %v7308, %v8921
      %v9373 = vmul.f32 %v7312, %v8921
      %v9374 = vmul.f32 %v7319, %v8925
      %v9375 = vmul.f32 %v7323, %v8925
      %v9376 = vmul.f32 %v7327, %v8925
      %v9377 = vmul.f32 %v7331, %v8925
      %v9378 = vmul.f32 %v7335, %v8925
      %v9379 = vmul.f32 %v7339, %v8925
      %v9380 = vmul.f32 %v7343, %v8925
      %v9381 = vmul.f32 %v7347, %v8925
      %v9382 = vmul.f32 %v7354, %v8929
      %v9383 = vmul.f32 %v7358, %v8929
      %v9384 = vmul.f32 %v7362, %v8929
      %v9385 = vmul.f32 %v7366, %v8929
      %v9386 = vmul.f32 %v7370, %v8929
      %v9387 = vmul.f32 %v7374, %v8929
      %v9388 = vmul.f32 %v7378, %v8929
      %v9389 = vmul.f32 %v7382, %v8929
      %v9390 = vmul.f32 %v7389, %v8933
      %v9391 = vmul.f32 %v7393, %v8933
      %v9392 = vmul.f32 %v7397, %v8933
      %v9393 = vmul.f32 %v7401, %v8933
      %v9394 = vmul.f32 %v7405, %v8933
      %v9395 = vmul.f32 %v7409, %v8933
      %v9396 = vmul.f32 %v7413, %v8933
      %v9397 = vmul.f32 %v7417, %v8933
      %v9398 = vmul.f32 %v7424, %v8937
      %v9399 = vmul.f32 %v7428, %v8937
      %v9400 = vmul.f32 %v7432, %v8937
      %v9401 = vmul.f32 %v7436, %v8937
      %v9402 = vmul.f32 %v7440, %v8937
      %v9403 = vmul.f32 %v7444, %v8937
      %v9404 = vmul.f32 %v7448, %v8937
      %v9405 = vmul.f32 %v7452, %v8937
      %v9406 = vmul.f32 %v7459, %v8941
      %v9407 = vmul.f32 %v7463, %v8941
      %v9408 = vmul.f32 %v7467, %v8941
      %v9409 = vmul.f32 %v7471, %v8941
      %v9410 = vmul.f32 %v7475, %v8941
      %v9411 = vmul.f32 %v7479, %v8941
      %v9412 = vmul.f32 %v7483, %v8941
      %v9413 = vmul.f32 %v7487, %v8941
      %v9414 = vmul.f32 %v7494, %v8945
      %v9415 = vmul.f32 %v7498, %v8945
      %v9416 = vmul.f32 %v7502, %v8945
      %v9417 = vmul.f32 %v7506, %v8945
      %v9418 = vmul.f32 %v7510, %v8945
      %v9419 = vmul.f32 %v7514, %v8945
      %v9420 = vmul.f32 %v7518, %v8945
      %v9421 = vmul.f32 %v7522, %v8945
      %v9422 = vmul.f32 %v7529, %v8949
      %v9423 = vmul.f32 %v7533, %v8949
      %v9424 = vmul.f32 %v7537, %v8949
      %v9425 = vmul.f32 %v7541, %v8949
      %v9426 = vmul.f32 %v7545, %v8949
      %v9427 = vmul.f32 %v7549, %v8949
      %v9428 = vmul.f32 %v7553, %v8949
      %v9429 = vmul.f32 %v7557, %v8949
      %v9430 = vmul.f32 %v7564, %v8953
      %v9431 = vmul.f32 %v7568, %v8953
      %v9432 = vmul.f32 %v7572, %v8953
      %v9433 = vmul.f32 %v7576, %v8953
      %v9434 = vmul.f32 %v7580, %v8953
      %v9435 = vmul.f32 %v7584, %v8953
      %v9436 = vmul.f32 %v7588, %v8953
      %v9437 = vmul.f32 %v7592, %v8953
      %v9438 = vmul.f32 %v7599, %v8957
      %v9439 = vmul.f32 %v7603, %v8957
      %v9440 = vmul.f32 %v7607, %v8957
      %v9441 = vmul.f32 %v7611, %v8957
      %v9442 = vmul.f32 %v7615, %v8957
      %v9443 = vmul.f32 %v7619, %v8957
      %v9444 = vmul.f32 %v7623, %v8957
      %v9445 = vmul.f32 %v7627, %v8957
      %v9446 = vmul.f32 %v7634, %v8961
      %v9447 = vmul.f32 %v7638, %v8961
      %v9448 = vmul.f32 %v7642, %v8961
      %v9449 = vmul.f32 %v7646, %v8961
      %v9450 = vmul.f32 %v7650, %v8961
      %v9451 = vmul.f32 %v7654, %v8961
      %v9452 = vmul.f32 %v7658, %v8961
      %v9453 = vmul.f32 %v7662, %v8961
      %v9454 = vmul.f32 %v7669, %v8965
      %v9455 = vmul.f32 %v7673, %v8965
      %v9456 = vmul.f32 %v7677, %v8965
      %v9457 = vmul.f32 %v7681, %v8965
      %v9458 = vmul.f32 %v7685, %v8965
      %v9459 = vmul.f32 %v7689, %v8965
      %v9460 = vmul.f32 %v7693, %v8965
      %v9461 = vmul.f32 %v7697, %v8965
      %v9462 = vmul.f32 %v7704, %v8969
      %v9463 = vmul.f32 %v7708, %v8969
      %v9464 = vmul.f32 %v7712, %v8969
      %v9465 = vmul.f32 %v7716, %v8969
      %v9466 = vmul.f32 %v7720, %v8969
      %v9467 = vmul.f32 %v7724, %v8969
      %v9468 = vmul.f32 %v7728, %v8969
      %v9469 = vmul.f32 %v7732, %v8969
      %v9470 = vmul.f32 %v7739, %v8973
      %v9471 = vmul.f32 %v7743, %v8973
      %v9472 = vmul.f32 %v7747, %v8973
      %v9473 = vmul.f32 %v7751, %v8973
      %v9474 = vmul.f32 %v7755, %v8973
      %v9475 = vmul.f32 %v7759, %v8973
      %v9476 = vmul.f32 %v7763, %v8973
      %v9477 = vmul.f32 %v7767, %v8973
      %v9478 = vmul.f32 %v7774, %v8977
      %v9479 = vmul.f32 %v7778, %v8977
      %v9480 = vmul.f32 %v7782, %v8977
      %v9481 = vmul.f32 %v7786, %v8977
      %v9482 = vmul.f32 %v7790, %v8977
      %v9483 = vmul.f32 %v7794, %v8977
      %v9484 = vmul.f32 %v7798, %v8977
      %v9485 = vmul.f32 %v7802, %v8977
      %v9486 = vmul.f32 %v7809, %v8981
      %v9487 = vmul.f32 %v7813, %v8981
      %v9488 = vmul.f32 %v7817, %v8981
      %v9489 = vmul.f32 %v7821, %v8981
      %v9490 = vmul.f32 %v7825, %v8981
      %v9491 = vmul.f32 %v7829, %v8981
      %v9492 = vmul.f32 %v7833, %v8981
      %v9493 = vmul.f32 %v7837, %v8981
      %v9494 = vmul.f32 %v7844, %v8985
      %v9495 = vmul.f32 %v7848, %v8985
      %v9496 = vmul.f32 %v7852, %v8985
      %v9497 = vmul.f32 %v7856, %v8985
      %v9498 = vmul.f32 %v7860, %v8985
      %v9499 = vmul.f32 %v7864, %v8985
      %v9500 = vmul.f32 %v7868, %v8985
      %v9501 = vmul.f32 %v7872, %v8985
      %v9502 = vmul.f32 %v7879, %v8989
      %v9503 = vmul.f32 %v7883, %v8989
      %v9504 = vmul.f32 %v7887, %v8989
      %v9505 = vmul.f32 %v7891, %v8989
      %v9506 = vmul.f32 %v7895, %v8989
      %v9507 = vmul.f32 %v7899, %v8989
      %v9508 = vmul.f32 %v7903, %v8989
      %v9509 = vmul.f32 %v7907, %v8989
      %v9510 = vmul.f32 %v7914, %v8993
      %v9511 = vmul.f32 %v7918, %v8993
      %v9512 = vmul.f32 %v7922, %v8993
      %v9513 = vmul.f32 %v7926, %v8993
      %v9514 = vmul.f32 %v7930, %v8993
      %v9515 = vmul.f32 %v7934, %v8993
      %v9516 = vmul.f32 %v7938, %v8993
      %v9517 = vmul.f32 %v7942, %v8993
      %v9518 = vmul.f32 %v7949, %v8997
      %v9519 = vmul.f32 %v7953, %v8997
      %v9520 = vmul.f32 %v7957, %v8997
      %v9521 = vmul.f32 %v7961, %v8997
      %v9522 = vmul.f32 %v7965, %v8997
      %v9523 = vmul.f32 %v7969, %v8997
      %v9524 = vmul.f32 %v7973, %v8997
      %v9525 = vmul.f32 %v7977, %v8997
      %v9526 = vmul.f32 %v7984, %v9001
      %v9527 = vmul.f32 %v7988, %v9001
      %v9528 = vmul.f32 %v7992, %v9001
      %v9529 = vmul.f32 %v7996, %v9001
      %v9530 = vmul.f32 %v8000, %v9001
      %v9531 = vmul.f32 %v8004, %v9001
      %v9532 = vmul.f32 %v8008, %v9001
      %v9533 = vmul.f32 %v8012, %v9001
      %v9534 = vmul.f32 %v8019, %v9005
      %v9535 = vmul.f32 %v8023, %v9005
      %v9536 = vmul.f32 %v8027, %v9005
      %v9537 = vmul.f32 %v8031, %v9005
      %v9538 = vmul.f32 %v8035, %v9005
      %v9539 = vmul.f32 %v8039, %v9005
      %v9540 = vmul.f32 %v8043, %v9005
      %v9541 = vmul.f32 %v8047, %v9005
      %v9542 = vmul.f32 %v8054, %v9009
      %v9543 = vmul.f32 %v8058, %v9009
      %v9544 = vmul.f32 %v8062, %v9009
      %v9545 = vmul.f32 %v8066, %v9009
      %v9546 = vmul.f32 %v8070, %v9009
      %v9547 = vmul.f32 %v8074, %v9009
      %v9548 = vmul.f32 %v8078, %v9009
      %v9549 = vmul.f32 %v8082, %v9009
      %v9550 = vmul.f32 %v8089, %v9013
      %v9551 = vmul.f32 %v8093, %v9013
      %v9552 = vmul.f32 %v8097, %v9013
      %v9553 = vmul.f32 %v8101, %v9013
      %v9554 = vmul.f32 %v8105, %v9013
      %v9555 = vmul.f32 %v8109, %v9013
      %v9556 = vmul.f32 %v8113, %v9013
      %v9557 = vmul.f32 %v8117, %v9013
      %v9558 = vmul.f32 %v8124, %v9017
      %v9559 = vmul.f32 %v8128, %v9017
      %v9560 = vmul.f32 %v8132, %v9017
      %v9561 = vmul.f32 %v8136, %v9017
      %v9562 = vmul.f32 %v8140, %v9017
      %v9563 = vmul.f32 %v8144, %v9017
      %v9564 = vmul.f32 %v8148, %v9017
      %v9565 = vmul.f32 %v8152, %v9017
      %v9566 = vmul.f32 %v8159, %v9021
      %v9567 = vmul.f32 %v8163, %v9021
      %v9568 = vmul.f32 %v8167, %v9021
      %v9569 = vmul.f32 %v8171, %v9021
      %v9570 = vmul.f32 %v8175, %v9021
      %v9571 = vmul.f32 %v8179, %v9021
      %v9572 = vmul.f32 %v8183, %v9021
      %v9573 = vmul.f32 %v8187, %v9021
      %v9574 = vmul.f32 %v8194, %v9025
      %v9575 = vmul.f32 %v8198, %v9025
      %v9576 = vmul.f32 %v8202, %v9025
      %v9577 = vmul.f32 %v8206, %v9025
      %v9578 = vmul.f32 %v8210, %v9025
      %v9579 = vmul.f32 %v8214, %v9025
      %v9580 = vmul.f32 %v8218, %v9025
      %v9581 = vmul.f32 %v8222, %v9025
      %v9582 = vmul.f32 %v8229, %v9029
      %v9583 = vmul.f32 %v8233, %v9029
      %v9584 = vmul.f32 %v8237, %v9029
      %v9585 = vmul.f32 %v8241, %v9029
      %v9586 = vmul.f32 %v8245, %v9029
      %v9587 = vmul.f32 %v8249, %v9029
      %v9588 = vmul.f32 %v8253, %v9029
      %v9589 = vmul.f32 %v8257, %v9029
      %v9590 = vmul.f32 %v8264, %v9033
      %v9591 = vmul.f32 %v8268, %v9033
      %v9592 = vmul.f32 %v8272, %v9033
      %v9593 = vmul.f32 %v8276, %v9033
      %v9594 = vmul.f32 %v8280, %v9033
      %v9595 = vmul.f32 %v8284, %v9033
      %v9596 = vmul.f32 %v8288, %v9033
      %v9597 = vmul.f32 %v8292, %v9033
      %v9598 = vmul.f32 %v8299, %v9037
      %v9599 = vmul.f32 %v8303, %v9037
      %v9600 = vmul.f32 %v8307, %v9037
      %v9601 = vmul.f32 %v8311, %v9037
      %v9602 = vmul.f32 %v8315, %v9037
      %v9603 = vmul.f32 %v8319, %v9037
      %v9604 = vmul.f32 %v8323, %v9037
      %v9605 = vmul.f32 %v8327, %v9037
      %v9606 = vmul.f32 %v8334, %v9041
      %v9607 = vmul.f32 %v8338, %v9041
      %v9608 = vmul.f32 %v8342, %v9041
      %v9609 = vmul.f32 %v8346, %v9041
      %v9610 = vmul.f32 %v8350, %v9041
      %v9611 = vmul.f32 %v8354, %v9041
      %v9612 = vmul.f32 %v8358, %v9041
      %v9613 = vmul.f32 %v8362, %v9041
      %v9614 = vmul.f32 %v8369, %v9045
      %v9615 = vmul.f32 %v8373, %v9045
      %v9616 = vmul.f32 %v8377, %v9045
      %v9617 = vmul.f32 %v8381, %v9045
      %v9618 = vmul.f32 %v8385, %v9045
      %v9619 = vmul.f32 %v8389, %v9045
      %v9620 = vmul.f32 %v8393, %v9045
      %v9621 = vmul.f32 %v8397, %v9045
      %v9622 = vsel %vm4304, %v9110, -inf
      %v9623 = vsel %vm4304, %v9118, -inf
      %v9624 = vmax.f32 %v9622, %v9623
      %v9625 = vsel %vm4304, %v9126, -inf
      %v9626 = vmax.f32 %v9624, %v9625
      %v9627 = vsel %vm4304, %v9134, -inf
      %v9628 = vmax.f32 %v9626, %v9627
      %v9629 = vsel %vm4304, %v9142, -inf
      %v9630 = vmax.f32 %v9628, %v9629
      %v9631 = vsel %vm4304, %v9150, -inf
      %v9632 = vmax.f32 %v9630, %v9631
      %v9633 = vsel %vm4304, %v9158, -inf
      %v9634 = vmax.f32 %v9632, %v9633
      %v9635 = vsel %vm4304, %v9166, -inf
      %v9636 = vmax.f32 %v9634, %v9635
      %v9637 = vsel %vm4304, %v9174, -inf
      %v9638 = vmax.f32 %v9636, %v9637
      %v9639 = vsel %vm4304, %v9182, -inf
      %v9640 = vmax.f32 %v9638, %v9639
      %v9641 = vsel %vm4304, %v9190, -inf
      %v9642 = vmax.f32 %v9640, %v9641
      %v9643 = vsel %vm4304, %v9198, -inf
      %v9644 = vmax.f32 %v9642, %v9643
      %v9645 = vsel %vm4304, %v9206, -inf
      %v9646 = vmax.f32 %v9644, %v9645
      %v9647 = vsel %vm4304, %v9214, -inf
      %v9648 = vmax.f32 %v9646, %v9647
      %v9649 = vsel %vm4304, %v9222, -inf
      %v9650 = vmax.f32 %v9648, %v9649
      %v9651 = vsel %vm4304, %v9230, -inf
      %v9652 = vmax.f32 %v9650, %v9651
      %v9653 = vsel %vm4304, %v9238, -inf
      %v9654 = vmax.f32 %v9652, %v9653
      %v9655 = vsel %vm4304, %v9246, -inf
      %v9656 = vmax.f32 %v9654, %v9655
      %v9657 = vsel %vm4304, %v9254, -inf
      %v9658 = vmax.f32 %v9656, %v9657
      %v9659 = vsel %vm4304, %v9262, -inf
      %v9660 = vmax.f32 %v9658, %v9659
      %v9661 = vsel %vm4304, %v9270, -inf
      %v9662 = vmax.f32 %v9660, %v9661
      %v9663 = vsel %vm4304, %v9278, -inf
      %v9664 = vmax.f32 %v9662, %v9663
      %v9665 = vsel %vm4304, %v9286, -inf
      %v9666 = vmax.f32 %v9664, %v9665
      %v9667 = vsel %vm4304, %v9294, -inf
      %v9668 = vmax.f32 %v9666, %v9667
      %v9669 = vsel %vm4304, %v9302, -inf
      %v9670 = vmax.f32 %v9668, %v9669
      %v9671 = vsel %vm4304, %v9310, -inf
      %v9672 = vmax.f32 %v9670, %v9671
      %v9673 = vsel %vm4304, %v9318, -inf
      %v9674 = vmax.f32 %v9672, %v9673
      %v9675 = vsel %vm4304, %v9326, -inf
      %v9676 = vmax.f32 %v9674, %v9675
      %v9677 = vsel %vm4304, %v9334, -inf
      %v9678 = vmax.f32 %v9676, %v9677
      %v9679 = vsel %vm4304, %v9342, -inf
      %v9680 = vmax.f32 %v9678, %v9679
      %v9681 = vsel %vm4304, %v9350, -inf
      %v9682 = vmax.f32 %v9680, %v9681
      %v9683 = vsel %vm4304, %v9358, -inf
      %v9684 = vmax.f32 %v9682, %v9683
      %v9685 = vsel %vm4304, %v9366, -inf
      %v9686 = vmax.f32 %v9684, %v9685
      %v9687 = vsel %vm4304, %v9374, -inf
      %v9688 = vmax.f32 %v9686, %v9687
      %v9689 = vsel %vm4304, %v9382, -inf
      %v9690 = vmax.f32 %v9688, %v9689
      %v9691 = vsel %vm4304, %v9390, -inf
      %v9692 = vmax.f32 %v9690, %v9691
      %v9693 = vsel %vm4304, %v9398, -inf
      %v9694 = vmax.f32 %v9692, %v9693
      %v9695 = vsel %vm4304, %v9406, -inf
      %v9696 = vmax.f32 %v9694, %v9695
      %v9697 = vsel %vm4304, %v9414, -inf
      %v9698 = vmax.f32 %v9696, %v9697
      %v9699 = vsel %vm4304, %v9422, -inf
      %v9700 = vmax.f32 %v9698, %v9699
      %v9701 = vsel %vm4304, %v9430, -inf
      %v9702 = vmax.f32 %v9700, %v9701
      %v9703 = vsel %vm4304, %v9438, -inf
      %v9704 = vmax.f32 %v9702, %v9703
      %v9705 = vsel %vm4304, %v9446, -inf
      %v9706 = vmax.f32 %v9704, %v9705
      %v9707 = vsel %vm4304, %v9454, -inf
      %v9708 = vmax.f32 %v9706, %v9707
      %v9709 = vsel %vm4304, %v9462, -inf
      %v9710 = vmax.f32 %v9708, %v9709
      %v9711 = vsel %vm4304, %v9470, -inf
      %v9712 = vmax.f32 %v9710, %v9711
      %v9713 = vsel %vm4304, %v9478, -inf
      %v9714 = vmax.f32 %v9712, %v9713
      %v9715 = vsel %vm4304, %v9486, -inf
      %v9716 = vmax.f32 %v9714, %v9715
      %v9717 = vsel %vm4304, %v9494, -inf
      %v9718 = vmax.f32 %v9716, %v9717
      %v9719 = vsel %vm4304, %v9502, -inf
      %v9720 = vmax.f32 %v9718, %v9719
      %v9721 = vsel %vm4304, %v9510, -inf
      %v9722 = vmax.f32 %v9720, %v9721
      %v9723 = vsel %vm4304, %v9518, -inf
      %v9724 = vmax.f32 %v9722, %v9723
      %v9725 = vsel %vm4304, %v9526, -inf
      %v9726 = vmax.f32 %v9724, %v9725
      %v9727 = vsel %vm4304, %v9534, -inf
      %v9728 = vmax.f32 %v9726, %v9727
      %v9729 = vsel %vm4304, %v9542, -inf
      %v9730 = vmax.f32 %v9728, %v9729
      %v9731 = vsel %vm4304, %v9550, -inf
      %v9732 = vmax.f32 %v9730, %v9731
      %v9733 = vsel %vm4304, %v9558, -inf
      %v9734 = vmax.f32 %v9732, %v9733
      %v9735 = vsel %vm4304, %v9566, -inf
      %v9736 = vmax.f32 %v9734, %v9735
      %v9737 = vsel %vm4304, %v9574, -inf
      %v9738 = vmax.f32 %v9736, %v9737
      %v9739 = vsel %vm4304, %v9582, -inf
      %v9740 = vmax.f32 %v9738, %v9739
      %v9741 = vsel %vm4304, %v9590, -inf
      %v9742 = vmax.f32 %v9740, %v9741
      %v9743 = vsel %vm4304, %v9598, -inf
      %v9744 = vmax.f32 %v9742, %v9743
      %v9745 = vsel %vm4304, %v9606, -inf
      %v9746 = vmax.f32 %v9744, %v9745
      %v9747 = vsel %vm4304, %v9614, -inf
      %v9748 = vmax.f32 %v9746, %v9747
      %v9749 = vsel %vm4304, %v9111, -inf
      %v9750 = vsel %vm4304, %v9119, -inf
      %v9751 = vmax.f32 %v9749, %v9750
      %v9752 = vsel %vm4304, %v9127, -inf
      %v9753 = vmax.f32 %v9751, %v9752
      %v9754 = vsel %vm4304, %v9135, -inf
      %v9755 = vmax.f32 %v9753, %v9754
      %v9756 = vsel %vm4304, %v9143, -inf
      %v9757 = vmax.f32 %v9755, %v9756
      %v9758 = vsel %vm4304, %v9151, -inf
      %v9759 = vmax.f32 %v9757, %v9758
      %v9760 = vsel %vm4304, %v9159, -inf
      %v9761 = vmax.f32 %v9759, %v9760
      %v9762 = vsel %vm4304, %v9167, -inf
      %v9763 = vmax.f32 %v9761, %v9762
      %v9764 = vsel %vm4304, %v9175, -inf
      %v9765 = vmax.f32 %v9763, %v9764
      %v9766 = vsel %vm4304, %v9183, -inf
      %v9767 = vmax.f32 %v9765, %v9766
      %v9768 = vsel %vm4304, %v9191, -inf
      %v9769 = vmax.f32 %v9767, %v9768
      %v9770 = vsel %vm4304, %v9199, -inf
      %v9771 = vmax.f32 %v9769, %v9770
      %v9772 = vsel %vm4304, %v9207, -inf
      %v9773 = vmax.f32 %v9771, %v9772
      %v9774 = vsel %vm4304, %v9215, -inf
      %v9775 = vmax.f32 %v9773, %v9774
      %v9776 = vsel %vm4304, %v9223, -inf
      %v9777 = vmax.f32 %v9775, %v9776
      %v9778 = vsel %vm4304, %v9231, -inf
      %v9779 = vmax.f32 %v9777, %v9778
      %v9780 = vsel %vm4304, %v9239, -inf
      %v9781 = vmax.f32 %v9779, %v9780
      %v9782 = vsel %vm4304, %v9247, -inf
      %v9783 = vmax.f32 %v9781, %v9782
      %v9784 = vsel %vm4304, %v9255, -inf
      %v9785 = vmax.f32 %v9783, %v9784
      %v9786 = vsel %vm4304, %v9263, -inf
      %v9787 = vmax.f32 %v9785, %v9786
      %v9788 = vsel %vm4304, %v9271, -inf
      %v9789 = vmax.f32 %v9787, %v9788
      %v9790 = vsel %vm4304, %v9279, -inf
      %v9791 = vmax.f32 %v9789, %v9790
      %v9792 = vsel %vm4304, %v9287, -inf
      %v9793 = vmax.f32 %v9791, %v9792
      %v9794 = vsel %vm4304, %v9295, -inf
      %v9795 = vmax.f32 %v9793, %v9794
      %v9796 = vsel %vm4304, %v9303, -inf
      %v9797 = vmax.f32 %v9795, %v9796
      %v9798 = vsel %vm4304, %v9311, -inf
      %v9799 = vmax.f32 %v9797, %v9798
      %v9800 = vsel %vm4304, %v9319, -inf
      %v9801 = vmax.f32 %v9799, %v9800
      %v9802 = vsel %vm4304, %v9327, -inf
      %v9803 = vmax.f32 %v9801, %v9802
      %v9804 = vsel %vm4304, %v9335, -inf
      %v9805 = vmax.f32 %v9803, %v9804
      %v9806 = vsel %vm4304, %v9343, -inf
      %v9807 = vmax.f32 %v9805, %v9806
      %v9808 = vsel %vm4304, %v9351, -inf
      %v9809 = vmax.f32 %v9807, %v9808
      %v9810 = vsel %vm4304, %v9359, -inf
      %v9811 = vmax.f32 %v9809, %v9810
      %v9812 = vsel %vm4304, %v9367, -inf
      %v9813 = vmax.f32 %v9811, %v9812
      %v9814 = vsel %vm4304, %v9375, -inf
      %v9815 = vmax.f32 %v9813, %v9814
      %v9816 = vsel %vm4304, %v9383, -inf
      %v9817 = vmax.f32 %v9815, %v9816
      %v9818 = vsel %vm4304, %v9391, -inf
      %v9819 = vmax.f32 %v9817, %v9818
      %v9820 = vsel %vm4304, %v9399, -inf
      %v9821 = vmax.f32 %v9819, %v9820
      %v9822 = vsel %vm4304, %v9407, -inf
      %v9823 = vmax.f32 %v9821, %v9822
      %v9824 = vsel %vm4304, %v9415, -inf
      %v9825 = vmax.f32 %v9823, %v9824
      %v9826 = vsel %vm4304, %v9423, -inf
      %v9827 = vmax.f32 %v9825, %v9826
      %v9828 = vsel %vm4304, %v9431, -inf
      %v9829 = vmax.f32 %v9827, %v9828
      %v9830 = vsel %vm4304, %v9439, -inf
      %v9831 = vmax.f32 %v9829, %v9830
      %v9832 = vsel %vm4304, %v9447, -inf
      %v9833 = vmax.f32 %v9831, %v9832
      %v9834 = vsel %vm4304, %v9455, -inf
      %v9835 = vmax.f32 %v9833, %v9834
      %v9836 = vsel %vm4304, %v9463, -inf
      %v9837 = vmax.f32 %v9835, %v9836
      %v9838 = vsel %vm4304, %v9471, -inf
      %v9839 = vmax.f32 %v9837, %v9838
      %v9840 = vsel %vm4304, %v9479, -inf
      %v9841 = vmax.f32 %v9839, %v9840
      %v9842 = vsel %vm4304, %v9487, -inf
      %v9843 = vmax.f32 %v9841, %v9842
      %v9844 = vsel %vm4304, %v9495, -inf
      %v9845 = vmax.f32 %v9843, %v9844
      %v9846 = vsel %vm4304, %v9503, -inf
      %v9847 = vmax.f32 %v9845, %v9846
      %v9848 = vsel %vm4304, %v9511, -inf
      %v9849 = vmax.f32 %v9847, %v9848
      %v9850 = vsel %vm4304, %v9519, -inf
      %v9851 = vmax.f32 %v9849, %v9850
      %v9852 = vsel %vm4304, %v9527, -inf
      %v9853 = vmax.f32 %v9851, %v9852
      %v9854 = vsel %vm4304, %v9535, -inf
      %v9855 = vmax.f32 %v9853, %v9854
      %v9856 = vsel %vm4304, %v9543, -inf
      %v9857 = vmax.f32 %v9855, %v9856
      %v9858 = vsel %vm4304, %v9551, -inf
      %v9859 = vmax.f32 %v9857, %v9858
      %v9860 = vsel %vm4304, %v9559, -inf
      %v9861 = vmax.f32 %v9859, %v9860
      %v9862 = vsel %vm4304, %v9567, -inf
      %v9863 = vmax.f32 %v9861, %v9862
      %v9864 = vsel %vm4304, %v9575, -inf
      %v9865 = vmax.f32 %v9863, %v9864
      %v9866 = vsel %vm4304, %v9583, -inf
      %v9867 = vmax.f32 %v9865, %v9866
      %v9868 = vsel %vm4304, %v9591, -inf
      %v9869 = vmax.f32 %v9867, %v9868
      %v9870 = vsel %vm4304, %v9599, -inf
      %v9871 = vmax.f32 %v9869, %v9870
      %v9872 = vsel %vm4304, %v9607, -inf
      %v9873 = vmax.f32 %v9871, %v9872
      %v9874 = vsel %vm4304, %v9615, -inf
      %v9875 = vmax.f32 %v9873, %v9874
      %v9876 = vsel %vm4304, %v9112, -inf
      %v9877 = vsel %vm4304, %v9120, -inf
      %v9878 = vmax.f32 %v9876, %v9877
      %v9879 = vsel %vm4304, %v9128, -inf
      %v9880 = vmax.f32 %v9878, %v9879
      %v9881 = vsel %vm4304, %v9136, -inf
      %v9882 = vmax.f32 %v9880, %v9881
      %v9883 = vsel %vm4304, %v9144, -inf
      %v9884 = vmax.f32 %v9882, %v9883
      %v9885 = vsel %vm4304, %v9152, -inf
      %v9886 = vmax.f32 %v9884, %v9885
      %v9887 = vsel %vm4304, %v9160, -inf
      %v9888 = vmax.f32 %v9886, %v9887
      %v9889 = vsel %vm4304, %v9168, -inf
      %v9890 = vmax.f32 %v9888, %v9889
      %v9891 = vsel %vm4304, %v9176, -inf
      %v9892 = vmax.f32 %v9890, %v9891
      %v9893 = vsel %vm4304, %v9184, -inf
      %v9894 = vmax.f32 %v9892, %v9893
      %v9895 = vsel %vm4304, %v9192, -inf
      %v9896 = vmax.f32 %v9894, %v9895
      %v9897 = vsel %vm4304, %v9200, -inf
      %v9898 = vmax.f32 %v9896, %v9897
      %v9899 = vsel %vm4304, %v9208, -inf
      %v9900 = vmax.f32 %v9898, %v9899
      %v9901 = vsel %vm4304, %v9216, -inf
      %v9902 = vmax.f32 %v9900, %v9901
      %v9903 = vsel %vm4304, %v9224, -inf
      %v9904 = vmax.f32 %v9902, %v9903
      %v9905 = vsel %vm4304, %v9232, -inf
      %v9906 = vmax.f32 %v9904, %v9905
      %v9907 = vsel %vm4304, %v9240, -inf
      %v9908 = vmax.f32 %v9906, %v9907
      %v9909 = vsel %vm4304, %v9248, -inf
      %v9910 = vmax.f32 %v9908, %v9909
      %v9911 = vsel %vm4304, %v9256, -inf
      %v9912 = vmax.f32 %v9910, %v9911
      %v9913 = vsel %vm4304, %v9264, -inf
      %v9914 = vmax.f32 %v9912, %v9913
      %v9915 = vsel %vm4304, %v9272, -inf
      %v9916 = vmax.f32 %v9914, %v9915
      %v9917 = vsel %vm4304, %v9280, -inf
      %v9918 = vmax.f32 %v9916, %v9917
      %v9919 = vsel %vm4304, %v9288, -inf
      %v9920 = vmax.f32 %v9918, %v9919
      %v9921 = vsel %vm4304, %v9296, -inf
      %v9922 = vmax.f32 %v9920, %v9921
      %v9923 = vsel %vm4304, %v9304, -inf
      %v9924 = vmax.f32 %v9922, %v9923
      %v9925 = vsel %vm4304, %v9312, -inf
      %v9926 = vmax.f32 %v9924, %v9925
      %v9927 = vsel %vm4304, %v9320, -inf
      %v9928 = vmax.f32 %v9926, %v9927
      %v9929 = vsel %vm4304, %v9328, -inf
      %v9930 = vmax.f32 %v9928, %v9929
      %v9931 = vsel %vm4304, %v9336, -inf
      %v9932 = vmax.f32 %v9930, %v9931
      %v9933 = vsel %vm4304, %v9344, -inf
      %v9934 = vmax.f32 %v9932, %v9933
      %v9935 = vsel %vm4304, %v9352, -inf
      %v9936 = vmax.f32 %v9934, %v9935
      %v9937 = vsel %vm4304, %v9360, -inf
      %v9938 = vmax.f32 %v9936, %v9937
      %v9939 = vsel %vm4304, %v9368, -inf
      %v9940 = vmax.f32 %v9938, %v9939
      %v9941 = vsel %vm4304, %v9376, -inf
      %v9942 = vmax.f32 %v9940, %v9941
      %v9943 = vsel %vm4304, %v9384, -inf
      %v9944 = vmax.f32 %v9942, %v9943
      %v9945 = vsel %vm4304, %v9392, -inf
      %v9946 = vmax.f32 %v9944, %v9945
      %v9947 = vsel %vm4304, %v9400, -inf
      %v9948 = vmax.f32 %v9946, %v9947
      %v9949 = vsel %vm4304, %v9408, -inf
      %v9950 = vmax.f32 %v9948, %v9949
      %v9951 = vsel %vm4304, %v9416, -inf
      %v9952 = vmax.f32 %v9950, %v9951
      %v9953 = vsel %vm4304, %v9424, -inf
      %v9954 = vmax.f32 %v9952, %v9953
      %v9955 = vsel %vm4304, %v9432, -inf
      %v9956 = vmax.f32 %v9954, %v9955
      %v9957 = vsel %vm4304, %v9440, -inf
      %v9958 = vmax.f32 %v9956, %v9957
      %v9959 = vsel %vm4304, %v9448, -inf
      %v9960 = vmax.f32 %v9958, %v9959
      %v9961 = vsel %vm4304, %v9456, -inf
      %v9962 = vmax.f32 %v9960, %v9961
      %v9963 = vsel %vm4304, %v9464, -inf
      %v9964 = vmax.f32 %v9962, %v9963
      %v9965 = vsel %vm4304, %v9472, -inf
      %v9966 = vmax.f32 %v9964, %v9965
      %v9967 = vsel %vm4304, %v9480, -inf
      %v9968 = vmax.f32 %v9966, %v9967
      %v9969 = vsel %vm4304, %v9488, -inf
      %v9970 = vmax.f32 %v9968, %v9969
      %v9971 = vsel %vm4304, %v9496, -inf
      %v9972 = vmax.f32 %v9970, %v9971
      %v9973 = vsel %vm4304, %v9504, -inf
      %v9974 = vmax.f32 %v9972, %v9973
      %v9975 = vsel %vm4304, %v9512, -inf
      %v9976 = vmax.f32 %v9974, %v9975
      %v9977 = vsel %vm4304, %v9520, -inf
      %v9978 = vmax.f32 %v9976, %v9977
      %v9979 = vsel %vm4304, %v9528, -inf
      %v9980 = vmax.f32 %v9978, %v9979
      %v9981 = vsel %vm4304, %v9536, -inf
      %v9982 = vmax.f32 %v9980, %v9981
      %v9983 = vsel %vm4304, %v9544, -inf
      %v9984 = vmax.f32 %v9982, %v9983
      %v9985 = vsel %vm4304, %v9552, -inf
      %v9986 = vmax.f32 %v9984, %v9985
      %v9987 = vsel %vm4304, %v9560, -inf
      %v9988 = vmax.f32 %v9986, %v9987
      %v9989 = vsel %vm4304, %v9568, -inf
      %v9990 = vmax.f32 %v9988, %v9989
      %v9991 = vsel %vm4304, %v9576, -inf
      %v9992 = vmax.f32 %v9990, %v9991
      %v9993 = vsel %vm4304, %v9584, -inf
      %v9994 = vmax.f32 %v9992, %v9993
      %v9995 = vsel %vm4304, %v9592, -inf
      %v9996 = vmax.f32 %v9994, %v9995
      %v9997 = vsel %vm4304, %v9600, -inf
      %v9998 = vmax.f32 %v9996, %v9997
      %v9999 = vsel %vm4304, %v9608, -inf
      %v10000 = vmax.f32 %v9998, %v9999
      %v10001 = vsel %vm4304, %v9616, -inf
      %v10002 = vmax.f32 %v10000, %v10001
      %v10003 = vsel %vm4304, %v9113, -inf
      %v10004 = vsel %vm4304, %v9121, -inf
      %v10005 = vmax.f32 %v10003, %v10004
      %v10006 = vsel %vm4304, %v9129, -inf
      %v10007 = vmax.f32 %v10005, %v10006
      %v10008 = vsel %vm4304, %v9137, -inf
      %v10009 = vmax.f32 %v10007, %v10008
      %v10010 = vsel %vm4304, %v9145, -inf
      %v10011 = vmax.f32 %v10009, %v10010
      %v10012 = vsel %vm4304, %v9153, -inf
      %v10013 = vmax.f32 %v10011, %v10012
      %v10014 = vsel %vm4304, %v9161, -inf
      %v10015 = vmax.f32 %v10013, %v10014
      %v10016 = vsel %vm4304, %v9169, -inf
      %v10017 = vmax.f32 %v10015, %v10016
      %v10018 = vsel %vm4304, %v9177, -inf
      %v10019 = vmax.f32 %v10017, %v10018
      %v10020 = vsel %vm4304, %v9185, -inf
      %v10021 = vmax.f32 %v10019, %v10020
      %v10022 = vsel %vm4304, %v9193, -inf
      %v10023 = vmax.f32 %v10021, %v10022
      %v10024 = vsel %vm4304, %v9201, -inf
      %v10025 = vmax.f32 %v10023, %v10024
      %v10026 = vsel %vm4304, %v9209, -inf
      %v10027 = vmax.f32 %v10025, %v10026
      %v10028 = vsel %vm4304, %v9217, -inf
      %v10029 = vmax.f32 %v10027, %v10028
      %v10030 = vsel %vm4304, %v9225, -inf
      %v10031 = vmax.f32 %v10029, %v10030
      %v10032 = vsel %vm4304, %v9233, -inf
      %v10033 = vmax.f32 %v10031, %v10032
      %v10034 = vsel %vm4304, %v9241, -inf
      %v10035 = vmax.f32 %v10033, %v10034
      %v10036 = vsel %vm4304, %v9249, -inf
      %v10037 = vmax.f32 %v10035, %v10036
      %v10038 = vsel %vm4304, %v9257, -inf
      %v10039 = vmax.f32 %v10037, %v10038
      %v10040 = vsel %vm4304, %v9265, -inf
      %v10041 = vmax.f32 %v10039, %v10040
      %v10042 = vsel %vm4304, %v9273, -inf
      %v10043 = vmax.f32 %v10041, %v10042
      %v10044 = vsel %vm4304, %v9281, -inf
      %v10045 = vmax.f32 %v10043, %v10044
      %v10046 = vsel %vm4304, %v9289, -inf
      %v10047 = vmax.f32 %v10045, %v10046
      %v10048 = vsel %vm4304, %v9297, -inf
      %v10049 = vmax.f32 %v10047, %v10048
      %v10050 = vsel %vm4304, %v9305, -inf
      %v10051 = vmax.f32 %v10049, %v10050
      %v10052 = vsel %vm4304, %v9313, -inf
      %v10053 = vmax.f32 %v10051, %v10052
      %v10054 = vsel %vm4304, %v9321, -inf
      %v10055 = vmax.f32 %v10053, %v10054
      %v10056 = vsel %vm4304, %v9329, -inf
      %v10057 = vmax.f32 %v10055, %v10056
      %v10058 = vsel %vm4304, %v9337, -inf
      %v10059 = vmax.f32 %v10057, %v10058
      %v10060 = vsel %vm4304, %v9345, -inf
      %v10061 = vmax.f32 %v10059, %v10060
      %v10062 = vsel %vm4304, %v9353, -inf
      %v10063 = vmax.f32 %v10061, %v10062
      %v10064 = vsel %vm4304, %v9361, -inf
      %v10065 = vmax.f32 %v10063, %v10064
      %v10066 = vsel %vm4304, %v9369, -inf
      %v10067 = vmax.f32 %v10065, %v10066
      %v10068 = vsel %vm4304, %v9377, -inf
      %v10069 = vmax.f32 %v10067, %v10068
      %v10070 = vsel %vm4304, %v9385, -inf
      %v10071 = vmax.f32 %v10069, %v10070
      %v10072 = vsel %vm4304, %v9393, -inf
      %v10073 = vmax.f32 %v10071, %v10072
      %v10074 = vsel %vm4304, %v9401, -inf
      %v10075 = vmax.f32 %v10073, %v10074
      %v10076 = vsel %vm4304, %v9409, -inf
      %v10077 = vmax.f32 %v10075, %v10076
      %v10078 = vsel %vm4304, %v9417, -inf
      %v10079 = vmax.f32 %v10077, %v10078
      %v10080 = vsel %vm4304, %v9425, -inf
      %v10081 = vmax.f32 %v10079, %v10080
      %v10082 = vsel %vm4304, %v9433, -inf
      %v10083 = vmax.f32 %v10081, %v10082
      %v10084 = vsel %vm4304, %v9441, -inf
      %v10085 = vmax.f32 %v10083, %v10084
      %v10086 = vsel %vm4304, %v9449, -inf
      %v10087 = vmax.f32 %v10085, %v10086
      %v10088 = vsel %vm4304, %v9457, -inf
      %v10089 = vmax.f32 %v10087, %v10088
      %v10090 = vsel %vm4304, %v9465, -inf
      %v10091 = vmax.f32 %v10089, %v10090
      %v10092 = vsel %vm4304, %v9473, -inf
      %v10093 = vmax.f32 %v10091, %v10092
      %v10094 = vsel %vm4304, %v9481, -inf
      %v10095 = vmax.f32 %v10093, %v10094
      %v10096 = vsel %vm4304, %v9489, -inf
      %v10097 = vmax.f32 %v10095, %v10096
      %v10098 = vsel %vm4304, %v9497, -inf
      %v10099 = vmax.f32 %v10097, %v10098
      %v10100 = vsel %vm4304, %v9505, -inf
      %v10101 = vmax.f32 %v10099, %v10100
      %v10102 = vsel %vm4304, %v9513, -inf
      %v10103 = vmax.f32 %v10101, %v10102
      %v10104 = vsel %vm4304, %v9521, -inf
      %v10105 = vmax.f32 %v10103, %v10104
      %v10106 = vsel %vm4304, %v9529, -inf
      %v10107 = vmax.f32 %v10105, %v10106
      %v10108 = vsel %vm4304, %v9537, -inf
      %v10109 = vmax.f32 %v10107, %v10108
      %v10110 = vsel %vm4304, %v9545, -inf
      %v10111 = vmax.f32 %v10109, %v10110
      %v10112 = vsel %vm4304, %v9553, -inf
      %v10113 = vmax.f32 %v10111, %v10112
      %v10114 = vsel %vm4304, %v9561, -inf
      %v10115 = vmax.f32 %v10113, %v10114
      %v10116 = vsel %vm4304, %v9569, -inf
      %v10117 = vmax.f32 %v10115, %v10116
      %v10118 = vsel %vm4304, %v9577, -inf
      %v10119 = vmax.f32 %v10117, %v10118
      %v10120 = vsel %vm4304, %v9585, -inf
      %v10121 = vmax.f32 %v10119, %v10120
      %v10122 = vsel %vm4304, %v9593, -inf
      %v10123 = vmax.f32 %v10121, %v10122
      %v10124 = vsel %vm4304, %v9601, -inf
      %v10125 = vmax.f32 %v10123, %v10124
      %v10126 = vsel %vm4304, %v9609, -inf
      %v10127 = vmax.f32 %v10125, %v10126
      %v10128 = vsel %vm4304, %v9617, -inf
      %v10129 = vmax.f32 %v10127, %v10128
      %v10130 = vsel %vm4304, %v9114, -inf
      %v10131 = vsel %vm4304, %v9122, -inf
      %v10132 = vmax.f32 %v10130, %v10131
      %v10133 = vsel %vm4304, %v9130, -inf
      %v10134 = vmax.f32 %v10132, %v10133
      %v10135 = vsel %vm4304, %v9138, -inf
      %v10136 = vmax.f32 %v10134, %v10135
      %v10137 = vsel %vm4304, %v9146, -inf
      %v10138 = vmax.f32 %v10136, %v10137
      %v10139 = vsel %vm4304, %v9154, -inf
      %v10140 = vmax.f32 %v10138, %v10139
      %v10141 = vsel %vm4304, %v9162, -inf
      %v10142 = vmax.f32 %v10140, %v10141
      %v10143 = vsel %vm4304, %v9170, -inf
      %v10144 = vmax.f32 %v10142, %v10143
      %v10145 = vsel %vm4304, %v9178, -inf
      %v10146 = vmax.f32 %v10144, %v10145
      %v10147 = vsel %vm4304, %v9186, -inf
      %v10148 = vmax.f32 %v10146, %v10147
      %v10149 = vsel %vm4304, %v9194, -inf
      %v10150 = vmax.f32 %v10148, %v10149
      %v10151 = vsel %vm4304, %v9202, -inf
      %v10152 = vmax.f32 %v10150, %v10151
      %v10153 = vsel %vm4304, %v9210, -inf
      %v10154 = vmax.f32 %v10152, %v10153
      %v10155 = vsel %vm4304, %v9218, -inf
      %v10156 = vmax.f32 %v10154, %v10155
      %v10157 = vsel %vm4304, %v9226, -inf
      %v10158 = vmax.f32 %v10156, %v10157
      %v10159 = vsel %vm4304, %v9234, -inf
      %v10160 = vmax.f32 %v10158, %v10159
      %v10161 = vsel %vm4304, %v9242, -inf
      %v10162 = vmax.f32 %v10160, %v10161
      %v10163 = vsel %vm4304, %v9250, -inf
      %v10164 = vmax.f32 %v10162, %v10163
      %v10165 = vsel %vm4304, %v9258, -inf
      %v10166 = vmax.f32 %v10164, %v10165
      %v10167 = vsel %vm4304, %v9266, -inf
      %v10168 = vmax.f32 %v10166, %v10167
      %v10169 = vsel %vm4304, %v9274, -inf
      %v10170 = vmax.f32 %v10168, %v10169
      %v10171 = vsel %vm4304, %v9282, -inf
      %v10172 = vmax.f32 %v10170, %v10171
      %v10173 = vsel %vm4304, %v9290, -inf
      %v10174 = vmax.f32 %v10172, %v10173
      %v10175 = vsel %vm4304, %v9298, -inf
      %v10176 = vmax.f32 %v10174, %v10175
      %v10177 = vsel %vm4304, %v9306, -inf
      %v10178 = vmax.f32 %v10176, %v10177
      %v10179 = vsel %vm4304, %v9314, -inf
      %v10180 = vmax.f32 %v10178, %v10179
      %v10181 = vsel %vm4304, %v9322, -inf
      %v10182 = vmax.f32 %v10180, %v10181
      %v10183 = vsel %vm4304, %v9330, -inf
      %v10184 = vmax.f32 %v10182, %v10183
      %v10185 = vsel %vm4304, %v9338, -inf
      %v10186 = vmax.f32 %v10184, %v10185
      %v10187 = vsel %vm4304, %v9346, -inf
      %v10188 = vmax.f32 %v10186, %v10187
      %v10189 = vsel %vm4304, %v9354, -inf
      %v10190 = vmax.f32 %v10188, %v10189
      %v10191 = vsel %vm4304, %v9362, -inf
      %v10192 = vmax.f32 %v10190, %v10191
      %v10193 = vsel %vm4304, %v9370, -inf
      %v10194 = vmax.f32 %v10192, %v10193
      %v10195 = vsel %vm4304, %v9378, -inf
      %v10196 = vmax.f32 %v10194, %v10195
      %v10197 = vsel %vm4304, %v9386, -inf
      %v10198 = vmax.f32 %v10196, %v10197
      %v10199 = vsel %vm4304, %v9394, -inf
      %v10200 = vmax.f32 %v10198, %v10199
      %v10201 = vsel %vm4304, %v9402, -inf
      %v10202 = vmax.f32 %v10200, %v10201
      %v10203 = vsel %vm4304, %v9410, -inf
      %v10204 = vmax.f32 %v10202, %v10203
      %v10205 = vsel %vm4304, %v9418, -inf
      %v10206 = vmax.f32 %v10204, %v10205
      %v10207 = vsel %vm4304, %v9426, -inf
      %v10208 = vmax.f32 %v10206, %v10207
      %v10209 = vsel %vm4304, %v9434, -inf
      %v10210 = vmax.f32 %v10208, %v10209
      %v10211 = vsel %vm4304, %v9442, -inf
      %v10212 = vmax.f32 %v10210, %v10211
      %v10213 = vsel %vm4304, %v9450, -inf
      %v10214 = vmax.f32 %v10212, %v10213
      %v10215 = vsel %vm4304, %v9458, -inf
      %v10216 = vmax.f32 %v10214, %v10215
      %v10217 = vsel %vm4304, %v9466, -inf
      %v10218 = vmax.f32 %v10216, %v10217
      %v10219 = vsel %vm4304, %v9474, -inf
      %v10220 = vmax.f32 %v10218, %v10219
      %v10221 = vsel %vm4304, %v9482, -inf
      %v10222 = vmax.f32 %v10220, %v10221
      %v10223 = vsel %vm4304, %v9490, -inf
      %v10224 = vmax.f32 %v10222, %v10223
      %v10225 = vsel %vm4304, %v9498, -inf
      %v10226 = vmax.f32 %v10224, %v10225
      %v10227 = vsel %vm4304, %v9506, -inf
      %v10228 = vmax.f32 %v10226, %v10227
      %v10229 = vsel %vm4304, %v9514, -inf
      %v10230 = vmax.f32 %v10228, %v10229
      %v10231 = vsel %vm4304, %v9522, -inf
      %v10232 = vmax.f32 %v10230, %v10231
      %v10233 = vsel %vm4304, %v9530, -inf
      %v10234 = vmax.f32 %v10232, %v10233
      %v10235 = vsel %vm4304, %v9538, -inf
      %v10236 = vmax.f32 %v10234, %v10235
      %v10237 = vsel %vm4304, %v9546, -inf
      %v10238 = vmax.f32 %v10236, %v10237
      %v10239 = vsel %vm4304, %v9554, -inf
      %v10240 = vmax.f32 %v10238, %v10239
      %v10241 = vsel %vm4304, %v9562, -inf
      %v10242 = vmax.f32 %v10240, %v10241
      %v10243 = vsel %vm4304, %v9570, -inf
      %v10244 = vmax.f32 %v10242, %v10243
      %v10245 = vsel %vm4304, %v9578, -inf
      %v10246 = vmax.f32 %v10244, %v10245
      %v10247 = vsel %vm4304, %v9586, -inf
      %v10248 = vmax.f32 %v10246, %v10247
      %v10249 = vsel %vm4304, %v9594, -inf
      %v10250 = vmax.f32 %v10248, %v10249
      %v10251 = vsel %vm4304, %v9602, -inf
      %v10252 = vmax.f32 %v10250, %v10251
      %v10253 = vsel %vm4304, %v9610, -inf
      %v10254 = vmax.f32 %v10252, %v10253
      %v10255 = vsel %vm4304, %v9618, -inf
      %v10256 = vmax.f32 %v10254, %v10255
      %v10257 = vsel %vm4304, %v9115, -inf
      %v10258 = vsel %vm4304, %v9123, -inf
      %v10259 = vmax.f32 %v10257, %v10258
      %v10260 = vsel %vm4304, %v9131, -inf
      %v10261 = vmax.f32 %v10259, %v10260
      %v10262 = vsel %vm4304, %v9139, -inf
      %v10263 = vmax.f32 %v10261, %v10262
      %v10264 = vsel %vm4304, %v9147, -inf
      %v10265 = vmax.f32 %v10263, %v10264
      %v10266 = vsel %vm4304, %v9155, -inf
      %v10267 = vmax.f32 %v10265, %v10266
      %v10268 = vsel %vm4304, %v9163, -inf
      %v10269 = vmax.f32 %v10267, %v10268
      %v10270 = vsel %vm4304, %v9171, -inf
      %v10271 = vmax.f32 %v10269, %v10270
      %v10272 = vsel %vm4304, %v9179, -inf
      %v10273 = vmax.f32 %v10271, %v10272
      %v10274 = vsel %vm4304, %v9187, -inf
      %v10275 = vmax.f32 %v10273, %v10274
      %v10276 = vsel %vm4304, %v9195, -inf
      %v10277 = vmax.f32 %v10275, %v10276
      %v10278 = vsel %vm4304, %v9203, -inf
      %v10279 = vmax.f32 %v10277, %v10278
      %v10280 = vsel %vm4304, %v9211, -inf
      %v10281 = vmax.f32 %v10279, %v10280
      %v10282 = vsel %vm4304, %v9219, -inf
      %v10283 = vmax.f32 %v10281, %v10282
      %v10284 = vsel %vm4304, %v9227, -inf
      %v10285 = vmax.f32 %v10283, %v10284
      %v10286 = vsel %vm4304, %v9235, -inf
      %v10287 = vmax.f32 %v10285, %v10286
      %v10288 = vsel %vm4304, %v9243, -inf
      %v10289 = vmax.f32 %v10287, %v10288
      %v10290 = vsel %vm4304, %v9251, -inf
      %v10291 = vmax.f32 %v10289, %v10290
      %v10292 = vsel %vm4304, %v9259, -inf
      %v10293 = vmax.f32 %v10291, %v10292
      %v10294 = vsel %vm4304, %v9267, -inf
      %v10295 = vmax.f32 %v10293, %v10294
      %v10296 = vsel %vm4304, %v9275, -inf
      %v10297 = vmax.f32 %v10295, %v10296
      %v10298 = vsel %vm4304, %v9283, -inf
      %v10299 = vmax.f32 %v10297, %v10298
      %v10300 = vsel %vm4304, %v9291, -inf
      %v10301 = vmax.f32 %v10299, %v10300
      %v10302 = vsel %vm4304, %v9299, -inf
      %v10303 = vmax.f32 %v10301, %v10302
      %v10304 = vsel %vm4304, %v9307, -inf
      %v10305 = vmax.f32 %v10303, %v10304
      %v10306 = vsel %vm4304, %v9315, -inf
      %v10307 = vmax.f32 %v10305, %v10306
      %v10308 = vsel %vm4304, %v9323, -inf
      %v10309 = vmax.f32 %v10307, %v10308
      %v10310 = vsel %vm4304, %v9331, -inf
      %v10311 = vmax.f32 %v10309, %v10310
      %v10312 = vsel %vm4304, %v9339, -inf
      %v10313 = vmax.f32 %v10311, %v10312
      %v10314 = vsel %vm4304, %v9347, -inf
      %v10315 = vmax.f32 %v10313, %v10314
      %v10316 = vsel %vm4304, %v9355, -inf
      %v10317 = vmax.f32 %v10315, %v10316
      %v10318 = vsel %vm4304, %v9363, -inf
      %v10319 = vmax.f32 %v10317, %v10318
      %v10320 = vsel %vm4304, %v9371, -inf
      %v10321 = vmax.f32 %v10319, %v10320
      %v10322 = vsel %vm4304, %v9379, -inf
      %v10323 = vmax.f32 %v10321, %v10322
      %v10324 = vsel %vm4304, %v9387, -inf
      %v10325 = vmax.f32 %v10323, %v10324
      %v10326 = vsel %vm4304, %v9395, -inf
      %v10327 = vmax.f32 %v10325, %v10326
      %v10328 = vsel %vm4304, %v9403, -inf
      %v10329 = vmax.f32 %v10327, %v10328
      %v10330 = vsel %vm4304, %v9411, -inf
      %v10331 = vmax.f32 %v10329, %v10330
      %v10332 = vsel %vm4304, %v9419, -inf
      %v10333 = vmax.f32 %v10331, %v10332
      %v10334 = vsel %vm4304, %v9427, -inf
      %v10335 = vmax.f32 %v10333, %v10334
      %v10336 = vsel %vm4304, %v9435, -inf
      %v10337 = vmax.f32 %v10335, %v10336
      %v10338 = vsel %vm4304, %v9443, -inf
      %v10339 = vmax.f32 %v10337, %v10338
      %v10340 = vsel %vm4304, %v9451, -inf
      %v10341 = vmax.f32 %v10339, %v10340
      %v10342 = vsel %vm4304, %v9459, -inf
      %v10343 = vmax.f32 %v10341, %v10342
      %v10344 = vsel %vm4304, %v9467, -inf
      %v10345 = vmax.f32 %v10343, %v10344
      %v10346 = vsel %vm4304, %v9475, -inf
      %v10347 = vmax.f32 %v10345, %v10346
      %v10348 = vsel %vm4304, %v9483, -inf
      %v10349 = vmax.f32 %v10347, %v10348
      %v10350 = vsel %vm4304, %v9491, -inf
      %v10351 = vmax.f32 %v10349, %v10350
      %v10352 = vsel %vm4304, %v9499, -inf
      %v10353 = vmax.f32 %v10351, %v10352
      %v10354 = vsel %vm4304, %v9507, -inf
      %v10355 = vmax.f32 %v10353, %v10354
      %v10356 = vsel %vm4304, %v9515, -inf
      %v10357 = vmax.f32 %v10355, %v10356
      %v10358 = vsel %vm4304, %v9523, -inf
      %v10359 = vmax.f32 %v10357, %v10358
      %v10360 = vsel %vm4304, %v9531, -inf
      %v10361 = vmax.f32 %v10359, %v10360
      %v10362 = vsel %vm4304, %v9539, -inf
      %v10363 = vmax.f32 %v10361, %v10362
      %v10364 = vsel %vm4304, %v9547, -inf
      %v10365 = vmax.f32 %v10363, %v10364
      %v10366 = vsel %vm4304, %v9555, -inf
      %v10367 = vmax.f32 %v10365, %v10366
      %v10368 = vsel %vm4304, %v9563, -inf
      %v10369 = vmax.f32 %v10367, %v10368
      %v10370 = vsel %vm4304, %v9571, -inf
      %v10371 = vmax.f32 %v10369, %v10370
      %v10372 = vsel %vm4304, %v9579, -inf
      %v10373 = vmax.f32 %v10371, %v10372
      %v10374 = vsel %vm4304, %v9587, -inf
      %v10375 = vmax.f32 %v10373, %v10374
      %v10376 = vsel %vm4304, %v9595, -inf
      %v10377 = vmax.f32 %v10375, %v10376
      %v10378 = vsel %vm4304, %v9603, -inf
      %v10379 = vmax.f32 %v10377, %v10378
      %v10380 = vsel %vm4304, %v9611, -inf
      %v10381 = vmax.f32 %v10379, %v10380
      %v10382 = vsel %vm4304, %v9619, -inf
      %v10383 = vmax.f32 %v10381, %v10382
      %v10384 = vsel %vm4304, %v9116, -inf
      %v10385 = vsel %vm4304, %v9124, -inf
      %v10386 = vmax.f32 %v10384, %v10385
      %v10387 = vsel %vm4304, %v9132, -inf
      %v10388 = vmax.f32 %v10386, %v10387
      %v10389 = vsel %vm4304, %v9140, -inf
      %v10390 = vmax.f32 %v10388, %v10389
      %v10391 = vsel %vm4304, %v9148, -inf
      %v10392 = vmax.f32 %v10390, %v10391
      %v10393 = vsel %vm4304, %v9156, -inf
      %v10394 = vmax.f32 %v10392, %v10393
      %v10395 = vsel %vm4304, %v9164, -inf
      %v10396 = vmax.f32 %v10394, %v10395
      %v10397 = vsel %vm4304, %v9172, -inf
      %v10398 = vmax.f32 %v10396, %v10397
      %v10399 = vsel %vm4304, %v9180, -inf
      %v10400 = vmax.f32 %v10398, %v10399
      %v10401 = vsel %vm4304, %v9188, -inf
      %v10402 = vmax.f32 %v10400, %v10401
      %v10403 = vsel %vm4304, %v9196, -inf
      %v10404 = vmax.f32 %v10402, %v10403
      %v10405 = vsel %vm4304, %v9204, -inf
      %v10406 = vmax.f32 %v10404, %v10405
      %v10407 = vsel %vm4304, %v9212, -inf
      %v10408 = vmax.f32 %v10406, %v10407
      %v10409 = vsel %vm4304, %v9220, -inf
      %v10410 = vmax.f32 %v10408, %v10409
      %v10411 = vsel %vm4304, %v9228, -inf
      %v10412 = vmax.f32 %v10410, %v10411
      %v10413 = vsel %vm4304, %v9236, -inf
      %v10414 = vmax.f32 %v10412, %v10413
      %v10415 = vsel %vm4304, %v9244, -inf
      %v10416 = vmax.f32 %v10414, %v10415
      %v10417 = vsel %vm4304, %v9252, -inf
      %v10418 = vmax.f32 %v10416, %v10417
      %v10419 = vsel %vm4304, %v9260, -inf
      %v10420 = vmax.f32 %v10418, %v10419
      %v10421 = vsel %vm4304, %v9268, -inf
      %v10422 = vmax.f32 %v10420, %v10421
      %v10423 = vsel %vm4304, %v9276, -inf
      %v10424 = vmax.f32 %v10422, %v10423
      %v10425 = vsel %vm4304, %v9284, -inf
      %v10426 = vmax.f32 %v10424, %v10425
      %v10427 = vsel %vm4304, %v9292, -inf
      %v10428 = vmax.f32 %v10426, %v10427
      %v10429 = vsel %vm4304, %v9300, -inf
      %v10430 = vmax.f32 %v10428, %v10429
      %v10431 = vsel %vm4304, %v9308, -inf
      %v10432 = vmax.f32 %v10430, %v10431
      %v10433 = vsel %vm4304, %v9316, -inf
      %v10434 = vmax.f32 %v10432, %v10433
      %v10435 = vsel %vm4304, %v9324, -inf
      %v10436 = vmax.f32 %v10434, %v10435
      %v10437 = vsel %vm4304, %v9332, -inf
      %v10438 = vmax.f32 %v10436, %v10437
      %v10439 = vsel %vm4304, %v9340, -inf
      %v10440 = vmax.f32 %v10438, %v10439
      %v10441 = vsel %vm4304, %v9348, -inf
      %v10442 = vmax.f32 %v10440, %v10441
      %v10443 = vsel %vm4304, %v9356, -inf
      %v10444 = vmax.f32 %v10442, %v10443
      %v10445 = vsel %vm4304, %v9364, -inf
      %v10446 = vmax.f32 %v10444, %v10445
      %v10447 = vsel %vm4304, %v9372, -inf
      %v10448 = vmax.f32 %v10446, %v10447
      %v10449 = vsel %vm4304, %v9380, -inf
      %v10450 = vmax.f32 %v10448, %v10449
      %v10451 = vsel %vm4304, %v9388, -inf
      %v10452 = vmax.f32 %v10450, %v10451
      %v10453 = vsel %vm4304, %v9396, -inf
      %v10454 = vmax.f32 %v10452, %v10453
      %v10455 = vsel %vm4304, %v9404, -inf
      %v10456 = vmax.f32 %v10454, %v10455
      %v10457 = vsel %vm4304, %v9412, -inf
      %v10458 = vmax.f32 %v10456, %v10457
      %v10459 = vsel %vm4304, %v9420, -inf
      %v10460 = vmax.f32 %v10458, %v10459
      %v10461 = vsel %vm4304, %v9428, -inf
      %v10462 = vmax.f32 %v10460, %v10461
      %v10463 = vsel %vm4304, %v9436, -inf
      %v10464 = vmax.f32 %v10462, %v10463
      %v10465 = vsel %vm4304, %v9444, -inf
      %v10466 = vmax.f32 %v10464, %v10465
      %v10467 = vsel %vm4304, %v9452, -inf
      %v10468 = vmax.f32 %v10466, %v10467
      %v10469 = vsel %vm4304, %v9460, -inf
      %v10470 = vmax.f32 %v10468, %v10469
      %v10471 = vsel %vm4304, %v9468, -inf
      %v10472 = vmax.f32 %v10470, %v10471
      %v10473 = vsel %vm4304, %v9476, -inf
      %v10474 = vmax.f32 %v10472, %v10473
      %v10475 = vsel %vm4304, %v9484, -inf
      %v10476 = vmax.f32 %v10474, %v10475
      %v10477 = vsel %vm4304, %v9492, -inf
      %v10478 = vmax.f32 %v10476, %v10477
      %v10479 = vsel %vm4304, %v9500, -inf
      %v10480 = vmax.f32 %v10478, %v10479
      %v10481 = vsel %vm4304, %v9508, -inf
      %v10482 = vmax.f32 %v10480, %v10481
      %v10483 = vsel %vm4304, %v9516, -inf
      %v10484 = vmax.f32 %v10482, %v10483
      %v10485 = vsel %vm4304, %v9524, -inf
      %v10486 = vmax.f32 %v10484, %v10485
      %v10487 = vsel %vm4304, %v9532, -inf
      %v10488 = vmax.f32 %v10486, %v10487
      %v10489 = vsel %vm4304, %v9540, -inf
      %v10490 = vmax.f32 %v10488, %v10489
      %v10491 = vsel %vm4304, %v9548, -inf
      %v10492 = vmax.f32 %v10490, %v10491
      %v10493 = vsel %vm4304, %v9556, -inf
      %v10494 = vmax.f32 %v10492, %v10493
      %v10495 = vsel %vm4304, %v9564, -inf
      %v10496 = vmax.f32 %v10494, %v10495
      %v10497 = vsel %vm4304, %v9572, -inf
      %v10498 = vmax.f32 %v10496, %v10497
      %v10499 = vsel %vm4304, %v9580, -inf
      %v10500 = vmax.f32 %v10498, %v10499
      %v10501 = vsel %vm4304, %v9588, -inf
      %v10502 = vmax.f32 %v10500, %v10501
      %v10503 = vsel %vm4304, %v9596, -inf
      %v10504 = vmax.f32 %v10502, %v10503
      %v10505 = vsel %vm4304, %v9604, -inf
      %v10506 = vmax.f32 %v10504, %v10505
      %v10507 = vsel %vm4304, %v9612, -inf
      %v10508 = vmax.f32 %v10506, %v10507
      %v10509 = vsel %vm4304, %v9620, -inf
      %v10510 = vmax.f32 %v10508, %v10509
      %v10511 = vsel %vm4304, %v9117, -inf
      %v10512 = vsel %vm4304, %v9125, -inf
      %v10513 = vmax.f32 %v10511, %v10512
      %v10514 = vsel %vm4304, %v9133, -inf
      %v10515 = vmax.f32 %v10513, %v10514
      %v10516 = vsel %vm4304, %v9141, -inf
      %v10517 = vmax.f32 %v10515, %v10516
      %v10518 = vsel %vm4304, %v9149, -inf
      %v10519 = vmax.f32 %v10517, %v10518
      %v10520 = vsel %vm4304, %v9157, -inf
      %v10521 = vmax.f32 %v10519, %v10520
      %v10522 = vsel %vm4304, %v9165, -inf
      %v10523 = vmax.f32 %v10521, %v10522
      %v10524 = vsel %vm4304, %v9173, -inf
      %v10525 = vmax.f32 %v10523, %v10524
      %v10526 = vsel %vm4304, %v9181, -inf
      %v10527 = vmax.f32 %v10525, %v10526
      %v10528 = vsel %vm4304, %v9189, -inf
      %v10529 = vmax.f32 %v10527, %v10528
      %v10530 = vsel %vm4304, %v9197, -inf
      %v10531 = vmax.f32 %v10529, %v10530
      %v10532 = vsel %vm4304, %v9205, -inf
      %v10533 = vmax.f32 %v10531, %v10532
      %v10534 = vsel %vm4304, %v9213, -inf
      %v10535 = vmax.f32 %v10533, %v10534
      %v10536 = vsel %vm4304, %v9221, -inf
      %v10537 = vmax.f32 %v10535, %v10536
      %v10538 = vsel %vm4304, %v9229, -inf
      %v10539 = vmax.f32 %v10537, %v10538
      %v10540 = vsel %vm4304, %v9237, -inf
      %v10541 = vmax.f32 %v10539, %v10540
      %v10542 = vsel %vm4304, %v9245, -inf
      %v10543 = vmax.f32 %v10541, %v10542
      %v10544 = vsel %vm4304, %v9253, -inf
      %v10545 = vmax.f32 %v10543, %v10544
      %v10546 = vsel %vm4304, %v9261, -inf
      %v10547 = vmax.f32 %v10545, %v10546
      %v10548 = vsel %vm4304, %v9269, -inf
      %v10549 = vmax.f32 %v10547, %v10548
      %v10550 = vsel %vm4304, %v9277, -inf
      %v10551 = vmax.f32 %v10549, %v10550
      %v10552 = vsel %vm4304, %v9285, -inf
      %v10553 = vmax.f32 %v10551, %v10552
      %v10554 = vsel %vm4304, %v9293, -inf
      %v10555 = vmax.f32 %v10553, %v10554
      %v10556 = vsel %vm4304, %v9301, -inf
      %v10557 = vmax.f32 %v10555, %v10556
      %v10558 = vsel %vm4304, %v9309, -inf
      %v10559 = vmax.f32 %v10557, %v10558
      %v10560 = vsel %vm4304, %v9317, -inf
      %v10561 = vmax.f32 %v10559, %v10560
      %v10562 = vsel %vm4304, %v9325, -inf
      %v10563 = vmax.f32 %v10561, %v10562
      %v10564 = vsel %vm4304, %v9333, -inf
      %v10565 = vmax.f32 %v10563, %v10564
      %v10566 = vsel %vm4304, %v9341, -inf
      %v10567 = vmax.f32 %v10565, %v10566
      %v10568 = vsel %vm4304, %v9349, -inf
      %v10569 = vmax.f32 %v10567, %v10568
      %v10570 = vsel %vm4304, %v9357, -inf
      %v10571 = vmax.f32 %v10569, %v10570
      %v10572 = vsel %vm4304, %v9365, -inf
      %v10573 = vmax.f32 %v10571, %v10572
      %v10574 = vsel %vm4304, %v9373, -inf
      %v10575 = vmax.f32 %v10573, %v10574
      %v10576 = vsel %vm4304, %v9381, -inf
      %v10577 = vmax.f32 %v10575, %v10576
      %v10578 = vsel %vm4304, %v9389, -inf
      %v10579 = vmax.f32 %v10577, %v10578
      %v10580 = vsel %vm4304, %v9397, -inf
      %v10581 = vmax.f32 %v10579, %v10580
      %v10582 = vsel %vm4304, %v9405, -inf
      %v10583 = vmax.f32 %v10581, %v10582
      %v10584 = vsel %vm4304, %v9413, -inf
      %v10585 = vmax.f32 %v10583, %v10584
      %v10586 = vsel %vm4304, %v9421, -inf
      %v10587 = vmax.f32 %v10585, %v10586
      %v10588 = vsel %vm4304, %v9429, -inf
      %v10589 = vmax.f32 %v10587, %v10588
      %v10590 = vsel %vm4304, %v9437, -inf
      %v10591 = vmax.f32 %v10589, %v10590
      %v10592 = vsel %vm4304, %v9445, -inf
      %v10593 = vmax.f32 %v10591, %v10592
      %v10594 = vsel %vm4304, %v9453, -inf
      %v10595 = vmax.f32 %v10593, %v10594
      %v10596 = vsel %vm4304, %v9461, -inf
      %v10597 = vmax.f32 %v10595, %v10596
      %v10598 = vsel %vm4304, %v9469, -inf
      %v10599 = vmax.f32 %v10597, %v10598
      %v10600 = vsel %vm4304, %v9477, -inf
      %v10601 = vmax.f32 %v10599, %v10600
      %v10602 = vsel %vm4304, %v9485, -inf
      %v10603 = vmax.f32 %v10601, %v10602
      %v10604 = vsel %vm4304, %v9493, -inf
      %v10605 = vmax.f32 %v10603, %v10604
      %v10606 = vsel %vm4304, %v9501, -inf
      %v10607 = vmax.f32 %v10605, %v10606
      %v10608 = vsel %vm4304, %v9509, -inf
      %v10609 = vmax.f32 %v10607, %v10608
      %v10610 = vsel %vm4304, %v9517, -inf
      %v10611 = vmax.f32 %v10609, %v10610
      %v10612 = vsel %vm4304, %v9525, -inf
      %v10613 = vmax.f32 %v10611, %v10612
      %v10614 = vsel %vm4304, %v9533, -inf
      %v10615 = vmax.f32 %v10613, %v10614
      %v10616 = vsel %vm4304, %v9541, -inf
      %v10617 = vmax.f32 %v10615, %v10616
      %v10618 = vsel %vm4304, %v9549, -inf
      %v10619 = vmax.f32 %v10617, %v10618
      %v10620 = vsel %vm4304, %v9557, -inf
      %v10621 = vmax.f32 %v10619, %v10620
      %v10622 = vsel %vm4304, %v9565, -inf
      %v10623 = vmax.f32 %v10621, %v10622
      %v10624 = vsel %vm4304, %v9573, -inf
      %v10625 = vmax.f32 %v10623, %v10624
      %v10626 = vsel %vm4304, %v9581, -inf
      %v10627 = vmax.f32 %v10625, %v10626
      %v10628 = vsel %vm4304, %v9589, -inf
      %v10629 = vmax.f32 %v10627, %v10628
      %v10630 = vsel %vm4304, %v9597, -inf
      %v10631 = vmax.f32 %v10629, %v10630
      %v10632 = vsel %vm4304, %v9605, -inf
      %v10633 = vmax.f32 %v10631, %v10632
      %v10634 = vsel %vm4304, %v9613, -inf
      %v10635 = vmax.f32 %v10633, %v10634
      %v10636 = vsel %vm4304, %v9621, -inf
      %v10637 = vmax.f32 %v10635, %v10636
      %10646 = vrot.lane.b32.xlu0 %v6120, 16
      %v10647 = vpop.permute.xlu0 %10646
      %10648 = vrot.lane.b32.xlu0 %v6125, 16
      %v10649 = vpop.permute.xlu0 %10648
      %10650 = vrot.lane.b32.xlu0 %v6130, 16
      %v10651 = vpop.permute.xlu0 %10650
      %10652 = vrot.lane.b32.xlu0 %v6135, 16
      %v10653 = vpop.permute.xlu0 %10652
      %10654 = vrot.lane.b32.xlu0 %v6140, 16
      %v10655 = vpop.permute.xlu0 %10654
      %10656 = vrot.lane.b32.xlu0 %v6145, 16
      %v10657 = vpop.permute.xlu0 %10656
      %10658 = vrot.lane.b32.xlu0 %v6150, 16
      %v10659 = vpop.permute.xlu0 %10658
      %10660 = vrot.lane.b32.xlu0 %v6155, 16
      %v10661 = vpop.permute.xlu0 %10660
      %10678 = vrot.lane.b32.xlu0 %v9748, 48
      %v10679 = vpop.permute.xlu0 %10678
      %10680 = vrot.lane.b32.xlu0 %v9875, 48
      %v10681 = vpop.permute.xlu0 %10680
      %10682 = vrot.lane.b32.xlu0 %v10002, 48
      %v10683 = vpop.permute.xlu0 %10682
      %10684 = vrot.lane.b32.xlu0 %v10129, 48
      %v10685 = vpop.permute.xlu0 %10684
      %10686 = vrot.lane.b32.xlu0 %v10256, 48
      %v10687 = vpop.permute.xlu0 %10686
      %10688 = vrot.lane.b32.xlu0 %v10383, 48
      %v10689 = vpop.permute.xlu0 %10688
      %10690 = vrot.lane.b32.xlu0 %v10510, 48
      %v10691 = vpop.permute.xlu0 %10690
      %10692 = vrot.lane.b32.xlu0 %v10637, 48
      %v10693 = vpop.permute.xlu0 %10692
      %v10702 = vsel %vm224, %v5539, %v10647
      %v10703 = vsel %vm224, %v5540, %v10649
      %v10704 = vsel %vm224, %v5541, %v10651
      %v10705 = vsel %vm224, %v5542, %v10653
      %v10706 = vsel %vm224, %v5543, %v10655
      %v10707 = vsel %vm224, %v5544, %v10657
      %v10708 = vsel %vm224, %v5545, %v10659
      %v10709 = vsel %vm224, %v5546, %v10661
      %v10710 = vsel %vm5393, %v10702, %v10679
      %v10711 = vsel %vm5393, %v10703, %v10681
      %v10712 = vsel %vm5393, %v10704, %v10683
      %v10713 = vsel %vm5393, %v10705, %v10685
      %v10714 = vsel %vm5393, %v10706, %v10687
      %v10715 = vsel %vm5393, %v10707, %v10689
      %v10716 = vsel %vm5393, %v10708, %v10691
      %v10717 = vsel %vm5393, %v10709, %v10693
      %v10719 = vsel %vm5408, %v10710, 0
      %v10722 = vsel %vm5408, %v10711, 0
      %v10725 = vsel %vm5408, %v10712, 0
      %v10728 = vsel %vm5408, %v10713, 0
      %v10731 = vsel %vm5408, %v10714, 0
      %v10734 = vsel %vm5408, %v10715, 0
      %v10737 = vsel %vm5408, %v10716, 0
      %v10740 = vsel %vm5408, %v10717, 0
      %10742 = vmatprep.subr.mxu0 0.0
      %10743 = vmatpush1.msra.mxu0 %v205
      %10744 = vmatprep.subr.mxu0 0.0
      %10745 = vmatpush1.msra.mxu0 %v206
      %10746 = vmatprep.subr.mxu0 0.0
      %10747 = vmatpush1.msra.mxu0 %v207
      %10748 = vmatprep.subr.mxu0 0.0
      %10749 = vmatpush1.msra.mxu0 %v208
      %10750 = vmatprep.subr.mxu0 0.0
      %10751 = vmatpush1.msra.mxu0 %v209
      %10752 = vmatprep.subr.mxu0 0.0
      %10753 = vmatpush1.msra.mxu0 %v210
      %10754 = vmatprep.subr.mxu0 0.0
      %10755 = vmatpush1.msra.mxu0 %v211
      %10756 = vmatprep.subr.mxu0 0.0
      %10757 = vmatpush1.msra.mxu0 %v212
      %10758 = vmatprep.subr.mxu0 0.0
      %10759 = vmatpush1.msra.mxu0 %v213
      %10760 = vmatprep.subr.mxu0 0.0
      %10761 = vmatpush1.msra.mxu0 %v214
      %10762 = vmatprep.subr.mxu0 0.0
      %10763 = vmatpush1.msra.mxu0 0.0
      %10764 = vmatprep.subr.mxu0 0.0
      %10765 = vmatpush1.msra.mxu0 0.0
      %10766 = vmatprep.subr.mxu0 0.0
      %10767 = vmatpush1.msra.mxu0 0.0
      %10768 = vmatprep.subr.mxu0 0.0
      %10769 = vmatpush1.msra.mxu0 0.0
      %10770 = vmatprep.subr.mxu0 0.0
      %10771 = vmatpush1.msra.mxu0 0.0
      %10772 = vmatprep.subr.mxu0 0.0
      %10773 = vmatpush1.msra.mxu0 0.0
      %10774 = vmatprep.subr.mxu0 0.0
      %10775 = vmatpush1.msra.mxu0 0.0
      %10776 = vmatprep.subr.mxu0 0.0
      %10777 = vmatpush1.msra.mxu0 0.0
      %10778 = vmatprep.subr.mxu0 0.0
      %10779 = vmatpush1.msra.mxu0 0.0
      %10780 = vmatprep.subr.mxu0 0.0
      %10781 = vmatpush1.msra.mxu0 0.0
      %10782 = vmatprep.subr.mxu0 0.0
      %10783 = vmatpush1.msra.mxu0 0.0
      %10784 = vmatprep.subr.mxu0 0.0
      %10785 = vmatpush1.msra.mxu0 0.0
      %10786 = vmatprep.subr.mxu0 0.0
      %10787 = vmatpush1.msra.mxu0 0.0
      %10788 = vmatprep.subr.mxu0 0.0
      %10789 = vmatpush1.msra.mxu0 0.0
      %10790 = vmatprep.subr.mxu0 0.0
      %10791 = vmatpush1.msra.mxu0 0.0
      %10792 = vmatprep.subr.mxu0 0.0
      %10793 = vmatpush1.msra.mxu0 0.0
      %10794 = vmatprep.subr.mxu0 0.0
      %10795 = vmatpush1.msra.mxu0 0.0
      %10796 = vmatprep.subr.mxu0 0.0
      %10797 = vmatpush1.msra.mxu0 0.0
      %10798 = vmatprep.subr.mxu0 0.0
      %10799 = vmatpush1.msra.mxu0 0.0
      %10800 = vmatprep.subr.mxu0 0.0
      %10801 = vmatpush1.msra.mxu0 0.0
      %10802 = vmatprep.subr.mxu0 0.0
      %10803 = vmatpush1.msra.mxu0 0.0
      %10804 = vmatprep.subr.mxu0 0.0
      %10805 = vmatpush1.msra.mxu0 0.0
      %10806 = vmatprep.mubr.f32.mxu0 0.0
      %10807 = vmatmul.mubr.f32.gmra.mrb[0].mxu0 %v10719
      %v10808 = vpop.f32.mrb[0].mxu0
      %v10809 = vadd.f32 %v5406, %v10808
      %v10810 = vpop.f32.mrb[0].mxu0
      %10811 = vmatprep.mubr.f32.mxu0 0.0
      %10812 = vmatmul.mubr.f32.gmra.mrb[0].mxu0 %v10722
      %v10813 = vpop.f32.mrb[0].mxu0
      %v10814 = vadd.f32 %v5406, %v10813
      %v10815 = vpop.f32.mrb[0].mxu0
      %10816 = vmatprep.mubr.f32.mxu0 0.0
      %10817 = vmatmul.mubr.f32.gmra.mrb[0].mxu0 %v10725
      %v10818 = vpop.f32.mrb[0].mxu0
      %v10819 = vadd.f32 %v5406, %v10818
      %v10820 = vpop.f32.mrb[0].mxu0
      %10821 = vmatprep.mubr.f32.mxu0 0.0
      %10822 = vmatmul.mubr.f32.gmra.mrb[0].mxu0 %v10728
      %v10823 = vpop.f32.mrb[0].mxu0
      %v10824 = vadd.f32 %v5406, %v10823
      %v10825 = vpop.f32.mrb[0].mxu0
      %10826 = vmatprep.mubr.f32.mxu0 0.0
      %10827 = vmatmul.mubr.f32.gmra.mrb[0].mxu0 %v10731
      %v10828 = vpop.f32.mrb[0].mxu0
      %v10829 = vadd.f32 %v5406, %v10828
      %v10830 = vpop.f32.mrb[0].mxu0
      %10831 = vmatprep.mubr.f32.mxu0 0.0
      %10832 = vmatmul.mubr.f32.gmra.mrb[0].mxu0 %v10734
      %v10833 = vpop.f32.mrb[0].mxu0
      %v10834 = vadd.f32 %v5406, %v10833
      %v10835 = vpop.f32.mrb[0].mxu0
      %10836 = vmatprep.mubr.f32.mxu0 0.0
      %10837 = vmatmul.mubr.f32.gmra.mrb[0].mxu0 %v10737
      %v10838 = vpop.f32.mrb[0].mxu0
      %v10839 = vadd.f32 %v5406, %v10838
      %v10840 = vpop.f32.mrb[0].mxu0
      %10841 = vmatprep.mubr.f32.mxu0 0.0
      %10842 = vmatmul.mubr.f32.gmra.mrb[0].mxu0 %v10740
      %v10843 = vpop.f32.mrb[0].mxu0
      %v10844 = vadd.f32 %v5406, %v10843
      %v10845 = vpop.f32.mrb[0].mxu0
      %10846 = vdwg.mxu0
      %10855 = vrot.lane.b32.xlu0 %v10809, 32
      %v10856 = vpop.permute.xlu0 %10855
      %10857 = vrot.lane.b32.xlu0 %v10814, 32
      %v10858 = vpop.permute.xlu0 %10857
      %10859 = vrot.lane.b32.xlu0 %v10819, 32
      %v10860 = vpop.permute.xlu0 %10859
      %10861 = vrot.lane.b32.xlu0 %v10824, 32
      %v10862 = vpop.permute.xlu0 %10861
      %10863 = vrot.lane.b32.xlu0 %v10829, 32
      %v10864 = vpop.permute.xlu0 %10863
      %10865 = vrot.lane.b32.xlu0 %v10834, 32
      %v10866 = vpop.permute.xlu0 %10865
      %10867 = vrot.lane.b32.xlu0 %v10839, 32
      %v10868 = vpop.permute.xlu0 %10867
      %10869 = vrot.lane.b32.xlu0 %v10844, 32
      %v10870 = vpop.permute.xlu0 %10869
      %v10879 = vsel %vm4304, %v5500, %v10856
      %v10880 = vsel %vm4304, %v5505, %v10858
      %v10881 = vsel %vm4304, %v5510, %v10860
      %v10882 = vsel %vm4304, %v5515, %v10862
      %v10883 = vsel %vm4304, %v5520, %v10864
      %v10884 = vsel %vm4304, %v5525, %v10866
      %v10885 = vsel %vm4304, %v5530, %v10868
      %v10886 = vsel %vm4304, %v5535, %v10870
      %10887 = vst.msk [vmem:[%s202] sm:$0xff] %vm710, %v10879
      %10888 = vst.msk [vmem:[%s202 + $0x8] sm:$0xff] %vm710, %v10880
      %10889 = vst.msk [vmem:[%s202 + $0x10] sm:$0xff] %vm710, %v10881
      %10890 = vst.msk [vmem:[%s202 + $0x18] sm:$0xff] %vm710, %v10882
      %10891 = vst.msk [vmem:[%s202 + $0x20] sm:$0xff] %vm710, %v10883
      %10892 = vst.msk [vmem:[%s202 + $0x28] sm:$0xff] %vm710, %v10884
      %10893 = vst.msk [vmem:[%s202 + $0x30] sm:$0xff] %vm710, %v10885
      %10894 = vst.msk [vmem:[%s202 + $0x38] sm:$0xff] %vm710, %v10886
      %p10895 = scmp.lt.s32.totalorder %s15, 1
      %s10896 = scalar_select %p10895, %s15, 1
      %s10897 = smul.addr %s10896, 8
      %s10898 = smul.addr %s10897, 8
      %s10899 = scalar_lea.vmem %s4, %s10898
      // Predicated region
      $region37: #{gravnet_forward.1} parent=35 // pred_check
        %p10900 = pneg %p122
      $region38: #{gravnet_forward.1} parent=35 // pred_check_branch
        %10902 = sbr.rel (%p10900) target = $region40
      $region39: #{gravnet_forward.1} parent=35 // pred_region
        _
      $region40: #{gravnet_forward.1} parent=35 // pred_fallthru
        _
    $region36: #{gravnet_forward.1} parent=5 // pred_fallthru
      _
    %p10903 = scmp.le.s32.totalorder 2, %s10
    // Predicated region
    $region41: #{gravnet_forward.1} parent=5 // pred_check
      %p10904 = pneg %p10903
    $region42: #{gravnet_forward.1} parent=5 // pred_check_branch
      %10906 = sbr.rel (%p10904) target = $region44
    $region43: #{gravnet_forward.1} parent=5 // pred_region
      %s10907 = ssub.s32 %s10, 2
      // Predicated region
      $region45: #{gravnet_forward.1} parent=43 // pred_check
        %p10908 = pneg %p128
      $region46: #{gravnet_forward.1} parent=43 // pred_check_branch
        %10910 = sbr.rel (%p10908) target = $region48
      $region47: #{gravnet_forward.1} parent=43 // pred_region
        %p10911 = scmp.lt.s32.totalorder %s16, 1
        %s10912 = scalar_select %p10911, %s16, 1
        %s10913 = smul.addr %s10912, 8
        %s10914 = smul.addr %s10913, 8
        %s10915 = scalar_lea.vmem %s4, %s10914
      $region48: #{gravnet_forward.1} parent=43 // pred_fallthru
        _
    $region44: #{gravnet_forward.1} parent=5 // pred_fallthru
      _
  $region6: #{gravnet_forward.1} parent=0 // loop_footer
    %s14 = sadd.s32 1, %s10
  $region7: #{gravnet_forward.1} parent=0 // loop_footer_branch
    %9 = sbr.rel target = $region3
  $region8: #{gravnet_forward.1} parent=0 // loop_exit
    _

</llo_original>
